<compile_context>
chip_gen: v7x
topology: tpu7x:2x2x1
jax: 0.10.0
libtpu: 0.0.40
codegen_flags: <defaults>
</compile_context>

<pallas_src>
import functools

import jax
import jax.numpy as jnp
import numpy as np
from jax.experimental import pallas as pl
from jax.experimental.pallas import tpu as pltpu


# ---------------------------------------------------------------------------
# In-kernel GroupNorm on a (HW, C) tile of one sample (f32 statistics).
# ---------------------------------------------------------------------------
def _group_norm(a, red, bcast, gamma, beta, group_size, eps):
    """red: (C, G) one-hot reduce matrix, bcast: (G, C) broadcast matrix.
    red/bcast = None => per-channel groups (G == C, group_size == 1).
    Biased variance (E[x^2] - E[x]^2), matching nn.GroupNorm."""
    hw = a.shape[0]
    s = jnp.sum(a, axis=0, keepdims=True)          # (1, C)
    sq = jnp.sum(a * a, axis=0, keepdims=True)     # (1, C)
    if red is not None:
        s = jnp.dot(jnp.dot(s, red, preferred_element_type=jnp.float32),
                    bcast, preferred_element_type=jnp.float32)
        sq = jnp.dot(jnp.dot(sq, red, preferred_element_type=jnp.float32),
                     bcast, preferred_element_type=jnp.float32)
    denom = float(hw * group_size)
    mean = s / denom
    var = sq / denom - mean * mean
    inv = jax.lax.rsqrt(var + eps)
    return (a - mean) * (inv * gamma) + beta


# ---------------------------------------------------------------------------
# Pallas kernel: one full PreActBottleneck forward for one batch element.
# ---------------------------------------------------------------------------
def _preact_bottleneck_kernel(*refs, H, W, cin, cmid, cout, has_downsample):
    if has_downsample:
        (x_ref, w1_ref, w2_ref, w3_ref, wd_ref,
         g1_ref, b1_ref, g2_ref, b2_ref, g3_ref, b3_ref, gp_ref, bp_ref,
         rmid_ref, bmid_ref, rout_ref, bout_ref,
         o_ref, pad_ref) = refs
    else:
        (x_ref, w1_ref, w2_ref, w3_ref,
         g1_ref, b1_ref, g2_ref, b2_ref, g3_ref, b3_ref,
         rmid_ref, bmid_ref, rout_ref, bout_ref,
         o_ref, pad_ref) = refs

    HW = H * W
    # bf16 operands feed the MXU; accumulate in f32.
    xb = x_ref[0].astype(jnp.bfloat16)                                   # (HW, cin)

    # ----- conv1 (1x1, pre-standardized weight) + gn1 + relu -----
    y = jnp.dot(xb, w1_ref[...], preferred_element_type=jnp.float32)     # (HW, cmid)
    y = _group_norm(y, rmid_ref[...], bmid_ref[...], g1_ref[...], b1_ref[...],
                    cmid // 32, 1e-6)
    y = jnp.maximum(y, 0.0)

    # ----- conv2 (3x3, pad=1, stride=1) + gn2 + relu -----
    # Interior of the padded scratch is fully rewritten every grid step; only
    # the one-pixel halo ring is zeroed (cheap).  This stays correct under
    # "parallel" (megacore) sharding of the batch axis.
    pad_ref[1:H + 1, 1:W + 1, :] = y.reshape(H, W, cmid)
    zrow = jnp.zeros((1, W + 2, cmid), jnp.float32)
    zcol = jnp.zeros((H, 1, cmid), jnp.float32)
    pad_ref[0:1, :, :] = zrow
    pad_ref[H + 1:H + 2, :, :] = zrow
    pad_ref[1:H + 1, 0:1, :] = zcol
    pad_ref[1:H + 1, W + 1:W + 2, :] = zcol

    # 9 statically-unrolled K=cmid matmuls (one per tap); f32 accumulator.
    acc = jnp.zeros((HW, cmid), jnp.float32)
    for kh in range(3):
        for kw in range(3):
            win = pad_ref[kh:kh + H, kw:kw + W, :]                        # (H, W, cmid)
            acc = acc + jnp.dot(
                win.reshape(HW, cmid).astype(jnp.bfloat16),
                w2_ref[kh * 3 + kw],
                preferred_element_type=jnp.float32)
    y = _group_norm(acc, rmid_ref[...], bmid_ref[...], g2_ref[...], b2_ref[...],
                    cmid // 32, 1e-6)
    y = jnp.maximum(y, 0.0)

    # ----- conv3 (1x1) + gn3 -----
    y = jnp.dot(y.astype(jnp.bfloat16), w3_ref[...],
                preferred_element_type=jnp.float32)                       # (HW, cout)
    y = _group_norm(y, rout_ref[...], bout_ref[...], g3_ref[...], b3_ref[...],
                    cout // 32, 1e-6)

    # ----- residual branch -----
    if has_downsample:
        r = jnp.dot(xb, wd_ref[...], preferred_element_type=jnp.float32)  # (HW, cout)
        # gn_proj = GroupNorm(cout, cout): per-channel groups, default eps 1e-5.
        r = _group_norm(r, None, None, gp_ref[...], bp_ref[...], 1, 1e-5)
    else:
        r = x_ref[0].astype(jnp.float32)

    o_ref[0] = jnp.maximum(r + y, 0.0).astype(o_ref.dtype)


# ---------------------------------------------------------------------------
# Wrapper (weight standardization + layout prep hoisted out of the kernel).
# ---------------------------------------------------------------------------
def _std_weight(w, axes):
    """torch.var_mean(w, dim=[1,2,3], unbiased=False) semantics on fan-in axes."""
    m = jnp.mean(w, axis=axes, keepdims=True)
    v = jnp.mean((w - m) ** 2, axis=axes, keepdims=True)
    return (w - m) / jnp.sqrt(v + 1e-5)


def _reduce_broadcast_matrices(C, G):
    gs = C // G
    idx = np.arange(C) // gs
    red = (idx[:, None] == np.arange(G)[None, :]).astype(np.float32)      # (C, G)
    return jnp.asarray(red), jnp.asarray(red.T)                           # (C,G), (G,C)


def preact_bottleneck(x, params, *, cin, cout, cmid, stride=1):
    """x: (N, H, W, cin) float32 NHWC.  Returns (N, H, W, cout)."""
    # TODO(synk): stride > 1 (strided 3x3 conv + strided downsample) not implemented.
    assert stride == 1
    N, H, W, C = x.shape
    assert C == cin
    assert cmid % 32 == 0 and cout % 32 == 0
    has_downsample = (stride != 1) or (cin != cout)
    HW = H * W

    # --- grid-invariant prep, done once outside the kernel ---
    w1 = _std_weight(params["w1"], (0,)).astype(jnp.bfloat16)             # (cin, cmid)
    w3 = _std_weight(params["w3"], (0,)).astype(jnp.bfloat16)             # (cmid, cout)
    w2 = _std_weight(params["w2"], (0, 1)).astype(jnp.bfloat16)           # (9, cmid, cmid)

    rmid, bmid = _reduce_broadcast_matrices(cmid, 32)
    rout, bout = _reduce_broadcast_matrices(cout, 32)

    x2 = x.reshape(N, HW, cin)

    kernel = functools.partial(
        _preact_bottleneck_kernel,
        H=H, W=W, cin=cin, cmid=cmid, cout=cout, has_downsample=has_downsample,
    )

    def full(shape):
        nd = len(shape)
        return pl.BlockSpec(shape, lambda n: (0,) * nd)

    in_specs = [
        pl.BlockSpec((1, HW, cin), lambda n: (n, 0, 0)),   # x
        full((cin, cmid)),            # w1
        full((9, cmid, cmid)),        # w2
        full((cmid, cout)),           # w3
    ]
    args = [x2, w1, w2, w3]

    if has_downsample:
        wd = _std_weight(params["wd"], (0,)).astype(jnp.bfloat16)         # (cin, cout)
        in_specs.append(full((cin, cout)))
        args.append(wd)

    gn_specs = [full((1, cmid))] * 4 + [full((1, cout))] * 2
    gn_args = [params["g1"], params["b1"], params["g2"], params["b2"],
               params["g3"], params["b3"]]
    if has_downsample:
        gn_specs += [full((1, cout))] * 2
        gn_args += [params["gp"], params["bp"]]
    in_specs += gn_specs
    args += gn_args

    in_specs += [full((cmid, 32)), full((32, cmid)),
                 full((cout, 32)), full((32, cout))]
    args += [rmid, bmid, rout, bout]

    out = pl.pallas_call(
        kernel,
        out_shape=jax.ShapeDtypeStruct((N, HW, cout), x.dtype),
        grid_spec=pltpu.PrefetchScalarGridSpec(
            num_scalar_prefetch=0,
            grid=(N,),
            in_specs=in_specs,
            out_specs=pl.BlockSpec((1, HW, cout), lambda n: (n, 0, 0)),
            scratch_shapes=[pltpu.VMEM((H + 2, W + 2, cmid), jnp.float32)],
        ),
        compiler_params=pltpu.CompilerParams(
            dimension_semantics=("parallel",),       # batch axis -> megacore
        ),
    )(*args)
    return out.reshape(N, H, W, cout)


# ---------------------------------------------------------------------------
# Pure-JAX reference (mirrors the PyTorch forward) for verification.
# ---------------------------------------------------------------------------
def _ref_std_conv(x, w_hwio, pad):
    m = jnp.mean(w_hwio, axis=(0, 1, 2), keepdims=True)
    v = jnp.mean((w_hwio - m) ** 2, axis=(0, 1, 2), keepdims=True)
    w = (w_hwio - m) / jnp.sqrt(v + 1e-5)
    return jax.lax.conv_general_dilated(
        x, w, (1, 1), [(pad, pad), (pad, pad)],
        dimension_numbers=("NHWC", "HWIO", "NHWC"))


def _ref_gn(x, G, gamma, beta, eps):
    N, H, W, C = x.shape
    xg = x.reshape(N, H, W, G, C // G)
    m = jnp.mean(xg, axis=(1, 2, 4), keepdims=True)
    v = jnp.mean((xg - m) ** 2, axis=(1, 2, 4), keepdims=True)
    xn = ((xg - m) / jnp.sqrt(v + eps)).reshape(N, H, W, C)
    return xn * gamma.reshape(1, 1, 1, C) + beta.reshape(1, 1, 1, C)


def _reference(x, p, cin, cout, cmid):
    w1 = p["w1"].reshape(1, 1, cin, cmid)
    w2 = p["w2"].reshape(3, 3, cmid, cmid)
    w3 = p["w3"].reshape(1, 1, cmid, cout)
    wd = p["wd"].reshape(1, 1, cin, cout)

    residual = _ref_std_conv(x, wd, 0)
    residual = _ref_gn(residual, cout, p["gp"][0], p["bp"][0], 1e-5)

    y = jax.nn.relu(_ref_gn(_ref_std_conv(x, w1, 0), 32, p["g1"][0], p["b1"][0], 1e-6))
    y = jax.nn.relu(_ref_gn(_ref_std_conv(y, w2, 1), 32, p["g2"][0], p["b2"][0], 1e-6))
    y = _ref_gn(_ref_std_conv(y, w3, 0), 32, p["g3"][0], p["b3"][0], 1e-6)
    return jax.nn.relu(residual + y)


# ---------------------------------------------------------------------------
if __name__ == "__main__":
    # Small shapes consistent with the module (GroupNorm(32, .) needs C % 32 == 0).
    N, H, W = 2, 16, 16
    cin, cmid, cout = 32, 32, 64        # cin != cout -> downsample + gn_proj branch

    key = jax.random.PRNGKey(0)
    ks = jax.random.split(key, 16)
    x = jax.random.normal(ks[0], (N, H, W, cin), jnp.float32)

    params = {
        "w1": 0.1 * jax.random.normal(ks[1], (cin, cmid), jnp.float32),
        "w2": 0.1 * jax.random.normal(ks[2], (9, cmid, cmid), jnp.float32),
        "w3": 0.1 * jax.random.normal(ks[3], (cmid, cout), jnp.float32),
        "wd": 0.1 * jax.random.normal(ks[4], (cin, cout), jnp.float32),
        "g1": 1.0 + 0.1 * jax.random.normal(ks[5], (1, cmid), jnp.float32),
        "b1": 0.1 * jax.random.normal(ks[6], (1, cmid), jnp.float32),
        "g2": 1.0 + 0.1 * jax.random.normal(ks[7], (1, cmid), jnp.float32),
        "b2": 0.1 * jax.random.normal(ks[8], (1, cmid), jnp.float32),
        "g3": 1.0 + 0.1 * jax.random.normal(ks[9], (1, cout), jnp.float32),
        "b3": 0.1 * jax.random.normal(ks[10], (1, cout), jnp.float32),
        "gp": 1.0 + 0.1 * jax.random.normal(ks[11], (1, cout), jnp.float32),
        "bp": 0.1 * jax.random.normal(ks[12], (1, cout), jnp.float32),
    }

    out = preact_bottleneck(x, params, cin=cin, cout=cout, cmid=cmid, stride=1)
    out = jax.block_until_ready(out)

    ref = jax.block_until_ready(_reference(x, params, cin, cout, cmid))
    # Kernel matmuls use bf16 MXU operands (f32 accumulation); compare against
    # the pure-f32 reference with a bf16-appropriate tolerance.
    np.testing.assert_allclose(np.asarray(out), np.asarray(ref), rtol=3e-2, atol=3e-2)

    print("KERNEL_OK")
</pallas_src>

<mosaic_0001>
module attributes {stable_mosaic.version = 11 : i64} {
  func.func @_preact_bottleneck_kernel(%arg0: i32, %arg1: memref<1x256x32xf32, #tpu.memory_space<vmem>>, %arg2: memref<32x32xbf16, #tpu.memory_space<vmem>>, %arg3: memref<9x32x32xbf16, #tpu.memory_space<vmem>>, %arg4: memref<32x64xbf16, #tpu.memory_space<vmem>>, %arg5: memref<32x64xbf16, #tpu.memory_space<vmem>>, %arg6: memref<1x32xf32, #tpu.memory_space<vmem>>, %arg7: memref<1x32xf32, #tpu.memory_space<vmem>>, %arg8: memref<1x32xf32, #tpu.memory_space<vmem>>, %arg9: memref<1x32xf32, #tpu.memory_space<vmem>>, %arg10: memref<1x64xf32, #tpu.memory_space<vmem>>, %arg11: memref<1x64xf32, #tpu.memory_space<vmem>>, %arg12: memref<1x64xf32, #tpu.memory_space<vmem>>, %arg13: memref<1x64xf32, #tpu.memory_space<vmem>>, %arg14: memref<32x32xf32, #tpu.memory_space<vmem>>, %arg15: memref<32x32xf32, #tpu.memory_space<vmem>>, %arg16: memref<64x32xf32, #tpu.memory_space<vmem>>, %arg17: memref<32x64xf32, #tpu.memory_space<vmem>>, %arg18: memref<1x256x64xf32, #tpu.memory_space<vmem>>, %arg19: memref<18x18x32xf32, #tpu.memory_space<vmem>>) attributes {dimension_semantics = [#tpu.dimension_semantics<parallel>], iteration_bounds = array<i64: 2>, scalar_prefetch = 0 : i64, scratch_operands = 1 : i64, tpu.core_type = #tpu.core_type<tc>, window_params = [{transform_indices = @transform_0, window_bounds = array<i64: 1, 256, 32>}, {pipeline_mode = #tpu.pipeline_mode<synchronous>, transform_indices = @transform_1, window_bounds = array<i64: 32, 32>}, {pipeline_mode = #tpu.pipeline_mode<synchronous>, transform_indices = @transform_2, window_bounds = array<i64: 9, 32, 32>}, {pipeline_mode = #tpu.pipeline_mode<synchronous>, transform_indices = @transform_3, window_bounds = array<i64: 32, 64>}, {pipeline_mode = #tpu.pipeline_mode<synchronous>, transform_indices = @transform_4, window_bounds = array<i64: 32, 64>}, {pipeline_mode = #tpu.pipeline_mode<synchronous>, transform_indices = @transform_5, window_bounds = array<i64: 1, 32>}, {pipeline_mode = #tpu.pipeline_mode<synchronous>, transform_indices = @transform_6, window_bounds = array<i64: 1, 32>}, {pipeline_mode = #tpu.pipeline_mode<synchronous>, transform_indices = @transform_7, window_bounds = array<i64: 1, 32>}, {pipeline_mode = #tpu.pipeline_mode<synchronous>, transform_indices = @transform_8, window_bounds = array<i64: 1, 32>}, {pipeline_mode = #tpu.pipeline_mode<synchronous>, transform_indices = @transform_9, window_bounds = array<i64: 1, 64>}, {pipeline_mode = #tpu.pipeline_mode<synchronous>, transform_indices = @transform_10, window_bounds = array<i64: 1, 64>}, {pipeline_mode = #tpu.pipeline_mode<synchronous>, transform_indices = @transform_11, window_bounds = array<i64: 1, 64>}, {pipeline_mode = #tpu.pipeline_mode<synchronous>, transform_indices = @transform_12, window_bounds = array<i64: 1, 64>}, {pipeline_mode = #tpu.pipeline_mode<synchronous>, transform_indices = @transform_13, window_bounds = array<i64: 32, 32>}, {pipeline_mode = #tpu.pipeline_mode<synchronous>, transform_indices = @transform_14, window_bounds = array<i64: 32, 32>}, {pipeline_mode = #tpu.pipeline_mode<synchronous>, transform_indices = @transform_15, window_bounds = array<i64: 64, 32>}, {pipeline_mode = #tpu.pipeline_mode<synchronous>, transform_indices = @transform_16, window_bounds = array<i64: 32, 64>}, {transform_indices = @transform_17, window_bounds = array<i64: 1, 256, 64>}]} {
    %c0 = arith.constant 0 : index
    %c0_0 = arith.constant 0 : index
    %c0_1 = arith.constant 0 : index
    %0 = vector.load %arg1[%c0, %c0_0, %c0_1] : memref<1x256x32xf32, #tpu.memory_space<vmem>>, vector<1x256x32xf32>
    %1 = vector.shape_cast %0 : vector<1x256x32xf32> to vector<256x32xf32>
    %2 = arith.truncf %1 : vector<256x32xf32> to vector<256x32xbf16>
    %c0_2 = arith.constant 0 : index
    %c0_3 = arith.constant 0 : index
    %3 = vector.load %arg2[%c0_2, %c0_3] : memref<32x32xbf16, #tpu.memory_space<vmem>>, vector<32x32xbf16>
    %cst = arith.constant dense<0.000000e+00> : vector<256x32xf32>
    %4 = tpu.matmul %2, %3, %cst {dimension_numbers = #tpu.dot_dimension_numbers<[1], [0], [0], [1], [0, 0, 1, 1], [], []>} : vector<256x32xbf16>, vector<32x32xbf16>, vector<256x32xf32> -> vector<256x32xf32>
    %c0_4 = arith.constant 0 : index
    %c0_5 = arith.constant 0 : index
    %5 = vector.load %arg14[%c0_4, %c0_5] : memref<32x32xf32, #tpu.memory_space<vmem>>, vector<32x32xf32>
    %c0_6 = arith.constant 0 : index
    %c0_7 = arith.constant 0 : index
    %6 = vector.load %arg15[%c0_6, %c0_7] : memref<32x32xf32, #tpu.memory_space<vmem>>, vector<32x32xf32>
    %c0_8 = arith.constant 0 : index
    %c0_9 = arith.constant 0 : index
    %7 = vector.load %arg6[%c0_8, %c0_9] : memref<1x32xf32, #tpu.memory_space<vmem>>, vector<1x32xf32>
    %c0_10 = arith.constant 0 : index
    %c0_11 = arith.constant 0 : index
    %8 = vector.load %arg7[%c0_10, %c0_11] : memref<1x32xf32, #tpu.memory_space<vmem>>, vector<1x32xf32>
    %cst_12 = arith.constant dense<0.000000e+00> : vector<32xf32>
    %9 = vector.multi_reduction <add>, %4, %cst_12 [0] : vector<256x32xf32> to vector<32xf32>
    %10 = vector.shape_cast %9 : vector<32xf32> to vector<1x32xf32>
    %11 = arith.mulf %4, %4 : vector<256x32xf32>
    %cst_13 = arith.constant dense<0.000000e+00> : vector<32xf32>
    %12 = vector.multi_reduction <add>, %11, %cst_13 [0] : vector<256x32xf32> to vector<32xf32>
    %13 = vector.shape_cast %12 : vector<32xf32> to vector<1x32xf32>
    %cst_14 = arith.constant dense<0.000000e+00> : vector<1x32xf32>
    %14 = tpu.matmul %10, %5, %cst_14 {dimension_numbers = #tpu.dot_dimension_numbers<[1], [0], [0], [1], [0, 0, 1, 1], [], []>} : vector<1x32xf32>, vector<32x32xf32>, vector<1x32xf32> -> vector<1x32xf32>
    %cst_15 = arith.constant dense<0.000000e+00> : vector<1x32xf32>
    %15 = tpu.matmul %14, %6, %cst_15 {dimension_numbers = #tpu.dot_dimension_numbers<[1], [0], [0], [1], [0, 0, 1, 1], [], []>} : vector<1x32xf32>, vector<32x32xf32>, vector<1x32xf32> -> vector<1x32xf32>
    %cst_16 = arith.constant dense<0.000000e+00> : vector<1x32xf32>
    %16 = tpu.matmul %13, %5, %cst_16 {dimension_numbers = #tpu.dot_dimension_numbers<[1], [0], [0], [1], [0, 0, 1, 1], [], []>} : vector<1x32xf32>, vector<32x32xf32>, vector<1x32xf32> -> vector<1x32xf32>
    %cst_17 = arith.constant dense<0.000000e+00> : vector<1x32xf32>
    %17 = tpu.matmul %16, %6, %cst_17 {dimension_numbers = #tpu.dot_dimension_numbers<[1], [0], [0], [1], [0, 0, 1, 1], [], []>} : vector<1x32xf32>, vector<32x32xf32>, vector<1x32xf32> -> vector<1x32xf32>
    %cst_18 = arith.constant 2.560000e+02 : f32
    %18 = vector.broadcast %cst_18 : f32 to vector<1x32xf32>
    %19 = arith.divf %15, %18 : vector<1x32xf32>
    %cst_19 = arith.constant 2.560000e+02 : f32
    %20 = vector.broadcast %cst_19 : f32 to vector<1x32xf32>
    %21 = arith.divf %17, %20 : vector<1x32xf32>
    %22 = arith.mulf %19, %19 : vector<1x32xf32>
    %23 = arith.subf %21, %22 : vector<1x32xf32>
    %cst_20 = arith.constant 9.99999997E-7 : f32
    %24 = vector.broadcast %cst_20 : f32 to vector<1x32xf32>
    %25 = arith.addf %23, %24 : vector<1x32xf32>
    %26 = math.rsqrt %25 : vector<1x32xf32>
    %27 = vector.broadcast %19 : vector<1x32xf32> to vector<256x32xf32>
    %28 = arith.subf %4, %27 : vector<256x32xf32>
    %29 = arith.mulf %26, %7 : vector<1x32xf32>
    %30 = vector.broadcast %29 : vector<1x32xf32> to vector<256x32xf32>
    %31 = arith.mulf %28, %30 : vector<256x32xf32>
    %32 = vector.broadcast %8 : vector<1x32xf32> to vector<256x32xf32>
    %33 = arith.addf %31, %32 : vector<256x32xf32>
    %cst_21 = arith.constant 0.000000e+00 : f32
    %34 = vector.broadcast %cst_21 : f32 to vector<256x32xf32>
    %35 = arith.maximumf %33, %34 : vector<256x32xf32>
    %36 = vector.shape_cast %35 : vector<256x32xf32> to vector<16x16x32xf32>
    %c1 = arith.constant 1 : index
    %c1_22 = arith.constant 1 : index
    %c0_23 = arith.constant 0 : index
    %37 = vector.load %arg19[%c1, %c1_22, %c0_23] : memref<18x18x32xf32, #tpu.memory_space<vmem>>, vector<16x16x32xf32>
    tpu.vector_store %arg19[%c1, %c1_22, %c0_23], %36 {strides = array<i32>} : memref<18x18x32xf32, #tpu.memory_space<vmem>>, vector<16x16x32xf32>,
    %cst_24 = arith.constant 0.000000e+00 : f32
    %38 = vector.broadcast %cst_24 : f32 to vector<1x18x32xf32>
    %cst_25 = arith.constant 0.000000e+00 : f32
    %39 = vector.broadcast %cst_25 : f32 to vector<16x1x32xf32>
    %c0_26 = arith.constant 0 : index
    %c0_27 = arith.constant 0 : index
    %c0_28 = arith.constant 0 : index
    %40 = vector.load %arg19[%c0_26, %c0_27, %c0_28] : memref<18x18x32xf32, #tpu.memory_space<vmem>>, vector<1x18x32xf32>
    tpu.vector_store %arg19[%c0_26, %c0_27, %c0_28], %38 {strides = array<i32>} : memref<18x18x32xf32, #tpu.memory_space<vmem>>, vector<1x18x32xf32>,
    %c17 = arith.constant 17 : index
    %c0_29 = arith.constant 0 : index
    %c0_30 = arith.constant 0 : index
    %41 = vector.load %arg19[%c17, %c0_29, %c0_30] : memref<18x18x32xf32, #tpu.memory_space<vmem>>, vector<1x18x32xf32>
    tpu.vector_store %arg19[%c17, %c0_29, %c0_30], %38 {strides = array<i32>} : memref<18x18x32xf32, #tpu.memory_space<vmem>>, vector<1x18x32xf32>,
    %c1_31 = arith.constant 1 : index
    %c0_32 = arith.constant 0 : index
    %c0_33 = arith.constant 0 : index
    %42 = vector.load %arg19[%c1_31, %c0_32, %c0_33] : memref<18x18x32xf32, #tpu.memory_space<vmem>>, vector<16x1x32xf32>
    tpu.vector_store %arg19[%c1_31, %c0_32, %c0_33], %39 {strides = array<i32>} : memref<18x18x32xf32, #tpu.memory_space<vmem>>, vector<16x1x32xf32>,
    %c1_34 = arith.constant 1 : index
    %c17_35 = arith.constant 17 : index
    %c0_36 = arith.constant 0 : index
    %43 = vector.load %arg19[%c1_34, %c17_35, %c0_36] : memref<18x18x32xf32, #tpu.memory_space<vmem>>, vector<16x1x32xf32>
    tpu.vector_store %arg19[%c1_34, %c17_35, %c0_36], %39 {strides = array<i32>} : memref<18x18x32xf32, #tpu.memory_space<vmem>>, vector<16x1x32xf32>,
    %cst_37 = arith.constant 0.000000e+00 : f32
    %44 = vector.broadcast %cst_37 : f32 to vector<256x32xf32>
    %c0_38 = arith.constant 0 : index
    %c0_39 = arith.constant 0 : index
    %c0_40 = arith.constant 0 : index
    %45 = vector.load %arg19[%c0_38, %c0_39, %c0_40] : memref<18x18x32xf32, #tpu.memory_space<vmem>>, vector<16x16x32xf32>
    %46 = vector.shape_cast %45 : vector<16x16x32xf32> to vector<256x32xf32>
    %47 = arith.truncf %46 : vector<256x32xf32> to vector<256x32xbf16>
    %c0_41 = arith.constant 0 : index
    %c0_42 = arith.constant 0 : index
    %c0_43 = arith.constant 0 : index
    %48 = vector.load %arg3[%c0_41, %c0_42, %c0_43] : memref<9x32x32xbf16, #tpu.memory_space<vmem>>, vector<1x32x32xbf16>
    %49 = vector.shape_cast %48 : vector<1x32x32xbf16> to vector<32x32xbf16>
    %cst_44 = arith.constant dense<0.000000e+00> : vector<256x32xf32>
    %50 = tpu.matmul %47, %49, %cst_44 {dimension_numbers = #tpu.dot_dimension_numbers<[1], [0], [0], [1], [0, 0, 1, 1], [], []>} : vector<256x32xbf16>, vector<32x32xbf16>, vector<256x32xf32> -> vector<256x32xf32>
    %51 = arith.addf %44, %50 : vector<256x32xf32>
    %c0_45 = arith.constant 0 : index
    %c1_46 = arith.constant 1 : index
    %c0_47 = arith.constant 0 : index
    %52 = vector.load %arg19[%c0_45, %c1_46, %c0_47] : memref<18x18x32xf32, #tpu.memory_space<vmem>>, vector<16x16x32xf32>
    %53 = vector.shape_cast %52 : vector<16x16x32xf32> to vector<256x32xf32>
    %54 = arith.truncf %53 : vector<256x32xf32> to vector<256x32xbf16>
    %c1_48 = arith.constant 1 : index
    %c0_49 = arith.constant 0 : index
    %c0_50 = arith.constant 0 : index
    %55 = vector.load %arg3[%c1_48, %c0_49, %c0_50] : memref<9x32x32xbf16, #tpu.memory_space<vmem>>, vector<1x32x32xbf16>
    %56 = vector.shape_cast %55 : vector<1x32x32xbf16> to vector<32x32xbf16>
    %cst_51 = arith.constant dense<0.000000e+00> : vector<256x32xf32>
    %57 = tpu.matmul %54, %56, %cst_51 {dimension_numbers = #tpu.dot_dimension_numbers<[1], [0], [0], [1], [0, 0, 1, 1], [], []>} : vector<256x32xbf16>, vector<32x32xbf16>, vector<256x32xf32> -> vector<256x32xf32>
    %58 = arith.addf %51, %57 : vector<256x32xf32>
    %c0_52 = arith.constant 0 : index
    %c2 = arith.constant 2 : index
    %c0_53 = arith.constant 0 : index
    %59 = vector.load %arg19[%c0_52, %c2, %c0_53] : memref<18x18x32xf32, #tpu.memory_space<vmem>>, vector<16x16x32xf32>
    %60 = vector.shape_cast %59 : vector<16x16x32xf32> to vector<256x32xf32>
    %61 = arith.truncf %60 : vector<256x32xf32> to vector<256x32xbf16>
    %c2_54 = arith.constant 2 : index
    %c0_55 = arith.constant 0 : index
    %c0_56 = arith.constant 0 : index
    %62 = vector.load %arg3[%c2_54, %c0_55, %c0_56] : memref<9x32x32xbf16, #tpu.memory_space<vmem>>, vector<1x32x32xbf16>
    %63 = vector.shape_cast %62 : vector<1x32x32xbf16> to vector<32x32xbf16>
    %cst_57 = arith.constant dense<0.000000e+00> : vector<256x32xf32>
    %64 = tpu.matmul %61, %63, %cst_57 {dimension_numbers = #tpu.dot_dimension_numbers<[1], [0], [0], [1], [0, 0, 1, 1], [], []>} : vector<256x32xbf16>, vector<32x32xbf16>, vector<256x32xf32> -> vector<256x32xf32>
    %65 = arith.addf %58, %64 : vector<256x32xf32>
    %c1_58 = arith.constant 1 : index
    %c0_59 = arith.constant 0 : index
    %c0_60 = arith.constant 0 : index
    %66 = vector.load %arg19[%c1_58, %c0_59, %c0_60] : memref<18x18x32xf32, #tpu.memory_space<vmem>>, vector<16x16x32xf32>
    %67 = vector.shape_cast %66 : vector<16x16x32xf32> to vector<256x32xf32>
    %68 = arith.truncf %67 : vector<256x32xf32> to vector<256x32xbf16>
    %c3 = arith.constant 3 : index
    %c0_61 = arith.constant 0 : index
    %c0_62 = arith.constant 0 : index
    %69 = vector.load %arg3[%c3, %c0_61, %c0_62] : memref<9x32x32xbf16, #tpu.memory_space<vmem>>, vector<1x32x32xbf16>
    %70 = vector.shape_cast %69 : vector<1x32x32xbf16> to vector<32x32xbf16>
    %cst_63 = arith.constant dense<0.000000e+00> : vector<256x32xf32>
    %71 = tpu.matmul %68, %70, %cst_63 {dimension_numbers = #tpu.dot_dimension_numbers<[1], [0], [0], [1], [0, 0, 1, 1], [], []>} : vector<256x32xbf16>, vector<32x32xbf16>, vector<256x32xf32> -> vector<256x32xf32>
    %72 = arith.addf %65, %71 : vector<256x32xf32>
    %c1_64 = arith.constant 1 : index
    %c1_65 = arith.constant 1 : index
    %c0_66 = arith.constant 0 : index
    %73 = vector.load %arg19[%c1_64, %c1_65, %c0_66] : memref<18x18x32xf32, #tpu.memory_space<vmem>>, vector<16x16x32xf32>
    %74 = vector.shape_cast %73 : vector<16x16x32xf32> to vector<256x32xf32>
    %75 = arith.truncf %74 : vector<256x32xf32> to vector<256x32xbf16>
    %c4 = arith.constant 4 : index
    %c0_67 = arith.constant 0 : index
    %c0_68 = arith.constant 0 : index
    %76 = vector.load %arg3[%c4, %c0_67, %c0_68] : memref<9x32x32xbf16, #tpu.memory_space<vmem>>, vector<1x32x32xbf16>
    %77 = vector.shape_cast %76 : vector<1x32x32xbf16> to vector<32x32xbf16>
    %cst_69 = arith.constant dense<0.000000e+00> : vector<256x32xf32>
    %78 = tpu.matmul %75, %77, %cst_69 {dimension_numbers = #tpu.dot_dimension_numbers<[1], [0], [0], [1], [0, 0, 1, 1], [], []>} : vector<256x32xbf16>, vector<32x32xbf16>, vector<256x32xf32> -> vector<256x32xf32>
    %79 = arith.addf %72, %78 : vector<256x32xf32>
    %c1_70 = arith.constant 1 : index
    %c2_71 = arith.constant 2 : index
    %c0_72 = arith.constant 0 : index
    %80 = vector.load %arg19[%c1_70, %c2_71, %c0_72] : memref<18x18x32xf32, #tpu.memory_space<vmem>>, vector<16x16x32xf32>
    %81 = vector.shape_cast %80 : vector<16x16x32xf32> to vector<256x32xf32>
    %82 = arith.truncf %81 : vector<256x32xf32> to vector<256x32xbf16>
    %c5 = arith.constant 5 : index
    %c0_73 = arith.constant 0 : index
    %c0_74 = arith.constant 0 : index
    %83 = vector.load %arg3[%c5, %c0_73, %c0_74] : memref<9x32x32xbf16, #tpu.memory_space<vmem>>, vector<1x32x32xbf16>
    %84 = vector.shape_cast %83 : vector<1x32x32xbf16> to vector<32x32xbf16>
    %cst_75 = arith.constant dense<0.000000e+00> : vector<256x32xf32>
    %85 = tpu.matmul %82, %84, %cst_75 {dimension_numbers = #tpu.dot_dimension_numbers<[1], [0], [0], [1], [0, 0, 1, 1], [], []>} : vector<256x32xbf16>, vector<32x32xbf16>, vector<256x32xf32> -> vector<256x32xf32>
    %86 = arith.addf %79, %85 : vector<256x32xf32>
    %c2_76 = arith.constant 2 : index
    %c0_77 = arith.constant 0 : index
    %c0_78 = arith.constant 0 : index
    %87 = vector.load %arg19[%c2_76, %c0_77, %c0_78] : memref<18x18x32xf32, #tpu.memory_space<vmem>>, vector<16x16x32xf32>
    %88 = vector.shape_cast %87 : vector<16x16x32xf32> to vector<256x32xf32>
    %89 = arith.truncf %88 : vector<256x32xf32> to vector<256x32xbf16>
    %c6 = arith.constant 6 : index
    %c0_79 = arith.constant 0 : index
    %c0_80 = arith.constant 0 : index
    %90 = vector.load %arg3[%c6, %c0_79, %c0_80] : memref<9x32x32xbf16, #tpu.memory_space<vmem>>, vector<1x32x32xbf16>
    %91 = vector.shape_cast %90 : vector<1x32x32xbf16> to vector<32x32xbf16>
    %cst_81 = arith.constant dense<0.000000e+00> : vector<256x32xf32>
    %92 = tpu.matmul %89, %91, %cst_81 {dimension_numbers = #tpu.dot_dimension_numbers<[1], [0], [0], [1], [0, 0, 1, 1], [], []>} : vector<256x32xbf16>, vector<32x32xbf16>, vector<256x32xf32> -> vector<256x32xf32>
    %93 = arith.addf %86, %92 : vector<256x32xf32>
    %c2_82 = arith.constant 2 : index
    %c1_83 = arith.constant 1 : index
    %c0_84 = arith.constant 0 : index
    %94 = vector.load %arg19[%c2_82, %c1_83, %c0_84] : memref<18x18x32xf32, #tpu.memory_space<vmem>>, vector<16x16x32xf32>
    %95 = vector.shape_cast %94 : vector<16x16x32xf32> to vector<256x32xf32>
    %96 = arith.truncf %95 : vector<256x32xf32> to vector<256x32xbf16>
    %c7 = arith.constant 7 : index
    %c0_85 = arith.constant 0 : index
    %c0_86 = arith.constant 0 : index
    %97 = vector.load %arg3[%c7, %c0_85, %c0_86] : memref<9x32x32xbf16, #tpu.memory_space<vmem>>, vector<1x32x32xbf16>
    %98 = vector.shape_cast %97 : vector<1x32x32xbf16> to vector<32x32xbf16>
    %cst_87 = arith.constant dense<0.000000e+00> : vector<256x32xf32>
    %99 = tpu.matmul %96, %98, %cst_87 {dimension_numbers = #tpu.dot_dimension_numbers<[1], [0], [0], [1], [0, 0, 1, 1], [], []>} : vector<256x32xbf16>, vector<32x32xbf16>, vector<256x32xf32> -> vector<256x32xf32>
    %100 = arith.addf %93, %99 : vector<256x32xf32>
    %c2_88 = arith.constant 2 : index
    %c2_89 = arith.constant 2 : index
    %c0_90 = arith.constant 0 : index
    %101 = vector.load %arg19[%c2_88, %c2_89, %c0_90] : memref<18x18x32xf32, #tpu.memory_space<vmem>>, vector<16x16x32xf32>
    %102 = vector.shape_cast %101 : vector<16x16x32xf32> to vector<256x32xf32>
    %103 = arith.truncf %102 : vector<256x32xf32> to vector<256x32xbf16>
    %c8 = arith.constant 8 : index
    %c0_91 = arith.constant 0 : index
    %c0_92 = arith.constant 0 : index
    %104 = vector.load %arg3[%c8, %c0_91, %c0_92] : memref<9x32x32xbf16, #tpu.memory_space<vmem>>, vector<1x32x32xbf16>
    %105 = vector.shape_cast %104 : vector<1x32x32xbf16> to vector<32x32xbf16>
    %cst_93 = arith.constant dense<0.000000e+00> : vector<256x32xf32>
    %106 = tpu.matmul %103, %105, %cst_93 {dimension_numbers = #tpu.dot_dimension_numbers<[1], [0], [0], [1], [0, 0, 1, 1], [], []>} : vector<256x32xbf16>, vector<32x32xbf16>, vector<256x32xf32> -> vector<256x32xf32>
    %107 = arith.addf %100, %106 : vector<256x32xf32>
    %c0_94 = arith.constant 0 : index
    %c0_95 = arith.constant 0 : index
    %108 = vector.load %arg14[%c0_94, %c0_95] : memref<32x32xf32, #tpu.memory_space<vmem>>, vector<32x32xf32>
    %c0_96 = arith.constant 0 : index
    %c0_97 = arith.constant 0 : index
    %109 = vector.load %arg15[%c0_96, %c0_97] : memref<32x32xf32, #tpu.memory_space<vmem>>, vector<32x32xf32>
    %c0_98 = arith.constant 0 : index
    %c0_99 = arith.constant 0 : index
    %110 = vector.load %arg8[%c0_98, %c0_99] : memref<1x32xf32, #tpu.memory_space<vmem>>, vector<1x32xf32>
    %c0_100 = arith.constant 0 : index
    %c0_101 = arith.constant 0 : index
    %111 = vector.load %arg9[%c0_100, %c0_101] : memref<1x32xf32, #tpu.memory_space<vmem>>, vector<1x32xf32>
    %cst_102 = arith.constant dense<0.000000e+00> : vector<32xf32>
    %112 = vector.multi_reduction <add>, %107, %cst_102 [0] : vector<256x32xf32> to vector<32xf32>
    %113 = vector.shape_cast %112 : vector<32xf32> to vector<1x32xf32>
    %114 = arith.mulf %107, %107 : vector<256x32xf32>
    %cst_103 = arith.constant dense<0.000000e+00> : vector<32xf32>
    %115 = vector.multi_reduction <add>, %114, %cst_103 [0] : vector<256x32xf32> to vector<32xf32>
    %116 = vector.shape_cast %115 : vector<32xf32> to vector<1x32xf32>
    %cst_104 = arith.constant dense<0.000000e+00> : vector<1x32xf32>
    %117 = tpu.matmul %113, %108, %cst_104 {dimension_numbers = #tpu.dot_dimension_numbers<[1], [0], [0], [1], [0, 0, 1, 1], [], []>} : vector<1x32xf32>, vector<32x32xf32>, vector<1x32xf32> -> vector<1x32xf32>
    %cst_105 = arith.constant dense<0.000000e+00> : vector<1x32xf32>
    %118 = tpu.matmul %117, %109, %cst_105 {dimension_numbers = #tpu.dot_dimension_numbers<[1], [0], [0], [1], [0, 0, 1, 1], [], []>} : vector<1x32xf32>, vector<32x32xf32>, vector<1x32xf32> -> vector<1x32xf32>
    %cst_106 = arith.constant dense<0.000000e+00> : vector<1x32xf32>
    %119 = tpu.matmul %116, %108, %cst_106 {dimension_numbers = #tpu.dot_dimension_numbers<[1], [0], [0], [1], [0, 0, 1, 1], [], []>} : vector<1x32xf32>, vector<32x32xf32>, vector<1x32xf32> -> vector<1x32xf32>
    %cst_107 = arith.constant dense<0.000000e+00> : vector<1x32xf32>
    %120 = tpu.matmul %119, %109, %cst_107 {dimension_numbers = #tpu.dot_dimension_numbers<[1], [0], [0], [1], [0, 0, 1, 1], [], []>} : vector<1x32xf32>, vector<32x32xf32>, vector<1x32xf32> -> vector<1x32xf32>
    %cst_108 = arith.constant 2.560000e+02 : f32
    %121 = vector.broadcast %cst_108 : f32 to vector<1x32xf32>
    %122 = arith.divf %118, %121 : vector<1x32xf32>
    %cst_109 = arith.constant 2.560000e+02 : f32
    %123 = vector.broadcast %cst_109 : f32 to vector<1x32xf32>
    %124 = arith.divf %120, %123 : vector<1x32xf32>
    %125 = arith.mulf %122, %122 : vector<1x32xf32>
    %126 = arith.subf %124, %125 : vector<1x32xf32>
    %cst_110 = arith.constant 9.99999997E-7 : f32
    %127 = vector.broadcast %cst_110 : f32 to vector<1x32xf32>
    %128 = arith.addf %126, %127 : vector<1x32xf32>
    %129 = math.rsqrt %128 : vector<1x32xf32>
    %130 = vector.broadcast %122 : vector<1x32xf32> to vector<256x32xf32>
    %131 = arith.subf %107, %130 : vector<256x32xf32>
    %132 = arith.mulf %129, %110 : vector<1x32xf32>
    %133 = vector.broadcast %132 : vector<1x32xf32> to vector<256x32xf32>
    %134 = arith.mulf %131, %133 : vector<256x32xf32>
    %135 = vector.broadcast %111 : vector<1x32xf32> to vector<256x32xf32>
    %136 = arith.addf %134, %135 : vector<256x32xf32>
    %cst_111 = arith.constant 0.000000e+00 : f32
    %137 = vector.broadcast %cst_111 : f32 to vector<256x32xf32>
    %138 = arith.maximumf %136, %137 : vector<256x32xf32>
    %139 = arith.truncf %138 : vector<256x32xf32> to vector<256x32xbf16>
    %c0_112 = arith.constant 0 : index
    %c0_113 = arith.constant 0 : index
    %140 = vector.load %arg4[%c0_112, %c0_113] : memref<32x64xbf16, #tpu.memory_space<vmem>>, vector<32x64xbf16>
    %cst_114 = arith.constant dense<0.000000e+00> : vector<256x64xf32>
    %141 = tpu.matmul %139, %140, %cst_114 {dimension_numbers = #tpu.dot_dimension_numbers<[1], [0], [0], [1], [0, 0, 1, 1], [], []>} : vector<256x32xbf16>, vector<32x64xbf16>, vector<256x64xf32> -> vector<256x64xf32>
    %c0_115 = arith.constant 0 : index
    %c0_116 = arith.constant 0 : index
    %142 = vector.load %arg16[%c0_115, %c0_116] : memref<64x32xf32, #tpu.memory_space<vmem>>, vector<64x32xf32>
    %c0_117 = arith.constant 0 : index
    %c0_118 = arith.constant 0 : index
    %143 = vector.load %arg17[%c0_117, %c0_118] : memref<32x64xf32, #tpu.memory_space<vmem>>, vector<32x64xf32>
    %c0_119 = arith.constant 0 : index
    %c0_120 = arith.constant 0 : index
    %144 = vector.load %arg10[%c0_119, %c0_120] : memref<1x64xf32, #tpu.memory_space<vmem>>, vector<1x64xf32>
    %c0_121 = arith.constant 0 : index
    %c0_122 = arith.constant 0 : index
    %145 = vector.load %arg11[%c0_121, %c0_122] : memref<1x64xf32, #tpu.memory_space<vmem>>, vector<1x64xf32>
    %cst_123 = arith.constant dense<0.000000e+00> : vector<64xf32>
    %146 = vector.multi_reduction <add>, %141, %cst_123 [0] : vector<256x64xf32> to vector<64xf32>
    %147 = vector.shape_cast %146 : vector<64xf32> to vector<1x64xf32>
    %148 = arith.mulf %141, %141 : vector<256x64xf32>
    %cst_124 = arith.constant dense<0.000000e+00> : vector<64xf32>
    %149 = vector.multi_reduction <add>, %148, %cst_124 [0] : vector<256x64xf32> to vector<64xf32>
    %150 = vector.shape_cast %149 : vector<64xf32> to vector<1x64xf32>
    %cst_125 = arith.constant dense<0.000000e+00> : vector<1x32xf32>
    %151 = tpu.matmul %147, %142, %cst_125 {dimension_numbers = #tpu.dot_dimension_numbers<[1], [0], [0], [1], [0, 0, 1, 1], [], []>} : vector<1x64xf32>, vector<64x32xf32>, vector<1x32xf32> -> vector<1x32xf32>
    %cst_126 = arith.constant dense<0.000000e+00> : vector<1x64xf32>
    %152 = tpu.matmul %151, %143, %cst_126 {dimension_numbers = #tpu.dot_dimension_numbers<[1], [0], [0], [1], [0, 0, 1, 1], [], []>} : vector<1x32xf32>, vector<32x64xf32>, vector<1x64xf32> -> vector<1x64xf32>
    %cst_127 = arith.constant dense<0.000000e+00> : vector<1x32xf32>
    %153 = tpu.matmul %150, %142, %cst_127 {dimension_numbers = #tpu.dot_dimension_numbers<[1], [0], [0], [1], [0, 0, 1, 1], [], []>} : vector<1x64xf32>, vector<64x32xf32>, vector<1x32xf32> -> vector<1x32xf32>
    %cst_128 = arith.constant dense<0.000000e+00> : vector<1x64xf32>
    %154 = tpu.matmul %153, %143, %cst_128 {dimension_numbers = #tpu.dot_dimension_numbers<[1], [0], [0], [1], [0, 0, 1, 1], [], []>} : vector<1x32xf32>, vector<32x64xf32>, vector<1x64xf32> -> vector<1x64xf32>
    %cst_129 = arith.constant 5.120000e+02 : f32
    %155 = vector.broadcast %cst_129 : f32 to vector<1x64xf32>
    %156 = arith.divf %152, %155 : vector<1x64xf32>
    %cst_130 = arith.constant 5.120000e+02 : f32
    %157 = vector.broadcast %cst_130 : f32 to vector<1x64xf32>
    %158 = arith.divf %154, %157 : vector<1x64xf32>
    %159 = arith.mulf %156, %156 : vector<1x64xf32>
    %160 = arith.subf %158, %159 : vector<1x64xf32>
    %cst_131 = arith.constant 9.99999997E-7 : f32
    %161 = vector.broadcast %cst_131 : f32 to vector<1x64xf32>
    %162 = arith.addf %160, %161 : vector<1x64xf32>
    %163 = math.rsqrt %162 : vector<1x64xf32>
    %164 = vector.broadcast %156 : vector<1x64xf32> to vector<256x64xf32>
    %165 = arith.subf %141, %164 : vector<256x64xf32>
    %166 = arith.mulf %163, %144 : vector<1x64xf32>
    %167 = vector.broadcast %166 : vector<1x64xf32> to vector<256x64xf32>
    %168 = arith.mulf %165, %167 : vector<256x64xf32>
    %169 = vector.broadcast %145 : vector<1x64xf32> to vector<256x64xf32>
    %170 = arith.addf %168, %169 : vector<256x64xf32>
    %c0_132 = arith.constant 0 : index
    %c0_133 = arith.constant 0 : index
    %171 = vector.load %arg5[%c0_132, %c0_133] : memref<32x64xbf16, #tpu.memory_space<vmem>>, vector<32x64xbf16>
    %cst_134 = arith.constant dense<0.000000e+00> : vector<256x64xf32>
    %172 = tpu.matmul %2, %171, %cst_134 {dimension_numbers = #tpu.dot_dimension_numbers<[1], [0], [0], [1], [0, 0, 1, 1], [], []>} : vector<256x32xbf16>, vector<32x64xbf16>, vector<256x64xf32> -> vector<256x64xf32>
    %c0_135 = arith.constant 0 : index
    %c0_136 = arith.constant 0 : index
    %173 = vector.load %arg12[%c0_135, %c0_136] : memref<1x64xf32, #tpu.memory_space<vmem>>, vector<1x64xf32>
    %c0_137 = arith.constant 0 : index
    %c0_138 = arith.constant 0 : index
    %174 = vector.load %arg13[%c0_137, %c0_138] : memref<1x64xf32, #tpu.memory_space<vmem>>, vector<1x64xf32>
    %cst_139 = arith.constant dense<0.000000e+00> : vector<64xf32>
    %175 = vector.multi_reduction <add>, %172, %cst_139 [0] : vector<256x64xf32> to vector<64xf32>
    %176 = vector.shape_cast %175 : vector<64xf32> to vector<1x64xf32>
    %177 = arith.mulf %172, %172 : vector<256x64xf32>
    %cst_140 = arith.constant dense<0.000000e+00> : vector<64xf32>
    %178 = vector.multi_reduction <add>, %177, %cst_140 [0] : vector<256x64xf32> to vector<64xf32>
    %179 = vector.shape_cast %178 : vector<64xf32> to vector<1x64xf32>
    %cst_141 = arith.constant 2.560000e+02 : f32
    %180 = vector.broadcast %cst_141 : f32 to vector<1x64xf32>
    %181 = arith.divf %176, %180 : vector<1x64xf32>
    %cst_142 = arith.constant 2.560000e+02 : f32
    %182 = vector.broadcast %cst_142 : f32 to vector<1x64xf32>
    %183 = arith.divf %179, %182 : vector<1x64xf32>
    %184 = arith.mulf %181, %181 : vector<1x64xf32>
    %185 = arith.subf %183, %184 : vector<1x64xf32>
    %cst_143 = arith.constant 9.99999974E-6 : f32
    %186 = vector.broadcast %cst_143 : f32 to vector<1x64xf32>
    %187 = arith.addf %185, %186 : vector<1x64xf32>
    %188 = math.rsqrt %187 : vector<1x64xf32>
    %189 = vector.broadcast %181 : vector<1x64xf32> to vector<256x64xf32>
    %190 = arith.subf %172, %189 : vector<256x64xf32>
    %191 = arith.mulf %188, %173 : vector<1x64xf32>
    %192 = vector.broadcast %191 : vector<1x64xf32> to vector<256x64xf32>
    %193 = arith.mulf %190, %192 : vector<256x64xf32>
    %194 = vector.broadcast %174 : vector<1x64xf32> to vector<256x64xf32>
    %195 = arith.addf %193, %194 : vector<256x64xf32>
    %196 = arith.addf %195, %170 : vector<256x64xf32>
    %cst_144 = arith.constant 0.000000e+00 : f32
    %197 = vector.broadcast %cst_144 : f32 to vector<256x64xf32>
    %198 = arith.maximumf %196, %197 : vector<256x64xf32>
    %c0_145 = arith.constant 0 : index
    %c0_146 = arith.constant 0 : index
    %c0_147 = arith.constant 0 : index
    %199 = vector.load %arg18[%c0_145, %c0_146, %c0_147] : memref<1x256x64xf32, #tpu.memory_space<vmem>>, vector<1x256x64xf32>
    %200 = vector.shape_cast %199 : vector<1x256x64xf32> to vector<256x64xf32>
    %201 = vector.shape_cast %198 : vector<256x64xf32> to vector<1x256x64xf32>
    tpu.vector_store %arg18[%c0_145, %c0_146, %c0_147], %201 {strides = array<i32>} : memref<1x256x64xf32, #tpu.memory_space<vmem>>, vector<1x256x64xf32>,
    return
  }
  func.func @transform_0(%arg0: i32) -> (i32, i32, i32) {
    %c0_i32 = arith.constant 0 : i32
    %c0_i32_0 = arith.constant 0 : i32
    %c0_i32_1 = arith.constant 0 : i32
    return %arg0, %c0_i32, %c0_i32_0 : i32, i32, i32
  }
  func.func @transform_1(%arg0: i32) -> (i32, i32) {
    %c0_i32 = arith.constant 0 : i32
    %c0_i32_0 = arith.constant 0 : i32
    %c0_i32_1 = arith.constant 0 : i32
    return %c0_i32, %c0_i32_0 : i32, i32
  }
  func.func @transform_2(%arg0: i32) -> (i32, i32, i32) {
    %c0_i32 = arith.constant 0 : i32
    %c0_i32_0 = arith.constant 0 : i32
    %c0_i32_1 = arith.constant 0 : i32
    %c0_i32_2 = arith.constant 0 : i32
    return %c0_i32, %c0_i32_0, %c0_i32_1 : i32, i32, i32
  }
  func.func @transform_3(%arg0: i32) -> (i32, i32) {
    %c0_i32 = arith.constant 0 : i32
    %c0_i32_0 = arith.constant 0 : i32
    %c0_i32_1 = arith.constant 0 : i32
    return %c0_i32, %c0_i32_0 : i32, i32
  }
  func.func @transform_4(%arg0: i32) -> (i32, i32) {
    %c0_i32 = arith.constant 0 : i32
    %c0_i32_0 = arith.constant 0 : i32
    %c0_i32_1 = arith.constant 0 : i32
    return %c0_i32, %c0_i32_0 : i32, i32
  }
  func.func @transform_5(%arg0: i32) -> (i32, i32) {
    %c0_i32 = arith.constant 0 : i32
    %c0_i32_0 = arith.constant 0 : i32
    %c0_i32_1 = arith.constant 0 : i32
    return %c0_i32, %c0_i32_0 : i32, i32
  }
  func.func @transform_6(%arg0: i32) -> (i32, i32) {
    %c0_i32 = arith.constant 0 : i32
    %c0_i32_0 = arith.constant 0 : i32
    %c0_i32_1 = arith.constant 0 : i32
    return %c0_i32, %c0_i32_0 : i32, i32
  }
  func.func @transform_7(%arg0: i32) -> (i32, i32) {
    %c0_i32 = arith.constant 0 : i32
    %c0_i32_0 = arith.constant 0 : i32
    %c0_i32_1 = arith.constant 0 : i32
    return %c0_i32, %c0_i32_0 : i32, i32
  }
  func.func @transform_8(%arg0: i32) -> (i32, i32) {
    %c0_i32 = arith.constant 0 : i32
    %c0_i32_0 = arith.constant 0 : i32
    %c0_i32_1 = arith.constant 0 : i32
    return %c0_i32, %c0_i32_0 : i32, i32
  }
  func.func @transform_9(%arg0: i32) -> (i32, i32) {
    %c0_i32 = arith.constant 0 : i32
    %c0_i32_0 = arith.constant 0 : i32
    %c0_i32_1 = arith.constant 0 : i32
    return %c0_i32, %c0_i32_0 : i32, i32
  }
  func.func @transform_10(%arg0: i32) -> (i32, i32) {
    %c0_i32 = arith.constant 0 : i32
    %c0_i32_0 = arith.constant 0 : i32
    %c0_i32_1 = arith.constant 0 : i32
    return %c0_i32, %c0_i32_0 : i32, i32
  }
  func.func @transform_11(%arg0: i32) -> (i32, i32) {
    %c0_i32 = arith.constant 0 : i32
    %c0_i32_0 = arith.constant 0 : i32
    %c0_i32_1 = arith.constant 0 : i32
    return %c0_i32, %c0_i32_0 : i32, i32
  }
  func.func @transform_12(%arg0: i32) -> (i32, i32) {
    %c0_i32 = arith.constant 0 : i32
    %c0_i32_0 = arith.constant 0 : i32
    %c0_i32_1 = arith.constant 0 : i32
    return %c0_i32, %c0_i32_0 : i32, i32
  }
  func.func @transform_13(%arg0: i32) -> (i32, i32) {
    %c0_i32 = arith.constant 0 : i32
    %c0_i32_0 = arith.constant 0 : i32
    %c0_i32_1 = arith.constant 0 : i32
    return %c0_i32, %c0_i32_0 : i32, i32
  }
  func.func @transform_14(%arg0: i32) -> (i32, i32) {
    %c0_i32 = arith.constant 0 : i32
    %c0_i32_0 = arith.constant 0 : i32
    %c0_i32_1 = arith.constant 0 : i32
    return %c0_i32, %c0_i32_0 : i32, i32
  }
  func.func @transform_15(%arg0: i32) -> (i32, i32) {
    %c0_i32 = arith.constant 0 : i32
    %c0_i32_0 = arith.constant 0 : i32
    %c0_i32_1 = arith.constant 0 : i32
    return %c0_i32, %c0_i32_0 : i32, i32
  }
  func.func @transform_16(%arg0: i32) -> (i32, i32) {
    %c0_i32 = arith.constant 0 : i32
    %c0_i32_0 = arith.constant 0 : i32
    %c0_i32_1 = arith.constant 0 : i32
    return %c0_i32, %c0_i32_0 : i32, i32
  }
  func.func @transform_17(%arg0: i32) -> (i32, i32, i32) {
    %c0_i32 = arith.constant 0 : i32
    %c0_i32_0 = arith.constant 0 : i32
    %c0_i32_1 = arith.constant 0 : i32
    return %arg0, %c0_i32, %c0_i32_0 : i32, i32, i32
  }
}

</mosaic_0001>

<llo_original>
// kernel: tpu_custom_call.1
$region0: #{tpu_custom_call.1}
  #allocation0 [shape = 'u32[]', space=smem, size = 0x4, offset = 0x4, fixed_abs, tag = 'smem constant byte address 0x4 - core index']
  #allocation1 [shape = 'u32[144,128]{1,0:T(1,128)}', space=vmem, size = 0x12000, scoped, tag = 'internal scratch']
  #allocation2 [shape = 'f32[18,18,32]{2,1,0:T(8,128)}', space=vmem, size = 0x36000, scoped, tag = 'scratch operand']
  %s0 = inlined_call_operand.vmem [shape: f32[2,256,32], index: 0, kind: input, shape index: {}]
  %s1 = inlined_call_operand.vmem [shape: bf16[32,32], index: 1, kind: input, shape index: {}]
  %s2 = inlined_call_operand.vmem [shape: bf16[9,32,32], index: 2, kind: input, shape index: {}]
  %s3 = inlined_call_operand.vmem [shape: bf16[32,64], index: 3, kind: input, shape index: {}]
  %s4 = inlined_call_operand.vmem [shape: bf16[32,64], index: 4, kind: input, shape index: {}]
  %s5 = inlined_call_operand.vmem [shape: f32[1,32], index: 5, kind: input, shape index: {}]
  %s6 = inlined_call_operand.vmem [shape: f32[1,32], index: 6, kind: input, shape index: {}]
  %s7 = inlined_call_operand.vmem [shape: f32[1,32], index: 7, kind: input, shape index: {}]
  %s8 = inlined_call_operand.vmem [shape: f32[1,32], index: 8, kind: input, shape index: {}]
  %s9 = inlined_call_operand.vmem [shape: f32[1,64], index: 9, kind: input, shape index: {}]
  %s10 = inlined_call_operand.vmem [shape: f32[1,64], index: 10, kind: input, shape index: {}]
  %s11 = inlined_call_operand.vmem [shape: f32[1,64], index: 11, kind: input, shape index: {}]
  %s12 = inlined_call_operand.vmem [shape: f32[1,64], index: 12, kind: input, shape index: {}]
  %s13 = inlined_call_operand.vmem [shape: f32[32,32], index: 13, kind: input, shape index: {}]
  %s14 = inlined_call_operand.vmem [shape: f32[32,32], index: 14, kind: input, shape index: {}]
  %s15 = inlined_call_operand.vmem [shape: f32[64,32], index: 15, kind: input, shape index: {}]
  %s16 = inlined_call_operand.vmem [shape: f32[32,64], index: 16, kind: input, shape index: {}]
  %s17 = inlined_call_operand.vmem [shape: f32[2,256,64], index: 17, kind: output, shape index: {}]
  %s18 = sld [smem:[#allocation0]]
  $region101: #{tpu_custom_call.1} parent=0
    _
  %s20 = ssub.s32 1, %s18
  %s21 = scalar_select 0, %s20, %s18
  loop: start=0, step=1, limit=4
  $region2: #{tpu_custom_call.1} parent=0 // loop_pre_header
    _
  $region3: #{tpu_custom_call.1} parent=0 // loop_header
    %s23 = sphi 0, %s27
    %p24 = scmp.ge.s32.totalorder %s23, 4
    %s33 = sphi 0, %s35
    %s36 = sphi 0, %s33
    %s37 = sphi 0, %s36
    %s53 = sphi 0, %s37
    %s57 = sphi 0, %s57
    %s59 = sphi 0, %s57
    %s60 = sphi 0, %s59
    %s74 = sphi 0, %s60
    %s78 = sphi 0, %s78
    %s80 = sphi 0, %s78
    %s81 = sphi 0, %s80
    %s95 = sphi 0, %s81
    %s99 = sphi 0, %s99
    %s101 = sphi 0, %s99
    %s102 = sphi 0, %s101
    %s116 = sphi 0, %s102
    %s120 = sphi 0, %s120
    %s122 = sphi 0, %s120
    %s123 = sphi 0, %s122
    %s137 = sphi 0, %s123
    %s141 = sphi 0, %s141
    %s143 = sphi 0, %s141
    %s144 = sphi 0, %s143
    %s158 = sphi 0, %s144
    %s162 = sphi 0, %s162
    %s164 = sphi 0, %s162
    %s165 = sphi 0, %s164
    %s179 = sphi 0, %s165
    %s183 = sphi 0, %s183
    %s185 = sphi 0, %s183
    %s186 = sphi 0, %s185
    %s200 = sphi 0, %s186
    %s204 = sphi 0, %s204
    %s206 = sphi 0, %s204
    %s207 = sphi 0, %s206
    %s221 = sphi 0, %s207
    %s225 = sphi 0, %s225
    %s227 = sphi 0, %s225
    %s228 = sphi 0, %s227
    %s242 = sphi 0, %s228
    %s246 = sphi 0, %s246
    %s248 = sphi 0, %s246
    %s249 = sphi 0, %s248
    %s263 = sphi 0, %s249
    %s267 = sphi 0, %s267
    %s269 = sphi 0, %s267
    %s270 = sphi 0, %s269
    %s284 = sphi 0, %s270
    %s288 = sphi 0, %s288
    %s290 = sphi 0, %s288
    %s291 = sphi 0, %s290
    %s305 = sphi 0, %s291
    %s309 = sphi 0, %s309
    %s311 = sphi 0, %s309
    %s312 = sphi 0, %s311
    %s326 = sphi 0, %s312
    %s330 = sphi 0, %s330
    %s332 = sphi 0, %s330
    %s333 = sphi 0, %s332
    %s347 = sphi 0, %s333
    %s351 = sphi 0, %s351
    %s353 = sphi 0, %s351
    %s354 = sphi 0, %s353
    %s368 = sphi 0, %s354
    %s372 = sphi 0, %s372
    %s374 = sphi 0, %s372
    %s375 = sphi 0, %s374
    %s389 = sphi 0, %s375
    %s395 = sphi 0, %s397
    %s398 = sphi 0, %s395
    %s399 = sphi 0, %s398
    %s415 = sphi 0, %s399
  $region4: #{tpu_custom_call.1} parent=0 // loop_header_branch
    %26 = sbr.rel (%p24) target = $region8
  $region5: #{tpu_custom_call.1} parent=0 // loop_body
    %s28 = ssub.s32 %s23, 1
    %s29 = ssub.s32 %s23, 2
    %s30 = sadd.s32 %s23, 1
    %s31 = ssub.s32 %s23, %s30
    %p32 = scmp.eq.s32.totalorder %s31, 0
    %s34 = sadd.s32 %s33, 1
    %s35 = scalar_select %p32, %s33, %s34
    %p38 = pneg %p32
    %p39 = scmp.eq.s32.totalorder %s23, 1
    %p40 = por %p38, %p39
    %p41 = scmp.ne.s32.totalorder %s33, %s36
    %p42 = scmp.eq.s32.totalorder %s23, 0
    %p43 = por %p41, %p42
    %p44 = scmp.ne.s32.totalorder %s33, %s36
    %p45 = scmp.eq.s32.totalorder %s28, 1
    %p46 = por %p44, %p45
    %p47 = scmp.ne.s32.totalorder %s36, %s37
    %p48 = scmp.eq.s32.totalorder %s28, 0
    %p49 = por %p47, %p48
    %p50 = scmp.ne.s32.totalorder %s36, %s37
    %p51 = scmp.eq.s32.totalorder %s29, 1
    %p52 = por %p50, %p51
    %p54 = scmp.ne.s32.totalorder %s37, %s53
    %p55 = scmp.eq.s32.totalorder %s29, 0
    %p56 = por %p54, %p55
    %s58 = sadd.s32 %s57, 1
    %p61 = scmp.eq.s32.totalorder %s23, 1
    %p62 = scmp.ne.s32.totalorder %s57, %s59
    %p63 = scmp.eq.s32.totalorder %s23, 0
    %p64 = por %p62, %p63
    %p65 = scmp.ne.s32.totalorder %s57, %s59
    %p66 = scmp.eq.s32.totalorder %s28, 1
    %p67 = por %p65, %p66
    %p68 = scmp.ne.s32.totalorder %s59, %s60
    %p69 = scmp.eq.s32.totalorder %s28, 0
    %p70 = por %p68, %p69
    %p71 = scmp.ne.s32.totalorder %s59, %s60
    %p72 = scmp.eq.s32.totalorder %s29, 1
    %p73 = por %p71, %p72
    %p75 = scmp.ne.s32.totalorder %s60, %s74
    %p76 = scmp.eq.s32.totalorder %s29, 0
    %p77 = por %p75, %p76
    %s79 = sadd.s32 %s78, 1
    %p82 = scmp.eq.s32.totalorder %s23, 1
    %p83 = scmp.ne.s32.totalorder %s78, %s80
    %p84 = scmp.eq.s32.totalorder %s23, 0
    %p85 = por %p83, %p84
    %p86 = scmp.ne.s32.totalorder %s78, %s80
    %p87 = scmp.eq.s32.totalorder %s28, 1
    %p88 = por %p86, %p87
    %p89 = scmp.ne.s32.totalorder %s80, %s81
    %p90 = scmp.eq.s32.totalorder %s28, 0
    %p91 = por %p89, %p90
    %p92 = scmp.ne.s32.totalorder %s80, %s81
    %p93 = scmp.eq.s32.totalorder %s29, 1
    %p94 = por %p92, %p93
    %p96 = scmp.ne.s32.totalorder %s81, %s95
    %p97 = scmp.eq.s32.totalorder %s29, 0
    %p98 = por %p96, %p97
    %s100 = sadd.s32 %s99, 1
    %p103 = scmp.eq.s32.totalorder %s23, 1
    %p104 = scmp.ne.s32.totalorder %s99, %s101
    %p105 = scmp.eq.s32.totalorder %s23, 0
    %p106 = por %p104, %p105
    %p107 = scmp.ne.s32.totalorder %s99, %s101
    %p108 = scmp.eq.s32.totalorder %s28, 1
    %p109 = por %p107, %p108
    %p110 = scmp.ne.s32.totalorder %s101, %s102
    %p111 = scmp.eq.s32.totalorder %s28, 0
    %p112 = por %p110, %p111
    %p113 = scmp.ne.s32.totalorder %s101, %s102
    %p114 = scmp.eq.s32.totalorder %s29, 1
    %p115 = por %p113, %p114
    %p117 = scmp.ne.s32.totalorder %s102, %s116
    %p118 = scmp.eq.s32.totalorder %s29, 0
    %p119 = por %p117, %p118
    %s121 = sadd.s32 %s120, 1
    %p124 = scmp.eq.s32.totalorder %s23, 1
    %p125 = scmp.ne.s32.totalorder %s120, %s122
    %p126 = scmp.eq.s32.totalorder %s23, 0
    %p127 = por %p125, %p126
    %p128 = scmp.ne.s32.totalorder %s120, %s122
    %p129 = scmp.eq.s32.totalorder %s28, 1
    %p130 = por %p128, %p129
    %p131 = scmp.ne.s32.totalorder %s122, %s123
    %p132 = scmp.eq.s32.totalorder %s28, 0
    %p133 = por %p131, %p132
    %p134 = scmp.ne.s32.totalorder %s122, %s123
    %p135 = scmp.eq.s32.totalorder %s29, 1
    %p136 = por %p134, %p135
    %p138 = scmp.ne.s32.totalorder %s123, %s137
    %p139 = scmp.eq.s32.totalorder %s29, 0
    %p140 = por %p138, %p139
    %s142 = sadd.s32 %s141, 1
    %p145 = scmp.eq.s32.totalorder %s23, 1
    %p146 = scmp.ne.s32.totalorder %s141, %s143
    %p147 = scmp.eq.s32.totalorder %s23, 0
    %p148 = por %p146, %p147
    %p149 = scmp.ne.s32.totalorder %s141, %s143
    %p150 = scmp.eq.s32.totalorder %s28, 1
    %p151 = por %p149, %p150
    %p152 = scmp.ne.s32.totalorder %s143, %s144
    %p153 = scmp.eq.s32.totalorder %s28, 0
    %p154 = por %p152, %p153
    %p155 = scmp.ne.s32.totalorder %s143, %s144
    %p156 = scmp.eq.s32.totalorder %s29, 1
    %p157 = por %p155, %p156
    %p159 = scmp.ne.s32.totalorder %s144, %s158
    %p160 = scmp.eq.s32.totalorder %s29, 0
    %p161 = por %p159, %p160
    %s163 = sadd.s32 %s162, 1
    %p166 = scmp.eq.s32.totalorder %s23, 1
    %p167 = scmp.ne.s32.totalorder %s162, %s164
    %p168 = scmp.eq.s32.totalorder %s23, 0
    %p169 = por %p167, %p168
    %p170 = scmp.ne.s32.totalorder %s162, %s164
    %p171 = scmp.eq.s32.totalorder %s28, 1
    %p172 = por %p170, %p171
    %p173 = scmp.ne.s32.totalorder %s164, %s165
    %p174 = scmp.eq.s32.totalorder %s28, 0
    %p175 = por %p173, %p174
    %p176 = scmp.ne.s32.totalorder %s164, %s165
    %p177 = scmp.eq.s32.totalorder %s29, 1
    %p178 = por %p176, %p177
    %p180 = scmp.ne.s32.totalorder %s165, %s179
    %p181 = scmp.eq.s32.totalorder %s29, 0
    %p182 = por %p180, %p181
    %s184 = sadd.s32 %s183, 1
    %p187 = scmp.eq.s32.totalorder %s23, 1
    %p188 = scmp.ne.s32.totalorder %s183, %s185
    %p189 = scmp.eq.s32.totalorder %s23, 0
    %p190 = por %p188, %p189
    %p191 = scmp.ne.s32.totalorder %s183, %s185
    %p192 = scmp.eq.s32.totalorder %s28, 1
    %p193 = por %p191, %p192
    %p194 = scmp.ne.s32.totalorder %s185, %s186
    %p195 = scmp.eq.s32.totalorder %s28, 0
    %p196 = por %p194, %p195
    %p197 = scmp.ne.s32.totalorder %s185, %s186
    %p198 = scmp.eq.s32.totalorder %s29, 1
    %p199 = por %p197, %p198
    %p201 = scmp.ne.s32.totalorder %s186, %s200
    %p202 = scmp.eq.s32.totalorder %s29, 0
    %p203 = por %p201, %p202
    %s205 = sadd.s32 %s204, 1
    %p208 = scmp.eq.s32.totalorder %s23, 1
    %p209 = scmp.ne.s32.totalorder %s204, %s206
    %p210 = scmp.eq.s32.totalorder %s23, 0
    %p211 = por %p209, %p210
    %p212 = scmp.ne.s32.totalorder %s204, %s206
    %p213 = scmp.eq.s32.totalorder %s28, 1
    %p214 = por %p212, %p213
    %p215 = scmp.ne.s32.totalorder %s206, %s207
    %p216 = scmp.eq.s32.totalorder %s28, 0
    %p217 = por %p215, %p216
    %p218 = scmp.ne.s32.totalorder %s206, %s207
    %p219 = scmp.eq.s32.totalorder %s29, 1
    %p220 = por %p218, %p219
    %p222 = scmp.ne.s32.totalorder %s207, %s221
    %p223 = scmp.eq.s32.totalorder %s29, 0
    %p224 = por %p222, %p223
    %s226 = sadd.s32 %s225, 1
    %p229 = scmp.eq.s32.totalorder %s23, 1
    %p230 = scmp.ne.s32.totalorder %s225, %s227
    %p231 = scmp.eq.s32.totalorder %s23, 0
    %p232 = por %p230, %p231
    %p233 = scmp.ne.s32.totalorder %s225, %s227
    %p234 = scmp.eq.s32.totalorder %s28, 1
    %p235 = por %p233, %p234
    %p236 = scmp.ne.s32.totalorder %s227, %s228
    %p237 = scmp.eq.s32.totalorder %s28, 0
    %p238 = por %p236, %p237
    %p239 = scmp.ne.s32.totalorder %s227, %s228
    %p240 = scmp.eq.s32.totalorder %s29, 1
    %p241 = por %p239, %p240
    %p243 = scmp.ne.s32.totalorder %s228, %s242
    %p244 = scmp.eq.s32.totalorder %s29, 0
    %p245 = por %p243, %p244
    %s247 = sadd.s32 %s246, 1
    %p250 = scmp.eq.s32.totalorder %s23, 1
    %p251 = scmp.ne.s32.totalorder %s246, %s248
    %p252 = scmp.eq.s32.totalorder %s23, 0
    %p253 = por %p251, %p252
    %p254 = scmp.ne.s32.totalorder %s246, %s248
    %p255 = scmp.eq.s32.totalorder %s28, 1
    %p256 = por %p254, %p255
    %p257 = scmp.ne.s32.totalorder %s248, %s249
    %p258 = scmp.eq.s32.totalorder %s28, 0
    %p259 = por %p257, %p258
    %p260 = scmp.ne.s32.totalorder %s248, %s249
    %p261 = scmp.eq.s32.totalorder %s29, 1
    %p262 = por %p260, %p261
    %p264 = scmp.ne.s32.totalorder %s249, %s263
    %p265 = scmp.eq.s32.totalorder %s29, 0
    %p266 = por %p264, %p265
    %s268 = sadd.s32 %s267, 1
    %p271 = scmp.eq.s32.totalorder %s23, 1
    %p272 = scmp.ne.s32.totalorder %s267, %s269
    %p273 = scmp.eq.s32.totalorder %s23, 0
    %p274 = por %p272, %p273
    %p275 = scmp.ne.s32.totalorder %s267, %s269
    %p276 = scmp.eq.s32.totalorder %s28, 1
    %p277 = por %p275, %p276
    %p278 = scmp.ne.s32.totalorder %s269, %s270
    %p279 = scmp.eq.s32.totalorder %s28, 0
    %p280 = por %p278, %p279
    %p281 = scmp.ne.s32.totalorder %s269, %s270
    %p282 = scmp.eq.s32.totalorder %s29, 1
    %p283 = por %p281, %p282
    %p285 = scmp.ne.s32.totalorder %s270, %s284
    %p286 = scmp.eq.s32.totalorder %s29, 0
    %p287 = por %p285, %p286
    %s289 = sadd.s32 %s288, 1
    %p292 = scmp.eq.s32.totalorder %s23, 1
    %p293 = scmp.ne.s32.totalorder %s288, %s290
    %p294 = scmp.eq.s32.totalorder %s23, 0
    %p295 = por %p293, %p294
    %p296 = scmp.ne.s32.totalorder %s288, %s290
    %p297 = scmp.eq.s32.totalorder %s28, 1
    %p298 = por %p296, %p297
    %p299 = scmp.ne.s32.totalorder %s290, %s291
    %p300 = scmp.eq.s32.totalorder %s28, 0
    %p301 = por %p299, %p300
    %p302 = scmp.ne.s32.totalorder %s290, %s291
    %p303 = scmp.eq.s32.totalorder %s29, 1
    %p304 = por %p302, %p303
    %p306 = scmp.ne.s32.totalorder %s291, %s305
    %p307 = scmp.eq.s32.totalorder %s29, 0
    %p308 = por %p306, %p307
    %s310 = sadd.s32 %s309, 1
    %p313 = scmp.eq.s32.totalorder %s23, 1
    %p314 = scmp.ne.s32.totalorder %s309, %s311
    %p315 = scmp.eq.s32.totalorder %s23, 0
    %p316 = por %p314, %p315
    %p317 = scmp.ne.s32.totalorder %s309, %s311
    %p318 = scmp.eq.s32.totalorder %s28, 1
    %p319 = por %p317, %p318
    %p320 = scmp.ne.s32.totalorder %s311, %s312
    %p321 = scmp.eq.s32.totalorder %s28, 0
    %p322 = por %p320, %p321
    %p323 = scmp.ne.s32.totalorder %s311, %s312
    %p324 = scmp.eq.s32.totalorder %s29, 1
    %p325 = por %p323, %p324
    %p327 = scmp.ne.s32.totalorder %s312, %s326
    %p328 = scmp.eq.s32.totalorder %s29, 0
    %p329 = por %p327, %p328
    %s331 = sadd.s32 %s330, 1
    %p334 = scmp.eq.s32.totalorder %s23, 1
    %p335 = scmp.ne.s32.totalorder %s330, %s332
    %p336 = scmp.eq.s32.totalorder %s23, 0
    %p337 = por %p335, %p336
    %p338 = scmp.ne.s32.totalorder %s330, %s332
    %p339 = scmp.eq.s32.totalorder %s28, 1
    %p340 = por %p338, %p339
    %p341 = scmp.ne.s32.totalorder %s332, %s333
    %p342 = scmp.eq.s32.totalorder %s28, 0
    %p343 = por %p341, %p342
    %p344 = scmp.ne.s32.totalorder %s332, %s333
    %p345 = scmp.eq.s32.totalorder %s29, 1
    %p346 = por %p344, %p345
    %p348 = scmp.ne.s32.totalorder %s333, %s347
    %p349 = scmp.eq.s32.totalorder %s29, 0
    %p350 = por %p348, %p349
    %s352 = sadd.s32 %s351, 1
    %p355 = scmp.eq.s32.totalorder %s23, 1
    %p356 = scmp.ne.s32.totalorder %s351, %s353
    %p357 = scmp.eq.s32.totalorder %s23, 0
    %p358 = por %p356, %p357
    %p359 = scmp.ne.s32.totalorder %s351, %s353
    %p360 = scmp.eq.s32.totalorder %s28, 1
    %p361 = por %p359, %p360
    %p362 = scmp.ne.s32.totalorder %s353, %s354
    %p363 = scmp.eq.s32.totalorder %s28, 0
    %p364 = por %p362, %p363
    %p365 = scmp.ne.s32.totalorder %s353, %s354
    %p366 = scmp.eq.s32.totalorder %s29, 1
    %p367 = por %p365, %p366
    %p369 = scmp.ne.s32.totalorder %s354, %s368
    %p370 = scmp.eq.s32.totalorder %s29, 0
    %p371 = por %p369, %p370
    %s373 = sadd.s32 %s372, 1
    %p376 = scmp.eq.s32.totalorder %s23, 1
    %p377 = scmp.ne.s32.totalorder %s372, %s374
    %p378 = scmp.eq.s32.totalorder %s23, 0
    %p379 = por %p377, %p378
    %p380 = scmp.ne.s32.totalorder %s372, %s374
    %p381 = scmp.eq.s32.totalorder %s28, 1
    %p382 = por %p380, %p381
    %p383 = scmp.ne.s32.totalorder %s374, %s375
    %p384 = scmp.eq.s32.totalorder %s28, 0
    %p385 = por %p383, %p384
    %p386 = scmp.ne.s32.totalorder %s374, %s375
    %p387 = scmp.eq.s32.totalorder %s29, 1
    %p388 = por %p386, %p387
    %p390 = scmp.ne.s32.totalorder %s375, %s389
    %p391 = scmp.eq.s32.totalorder %s29, 0
    %p392 = por %p390, %p391
    %s393 = ssub.s32 %s23, %s30
    %p394 = scmp.eq.s32.totalorder %s393, 0
    %s396 = sadd.s32 %s395, 1
    %s397 = scalar_select %p394, %s395, %s396
    %p400 = pneg %p394
    %p401 = scmp.eq.s32.totalorder %s23, 1
    %p402 = por %p400, %p401
    %p403 = scmp.ne.s32.totalorder %s395, %s398
    %p404 = scmp.eq.s32.totalorder %s23, 0
    %p405 = por %p403, %p404
    %p406 = scmp.ne.s32.totalorder %s395, %s398
    %p407 = scmp.eq.s32.totalorder %s28, 1
    %p408 = por %p406, %p407
    %p409 = scmp.ne.s32.totalorder %s398, %s399
    %p410 = scmp.eq.s32.totalorder %s28, 0
    %p411 = por %p409, %p410
    %p412 = scmp.ne.s32.totalorder %s398, %s399
    %p413 = scmp.eq.s32.totalorder %s29, 1
    %p414 = por %p412, %p413
    %p416 = scmp.ne.s32.totalorder %s399, %s415
    %p417 = scmp.eq.s32.totalorder %s29, 0
    %p418 = por %p416, %p417
    %p419 = scmp.le.s32.totalorder 1, %s23
    %p420 = scmp.lt.s32.totalorder %s23, 3
    %p421 = pnand %p419, %p420
    %p422 = pneg %p421
    // Predicated region
    $region9: #{tpu_custom_call.1} parent=5 // pred_check
      _
    $region10: #{tpu_custom_call.1} parent=5 // pred_check_branch
      %424 = sbr.rel (%p421) target = $region12
    $region11: #{tpu_custom_call.1} parent=5 // pred_region
      %s425 = ssub.s32 %s23, 1
      // Predicated region
      $region13: #{tpu_custom_call.1} parent=11 // pred_check
        %p426 = pneg %p70
      $region14: #{tpu_custom_call.1} parent=11 // pred_check_branch
        %428 = sbr.rel (%p426) target = $region16
      $region15: #{tpu_custom_call.1} parent=11 // pred_region
        _
      $region16: #{tpu_custom_call.1} parent=11 // pred_fallthru
        _
      // Predicated region
      $region17: #{tpu_custom_call.1} parent=11 // pred_check
        %p429 = pneg %p91
      $region18: #{tpu_custom_call.1} parent=11 // pred_check_branch
        %431 = sbr.rel (%p429) target = $region20
      $region19: #{tpu_custom_call.1} parent=11 // pred_region
        _
      $region20: #{tpu_custom_call.1} parent=11 // pred_fallthru
        _
      // Predicated region
      $region21: #{tpu_custom_call.1} parent=11 // pred_check
        %p432 = pneg %p112
      $region22: #{tpu_custom_call.1} parent=11 // pred_check_branch
        %434 = sbr.rel (%p432) target = $region24
      $region23: #{tpu_custom_call.1} parent=11 // pred_region
        _
      $region24: #{tpu_custom_call.1} parent=11 // pred_fallthru
        _
      // Predicated region
      $region25: #{tpu_custom_call.1} parent=11 // pred_check
        %p435 = pneg %p133
      $region26: #{tpu_custom_call.1} parent=11 // pred_check_branch
        %437 = sbr.rel (%p435) target = $region28
      $region27: #{tpu_custom_call.1} parent=11 // pred_region
        _
      $region28: #{tpu_custom_call.1} parent=11 // pred_fallthru
        _
      // Predicated region
      $region29: #{tpu_custom_call.1} parent=11 // pred_check
        %p438 = pneg %p154
      $region30: #{tpu_custom_call.1} parent=11 // pred_check_branch
        %440 = sbr.rel (%p438) target = $region32
      $region31: #{tpu_custom_call.1} parent=11 // pred_region
        _
      $region32: #{tpu_custom_call.1} parent=11 // pred_fallthru
        _
      // Predicated region
      $region33: #{tpu_custom_call.1} parent=11 // pred_check
        %p441 = pneg %p175
      $region34: #{tpu_custom_call.1} parent=11 // pred_check_branch
        %443 = sbr.rel (%p441) target = $region36
      $region35: #{tpu_custom_call.1} parent=11 // pred_region
        _
      $region36: #{tpu_custom_call.1} parent=11 // pred_fallthru
        _
      // Predicated region
      $region37: #{tpu_custom_call.1} parent=11 // pred_check
        %p444 = pneg %p196
      $region38: #{tpu_custom_call.1} parent=11 // pred_check_branch
        %446 = sbr.rel (%p444) target = $region40
      $region39: #{tpu_custom_call.1} parent=11 // pred_region
        _
      $region40: #{tpu_custom_call.1} parent=11 // pred_fallthru
        _
      // Predicated region
      $region41: #{tpu_custom_call.1} parent=11 // pred_check
        %p447 = pneg %p217
      $region42: #{tpu_custom_call.1} parent=11 // pred_check_branch
        %449 = sbr.rel (%p447) target = $region44
      $region43: #{tpu_custom_call.1} parent=11 // pred_region
        _
      $region44: #{tpu_custom_call.1} parent=11 // pred_fallthru
        _
      // Predicated region
      $region45: #{tpu_custom_call.1} parent=11 // pred_check
        %p450 = pneg %p238
      $region46: #{tpu_custom_call.1} parent=11 // pred_check_branch
        %452 = sbr.rel (%p450) target = $region48
      $region47: #{tpu_custom_call.1} parent=11 // pred_region
        _
      $region48: #{tpu_custom_call.1} parent=11 // pred_fallthru
        _
      // Predicated region
      $region49: #{tpu_custom_call.1} parent=11 // pred_check
        %p453 = pneg %p259
      $region50: #{tpu_custom_call.1} parent=11 // pred_check_branch
        %455 = sbr.rel (%p453) target = $region52
      $region51: #{tpu_custom_call.1} parent=11 // pred_region
        _
      $region52: #{tpu_custom_call.1} parent=11 // pred_fallthru
        _
      // Predicated region
      $region53: #{tpu_custom_call.1} parent=11 // pred_check
        %p456 = pneg %p280
      $region54: #{tpu_custom_call.1} parent=11 // pred_check_branch
        %458 = sbr.rel (%p456) target = $region56
      $region55: #{tpu_custom_call.1} parent=11 // pred_region
        _
      $region56: #{tpu_custom_call.1} parent=11 // pred_fallthru
        _
      // Predicated region
      $region57: #{tpu_custom_call.1} parent=11 // pred_check
        %p459 = pneg %p301
      $region58: #{tpu_custom_call.1} parent=11 // pred_check_branch
        %461 = sbr.rel (%p459) target = $region60
      $region59: #{tpu_custom_call.1} parent=11 // pred_region
        _
      $region60: #{tpu_custom_call.1} parent=11 // pred_fallthru
        _
      // Predicated region
      $region61: #{tpu_custom_call.1} parent=11 // pred_check
        %p462 = pneg %p322
      $region62: #{tpu_custom_call.1} parent=11 // pred_check_branch
        %464 = sbr.rel (%p462) target = $region64
      $region63: #{tpu_custom_call.1} parent=11 // pred_region
        _
      $region64: #{tpu_custom_call.1} parent=11 // pred_fallthru
        _
      // Predicated region
      $region65: #{tpu_custom_call.1} parent=11 // pred_check
        %p465 = pneg %p343
      $region66: #{tpu_custom_call.1} parent=11 // pred_check_branch
        %467 = sbr.rel (%p465) target = $region68
      $region67: #{tpu_custom_call.1} parent=11 // pred_region
        _
      $region68: #{tpu_custom_call.1} parent=11 // pred_fallthru
        _
      // Predicated region
      $region69: #{tpu_custom_call.1} parent=11 // pred_check
        %p468 = pneg %p364
      $region70: #{tpu_custom_call.1} parent=11 // pred_check_branch
        %470 = sbr.rel (%p468) target = $region72
      $region71: #{tpu_custom_call.1} parent=11 // pred_region
        _
      $region72: #{tpu_custom_call.1} parent=11 // pred_fallthru
        _
      // Predicated region
      $region73: #{tpu_custom_call.1} parent=11 // pred_check
        %p471 = pneg %p385
      $region74: #{tpu_custom_call.1} parent=11 // pred_check_branch
        %473 = sbr.rel (%p471) target = $region76
      $region75: #{tpu_custom_call.1} parent=11 // pred_region
        _
      $region76: #{tpu_custom_call.1} parent=11 // pred_fallthru
        _
    $region12: #{tpu_custom_call.1} parent=5 // pred_fallthru
      _
    %p474 = scmp.lt.s32.totalorder %s23, 2
    // Predicated region
    $region77: #{tpu_custom_call.1} parent=5 // pred_check
      %p475 = pneg %p474
    $region78: #{tpu_custom_call.1} parent=5 // pred_check_branch
      %477 = sbr.rel (%p475) target = $region80
    $region79: #{tpu_custom_call.1} parent=5 // pred_region
      // Predicated region
      $region81: #{tpu_custom_call.1} parent=79 // pred_check
        %p478 = pneg %p43
      $region82: #{tpu_custom_call.1} parent=79 // pred_check_branch
        %480 = sbr.rel (%p478) target = $region84
      $region83: #{tpu_custom_call.1} parent=79 // pred_region
        %p481 = scmp.lt.s32.totalorder %s23, 1
        %s482 = scalar_select %p481, %s23, 1
        %s483 = smul.addr %s482, 32
        %s484 = smul.addr %s483, 8
        %s485 = scalar_lea.vmem %s0, %s484
      $region84: #{tpu_custom_call.1} parent=79 // pred_fallthru
        _
    $region80: #{tpu_custom_call.1} parent=5 // pred_fallthru
      _
    %p486 = scmp.le.s32.totalorder 1, %s23
    %p487 = scmp.lt.s32.totalorder %s23, 3
    %p488 = pnand %p486, %p487
    %p489 = pneg %p488
    // Predicated region
    $region85: #{tpu_custom_call.1} parent=5 // pred_check
      _
    $region86: #{tpu_custom_call.1} parent=5 // pred_check_branch
      %491 = sbr.rel (%p488) target = $region88
    $region87: #{tpu_custom_call.1} parent=5 // pred_region
      %s492 = ssub.s32 %s23, 1
      %p493 = scmp.lt.s32.totalorder %s28, 1
      %s494 = scalar_select %p493, %s28, 1
      %s495 = smul.addr %s494, 32
      %s496 = smul.addr %s495, 8
      %s497 = scalar_lea.vmem %s0, %s496
      %p498 = pneg %p49
      %p499 = pneg %p46
      %p500 = pneg %p70
      %p501 = pneg %p67
      %p502 = pneg %p91
      %p503 = pneg %p88
      %p504 = pneg %p112
      %p505 = pneg %p109
      %p506 = pneg %p133
      %p507 = pneg %p130
      %p508 = pneg %p154
      %p509 = pneg %p151
      %p510 = pneg %p175
      %p511 = pneg %p172
      %p512 = pneg %p196
      %p513 = pneg %p193
      %p514 = pneg %p217
      %p515 = pneg %p214
      %p516 = pneg %p238
      %p517 = pneg %p235
      %p518 = pneg %p259
      %p519 = pneg %p256
      %p520 = pneg %p280
      %p521 = pneg %p277
      %p522 = pneg %p301
      %p523 = pneg %p298
      %p524 = pneg %p322
      %p525 = pneg %p319
      %p526 = pneg %p343
      %p527 = pneg %p340
      %p528 = pneg %p364
      %p529 = pneg %p361
      %p530 = pneg %p385
      %p531 = pneg %p382
      %p532 = pneg %p411
      %p533 = pneg %p408
      %p534 = scmp.lt.s32.totalorder %s28, 1
      %s535 = scalar_select %p534, %s28, 1
      %s536 = smul.addr %s535, 32
      %s537 = smul.addr %s536, 8
      %s538 = scalar_lea.vmem %s17, %s537
      %p539 = scmp.lt.s32.totalorder %s28, 1
      %s540 = scalar_select %p539, %s28, 1
      %s541 = smul.addr %s540, 32
      %s542 = smul.addr %s541, 8
      %s543 = scalar_lea.vmem %s0, %s542
      %p544 = scmp.lt.s32.totalorder %s28, 1
      %s545 = scalar_select %p544, %s28, 1
      %s546 = smul.addr %s545, 32
      %s547 = smul.addr %s546, 8
      %s548 = scalar_lea.vmem %s17, %s547
      %v550 = vld [vmem:[%s543] sm:$0xff]
      %v551 = vld [vmem:[%s543 + $0x8] sm:$0xff]
      %v552 = vld [vmem:[%s543 + $0x10] sm:$0xff]
      %v553 = vld [vmem:[%s543 + $0x18] sm:$0xff]
      %v554 = vld [vmem:[%s543 + $0x20] sm:$0xff]
      %v555 = vld [vmem:[%s543 + $0x28] sm:$0xff]
      %v556 = vld [vmem:[%s543 + $0x30] sm:$0xff]
      %v557 = vld [vmem:[%s543 + $0x38] sm:$0xff]
      %v558 = vld [vmem:[%s543 + $0x40] sm:$0xff]
      %v559 = vld [vmem:[%s543 + $0x48] sm:$0xff]
      %v560 = vld [vmem:[%s543 + $0x50] sm:$0xff]
      %v561 = vld [vmem:[%s543 + $0x58] sm:$0xff]
      %v562 = vld [vmem:[%s543 + $0x60] sm:$0xff]
      %v563 = vld [vmem:[%s543 + $0x68] sm:$0xff]
      %v564 = vld [vmem:[%s543 + $0x70] sm:$0xff]
      %v565 = vld [vmem:[%s543 + $0x78] sm:$0xff]
      %v566 = vld [vmem:[%s543 + $0x80] sm:$0xff]
      %v567 = vld [vmem:[%s543 + $0x88] sm:$0xff]
      %v568 = vld [vmem:[%s543 + $0x90] sm:$0xff]
      %v569 = vld [vmem:[%s543 + $0x98] sm:$0xff]
      %v570 = vld [vmem:[%s543 + $0xa0] sm:$0xff]
      %v571 = vld [vmem:[%s543 + $0xa8] sm:$0xff]
      %v572 = vld [vmem:[%s543 + $0xb0] sm:$0xff]
      %v573 = vld [vmem:[%s543 + $0xb8] sm:$0xff]
      %v574 = vld [vmem:[%s543 + $0xc0] sm:$0xff]
      %v575 = vld [vmem:[%s543 + $0xc8] sm:$0xff]
      %v576 = vld [vmem:[%s543 + $0xd0] sm:$0xff]
      %v577 = vld [vmem:[%s543 + $0xd8] sm:$0xff]
      %v578 = vld [vmem:[%s543 + $0xe0] sm:$0xff]
      %v579 = vld [vmem:[%s543 + $0xe8] sm:$0xff]
      %v580 = vld [vmem:[%s543 + $0xf0] sm:$0xff]
      %v581 = vld [vmem:[%s543 + $0xf8] sm:$0xff]
      %v582 = vpack.c.bf16 %v551, %v550
      %v583 = vpack.c.bf16 %v553, %v552
      %v584 = vpack.c.bf16 %v555, %v554
      %v585 = vpack.c.bf16 %v557, %v556
      %v586 = vpack.c.bf16 %v559, %v558
      %v587 = vpack.c.bf16 %v561, %v560
      %v588 = vpack.c.bf16 %v563, %v562
      %v589 = vpack.c.bf16 %v565, %v564
      %v590 = vpack.c.bf16 %v567, %v566
      %v591 = vpack.c.bf16 %v569, %v568
      %v592 = vpack.c.bf16 %v571, %v570
      %v593 = vpack.c.bf16 %v573, %v572
      %v594 = vpack.c.bf16 %v575, %v574
      %v595 = vpack.c.bf16 %v577, %v576
      %v596 = vpack.c.bf16 %v579, %v578
      %v597 = vpack.c.bf16 %v581, %v580
      %v598 = vld [vmem:[%s1] sm:$0xf]
      %v599 = vld [vmem:[%s1 + $0x4] sm:$0xf]
      %v600 = vld [vmem:[%s1 + $0x8] sm:$0xf]
      %v601 = vld [vmem:[%s1 + $0xc] sm:$0xf]
      %v606 = vunpack.c.l.b16 %v598
      %v607 = vunpack.c.l.b16 %v599
      %v608 = vunpack.c.l.b16 %v600
      %v609 = vunpack.c.l.b16 %v601
      %v610 = vpack.c.b16 %v607, %v606
      %v611 = vpack.c.b16 %v609, %v608
      %vm614 = vcmask 261120
      %v616 = vsel %vm614, %v582, 0
      %v619 = vsel %vm614, %v583, 0
      %v622 = vsel %vm614, %v584, 0
      %v625 = vsel %vm614, %v585, 0
      %v628 = vsel %vm614, %v586, 0
      %v631 = vsel %vm614, %v587, 0
      %v634 = vsel %vm614, %v588, 0
      %v637 = vsel %vm614, %v589, 0
      %v640 = vsel %vm614, %v590, 0
      %v643 = vsel %vm614, %v591, 0
      %v646 = vsel %vm614, %v592, 0
      %v649 = vsel %vm614, %v593, 0
      %v652 = vsel %vm614, %v594, 0
      %v655 = vsel %vm614, %v595, 0
      %v658 = vsel %vm614, %v596, 0
      %v661 = vsel %vm614, %v597, 0
      %663 = vmatprep.subr.bf16.mxu0 0
      %664 = vmatpush1.bf16.msra.mxu0 %v610
      %665 = vmatprep.subr.bf16.mxu0 0
      %666 = vmatpush1.bf16.msra.mxu0 %v611
      %667 = vmatprep.subr.bf16.mxu0 0
      %668 = vmatpush1.bf16.msra.mxu0 0
      %669 = vmatprep.subr.bf16.mxu0 0
      %670 = vmatpush1.bf16.msra.mxu0 0
      %671 = vmatprep.subr.bf16.mxu0 0
      %672 = vmatpush1.bf16.msra.mxu0 0
      %673 = vmatprep.subr.bf16.mxu0 0
      %674 = vmatpush1.bf16.msra.mxu0 0
      %675 = vmatprep.subr.bf16.mxu0 0
      %676 = vmatpush1.bf16.msra.mxu0 0
      %677 = vmatprep.subr.bf16.mxu0 0
      %678 = vmatpush1.bf16.msra.mxu0 0
      %679 = vmatprep.subr.bf16.mxu0 0
      %680 = vmatpush1.bf16.msra.mxu0 0
      %681 = vmatprep.subr.bf16.mxu0 0
      %682 = vmatpush1.bf16.msra.mxu0 0
      %683 = vmatprep.subr.bf16.mxu0 0
      %684 = vmatpush1.bf16.msra.mxu0 0
      %685 = vmatprep.subr.bf16.mxu0 0
      %686 = vmatpush1.bf16.msra.mxu0 0
      %687 = vmatprep.subr.bf16.mxu0 0
      %688 = vmatpush1.bf16.msra.mxu0 0
      %689 = vmatprep.subr.bf16.mxu0 0
      %690 = vmatpush1.bf16.msra.mxu0 0
      %691 = vmatprep.subr.bf16.mxu0 0
      %692 = vmatpush1.bf16.msra.mxu0 0
      %693 = vmatprep.subr.bf16.mxu0 0
      %694 = vmatpush1.bf16.msra.mxu0 0
      %695 = vmatprep.mubr.bf16.mxu0 0
      %696 = vmatmul.mubr.bf16.gmra.mrb[0].mxu0 %v616
      %v697 = vpop.f32.mrb[0].mxu0
      %v698 = vadd.f32 0.0, %v697
      %v699 = vpop.f32.mrb[0].mxu0
      %v700 = vpop.f32.mrb[0].mxu0
      %v701 = vadd.f32 0.0, %v700
      %v702 = vpop.f32.mrb[0].mxu0
      %703 = vmatprep.mubr.bf16.mxu0 0
      %704 = vmatmul.mubr.bf16.gmra.mrb[0].mxu0 %v619
      %v705 = vpop.f32.mrb[0].mxu0
      %v706 = vadd.f32 0.0, %v705
      %v707 = vpop.f32.mrb[0].mxu0
      %v708 = vpop.f32.mrb[0].mxu0
      %v709 = vadd.f32 0.0, %v708
      %v710 = vpop.f32.mrb[0].mxu0
      %711 = vmatprep.mubr.bf16.mxu0 0
      %712 = vmatmul.mubr.bf16.gmra.mrb[0].mxu0 %v622
      %v713 = vpop.f32.mrb[0].mxu0
      %v714 = vadd.f32 0.0, %v713
      %v715 = vpop.f32.mrb[0].mxu0
      %v716 = vpop.f32.mrb[0].mxu0
      %v717 = vadd.f32 0.0, %v716
      %v718 = vpop.f32.mrb[0].mxu0
      %719 = vmatprep.mubr.bf16.mxu0 0
      %720 = vmatmul.mubr.bf16.gmra.mrb[0].mxu0 %v625
      %v721 = vpop.f32.mrb[0].mxu0
      %v722 = vadd.f32 0.0, %v721
      %v723 = vpop.f32.mrb[0].mxu0
      %v724 = vpop.f32.mrb[0].mxu0
      %v725 = vadd.f32 0.0, %v724
      %v726 = vpop.f32.mrb[0].mxu0
      %727 = vmatprep.mubr.bf16.mxu0 0
      %728 = vmatmul.mubr.bf16.gmra.mrb[0].mxu0 %v628
      %v729 = vpop.f32.mrb[0].mxu0
      %v730 = vadd.f32 0.0, %v729
      %v731 = vpop.f32.mrb[0].mxu0
      %v732 = vpop.f32.mrb[0].mxu0
      %v733 = vadd.f32 0.0, %v732
      %v734 = vpop.f32.mrb[0].mxu0
      %735 = vmatprep.mubr.bf16.mxu0 0
      %736 = vmatmul.mubr.bf16.gmra.mrb[0].mxu0 %v631
      %v737 = vpop.f32.mrb[0].mxu0
      %v738 = vadd.f32 0.0, %v737
      %v739 = vpop.f32.mrb[0].mxu0
      %v740 = vpop.f32.mrb[0].mxu0
      %v741 = vadd.f32 0.0, %v740
      %v742 = vpop.f32.mrb[0].mxu0
      %743 = vmatprep.mubr.bf16.mxu0 0
      %744 = vmatmul.mubr.bf16.gmra.mrb[0].mxu0 %v634
      %v745 = vpop.f32.mrb[0].mxu0
      %v746 = vadd.f32 0.0, %v745
      %v747 = vpop.f32.mrb[0].mxu0
      %v748 = vpop.f32.mrb[0].mxu0
      %v749 = vadd.f32 0.0, %v748
      %v750 = vpop.f32.mrb[0].mxu0
      %751 = vmatprep.mubr.bf16.mxu0 0
      %752 = vmatmul.mubr.bf16.gmra.mrb[0].mxu0 %v637
      %v753 = vpop.f32.mrb[0].mxu0
      %v754 = vadd.f32 0.0, %v753
      %v755 = vpop.f32.mrb[0].mxu0
      %v756 = vpop.f32.mrb[0].mxu0
      %v757 = vadd.f32 0.0, %v756
      %v758 = vpop.f32.mrb[0].mxu0
      %759 = vmatprep.mubr.bf16.mxu0 0
      %760 = vmatmul.mubr.bf16.gmra.mrb[0].mxu0 %v640
      %v761 = vpop.f32.mrb[0].mxu0
      %v762 = vadd.f32 0.0, %v761
      %v763 = vpop.f32.mrb[0].mxu0
      %v764 = vpop.f32.mrb[0].mxu0
      %v765 = vadd.f32 0.0, %v764
      %v766 = vpop.f32.mrb[0].mxu0
      %767 = vmatprep.mubr.bf16.mxu0 0
      %768 = vmatmul.mubr.bf16.gmra.mrb[0].mxu0 %v643
      %v769 = vpop.f32.mrb[0].mxu0
      %v770 = vadd.f32 0.0, %v769
      %v771 = vpop.f32.mrb[0].mxu0
      %v772 = vpop.f32.mrb[0].mxu0
      %v773 = vadd.f32 0.0, %v772
      %v774 = vpop.f32.mrb[0].mxu0
      %775 = vmatprep.mubr.bf16.mxu0 0
      %776 = vmatmul.mubr.bf16.gmra.mrb[0].mxu0 %v646
      %v777 = vpop.f32.mrb[0].mxu0
      %v778 = vadd.f32 0.0, %v777
      %v779 = vpop.f32.mrb[0].mxu0
      %v780 = vpop.f32.mrb[0].mxu0
      %v781 = vadd.f32 0.0, %v780
      %v782 = vpop.f32.mrb[0].mxu0
      %783 = vmatprep.mubr.bf16.mxu0 0
      %784 = vmatmul.mubr.bf16.gmra.mrb[0].mxu0 %v649
      %v785 = vpop.f32.mrb[0].mxu0
      %v786 = vadd.f32 0.0, %v785
      %v787 = vpop.f32.mrb[0].mxu0
      %v788 = vpop.f32.mrb[0].mxu0
      %v789 = vadd.f32 0.0, %v788
      %v790 = vpop.f32.mrb[0].mxu0
      %791 = vmatprep.mubr.bf16.mxu0 0
      %792 = vmatmul.mubr.bf16.gmra.mrb[0].mxu0 %v652
      %v793 = vpop.f32.mrb[0].mxu0
      %v794 = vadd.f32 0.0, %v793
      %v795 = vpop.f32.mrb[0].mxu0
      %v796 = vpop.f32.mrb[0].mxu0
      %v797 = vadd.f32 0.0, %v796
      %v798 = vpop.f32.mrb[0].mxu0
      %799 = vmatprep.mubr.bf16.mxu0 0
      %800 = vmatmul.mubr.bf16.gmra.mrb[0].mxu0 %v655
      %v801 = vpop.f32.mrb[0].mxu0
      %v802 = vadd.f32 0.0, %v801
      %v803 = vpop.f32.mrb[0].mxu0
      %v804 = vpop.f32.mrb[0].mxu0
      %v805 = vadd.f32 0.0, %v804
      %v806 = vpop.f32.mrb[0].mxu0
      %807 = vmatprep.mubr.bf16.mxu0 0
      %808 = vmatmul.mubr.bf16.gmra.mrb[0].mxu0 %v658
      %v809 = vpop.f32.mrb[0].mxu0
      %v810 = vadd.f32 0.0, %v809
      %v811 = vpop.f32.mrb[0].mxu0
      %v812 = vpop.f32.mrb[0].mxu0
      %v813 = vadd.f32 0.0, %v812
      %v814 = vpop.f32.mrb[0].mxu0
      %815 = vmatprep.mubr.bf16.mxu0 0
      %816 = vmatmul.mubr.bf16.gmra.mrb[0].mxu0 %v661
      %v817 = vpop.f32.mrb[0].mxu0
      %v818 = vadd.f32 0.0, %v817
      %v819 = vpop.f32.mrb[0].mxu0
      %v820 = vpop.f32.mrb[0].mxu0
      %v821 = vadd.f32 0.0, %v820
      %v822 = vpop.f32.mrb[0].mxu0
      %823 = vdwg.mxu0
      %v824 = vld [vmem:[%s13] sm:$0xff]
      %v825 = vld [vmem:[%s13 + $0x8] sm:$0xff]
      %v826 = vld [vmem:[%s13 + $0x10] sm:$0xff]
      %v827 = vld [vmem:[%s13 + $0x18] sm:$0xff]
      %v828 = vld [vmem:[%s14] sm:$0xff]
      %v829 = vld [vmem:[%s14 + $0x8] sm:$0xff]
      %v830 = vld [vmem:[%s14 + $0x10] sm:$0xff]
      %v831 = vld [vmem:[%s14 + $0x18] sm:$0xff]
      %v832 = vld [vmem:[%s5] sm:$0x1]
      %v833 = vld [vmem:[%s6] sm:$0x1]
      %v834 = vsel %vm614, %v698, 0.0
      %v835 = vsel %vm614, %v701, 0.0
      %v836 = vadd.f32 %v834, %v835
      %v837 = vsel %vm614, %v706, 0.0
      %v838 = vadd.f32 %v836, %v837
      %v839 = vsel %vm614, %v709, 0.0
      %v840 = vadd.f32 %v838, %v839
      %v841 = vsel %vm614, %v714, 0.0
      %v842 = vadd.f32 %v840, %v841
      %v843 = vsel %vm614, %v717, 0.0
      %v844 = vadd.f32 %v842, %v843
      %v845 = vsel %vm614, %v722, 0.0
      %v846 = vadd.f32 %v844, %v845
      %v847 = vsel %vm614, %v725, 0.0
      %v848 = vadd.f32 %v846, %v847
      %v849 = vsel %vm614, %v730, 0.0
      %v850 = vadd.f32 %v848, %v849
      %v851 = vsel %vm614, %v733, 0.0
      %v852 = vadd.f32 %v850, %v851
      %v853 = vsel %vm614, %v738, 0.0
      %v854 = vadd.f32 %v852, %v853
      %v855 = vsel %vm614, %v741, 0.0
      %v856 = vadd.f32 %v854, %v855
      %v857 = vsel %vm614, %v746, 0.0
      %v858 = vadd.f32 %v856, %v857
      %v859 = vsel %vm614, %v749, 0.0
      %v860 = vadd.f32 %v858, %v859
      %v861 = vsel %vm614, %v754, 0.0
      %v862 = vadd.f32 %v860, %v861
      %v863 = vsel %vm614, %v757, 0.0
      %v864 = vadd.f32 %v862, %v863
      %v865 = vsel %vm614, %v762, 0.0
      %v866 = vadd.f32 %v864, %v865
      %v867 = vsel %vm614, %v765, 0.0
      %v868 = vadd.f32 %v866, %v867
      %v869 = vsel %vm614, %v770, 0.0
      %v870 = vadd.f32 %v868, %v869
      %v871 = vsel %vm614, %v773, 0.0
      %v872 = vadd.f32 %v870, %v871
      %v873 = vsel %vm614, %v778, 0.0
      %v874 = vadd.f32 %v872, %v873
      %v875 = vsel %vm614, %v781, 0.0
      %v876 = vadd.f32 %v874, %v875
      %v877 = vsel %vm614, %v786, 0.0
      %v878 = vadd.f32 %v876, %v877
      %v879 = vsel %vm614, %v789, 0.0
      %v880 = vadd.f32 %v878, %v879
      %v881 = vsel %vm614, %v794, 0.0
      %v882 = vadd.f32 %v880, %v881
      %v883 = vsel %vm614, %v797, 0.0
      %v884 = vadd.f32 %v882, %v883
      %v885 = vsel %vm614, %v802, 0.0
      %v886 = vadd.f32 %v884, %v885
      %v887 = vsel %vm614, %v805, 0.0
      %v888 = vadd.f32 %v886, %v887
      %v889 = vsel %vm614, %v810, 0.0
      %v890 = vadd.f32 %v888, %v889
      %v891 = vsel %vm614, %v813, 0.0
      %v892 = vadd.f32 %v890, %v891
      %v893 = vsel %vm614, %v818, 0.0
      %v894 = vadd.f32 %v892, %v893
      %v895 = vsel %vm614, %v821, 0.0
      %v896 = vadd.f32 %v894, %v895
      %v897 = vrot.slane %v896, 4
      %v898 = vadd.f32 %v896, %v897
      %v899 = vrot.slane %v898, 2
      %v900 = vadd.f32 %v898, %v899
      %v901 = vrot.slane %v900, 1
      %v902 = vadd.f32 %v900, %v901
      %v903 = vmul.f32 %v698, %v698
      %v904 = vmul.f32 %v701, %v701
      %v905 = vmul.f32 %v706, %v706
      %v906 = vmul.f32 %v709, %v709
      %v907 = vmul.f32 %v714, %v714
      %v908 = vmul.f32 %v717, %v717
      %v909 = vmul.f32 %v722, %v722
      %v910 = vmul.f32 %v725, %v725
      %v911 = vmul.f32 %v730, %v730
      %v912 = vmul.f32 %v733, %v733
      %v913 = vmul.f32 %v738, %v738
      %v914 = vmul.f32 %v741, %v741
      %v915 = vmul.f32 %v746, %v746
      %v916 = vmul.f32 %v749, %v749
      %v917 = vmul.f32 %v754, %v754
      %v918 = vmul.f32 %v757, %v757
      %v919 = vmul.f32 %v762, %v762
      %v920 = vmul.f32 %v765, %v765
      %v921 = vmul.f32 %v770, %v770
      %v922 = vmul.f32 %v773, %v773
      %v923 = vmul.f32 %v778, %v778
      %v924 = vmul.f32 %v781, %v781
      %v925 = vmul.f32 %v786, %v786
      %v926 = vmul.f32 %v789, %v789
      %v927 = vmul.f32 %v794, %v794
      %v928 = vmul.f32 %v797, %v797
      %v929 = vmul.f32 %v802, %v802
      %v930 = vmul.f32 %v805, %v805
      %v931 = vmul.f32 %v810, %v810
      %v932 = vmul.f32 %v813, %v813
      %v933 = vmul.f32 %v818, %v818
      %v934 = vmul.f32 %v821, %v821
      %v935 = vsel %vm614, %v903, 0.0
      %v936 = vsel %vm614, %v904, 0.0
      %v937 = vadd.f32 %v935, %v936
      %v938 = vsel %vm614, %v905, 0.0
      %v939 = vadd.f32 %v937, %v938
      %v940 = vsel %vm614, %v906, 0.0
      %v941 = vadd.f32 %v939, %v940
      %v942 = vsel %vm614, %v907, 0.0
      %v943 = vadd.f32 %v941, %v942
      %v944 = vsel %vm614, %v908, 0.0
      %v945 = vadd.f32 %v943, %v944
      %v946 = vsel %vm614, %v909, 0.0
      %v947 = vadd.f32 %v945, %v946
      %v948 = vsel %vm614, %v910, 0.0
      %v949 = vadd.f32 %v947, %v948
      %v950 = vsel %vm614, %v911, 0.0
      %v951 = vadd.f32 %v949, %v950
      %v952 = vsel %vm614, %v912, 0.0
      %v953 = vadd.f32 %v951, %v952
      %v954 = vsel %vm614, %v913, 0.0
      %v955 = vadd.f32 %v953, %v954
      %v956 = vsel %vm614, %v914, 0.0
      %v957 = vadd.f32 %v955, %v956
      %v958 = vsel %vm614, %v915, 0.0
      %v959 = vadd.f32 %v957, %v958
      %v960 = vsel %vm614, %v916, 0.0
      %v961 = vadd.f32 %v959, %v960
      %v962 = vsel %vm614, %v917, 0.0
      %v963 = vadd.f32 %v961, %v962
      %v964 = vsel %vm614, %v918, 0.0
      %v965 = vadd.f32 %v963, %v964
      %v966 = vsel %vm614, %v919, 0.0
      %v967 = vadd.f32 %v965, %v966
      %v968 = vsel %vm614, %v920, 0.0
      %v969 = vadd.f32 %v967, %v968
      %v970 = vsel %vm614, %v921, 0.0
      %v971 = vadd.f32 %v969, %v970
      %v972 = vsel %vm614, %v922, 0.0
      %v973 = vadd.f32 %v971, %v972
      %v974 = vsel %vm614, %v923, 0.0
      %v975 = vadd.f32 %v973, %v974
      %v976 = vsel %vm614, %v924, 0.0
      %v977 = vadd.f32 %v975, %v976
      %v978 = vsel %vm614, %v925, 0.0
      %v979 = vadd.f32 %v977, %v978
      %v980 = vsel %vm614, %v926, 0.0
      %v981 = vadd.f32 %v979, %v980
      %v982 = vsel %vm614, %v927, 0.0
      %v983 = vadd.f32 %v981, %v982
      %v984 = vsel %vm614, %v928, 0.0
      %v985 = vadd.f32 %v983, %v984
      %v986 = vsel %vm614, %v929, 0.0
      %v987 = vadd.f32 %v985, %v986
      %v988 = vsel %vm614, %v930, 0.0
      %v989 = vadd.f32 %v987, %v988
      %v990 = vsel %vm614, %v931, 0.0
      %v991 = vadd.f32 %v989, %v990
      %v992 = vsel %vm614, %v932, 0.0
      %v993 = vadd.f32 %v991, %v992
      %v994 = vsel %vm614, %v933, 0.0
      %v995 = vadd.f32 %v993, %v994
      %v996 = vsel %vm614, %v934, 0.0
      %v997 = vadd.f32 %v995, %v996
      %v998 = vrot.slane %v997, 4
      %v999 = vadd.f32 %v997, %v998
      %v1000 = vrot.slane %v999, 2
      %v1001 = vadd.f32 %v999, %v1000
      %v1002 = vrot.slane %v1001, 1
      %v1003 = vadd.f32 %v1001, %v1002
      %v1005 = vsel %vm614, %v902, 0
      %1007 = vmatprep.subr.mxu0 0.0
      %1008 = vmatpush1.msra.mxu0 %v824
      %1009 = vmatprep.subr.mxu0 0.0
      %1010 = vmatpush1.msra.mxu0 %v825
      %1011 = vmatprep.subr.mxu0 0.0
      %1012 = vmatpush1.msra.mxu0 %v826
      %1013 = vmatprep.subr.mxu0 0.0
      %1014 = vmatpush1.msra.mxu0 %v827
      %1015 = vmatprep.subr.mxu0 0.0
      %1016 = vmatpush1.msra.mxu0 0.0
      %1017 = vmatprep.subr.mxu0 0.0
      %1018 = vmatpush1.msra.mxu0 0.0
      %1019 = vmatprep.subr.mxu0 0.0
      %1020 = vmatpush1.msra.mxu0 0.0
      %1021 = vmatprep.subr.mxu0 0.0
      %1022 = vmatpush1.msra.mxu0 0.0
      %1023 = vmatprep.subr.mxu0 0.0
      %1024 = vmatpush1.msra.mxu0 0.0
      %1025 = vmatprep.subr.mxu0 0.0
      %1026 = vmatpush1.msra.mxu0 0.0
      %1027 = vmatprep.subr.mxu0 0.0
      %1028 = vmatpush1.msra.mxu0 0.0
      %1029 = vmatprep.subr.mxu0 0.0
      %1030 = vmatpush1.msra.mxu0 0.0
      %1031 = vmatprep.subr.mxu0 0.0
      %1032 = vmatpush1.msra.mxu0 0.0
      %1033 = vmatprep.subr.mxu0 0.0
      %1034 = vmatpush1.msra.mxu0 0.0
      %1035 = vmatprep.subr.mxu0 0.0
      %1036 = vmatpush1.msra.mxu0 0.0
      %1037 = vmatprep.subr.mxu0 0.0
      %1038 = vmatpush1.msra.mxu0 0.0
      %1039 = vmatprep.subr.mxu0 0.0
      %1040 = vmatpush1.msra.mxu0 0.0
      %1041 = vmatprep.subr.mxu0 0.0
      %1042 = vmatpush1.msra.mxu0 0.0
      %1043 = vmatprep.subr.mxu0 0.0
      %1044 = vmatpush1.msra.mxu0 0.0
      %1045 = vmatprep.subr.mxu0 0.0
      %1046 = vmatpush1.msra.mxu0 0.0
      %1047 = vmatprep.subr.mxu0 0.0
      %1048 = vmatpush1.msra.mxu0 0.0
      %1049 = vmatprep.subr.mxu0 0.0
      %1050 = vmatpush1.msra.mxu0 0.0
      %1051 = vmatprep.subr.mxu0 0.0
      %1052 = vmatpush1.msra.mxu0 0.0
      %1053 = vmatprep.subr.mxu0 0.0
      %1054 = vmatpush1.msra.mxu0 0.0
      %1055 = vmatprep.subr.mxu0 0.0
      %1056 = vmatpush1.msra.mxu0 0.0
      %1057 = vmatprep.subr.mxu0 0.0
      %1058 = vmatpush1.msra.mxu0 0.0
      %1059 = vmatprep.subr.mxu0 0.0
      %1060 = vmatpush1.msra.mxu0 0.0
      %1061 = vmatprep.subr.mxu0 0.0
      %1062 = vmatpush1.msra.mxu0 0.0
      %1063 = vmatprep.subr.mxu0 0.0
      %1064 = vmatpush1.msra.mxu0 0.0
      %1065 = vmatprep.subr.mxu0 0.0
      %1066 = vmatpush1.msra.mxu0 0.0
      %1067 = vmatprep.subr.mxu0 0.0
      %1068 = vmatpush1.msra.mxu0 0.0
      %1069 = vmatprep.subr.mxu0 0.0
      %1070 = vmatpush1.msra.mxu0 0.0
      %1071 = vmatprep.mubr.f32.mxu0 0.0
      %1072 = vmatmul.mubr.f32.gmra.mrb[0].mxu0 %v1005
      %v1073 = vpop.f32.mrb[0].mxu0
      %v1074 = vadd.f32 0.0, %v1073
      %v1075 = vpop.f32.mrb[0].mxu0
      %1076 = vdwg.mxu0
      %v1078 = vsel %vm614, %v1074, 0
      %1080 = vmatprep.subr.mxu0 0.0
      %1081 = vmatpush1.msra.mxu0 %v828
      %1082 = vmatprep.subr.mxu0 0.0
      %1083 = vmatpush1.msra.mxu0 %v829
      %1084 = vmatprep.subr.mxu0 0.0
      %1085 = vmatpush1.msra.mxu0 %v830
      %1086 = vmatprep.subr.mxu0 0.0
      %1087 = vmatpush1.msra.mxu0 %v831
      %1088 = vmatprep.subr.mxu0 0.0
      %1089 = vmatpush1.msra.mxu0 0.0
      %1090 = vmatprep.subr.mxu0 0.0
      %1091 = vmatpush1.msra.mxu0 0.0
      %1092 = vmatprep.subr.mxu0 0.0
      %1093 = vmatpush1.msra.mxu0 0.0
      %1094 = vmatprep.subr.mxu0 0.0
      %1095 = vmatpush1.msra.mxu0 0.0
      %1096 = vmatprep.subr.mxu0 0.0
      %1097 = vmatpush1.msra.mxu0 0.0
      %1098 = vmatprep.subr.mxu0 0.0
      %1099 = vmatpush1.msra.mxu0 0.0
      %1100 = vmatprep.subr.mxu0 0.0
      %1101 = vmatpush1.msra.mxu0 0.0
      %1102 = vmatprep.subr.mxu0 0.0
      %1103 = vmatpush1.msra.mxu0 0.0
      %1104 = vmatprep.subr.mxu0 0.0
      %1105 = vmatpush1.msra.mxu0 0.0
      %1106 = vmatprep.subr.mxu0 0.0
      %1107 = vmatpush1.msra.mxu0 0.0
      %1108 = vmatprep.subr.mxu0 0.0
      %1109 = vmatpush1.msra.mxu0 0.0
      %1110 = vmatprep.subr.mxu0 0.0
      %1111 = vmatpush1.msra.mxu0 0.0
      %1112 = vmatprep.subr.mxu0 0.0
      %1113 = vmatpush1.msra.mxu0 0.0
      %1114 = vmatprep.subr.mxu0 0.0
      %1115 = vmatpush1.msra.mxu0 0.0
      %1116 = vmatprep.subr.mxu0 0.0
      %1117 = vmatpush1.msra.mxu0 0.0
      %1118 = vmatprep.subr.mxu0 0.0
      %1119 = vmatpush1.msra.mxu0 0.0
      %1120 = vmatprep.subr.mxu0 0.0
      %1121 = vmatpush1.msra.mxu0 0.0
      %1122 = vmatprep.subr.mxu0 0.0
      %1123 = vmatpush1.msra.mxu0 0.0
      %1124 = vmatprep.subr.mxu0 0.0
      %1125 = vmatpush1.msra.mxu0 0.0
      %1126 = vmatprep.subr.mxu0 0.0
      %1127 = vmatpush1.msra.mxu0 0.0
      %1128 = vmatprep.subr.mxu0 0.0
      %1129 = vmatpush1.msra.mxu0 0.0
      %1130 = vmatprep.subr.mxu0 0.0
      %1131 = vmatpush1.msra.mxu0 0.0
      %1132 = vmatprep.subr.mxu0 0.0
      %1133 = vmatpush1.msra.mxu0 0.0
      %1134 = vmatprep.subr.mxu0 0.0
      %1135 = vmatpush1.msra.mxu0 0.0
      %1136 = vmatprep.subr.mxu0 0.0
      %1137 = vmatpush1.msra.mxu0 0.0
      %1138 = vmatprep.subr.mxu0 0.0
      %1139 = vmatpush1.msra.mxu0 0.0
      %1140 = vmatprep.subr.mxu0 0.0
      %1141 = vmatpush1.msra.mxu0 0.0
      %1142 = vmatprep.subr.mxu0 0.0
      %1143 = vmatpush1.msra.mxu0 0.0
      %1144 = vmatprep.mubr.f32.mxu0 0.0
      %1145 = vmatmul.mubr.f32.gmra.mrb[0].mxu0 %v1078
      %v1146 = vpop.f32.mrb[0].mxu0
      %v1147 = vadd.f32 0.0, %v1146
      %v1148 = vpop.f32.mrb[0].mxu0
      %1149 = vdwg.mxu0
      %v1151 = vsel %vm614, %v1003, 0
      %1153 = vmatprep.subr.mxu0 0.0
      %1154 = vmatpush1.msra.mxu0 %v824
      %1155 = vmatprep.subr.mxu0 0.0
      %1156 = vmatpush1.msra.mxu0 %v825
      %1157 = vmatprep.subr.mxu0 0.0
      %1158 = vmatpush1.msra.mxu0 %v826
      %1159 = vmatprep.subr.mxu0 0.0
      %1160 = vmatpush1.msra.mxu0 %v827
      %1161 = vmatprep.subr.mxu0 0.0
      %1162 = vmatpush1.msra.mxu0 0.0
      %1163 = vmatprep.subr.mxu0 0.0
      %1164 = vmatpush1.msra.mxu0 0.0
      %1165 = vmatprep.subr.mxu0 0.0
      %1166 = vmatpush1.msra.mxu0 0.0
      %1167 = vmatprep.subr.mxu0 0.0
      %1168 = vmatpush1.msra.mxu0 0.0
      %1169 = vmatprep.subr.mxu0 0.0
      %1170 = vmatpush1.msra.mxu0 0.0
      %1171 = vmatprep.subr.mxu0 0.0
      %1172 = vmatpush1.msra.mxu0 0.0
      %1173 = vmatprep.subr.mxu0 0.0
      %1174 = vmatpush1.msra.mxu0 0.0
      %1175 = vmatprep.subr.mxu0 0.0
      %1176 = vmatpush1.msra.mxu0 0.0
      %1177 = vmatprep.subr.mxu0 0.0
      %1178 = vmatpush1.msra.mxu0 0.0
      %1179 = vmatprep.subr.mxu0 0.0
      %1180 = vmatpush1.msra.mxu0 0.0
      %1181 = vmatprep.subr.mxu0 0.0
      %1182 = vmatpush1.msra.mxu0 0.0
      %1183 = vmatprep.subr.mxu0 0.0
      %1184 = vmatpush1.msra.mxu0 0.0
      %1185 = vmatprep.subr.mxu0 0.0
      %1186 = vmatpush1.msra.mxu0 0.0
      %1187 = vmatprep.subr.mxu0 0.0
      %1188 = vmatpush1.msra.mxu0 0.0
      %1189 = vmatprep.subr.mxu0 0.0
      %1190 = vmatpush1.msra.mxu0 0.0
      %1191 = vmatprep.subr.mxu0 0.0
      %1192 = vmatpush1.msra.mxu0 0.0
      %1193 = vmatprep.subr.mxu0 0.0
      %1194 = vmatpush1.msra.mxu0 0.0
      %1195 = vmatprep.subr.mxu0 0.0
      %1196 = vmatpush1.msra.mxu0 0.0
      %1197 = vmatprep.subr.mxu0 0.0
      %1198 = vmatpush1.msra.mxu0 0.0
      %1199 = vmatprep.subr.mxu0 0.0
      %1200 = vmatpush1.msra.mxu0 0.0
      %1201 = vmatprep.subr.mxu0 0.0
      %1202 = vmatpush1.msra.mxu0 0.0
      %1203 = vmatprep.subr.mxu0 0.0
      %1204 = vmatpush1.msra.mxu0 0.0
      %1205 = vmatprep.subr.mxu0 0.0
      %1206 = vmatpush1.msra.mxu0 0.0
      %1207 = vmatprep.subr.mxu0 0.0
      %1208 = vmatpush1.msra.mxu0 0.0
      %1209 = vmatprep.subr.mxu0 0.0
      %1210 = vmatpush1.msra.mxu0 0.0
      %1211 = vmatprep.subr.mxu0 0.0
      %1212 = vmatpush1.msra.mxu0 0.0
      %1213 = vmatprep.subr.mxu0 0.0
      %1214 = vmatpush1.msra.mxu0 0.0
      %1215 = vmatprep.subr.mxu0 0.0
      %1216 = vmatpush1.msra.mxu0 0.0
      %1217 = vmatprep.mubr.f32.mxu0 0.0
      %1218 = vmatmul.mubr.f32.gmra.mrb[0].mxu0 %v1151
      %v1219 = vpop.f32.mrb[0].mxu0
      %v1220 = vadd.f32 0.0, %v1219
      %v1221 = vpop.f32.mrb[0].mxu0
      %1222 = vdwg.mxu0
      %v1224 = vsel %vm614, %v1220, 0
      %1226 = vmatprep.subr.mxu0 0.0
      %1227 = vmatpush1.msra.mxu0 %v828
      %1228 = vmatprep.subr.mxu0 0.0
      %1229 = vmatpush1.msra.mxu0 %v829
      %1230 = vmatprep.subr.mxu0 0.0
      %1231 = vmatpush1.msra.mxu0 %v830
      %1232 = vmatprep.subr.mxu0 0.0
      %1233 = vmatpush1.msra.mxu0 %v831
      %1234 = vmatprep.subr.mxu0 0.0
      %1235 = vmatpush1.msra.mxu0 0.0
      %1236 = vmatprep.subr.mxu0 0.0
      %1237 = vmatpush1.msra.mxu0 0.0
      %1238 = vmatprep.subr.mxu0 0.0
      %1239 = vmatpush1.msra.mxu0 0.0
      %1240 = vmatprep.subr.mxu0 0.0
      %1241 = vmatpush1.msra.mxu0 0.0
      %1242 = vmatprep.subr.mxu0 0.0
      %1243 = vmatpush1.msra.mxu0 0.0
      %1244 = vmatprep.subr.mxu0 0.0
      %1245 = vmatpush1.msra.mxu0 0.0
      %1246 = vmatprep.subr.mxu0 0.0
      %1247 = vmatpush1.msra.mxu0 0.0
      %1248 = vmatprep.subr.mxu0 0.0
      %1249 = vmatpush1.msra.mxu0 0.0
      %1250 = vmatprep.subr.mxu0 0.0
      %1251 = vmatpush1.msra.mxu0 0.0
      %1252 = vmatprep.subr.mxu0 0.0
      %1253 = vmatpush1.msra.mxu0 0.0
      %1254 = vmatprep.subr.mxu0 0.0
      %1255 = vmatpush1.msra.mxu0 0.0
      %1256 = vmatprep.subr.mxu0 0.0
      %1257 = vmatpush1.msra.mxu0 0.0
      %1258 = vmatprep.subr.mxu0 0.0
      %1259 = vmatpush1.msra.mxu0 0.0
      %1260 = vmatprep.subr.mxu0 0.0
      %1261 = vmatpush1.msra.mxu0 0.0
      %1262 = vmatprep.subr.mxu0 0.0
      %1263 = vmatpush1.msra.mxu0 0.0
      %1264 = vmatprep.subr.mxu0 0.0
      %1265 = vmatpush1.msra.mxu0 0.0
      %1266 = vmatprep.subr.mxu0 0.0
      %1267 = vmatpush1.msra.mxu0 0.0
      %1268 = vmatprep.subr.mxu0 0.0
      %1269 = vmatpush1.msra.mxu0 0.0
      %1270 = vmatprep.subr.mxu0 0.0
      %1271 = vmatpush1.msra.mxu0 0.0
      %1272 = vmatprep.subr.mxu0 0.0
      %1273 = vmatpush1.msra.mxu0 0.0
      %1274 = vmatprep.subr.mxu0 0.0
      %1275 = vmatpush1.msra.mxu0 0.0
      %1276 = vmatprep.subr.mxu0 0.0
      %1277 = vmatpush1.msra.mxu0 0.0
      %1278 = vmatprep.subr.mxu0 0.0
      %1279 = vmatpush1.msra.mxu0 0.0
      %1280 = vmatprep.subr.mxu0 0.0
      %1281 = vmatpush1.msra.mxu0 0.0
      %1282 = vmatprep.subr.mxu0 0.0
      %1283 = vmatpush1.msra.mxu0 0.0
      %1284 = vmatprep.subr.mxu0 0.0
      %1285 = vmatpush1.msra.mxu0 0.0
      %1286 = vmatprep.subr.mxu0 0.0
      %1287 = vmatpush1.msra.mxu0 0.0
      %1288 = vmatprep.subr.mxu0 0.0
      %1289 = vmatpush1.msra.mxu0 0.0
      %1290 = vmatprep.mubr.f32.mxu0 0.0
      %1291 = vmatmul.mubr.f32.gmra.mrb[0].mxu0 %v1224
      %v1292 = vpop.f32.mrb[0].mxu0
      %v1293 = vadd.f32 0.0, %v1292
      %v1294 = vpop.f32.mrb[0].mxu0
      %1295 = vdwg.mxu0
      %v1296 = vrcp.pop 256.0
      %v1297 = vmul.f32 %v1147, %v1296
      %v1298 = vmul.f32 %v1293, %v1296
      %v1299 = vmul.f32 %v1297, %v1297
      %v1300 = vsub.f32 %v1298, %v1299
      %v1301 = vadd.f32 %v1300, 1e-06
      %v1302 = vrsqrt.pop %v1301
      %v1303 = vlaneseq
      %v1304 = vshrl.u32 %v1303, 7
      %v1305 = vsub.s32 0, %v1304
      %v1306 = vrot.slane %v1297, %v1305
      %v1307 = vsub.f32 %v698, %v1306
      %v1308 = vsub.f32 %v701, %v1306
      %v1309 = vsub.f32 %v706, %v1306
      %v1310 = vsub.f32 %v709, %v1306
      %v1311 = vsub.f32 %v714, %v1306
      %v1312 = vsub.f32 %v717, %v1306
      %v1313 = vsub.f32 %v722, %v1306
      %v1314 = vsub.f32 %v725, %v1306
      %v1315 = vsub.f32 %v730, %v1306
      %v1316 = vsub.f32 %v733, %v1306
      %v1317 = vsub.f32 %v738, %v1306
      %v1318 = vsub.f32 %v741, %v1306
      %v1319 = vsub.f32 %v746, %v1306
      %v1320 = vsub.f32 %v749, %v1306
      %v1321 = vsub.f32 %v754, %v1306
      %v1322 = vsub.f32 %v757, %v1306
      %v1323 = vsub.f32 %v762, %v1306
      %v1324 = vsub.f32 %v765, %v1306
      %v1325 = vsub.f32 %v770, %v1306
      %v1326 = vsub.f32 %v773, %v1306
      %v1327 = vsub.f32 %v778, %v1306
      %v1328 = vsub.f32 %v781, %v1306
      %v1329 = vsub.f32 %v786, %v1306
      %v1330 = vsub.f32 %v789, %v1306
      %v1331 = vsub.f32 %v794, %v1306
      %v1332 = vsub.f32 %v797, %v1306
      %v1333 = vsub.f32 %v802, %v1306
      %v1334 = vsub.f32 %v805, %v1306
      %v1335 = vsub.f32 %v810, %v1306
      %v1336 = vsub.f32 %v813, %v1306
      %v1337 = vsub.f32 %v818, %v1306
      %v1338 = vsub.f32 %v821, %v1306
      %v1339 = vmul.f32 %v1302, %v832
      %v1340 = vlaneseq
      %v1341 = vshrl.u32 %v1340, 7
      %v1342 = vsub.s32 0, %v1341
      %v1343 = vrot.slane %v1339, %v1342
      %v1344 = vmul.f32 %v1307, %v1343
      %v1345 = vmul.f32 %v1308, %v1343
      %v1346 = vmul.f32 %v1309, %v1343
      %v1347 = vmul.f32 %v1310, %v1343
      %v1348 = vmul.f32 %v1311, %v1343
      %v1349 = vmul.f32 %v1312, %v1343
      %v1350 = vmul.f32 %v1313, %v1343
      %v1351 = vmul.f32 %v1314, %v1343
      %v1352 = vmul.f32 %v1315, %v1343
      %v1353 = vmul.f32 %v1316, %v1343
      %v1354 = vmul.f32 %v1317, %v1343
      %v1355 = vmul.f32 %v1318, %v1343
      %v1356 = vmul.f32 %v1319, %v1343
      %v1357 = vmul.f32 %v1320, %v1343
      %v1358 = vmul.f32 %v1321, %v1343
      %v1359 = vmul.f32 %v1322, %v1343
      %v1360 = vmul.f32 %v1323, %v1343
      %v1361 = vmul.f32 %v1324, %v1343
      %v1362 = vmul.f32 %v1325, %v1343
      %v1363 = vmul.f32 %v1326, %v1343
      %v1364 = vmul.f32 %v1327, %v1343
      %v1365 = vmul.f32 %v1328, %v1343
      %v1366 = vmul.f32 %v1329, %v1343
      %v1367 = vmul.f32 %v1330, %v1343
      %v1368 = vmul.f32 %v1331, %v1343
      %v1369 = vmul.f32 %v1332, %v1343
      %v1370 = vmul.f32 %v1333, %v1343
      %v1371 = vmul.f32 %v1334, %v1343
      %v1372 = vmul.f32 %v1335, %v1343
      %v1373 = vmul.f32 %v1336, %v1343
      %v1374 = vmul.f32 %v1337, %v1343
      %v1375 = vmul.f32 %v1338, %v1343
      %v1377 = vlaneseq
      %v1378 = vshrl.u32 %v1377, 7
      %v1379 = vsub.s32 0, %v1378
      %v1380 = vrot.slane %v833, %v1379
      %v1382 = vadd.f32 %v1344, %v1380
      %v1383 = vadd.f32 %v1345, %v1380
      %v1384 = vadd.f32 %v1346, %v1380
      %v1385 = vadd.f32 %v1347, %v1380
      %v1386 = vadd.f32 %v1348, %v1380
      %v1387 = vadd.f32 %v1349, %v1380
      %v1388 = vadd.f32 %v1350, %v1380
      %v1389 = vadd.f32 %v1351, %v1380
      %v1390 = vadd.f32 %v1352, %v1380
      %v1391 = vadd.f32 %v1353, %v1380
      %v1392 = vadd.f32 %v1354, %v1380
      %v1393 = vadd.f32 %v1355, %v1380
      %v1394 = vadd.f32 %v1356, %v1380
      %v1395 = vadd.f32 %v1357, %v1380
      %v1396 = vadd.f32 %v1358, %v1380
      %v1397 = vadd.f32 %v1359, %v1380
      %v1398 = vadd.f32 %v1360, %v1380
      %v1399 = vadd.f32 %v1361, %v1380
      %v1400 = vadd.f32 %v1362, %v1380
      %v1401 = vadd.f32 %v1363, %v1380
      %v1402 = vadd.f32 %v1364, %v1380
      %v1403 = vadd.f32 %v1365, %v1380
      %v1404 = vadd.f32 %v1366, %v1380
      %v1405 = vadd.f32 %v1367, %v1380
      %v1406 = vadd.f32 %v1368, %v1380
      %v1407 = vadd.f32 %v1369, %v1380
      %v1408 = vadd.f32 %v1370, %v1380
      %v1409 = vadd.f32 %v1371, %v1380
      %v1410 = vadd.f32 %v1372, %v1380
      %v1411 = vadd.f32 %v1373, %v1380
      %v1412 = vadd.f32 %v1374, %v1380
      %v1413 = vadd.f32 %v1375, %v1380
      %v1414 = vmax.f32 %v1382, 0.0
      %v1415 = vmax.f32 %v1383, 0.0
      %v1416 = vmax.f32 %v1384, 0.0
      %v1417 = vmax.f32 %v1385, 0.0
      %v1418 = vmax.f32 %v1386, 0.0
      %v1419 = vmax.f32 %v1387, 0.0
      %v1420 = vmax.f32 %v1388, 0.0
      %v1421 = vmax.f32 %v1389, 0.0
      %v1422 = vmax.f32 %v1390, 0.0
      %v1423 = vmax.f32 %v1391, 0.0
      %v1424 = vmax.f32 %v1392, 0.0
      %v1425 = vmax.f32 %v1393, 0.0
      %v1426 = vmax.f32 %v1394, 0.0
      %v1427 = vmax.f32 %v1395, 0.0
      %v1428 = vmax.f32 %v1396, 0.0
      %v1429 = vmax.f32 %v1397, 0.0
      %v1430 = vmax.f32 %v1398, 0.0
      %v1431 = vmax.f32 %v1399, 0.0
      %v1432 = vmax.f32 %v1400, 0.0
      %v1433 = vmax.f32 %v1401, 0.0
      %v1434 = vmax.f32 %v1402, 0.0
      %v1435 = vmax.f32 %v1403, 0.0
      %v1436 = vmax.f32 %v1404, 0.0
      %v1437 = vmax.f32 %v1405, 0.0
      %v1438 = vmax.f32 %v1406, 0.0
      %v1439 = vmax.f32 %v1407, 0.0
      %v1440 = vmax.f32 %v1408, 0.0
      %v1441 = vmax.f32 %v1409, 0.0
      %v1442 = vmax.f32 %v1410, 0.0
      %v1443 = vmax.f32 %v1411, 0.0
      %v1444 = vmax.f32 %v1412, 0.0
      %v1445 = vmax.f32 %v1413, 0.0
      %s1446 = scalar_lea.vmem [#allocation2], 24
      %1447 = vst.msk [vmem:[%s1446 + $0x1] sm:$0xff] %vm614, %v1414
      %1448 = vst.msk [vmem:[%s1446 + $0x9] sm:$0xff] %vm614, %v1415
      %1449 = vst.msk [vmem:[%s1446 + $0x19] sm:$0xff] %vm614, %v1416
      %1450 = vst.msk [vmem:[%s1446 + $0x21] sm:$0xff] %vm614, %v1417
      %1451 = vst.msk [vmem:[%s1446 + $0x31] sm:$0xff] %vm614, %v1418
      %1452 = vst.msk [vmem:[%s1446 + $0x39] sm:$0xff] %vm614, %v1419
      %1453 = vst.msk [vmem:[%s1446 + $0x49] sm:$0xff] %vm614, %v1420
      %1454 = vst.msk [vmem:[%s1446 + $0x51] sm:$0xff] %vm614, %v1421
      %1455 = vst.msk [vmem:[%s1446 + $0x61] sm:$0xff] %vm614, %v1422
      %1456 = vst.msk [vmem:[%s1446 + $0x69] sm:$0xff] %vm614, %v1423
      %1457 = vst.msk [vmem:[%s1446 + $0x79] sm:$0xff] %vm614, %v1424
      %1458 = vst.msk [vmem:[%s1446 + $0x81] sm:$0xff] %vm614, %v1425
      %1459 = vst.msk [vmem:[%s1446 + $0x91] sm:$0xff] %vm614, %v1426
      %1460 = vst.msk [vmem:[%s1446 + $0x99] sm:$0xff] %vm614, %v1427
      %1461 = vst.msk [vmem:[%s1446 + $0xa9] sm:$0xff] %vm614, %v1428
      %1462 = vst.msk [vmem:[%s1446 + $0xb1] sm:$0xff] %vm614, %v1429
      %1463 = vst.msk [vmem:[%s1446 + $0xc1] sm:$0xff] %vm614, %v1430
      %1464 = vst.msk [vmem:[%s1446 + $0xc9] sm:$0xff] %vm614, %v1431
      %1465 = vst.msk [vmem:[%s1446 + $0xd9] sm:$0xff] %vm614, %v1432
      %1466 = vst.msk [vmem:[%s1446 + $0xe1] sm:$0xff] %vm614, %v1433
      %1467 = vst.msk [vmem:[%s1446 + $0xf1] sm:$0xff] %vm614, %v1434
      %1468 = vst.msk [vmem:[%s1446 + $0xf9] sm:$0xff] %vm614, %v1435
      %1469 = vst.msk [vmem:[%s1446 + $0x109] sm:$0xff] %vm614, %v1436
      %1470 = vst.msk [vmem:[%s1446 + $0x111] sm:$0xff] %vm614, %v1437
      %1471 = vst.msk [vmem:[%s1446 + $0x121] sm:$0xff] %vm614, %v1438
      %1472 = vst.msk [vmem:[%s1446 + $0x129] sm:$0xff] %vm614, %v1439
      %1473 = vst.msk [vmem:[%s1446 + $0x139] sm:$0xff] %vm614, %v1440
      %1474 = vst.msk [vmem:[%s1446 + $0x141] sm:$0xff] %vm614, %v1441
      %1475 = vst.msk [vmem:[%s1446 + $0x151] sm:$0xff] %vm614, %v1442
      %1476 = vst.msk [vmem:[%s1446 + $0x159] sm:$0xff] %vm614, %v1443
      %1477 = vst.msk [vmem:[%s1446 + $0x169] sm:$0xff] %vm614, %v1444
      %1478 = vst.msk [vmem:[%s1446 + $0x171] sm:$0xff] %vm614, %v1445
      %1479 = vst.msk [vmem:[#allocation2] sm:$0xff] %vm614, 0.0
      %1480 = vst.msk [vmem:[#allocation2 + $0x8] sm:$0xff] %vm614, 0.0
      %vm1481 = vcmask 254976
      %1482 = vst.msk [vmem:[#allocation2 + $0x10] sm:$0x3] %vm1481, 0.0
      %s1483 = scalar_lea.vmem [#allocation2], 408
      %1484 = vst.msk [vmem:[%s1483] sm:$0xff] %vm614, 0.0
      %1485 = vst.msk [vmem:[%s1483 + $0x8] sm:$0xff] %vm614, 0.0
      %1486 = vst.msk [vmem:[%s1483 + $0x10] sm:$0x3] %vm1481, 0.0
      %vm1487 = vcmask 253952
      %1488 = vst.msk [vmem:[%s1446] sm:$0x1] %vm1487, 0.0
      %1489 = vst.msk [vmem:[%s1446 + $0x18] sm:$0x1] %vm1487, 0.0
      %1490 = vst.msk [vmem:[%s1446 + $0x30] sm:$0x1] %vm1487, 0.0
      %1491 = vst.msk [vmem:[%s1446 + $0x48] sm:$0x1] %vm1487, 0.0
      %1492 = vst.msk [vmem:[%s1446 + $0x60] sm:$0x1] %vm1487, 0.0
      %1493 = vst.msk [vmem:[%s1446 + $0x78] sm:$0x1] %vm1487, 0.0
      %1494 = vst.msk [vmem:[%s1446 + $0x90] sm:$0x1] %vm1487, 0.0
      %1495 = vst.msk [vmem:[%s1446 + $0xa8] sm:$0x1] %vm1487, 0.0
      %1496 = vst.msk [vmem:[%s1446 + $0xc0] sm:$0x1] %vm1487, 0.0
      %1497 = vst.msk [vmem:[%s1446 + $0xd8] sm:$0x1] %vm1487, 0.0
      %1498 = vst.msk [vmem:[%s1446 + $0xf0] sm:$0x1] %vm1487, 0.0
      %1499 = vst.msk [vmem:[%s1446 + $0x108] sm:$0x1] %vm1487, 0.0
      %1500 = vst.msk [vmem:[%s1446 + $0x120] sm:$0x1] %vm1487, 0.0
      %1501 = vst.msk [vmem:[%s1446 + $0x138] sm:$0x1] %vm1487, 0.0
      %1502 = vst.msk [vmem:[%s1446 + $0x150] sm:$0x1] %vm1487, 0.0
      %1503 = vst.msk [vmem:[%s1446 + $0x168] sm:$0x1] %vm1487, 0.0
      %1504 = vst.msk [vmem:[%s1446 + $0x11] sm:$0x1] %vm1487, 0.0
      %1505 = vst.msk [vmem:[%s1446 + $0x29] sm:$0x1] %vm1487, 0.0
      %1506 = vst.msk [vmem:[%s1446 + $0x41] sm:$0x1] %vm1487, 0.0
      %1507 = vst.msk [vmem:[%s1446 + $0x59] sm:$0x1] %vm1487, 0.0
      %1508 = vst.msk [vmem:[%s1446 + $0x71] sm:$0x1] %vm1487, 0.0
      %1509 = vst.msk [vmem:[%s1446 + $0x89] sm:$0x1] %vm1487, 0.0
      %1510 = vst.msk [vmem:[%s1446 + $0xa1] sm:$0x1] %vm1487, 0.0
      %1511 = vst.msk [vmem:[%s1446 + $0xb9] sm:$0x1] %vm1487, 0.0
      %1512 = vst.msk [vmem:[%s1446 + $0xd1] sm:$0x1] %vm1487, 0.0
      %1513 = vst.msk [vmem:[%s1446 + $0xe9] sm:$0x1] %vm1487, 0.0
      %1514 = vst.msk [vmem:[%s1446 + $0x101] sm:$0x1] %vm1487, 0.0
      %1515 = vst.msk [vmem:[%s1446 + $0x119] sm:$0x1] %vm1487, 0.0
      %1516 = vst.msk [vmem:[%s1446 + $0x131] sm:$0x1] %vm1487, 0.0
      %1517 = vst.msk [vmem:[%s1446 + $0x149] sm:$0x1] %vm1487, 0.0
      %1518 = vst.msk [vmem:[%s1446 + $0x161] sm:$0x1] %vm1487, 0.0
      %1519 = vst.msk [vmem:[%s1446 + $0x179] sm:$0x1] %vm1487, 0.0
      %v1520 = vld [vmem:[#allocation2] sm:$0xff]
      %v1521 = vld [vmem:[#allocation2 + $0x8] sm:$0xff]
      %v1522 = vld [vmem:[#allocation2 + $0x18] sm:$0xff]
      %v1523 = vld [vmem:[#allocation2 + $0x20] sm:$0xff]
      %v1524 = vld [vmem:[#allocation2 + $0x30] sm:$0xff]
      %v1525 = vld [vmem:[#allocation2 + $0x38] sm:$0xff]
      %v1526 = vld [vmem:[#allocation2 + $0x48] sm:$0xff]
      %v1527 = vld [vmem:[#allocation2 + $0x50] sm:$0xff]
      %v1528 = vld [vmem:[#allocation2 + $0x60] sm:$0xff]
      %v1529 = vld [vmem:[#allocation2 + $0x68] sm:$0xff]
      %v1530 = vld [vmem:[#allocation2 + $0x78] sm:$0xff]
      %v1531 = vld [vmem:[#allocation2 + $0x80] sm:$0xff]
      %v1532 = vld [vmem:[#allocation2 + $0x90] sm:$0xff]
      %v1533 = vld [vmem:[#allocation2 + $0x98] sm:$0xff]
      %v1534 = vld [vmem:[#allocation2 + $0xa8] sm:$0xff]
      %v1535 = vld [vmem:[#allocation2 + $0xb0] sm:$0xff]
      %v1536 = vld [vmem:[#allocation2 + $0xc0] sm:$0xff]
      %v1537 = vld [vmem:[#allocation2 + $0xc8] sm:$0xff]
      %v1538 = vld [vmem:[#allocation2 + $0xd8] sm:$0xff]
      %v1539 = vld [vmem:[#allocation2 + $0xe0] sm:$0xff]
      %v1540 = vld [vmem:[#allocation2 + $0xf0] sm:$0xff]
      %v1541 = vld [vmem:[#allocation2 + $0xf8] sm:$0xff]
      %v1542 = vld [vmem:[#allocation2 + $0x108] sm:$0xff]
      %v1543 = vld [vmem:[#allocation2 + $0x110] sm:$0xff]
      %v1544 = vld [vmem:[#allocation2 + $0x120] sm:$0xff]
      %v1545 = vld [vmem:[#allocation2 + $0x128] sm:$0xff]
      %v1546 = vld [vmem:[#allocation2 + $0x138] sm:$0xff]
      %v1547 = vld [vmem:[#allocation2 + $0x140] sm:$0xff]
      %v1548 = vld [vmem:[#allocation2 + $0x150] sm:$0xff]
      %v1549 = vld [vmem:[#allocation2 + $0x158] sm:$0xff]
      %v1550 = vld [vmem:[#allocation2 + $0x168] sm:$0xff]
      %v1551 = vld [vmem:[#allocation2 + $0x170] sm:$0xff]
      %v1552 = vpack.c.bf16 %v1521, %v1520
      %v1553 = vpack.c.bf16 %v1523, %v1522
      %v1554 = vpack.c.bf16 %v1525, %v1524
      %v1555 = vpack.c.bf16 %v1527, %v1526
      %v1556 = vpack.c.bf16 %v1529, %v1528
      %v1557 = vpack.c.bf16 %v1531, %v1530
      %v1558 = vpack.c.bf16 %v1533, %v1532
      %v1559 = vpack.c.bf16 %v1535, %v1534
      %v1560 = vpack.c.bf16 %v1537, %v1536
      %v1561 = vpack.c.bf16 %v1539, %v1538
      %v1562 = vpack.c.bf16 %v1541, %v1540
      %v1563 = vpack.c.bf16 %v1543, %v1542
      %v1564 = vpack.c.bf16 %v1545, %v1544
      %v1565 = vpack.c.bf16 %v1547, %v1546
      %v1566 = vpack.c.bf16 %v1549, %v1548
      %v1567 = vpack.c.bf16 %v1551, %v1550
      %v1568 = vld [vmem:[%s2] sm:$0xf]
      %v1569 = vld [vmem:[%s2 + $0x4] sm:$0xf]
      %v1570 = vld [vmem:[%s2 + $0x8] sm:$0xf]
      %v1571 = vld [vmem:[%s2 + $0xc] sm:$0xf]
      %v1572 = vld [vmem:[#allocation2 + $0x1] sm:$0xff]
      %v1573 = vld [vmem:[#allocation2 + $0x9] sm:$0xff]
      %v1574 = vld [vmem:[#allocation2 + $0x19] sm:$0xff]
      %v1575 = vld [vmem:[#allocation2 + $0x21] sm:$0xff]
      %v1576 = vld [vmem:[#allocation2 + $0x31] sm:$0xff]
      %v1577 = vld [vmem:[#allocation2 + $0x39] sm:$0xff]
      %v1578 = vld [vmem:[#allocation2 + $0x49] sm:$0xff]
      %v1579 = vld [vmem:[#allocation2 + $0x51] sm:$0xff]
      %v1580 = vld [vmem:[#allocation2 + $0x61] sm:$0xff]
      %v1581 = vld [vmem:[#allocation2 + $0x69] sm:$0xff]
      %v1582 = vld [vmem:[#allocation2 + $0x79] sm:$0xff]
      %v1583 = vld [vmem:[#allocation2 + $0x81] sm:$0xff]
      %v1584 = vld [vmem:[#allocation2 + $0x91] sm:$0xff]
      %v1585 = vld [vmem:[#allocation2 + $0x99] sm:$0xff]
      %v1586 = vld [vmem:[#allocation2 + $0xa9] sm:$0xff]
      %v1587 = vld [vmem:[#allocation2 + $0xb1] sm:$0xff]
      %v1588 = vld [vmem:[#allocation2 + $0xc1] sm:$0xff]
      %v1589 = vld [vmem:[#allocation2 + $0xc9] sm:$0xff]
      %v1590 = vld [vmem:[#allocation2 + $0xd9] sm:$0xff]
      %v1591 = vld [vmem:[#allocation2 + $0xe1] sm:$0xff]
      %v1592 = vld [vmem:[#allocation2 + $0xf1] sm:$0xff]
      %v1593 = vld [vmem:[#allocation2 + $0xf9] sm:$0xff]
      %v1594 = vld [vmem:[#allocation2 + $0x109] sm:$0xff]
      %v1595 = vld [vmem:[#allocation2 + $0x111] sm:$0xff]
      %v1596 = vld [vmem:[#allocation2 + $0x121] sm:$0xff]
      %v1597 = vld [vmem:[#allocation2 + $0x129] sm:$0xff]
      %v1598 = vld [vmem:[#allocation2 + $0x139] sm:$0xff]
      %v1599 = vld [vmem:[#allocation2 + $0x141] sm:$0xff]
      %v1600 = vld [vmem:[#allocation2 + $0x151] sm:$0xff]
      %v1601 = vld [vmem:[#allocation2 + $0x159] sm:$0xff]
      %v1602 = vld [vmem:[#allocation2 + $0x169] sm:$0xff]
      %v1603 = vld [vmem:[#allocation2 + $0x171] sm:$0xff]
      %v1604 = vpack.c.bf16 %v1573, %v1572
      %v1605 = vpack.c.bf16 %v1575, %v1574
      %v1606 = vpack.c.bf16 %v1577, %v1576
      %v1607 = vpack.c.bf16 %v1579, %v1578
      %v1608 = vpack.c.bf16 %v1581, %v1580
      %v1609 = vpack.c.bf16 %v1583, %v1582
      %v1610 = vpack.c.bf16 %v1585, %v1584
      %v1611 = vpack.c.bf16 %v1587, %v1586
      %v1612 = vpack.c.bf16 %v1589, %v1588
      %v1613 = vpack.c.bf16 %v1591, %v1590
      %v1614 = vpack.c.bf16 %v1593, %v1592
      %v1615 = vpack.c.bf16 %v1595, %v1594
      %v1616 = vpack.c.bf16 %v1597, %v1596
      %v1617 = vpack.c.bf16 %v1599, %v1598
      %v1618 = vpack.c.bf16 %v1601, %v1600
      %v1619 = vpack.c.bf16 %v1603, %v1602
      %s1620 = scalar_lea.vmem %s2, 16
      %v1621 = vld [vmem:[%s1620] sm:$0xf]
      %v1622 = vld [vmem:[%s1620 + $0x4] sm:$0xf]
      %v1623 = vld [vmem:[%s1620 + $0x8] sm:$0xf]
      %v1624 = vld [vmem:[%s1620 + $0xc] sm:$0xf]
      %v1629 = vunpack.c.l.b16 %v1621
      %v1630 = vunpack.c.l.b16 %v1622
      %v1631 = vunpack.c.l.b16 %v1623
      %v1632 = vunpack.c.l.b16 %v1624
      %v1633 = vpack.c.b16 %v1630, %v1629
      %v1634 = vpack.c.b16 %v1632, %v1631
      %v1638 = vsel %vm614, %v1604, 0
      %v1641 = vsel %vm614, %v1605, 0
      %v1644 = vsel %vm614, %v1606, 0
      %v1647 = vsel %vm614, %v1607, 0
      %v1650 = vsel %vm614, %v1608, 0
      %v1653 = vsel %vm614, %v1609, 0
      %v1656 = vsel %vm614, %v1610, 0
      %v1659 = vsel %vm614, %v1611, 0
      %v1662 = vsel %vm614, %v1612, 0
      %v1665 = vsel %vm614, %v1613, 0
      %v1668 = vsel %vm614, %v1614, 0
      %v1671 = vsel %vm614, %v1615, 0
      %v1674 = vsel %vm614, %v1616, 0
      %v1677 = vsel %vm614, %v1617, 0
      %v1680 = vsel %vm614, %v1618, 0
      %v1683 = vsel %vm614, %v1619, 0
      %1685 = vmatprep.subr.bf16.mxu0 0
      %1686 = vmatpush1.bf16.msra.mxu0 %v1633
      %1687 = vmatprep.subr.bf16.mxu0 0
      %1688 = vmatpush1.bf16.msra.mxu0 %v1634
      %1689 = vmatprep.subr.bf16.mxu0 0
      %1690 = vmatpush1.bf16.msra.mxu0 0
      %1691 = vmatprep.subr.bf16.mxu0 0
      %1692 = vmatpush1.bf16.msra.mxu0 0
      %1693 = vmatprep.subr.bf16.mxu0 0
      %1694 = vmatpush1.bf16.msra.mxu0 0
      %1695 = vmatprep.subr.bf16.mxu0 0
      %1696 = vmatpush1.bf16.msra.mxu0 0
      %1697 = vmatprep.subr.bf16.mxu0 0
      %1698 = vmatpush1.bf16.msra.mxu0 0
      %1699 = vmatprep.subr.bf16.mxu0 0
      %1700 = vmatpush1.bf16.msra.mxu0 0
      %1701 = vmatprep.subr.bf16.mxu0 0
      %1702 = vmatpush1.bf16.msra.mxu0 0
      %1703 = vmatprep.subr.bf16.mxu0 0
      %1704 = vmatpush1.bf16.msra.mxu0 0
      %1705 = vmatprep.subr.bf16.mxu0 0
      %1706 = vmatpush1.bf16.msra.mxu0 0
      %1707 = vmatprep.subr.bf16.mxu0 0
      %1708 = vmatpush1.bf16.msra.mxu0 0
      %1709 = vmatprep.subr.bf16.mxu0 0
      %1710 = vmatpush1.bf16.msra.mxu0 0
      %1711 = vmatprep.subr.bf16.mxu0 0
      %1712 = vmatpush1.bf16.msra.mxu0 0
      %1713 = vmatprep.subr.bf16.mxu0 0
      %1714 = vmatpush1.bf16.msra.mxu0 0
      %1715 = vmatprep.subr.bf16.mxu0 0
      %1716 = vmatpush1.bf16.msra.mxu0 0
      %1717 = vmatprep.mubr.bf16.mxu0 0
      %1718 = vmatmul.mubr.bf16.gmra.mrb[0].mxu0 %v1638
      %v1719 = vpop.f32.mrb[0].mxu0
      %v1720 = vadd.f32 0.0, %v1719
      %v1721 = vpop.f32.mrb[0].mxu0
      %v1722 = vpop.f32.mrb[0].mxu0
      %v1723 = vadd.f32 0.0, %v1722
      %v1724 = vpop.f32.mrb[0].mxu0
      %1725 = vmatprep.mubr.bf16.mxu0 0
      %1726 = vmatmul.mubr.bf16.gmra.mrb[0].mxu0 %v1641
      %v1727 = vpop.f32.mrb[0].mxu0
      %v1728 = vadd.f32 0.0, %v1727
      %v1729 = vpop.f32.mrb[0].mxu0
      %v1730 = vpop.f32.mrb[0].mxu0
      %v1731 = vadd.f32 0.0, %v1730
      %v1732 = vpop.f32.mrb[0].mxu0
      %1733 = vmatprep.mubr.bf16.mxu0 0
      %1734 = vmatmul.mubr.bf16.gmra.mrb[0].mxu0 %v1644
      %v1735 = vpop.f32.mrb[0].mxu0
      %v1736 = vadd.f32 0.0, %v1735
      %v1737 = vpop.f32.mrb[0].mxu0
      %v1738 = vpop.f32.mrb[0].mxu0
      %v1739 = vadd.f32 0.0, %v1738
      %v1740 = vpop.f32.mrb[0].mxu0
      %1741 = vmatprep.mubr.bf16.mxu0 0
      %1742 = vmatmul.mubr.bf16.gmra.mrb[0].mxu0 %v1647
      %v1743 = vpop.f32.mrb[0].mxu0
      %v1744 = vadd.f32 0.0, %v1743
      %v1745 = vpop.f32.mrb[0].mxu0
      %v1746 = vpop.f32.mrb[0].mxu0
      %v1747 = vadd.f32 0.0, %v1746
      %v1748 = vpop.f32.mrb[0].mxu0
      %1749 = vmatprep.mubr.bf16.mxu0 0
      %1750 = vmatmul.mubr.bf16.gmra.mrb[0].mxu0 %v1650
      %v1751 = vpop.f32.mrb[0].mxu0
      %v1752 = vadd.f32 0.0, %v1751
      %v1753 = vpop.f32.mrb[0].mxu0
      %v1754 = vpop.f32.mrb[0].mxu0
      %v1755 = vadd.f32 0.0, %v1754
      %v1756 = vpop.f32.mrb[0].mxu0
      %1757 = vmatprep.mubr.bf16.mxu0 0
      %1758 = vmatmul.mubr.bf16.gmra.mrb[0].mxu0 %v1653
      %v1759 = vpop.f32.mrb[0].mxu0
      %v1760 = vadd.f32 0.0, %v1759
      %v1761 = vpop.f32.mrb[0].mxu0
      %v1762 = vpop.f32.mrb[0].mxu0
      %v1763 = vadd.f32 0.0, %v1762
      %v1764 = vpop.f32.mrb[0].mxu0
      %1765 = vmatprep.mubr.bf16.mxu0 0
      %1766 = vmatmul.mubr.bf16.gmra.mrb[0].mxu0 %v1656
      %v1767 = vpop.f32.mrb[0].mxu0
      %v1768 = vadd.f32 0.0, %v1767
      %v1769 = vpop.f32.mrb[0].mxu0
      %v1770 = vpop.f32.mrb[0].mxu0
      %v1771 = vadd.f32 0.0, %v1770
      %v1772 = vpop.f32.mrb[0].mxu0
      %1773 = vmatprep.mubr.bf16.mxu0 0
      %1774 = vmatmul.mubr.bf16.gmra.mrb[0].mxu0 %v1659
      %v1775 = vpop.f32.mrb[0].mxu0
      %v1776 = vadd.f32 0.0, %v1775
      %v1777 = vpop.f32.mrb[0].mxu0
      %v1778 = vpop.f32.mrb[0].mxu0
      %v1779 = vadd.f32 0.0, %v1778
      %v1780 = vpop.f32.mrb[0].mxu0
      %1781 = vmatprep.mubr.bf16.mxu0 0
      %1782 = vmatmul.mubr.bf16.gmra.mrb[0].mxu0 %v1662
      %v1783 = vpop.f32.mrb[0].mxu0
      %v1784 = vadd.f32 0.0, %v1783
      %v1785 = vpop.f32.mrb[0].mxu0
      %v1786 = vpop.f32.mrb[0].mxu0
      %v1787 = vadd.f32 0.0, %v1786
      %v1788 = vpop.f32.mrb[0].mxu0
      %1789 = vmatprep.mubr.bf16.mxu0 0
      %1790 = vmatmul.mubr.bf16.gmra.mrb[0].mxu0 %v1665
      %v1791 = vpop.f32.mrb[0].mxu0
      %v1792 = vadd.f32 0.0, %v1791
      %v1793 = vpop.f32.mrb[0].mxu0
      %v1794 = vpop.f32.mrb[0].mxu0
      %v1795 = vadd.f32 0.0, %v1794
      %v1796 = vpop.f32.mrb[0].mxu0
      %1797 = vmatprep.mubr.bf16.mxu0 0
      %1798 = vmatmul.mubr.bf16.gmra.mrb[0].mxu0 %v1668
      %v1799 = vpop.f32.mrb[0].mxu0
      %v1800 = vadd.f32 0.0, %v1799
      %v1801 = vpop.f32.mrb[0].mxu0
      %v1802 = vpop.f32.mrb[0].mxu0
      %v1803 = vadd.f32 0.0, %v1802
      %v1804 = vpop.f32.mrb[0].mxu0
      %1805 = vmatprep.mubr.bf16.mxu0 0
      %1806 = vmatmul.mubr.bf16.gmra.mrb[0].mxu0 %v1671
      %v1807 = vpop.f32.mrb[0].mxu0
      %v1808 = vadd.f32 0.0, %v1807
      %v1809 = vpop.f32.mrb[0].mxu0
      %v1810 = vpop.f32.mrb[0].mxu0
      %v1811 = vadd.f32 0.0, %v1810
      %v1812 = vpop.f32.mrb[0].mxu0
      %1813 = vmatprep.mubr.bf16.mxu0 0
      %1814 = vmatmul.mubr.bf16.gmra.mrb[0].mxu0 %v1674
      %v1815 = vpop.f32.mrb[0].mxu0
      %v1816 = vadd.f32 0.0, %v1815
      %v1817 = vpop.f32.mrb[0].mxu0
      %v1818 = vpop.f32.mrb[0].mxu0
      %v1819 = vadd.f32 0.0, %v1818
      %v1820 = vpop.f32.mrb[0].mxu0
      %1821 = vmatprep.mubr.bf16.mxu0 0
      %1822 = vmatmul.mubr.bf16.gmra.mrb[0].mxu0 %v1677
      %v1823 = vpop.f32.mrb[0].mxu0
      %v1824 = vadd.f32 0.0, %v1823
      %v1825 = vpop.f32.mrb[0].mxu0
      %v1826 = vpop.f32.mrb[0].mxu0
      %v1827 = vadd.f32 0.0, %v1826
      %v1828 = vpop.f32.mrb[0].mxu0
      %1829 = vmatprep.mubr.bf16.mxu0 0
      %1830 = vmatmul.mubr.bf16.gmra.mrb[0].mxu0 %v1680
      %v1831 = vpop.f32.mrb[0].mxu0
      %v1832 = vadd.f32 0.0, %v1831
      %v1833 = vpop.f32.mrb[0].mxu0
      %v1834 = vpop.f32.mrb[0].mxu0
      %v1835 = vadd.f32 0.0, %v1834
      %v1836 = vpop.f32.mrb[0].mxu0
      %1837 = vmatprep.mubr.bf16.mxu0 0
      %1838 = vmatmul.mubr.bf16.gmra.mrb[0].mxu0 %v1683
      %v1839 = vpop.f32.mrb[0].mxu0
      %v1840 = vadd.f32 0.0, %v1839
      %v1841 = vpop.f32.mrb[0].mxu0
      %v1842 = vpop.f32.mrb[0].mxu0
      %v1843 = vadd.f32 0.0, %v1842
      %v1844 = vpop.f32.mrb[0].mxu0
      %1845 = vdwg.mxu0
      %v1850 = vunpack.c.l.b16 %v1568
      %v1851 = vunpack.c.l.b16 %v1569
      %v1852 = vunpack.c.l.b16 %v1570
      %v1853 = vunpack.c.l.b16 %v1571
      %v1854 = vpack.c.b16 %v1851, %v1850
      %v1855 = vpack.c.b16 %v1853, %v1852
      %v1859 = vsel %vm614, %v1552, 0
      %v1862 = vsel %vm614, %v1553, 0
      %v1865 = vsel %vm614, %v1554, 0
      %v1868 = vsel %vm614, %v1555, 0
      %v1871 = vsel %vm614, %v1556, 0
      %v1874 = vsel %vm614, %v1557, 0
      %v1877 = vsel %vm614, %v1558, 0
      %v1880 = vsel %vm614, %v1559, 0
      %v1883 = vsel %vm614, %v1560, 0
      %v1886 = vsel %vm614, %v1561, 0
      %v1889 = vsel %vm614, %v1562, 0
      %v1892 = vsel %vm614, %v1563, 0
      %v1895 = vsel %vm614, %v1564, 0
      %v1898 = vsel %vm614, %v1565, 0
      %v1901 = vsel %vm614, %v1566, 0
      %v1904 = vsel %vm614, %v1567, 0
      %1906 = vmatprep.subr.bf16.mxu0 0
      %1907 = vmatpush1.bf16.msra.mxu0 %v1854
      %1908 = vmatprep.subr.bf16.mxu0 0
      %1909 = vmatpush1.bf16.msra.mxu0 %v1855
      %1910 = vmatprep.subr.bf16.mxu0 0
      %1911 = vmatpush1.bf16.msra.mxu0 0
      %1912 = vmatprep.subr.bf16.mxu0 0
      %1913 = vmatpush1.bf16.msra.mxu0 0
      %1914 = vmatprep.subr.bf16.mxu0 0
      %1915 = vmatpush1.bf16.msra.mxu0 0
      %1916 = vmatprep.subr.bf16.mxu0 0
      %1917 = vmatpush1.bf16.msra.mxu0 0
      %1918 = vmatprep.subr.bf16.mxu0 0
      %1919 = vmatpush1.bf16.msra.mxu0 0
      %1920 = vmatprep.subr.bf16.mxu0 0
      %1921 = vmatpush1.bf16.msra.mxu0 0
      %1922 = vmatprep.subr.bf16.mxu0 0
      %1923 = vmatpush1.bf16.msra.mxu0 0
      %1924 = vmatprep.subr.bf16.mxu0 0
      %1925 = vmatpush1.bf16.msra.mxu0 0
      %1926 = vmatprep.subr.bf16.mxu0 0
      %1927 = vmatpush1.bf16.msra.mxu0 0
      %1928 = vmatprep.subr.bf16.mxu0 0
      %1929 = vmatpush1.bf16.msra.mxu0 0
      %1930 = vmatprep.subr.bf16.mxu0 0
      %1931 = vmatpush1.bf16.msra.mxu0 0
      %1932 = vmatprep.subr.bf16.mxu0 0
      %1933 = vmatpush1.bf16.msra.mxu0 0
      %1934 = vmatprep.subr.bf16.mxu0 0
      %1935 = vmatpush1.bf16.msra.mxu0 0
      %1936 = vmatprep.subr.bf16.mxu0 0
      %1937 = vmatpush1.bf16.msra.mxu0 0
      %1938 = vmatprep.mubr.bf16.mxu0 0
      %1939 = vmatmul.mubr.bf16.gmra.mrb[0].mxu0 %v1859
      %v1940 = vpop.f32.mrb[0].mxu0
      %v1941 = vadd.f32 %v1720, %v1940
      %v1942 = vpop.f32.mrb[0].mxu0
      %v1943 = vpop.f32.mrb[0].mxu0
      %v1944 = vadd.f32 %v1723, %v1943
      %v1945 = vpop.f32.mrb[0].mxu0
      %1946 = vmatprep.mubr.bf16.mxu0 0
      %1947 = vmatmul.mubr.bf16.gmra.mrb[0].mxu0 %v1862
      %v1948 = vpop.f32.mrb[0].mxu0
      %v1949 = vadd.f32 %v1728, %v1948
      %v1950 = vpop.f32.mrb[0].mxu0
      %v1951 = vpop.f32.mrb[0].mxu0
      %v1952 = vadd.f32 %v1731, %v1951
      %v1953 = vpop.f32.mrb[0].mxu0
      %1954 = vmatprep.mubr.bf16.mxu0 0
      %1955 = vmatmul.mubr.bf16.gmra.mrb[0].mxu0 %v1865
      %v1956 = vpop.f32.mrb[0].mxu0
      %v1957 = vadd.f32 %v1736, %v1956
      %v1958 = vpop.f32.mrb[0].mxu0
      %v1959 = vpop.f32.mrb[0].mxu0
      %v1960 = vadd.f32 %v1739, %v1959
      %v1961 = vpop.f32.mrb[0].mxu0
      %1962 = vmatprep.mubr.bf16.mxu0 0
      %1963 = vmatmul.mubr.bf16.gmra.mrb[0].mxu0 %v1868
      %v1964 = vpop.f32.mrb[0].mxu0
      %v1965 = vadd.f32 %v1744, %v1964
      %v1966 = vpop.f32.mrb[0].mxu0
      %v1967 = vpop.f32.mrb[0].mxu0
      %v1968 = vadd.f32 %v1747, %v1967
      %v1969 = vpop.f32.mrb[0].mxu0
      %1970 = vmatprep.mubr.bf16.mxu0 0
      %1971 = vmatmul.mubr.bf16.gmra.mrb[0].mxu0 %v1871
      %v1972 = vpop.f32.mrb[0].mxu0
      %v1973 = vadd.f32 %v1752, %v1972
      %v1974 = vpop.f32.mrb[0].mxu0
      %v1975 = vpop.f32.mrb[0].mxu0
      %v1976 = vadd.f32 %v1755, %v1975
      %v1977 = vpop.f32.mrb[0].mxu0
      %1978 = vmatprep.mubr.bf16.mxu0 0
      %1979 = vmatmul.mubr.bf16.gmra.mrb[0].mxu0 %v1874
      %v1980 = vpop.f32.mrb[0].mxu0
      %v1981 = vadd.f32 %v1760, %v1980
      %v1982 = vpop.f32.mrb[0].mxu0
      %v1983 = vpop.f32.mrb[0].mxu0
      %v1984 = vadd.f32 %v1763, %v1983
      %v1985 = vpop.f32.mrb[0].mxu0
      %1986 = vmatprep.mubr.bf16.mxu0 0
      %1987 = vmatmul.mubr.bf16.gmra.mrb[0].mxu0 %v1877
      %v1988 = vpop.f32.mrb[0].mxu0
      %v1989 = vadd.f32 %v1768, %v1988
      %v1990 = vpop.f32.mrb[0].mxu0
      %v1991 = vpop.f32.mrb[0].mxu0
      %v1992 = vadd.f32 %v1771, %v1991
      %v1993 = vpop.f32.mrb[0].mxu0
      %1994 = vmatprep.mubr.bf16.mxu0 0
      %1995 = vmatmul.mubr.bf16.gmra.mrb[0].mxu0 %v1880
      %v1996 = vpop.f32.mrb[0].mxu0
      %v1997 = vadd.f32 %v1776, %v1996
      %v1998 = vpop.f32.mrb[0].mxu0
      %v1999 = vpop.f32.mrb[0].mxu0
      %v2000 = vadd.f32 %v1779, %v1999
      %v2001 = vpop.f32.mrb[0].mxu0
      %2002 = vmatprep.mubr.bf16.mxu0 0
      %2003 = vmatmul.mubr.bf16.gmra.mrb[0].mxu0 %v1883
      %v2004 = vpop.f32.mrb[0].mxu0
      %v2005 = vadd.f32 %v1784, %v2004
      %v2006 = vpop.f32.mrb[0].mxu0
      %v2007 = vpop.f32.mrb[0].mxu0
      %v2008 = vadd.f32 %v1787, %v2007
      %v2009 = vpop.f32.mrb[0].mxu0
      %2010 = vmatprep.mubr.bf16.mxu0 0
      %2011 = vmatmul.mubr.bf16.gmra.mrb[0].mxu0 %v1886
      %v2012 = vpop.f32.mrb[0].mxu0
      %v2013 = vadd.f32 %v1792, %v2012
      %v2014 = vpop.f32.mrb[0].mxu0
      %v2015 = vpop.f32.mrb[0].mxu0
      %v2016 = vadd.f32 %v1795, %v2015
      %v2017 = vpop.f32.mrb[0].mxu0
      %2018 = vmatprep.mubr.bf16.mxu0 0
      %2019 = vmatmul.mubr.bf16.gmra.mrb[0].mxu0 %v1889
      %v2020 = vpop.f32.mrb[0].mxu0
      %v2021 = vadd.f32 %v1800, %v2020
      %v2022 = vpop.f32.mrb[0].mxu0
      %v2023 = vpop.f32.mrb[0].mxu0
      %v2024 = vadd.f32 %v1803, %v2023
      %v2025 = vpop.f32.mrb[0].mxu0
      %2026 = vmatprep.mubr.bf16.mxu0 0
      %2027 = vmatmul.mubr.bf16.gmra.mrb[0].mxu0 %v1892
      %v2028 = vpop.f32.mrb[0].mxu0
      %v2029 = vadd.f32 %v1808, %v2028
      %v2030 = vpop.f32.mrb[0].mxu0
      %v2031 = vpop.f32.mrb[0].mxu0
      %v2032 = vadd.f32 %v1811, %v2031
      %v2033 = vpop.f32.mrb[0].mxu0
      %2034 = vmatprep.mubr.bf16.mxu0 0
      %2035 = vmatmul.mubr.bf16.gmra.mrb[0].mxu0 %v1895
      %v2036 = vpop.f32.mrb[0].mxu0
      %v2037 = vadd.f32 %v1816, %v2036
      %v2038 = vpop.f32.mrb[0].mxu0
      %v2039 = vpop.f32.mrb[0].mxu0
      %v2040 = vadd.f32 %v1819, %v2039
      %v2041 = vpop.f32.mrb[0].mxu0
      %2042 = vmatprep.mubr.bf16.mxu0 0
      %2043 = vmatmul.mubr.bf16.gmra.mrb[0].mxu0 %v1898
      %v2044 = vpop.f32.mrb[0].mxu0
      %v2045 = vadd.f32 %v1824, %v2044
      %v2046 = vpop.f32.mrb[0].mxu0
      %v2047 = vpop.f32.mrb[0].mxu0
      %v2048 = vadd.f32 %v1827, %v2047
      %v2049 = vpop.f32.mrb[0].mxu0
      %2050 = vmatprep.mubr.bf16.mxu0 0
      %2051 = vmatmul.mubr.bf16.gmra.mrb[0].mxu0 %v1901
      %v2052 = vpop.f32.mrb[0].mxu0
      %v2053 = vadd.f32 %v1832, %v2052
      %v2054 = vpop.f32.mrb[0].mxu0
      %v2055 = vpop.f32.mrb[0].mxu0
      %v2056 = vadd.f32 %v1835, %v2055
      %v2057 = vpop.f32.mrb[0].mxu0
      %2058 = vmatprep.mubr.bf16.mxu0 0
      %2059 = vmatmul.mubr.bf16.gmra.mrb[0].mxu0 %v1904
      %v2060 = vpop.f32.mrb[0].mxu0
      %v2061 = vadd.f32 %v1840, %v2060
      %v2062 = vpop.f32.mrb[0].mxu0
      %v2063 = vpop.f32.mrb[0].mxu0
      %v2064 = vadd.f32 %v1843, %v2063
      %v2065 = vpop.f32.mrb[0].mxu0
      %2066 = vdwg.mxu0
      %v2067 = vld [vmem:[#allocation2 + $0x2] sm:$0xff]
      %v2068 = vld [vmem:[#allocation2 + $0xa] sm:$0xff]
      %v2069 = vld [vmem:[#allocation2 + $0x1a] sm:$0xff]
      %v2070 = vld [vmem:[#allocation2 + $0x22] sm:$0xff]
      %v2071 = vld [vmem:[#allocation2 + $0x32] sm:$0xff]
      %v2072 = vld [vmem:[#allocation2 + $0x3a] sm:$0xff]
      %v2073 = vld [vmem:[#allocation2 + $0x4a] sm:$0xff]
      %v2074 = vld [vmem:[#allocation2 + $0x52] sm:$0xff]
      %v2075 = vld [vmem:[#allocation2 + $0x62] sm:$0xff]
      %v2076 = vld [vmem:[#allocation2 + $0x6a] sm:$0xff]
      %v2077 = vld [vmem:[#allocation2 + $0x7a] sm:$0xff]
      %v2078 = vld [vmem:[#allocation2 + $0x82] sm:$0xff]
      %v2079 = vld [vmem:[#allocation2 + $0x92] sm:$0xff]
      %v2080 = vld [vmem:[#allocation2 + $0x9a] sm:$0xff]
      %v2081 = vld [vmem:[#allocation2 + $0xaa] sm:$0xff]
      %v2082 = vld [vmem:[#allocation2 + $0xb2] sm:$0xff]
      %v2083 = vld [vmem:[#allocation2 + $0xc2] sm:$0xff]
      %v2084 = vld [vmem:[#allocation2 + $0xca] sm:$0xff]
      %v2085 = vld [vmem:[#allocation2 + $0xda] sm:$0xff]
      %v2086 = vld [vmem:[#allocation2 + $0xe2] sm:$0xff]
      %v2087 = vld [vmem:[#allocation2 + $0xf2] sm:$0xff]
      %v2088 = vld [vmem:[#allocation2 + $0xfa] sm:$0xff]
      %v2089 = vld [vmem:[#allocation2 + $0x10a] sm:$0xff]
      %v2090 = vld [vmem:[#allocation2 + $0x112] sm:$0xff]
      %v2091 = vld [vmem:[#allocation2 + $0x122] sm:$0xff]
      %v2092 = vld [vmem:[#allocation2 + $0x12a] sm:$0xff]
      %v2093 = vld [vmem:[#allocation2 + $0x13a] sm:$0xff]
      %v2094 = vld [vmem:[#allocation2 + $0x142] sm:$0xff]
      %v2095 = vld [vmem:[#allocation2 + $0x152] sm:$0xff]
      %v2096 = vld [vmem:[#allocation2 + $0x15a] sm:$0xff]
      %v2097 = vld [vmem:[#allocation2 + $0x16a] sm:$0xff]
      %v2098 = vld [vmem:[#allocation2 + $0x172] sm:$0xff]
      %v2099 = vpack.c.bf16 %v2068, %v2067
      %v2100 = vpack.c.bf16 %v2070, %v2069
      %v2101 = vpack.c.bf16 %v2072, %v2071
      %v2102 = vpack.c.bf16 %v2074, %v2073
      %v2103 = vpack.c.bf16 %v2076, %v2075
      %v2104 = vpack.c.bf16 %v2078, %v2077
      %v2105 = vpack.c.bf16 %v2080, %v2079
      %v2106 = vpack.c.bf16 %v2082, %v2081
      %v2107 = vpack.c.bf16 %v2084, %v2083
      %v2108 = vpack.c.bf16 %v2086, %v2085
      %v2109 = vpack.c.bf16 %v2088, %v2087
      %v2110 = vpack.c.bf16 %v2090, %v2089
      %v2111 = vpack.c.bf16 %v2092, %v2091
      %v2112 = vpack.c.bf16 %v2094, %v2093
      %v2113 = vpack.c.bf16 %v2096, %v2095
      %v2114 = vpack.c.bf16 %v2098, %v2097
      %s2115 = scalar_lea.vmem %s2, 32
      %v2116 = vld [vmem:[%s2115] sm:$0xf]
      %v2117 = vld [vmem:[%s2115 + $0x4] sm:$0xf]
      %v2118 = vld [vmem:[%s2115 + $0x8] sm:$0xf]
      %v2119 = vld [vmem:[%s2115 + $0xc] sm:$0xf]
      %v2124 = vunpack.c.l.b16 %v2116
      %v2125 = vunpack.c.l.b16 %v2117
      %v2126 = vunpack.c.l.b16 %v2118
      %v2127 = vunpack.c.l.b16 %v2119
      %v2128 = vpack.c.b16 %v2125, %v2124
      %v2129 = vpack.c.b16 %v2127, %v2126
      %v2133 = vsel %vm614, %v2099, 0
      %v2136 = vsel %vm614, %v2100, 0
      %v2139 = vsel %vm614, %v2101, 0
      %v2142 = vsel %vm614, %v2102, 0
      %v2145 = vsel %vm614, %v2103, 0
      %v2148 = vsel %vm614, %v2104, 0
      %v2151 = vsel %vm614, %v2105, 0
      %v2154 = vsel %vm614, %v2106, 0
      %v2157 = vsel %vm614, %v2107, 0
      %v2160 = vsel %vm614, %v2108, 0
      %v2163 = vsel %vm614, %v2109, 0
      %v2166 = vsel %vm614, %v2110, 0
      %v2169 = vsel %vm614, %v2111, 0
      %v2172 = vsel %vm614, %v2112, 0
      %v2175 = vsel %vm614, %v2113, 0
      %v2178 = vsel %vm614, %v2114, 0
      %2180 = vmatprep.subr.bf16.mxu0 0
      %2181 = vmatpush1.bf16.msra.mxu0 %v2128
      %2182 = vmatprep.subr.bf16.mxu0 0
      %2183 = vmatpush1.bf16.msra.mxu0 %v2129
      %2184 = vmatprep.subr.bf16.mxu0 0
      %2185 = vmatpush1.bf16.msra.mxu0 0
      %2186 = vmatprep.subr.bf16.mxu0 0
      %2187 = vmatpush1.bf16.msra.mxu0 0
      %2188 = vmatprep.subr.bf16.mxu0 0
      %2189 = vmatpush1.bf16.msra.mxu0 0
      %2190 = vmatprep.subr.bf16.mxu0 0
      %2191 = vmatpush1.bf16.msra.mxu0 0
      %2192 = vmatprep.subr.bf16.mxu0 0
      %2193 = vmatpush1.bf16.msra.mxu0 0
      %2194 = vmatprep.subr.bf16.mxu0 0
      %2195 = vmatpush1.bf16.msra.mxu0 0
      %2196 = vmatprep.subr.bf16.mxu0 0
      %2197 = vmatpush1.bf16.msra.mxu0 0
      %2198 = vmatprep.subr.bf16.mxu0 0
      %2199 = vmatpush1.bf16.msra.mxu0 0
      %2200 = vmatprep.subr.bf16.mxu0 0
      %2201 = vmatpush1.bf16.msra.mxu0 0
      %2202 = vmatprep.subr.bf16.mxu0 0
      %2203 = vmatpush1.bf16.msra.mxu0 0
      %2204 = vmatprep.subr.bf16.mxu0 0
      %2205 = vmatpush1.bf16.msra.mxu0 0
      %2206 = vmatprep.subr.bf16.mxu0 0
      %2207 = vmatpush1.bf16.msra.mxu0 0
      %2208 = vmatprep.subr.bf16.mxu0 0
      %2209 = vmatpush1.bf16.msra.mxu0 0
      %2210 = vmatprep.subr.bf16.mxu0 0
      %2211 = vmatpush1.bf16.msra.mxu0 0
      %2212 = vmatprep.mubr.bf16.mxu0 0
      %2213 = vmatmul.mubr.bf16.gmra.mrb[0].mxu0 %v2133
      %v2214 = vpop.f32.mrb[0].mxu0
      %v2215 = vadd.f32 0.0, %v2214
      %v2216 = vpop.f32.mrb[0].mxu0
      %v2217 = vpop.f32.mrb[0].mxu0
      %v2218 = vadd.f32 0.0, %v2217
      %v2219 = vpop.f32.mrb[0].mxu0
      %2220 = vmatprep.mubr.bf16.mxu0 0
      %2221 = vmatmul.mubr.bf16.gmra.mrb[0].mxu0 %v2136
      %v2222 = vpop.f32.mrb[0].mxu0
      %v2223 = vadd.f32 0.0, %v2222
      %v2224 = vpop.f32.mrb[0].mxu0
      %v2225 = vpop.f32.mrb[0].mxu0
      %v2226 = vadd.f32 0.0, %v2225
      %v2227 = vpop.f32.mrb[0].mxu0
      %2228 = vmatprep.mubr.bf16.mxu0 0
      %2229 = vmatmul.mubr.bf16.gmra.mrb[0].mxu0 %v2139
      %v2230 = vpop.f32.mrb[0].mxu0
      %v2231 = vadd.f32 0.0, %v2230
      %v2232 = vpop.f32.mrb[0].mxu0
      %v2233 = vpop.f32.mrb[0].mxu0
      %v2234 = vadd.f32 0.0, %v2233
      %v2235 = vpop.f32.mrb[0].mxu0
      %2236 = vmatprep.mubr.bf16.mxu0 0
      %2237 = vmatmul.mubr.bf16.gmra.mrb[0].mxu0 %v2142
      %v2238 = vpop.f32.mrb[0].mxu0
      %v2239 = vadd.f32 0.0, %v2238
      %v2240 = vpop.f32.mrb[0].mxu0
      %v2241 = vpop.f32.mrb[0].mxu0
      %v2242 = vadd.f32 0.0, %v2241
      %v2243 = vpop.f32.mrb[0].mxu0
      %2244 = vmatprep.mubr.bf16.mxu0 0
      %2245 = vmatmul.mubr.bf16.gmra.mrb[0].mxu0 %v2145
      %v2246 = vpop.f32.mrb[0].mxu0
      %v2247 = vadd.f32 0.0, %v2246
      %v2248 = vpop.f32.mrb[0].mxu0
      %v2249 = vpop.f32.mrb[0].mxu0
      %v2250 = vadd.f32 0.0, %v2249
      %v2251 = vpop.f32.mrb[0].mxu0
      %2252 = vmatprep.mubr.bf16.mxu0 0
      %2253 = vmatmul.mubr.bf16.gmra.mrb[0].mxu0 %v2148
      %v2254 = vpop.f32.mrb[0].mxu0
      %v2255 = vadd.f32 0.0, %v2254
      %v2256 = vpop.f32.mrb[0].mxu0
      %v2257 = vpop.f32.mrb[0].mxu0
      %v2258 = vadd.f32 0.0, %v2257
      %v2259 = vpop.f32.mrb[0].mxu0
      %2260 = vmatprep.mubr.bf16.mxu0 0
      %2261 = vmatmul.mubr.bf16.gmra.mrb[0].mxu0 %v2151
      %v2262 = vpop.f32.mrb[0].mxu0
      %v2263 = vadd.f32 0.0, %v2262
      %v2264 = vpop.f32.mrb[0].mxu0
      %v2265 = vpop.f32.mrb[0].mxu0
      %v2266 = vadd.f32 0.0, %v2265
      %v2267 = vpop.f32.mrb[0].mxu0
      %2268 = vmatprep.mubr.bf16.mxu0 0
      %2269 = vmatmul.mubr.bf16.gmra.mrb[0].mxu0 %v2154
      %v2270 = vpop.f32.mrb[0].mxu0
      %v2271 = vadd.f32 0.0, %v2270
      %v2272 = vpop.f32.mrb[0].mxu0
      %v2273 = vpop.f32.mrb[0].mxu0
      %v2274 = vadd.f32 0.0, %v2273
      %v2275 = vpop.f32.mrb[0].mxu0
      %2276 = vmatprep.mubr.bf16.mxu0 0
      %2277 = vmatmul.mubr.bf16.gmra.mrb[0].mxu0 %v2157
      %v2278 = vpop.f32.mrb[0].mxu0
      %v2279 = vadd.f32 0.0, %v2278
      %v2280 = vpop.f32.mrb[0].mxu0
      %v2281 = vpop.f32.mrb[0].mxu0
      %v2282 = vadd.f32 0.0, %v2281
      %v2283 = vpop.f32.mrb[0].mxu0
      %2284 = vmatprep.mubr.bf16.mxu0 0
      %2285 = vmatmul.mubr.bf16.gmra.mrb[0].mxu0 %v2160
      %v2286 = vpop.f32.mrb[0].mxu0
      %v2287 = vadd.f32 0.0, %v2286
      %v2288 = vpop.f32.mrb[0].mxu0
      %v2289 = vpop.f32.mrb[0].mxu0
      %v2290 = vadd.f32 0.0, %v2289
      %v2291 = vpop.f32.mrb[0].mxu0
      %2292 = vmatprep.mubr.bf16.mxu0 0
      %2293 = vmatmul.mubr.bf16.gmra.mrb[0].mxu0 %v2163
      %v2294 = vpop.f32.mrb[0].mxu0
      %v2295 = vadd.f32 0.0, %v2294
      %v2296 = vpop.f32.mrb[0].mxu0
      %v2297 = vpop.f32.mrb[0].mxu0
      %v2298 = vadd.f32 0.0, %v2297
      %v2299 = vpop.f32.mrb[0].mxu0
      %2300 = vmatprep.mubr.bf16.mxu0 0
      %2301 = vmatmul.mubr.bf16.gmra.mrb[0].mxu0 %v2166
      %v2302 = vpop.f32.mrb[0].mxu0
      %v2303 = vadd.f32 0.0, %v2302
      %v2304 = vpop.f32.mrb[0].mxu0
      %v2305 = vpop.f32.mrb[0].mxu0
      %v2306 = vadd.f32 0.0, %v2305
      %v2307 = vpop.f32.mrb[0].mxu0
      %2308 = vmatprep.mubr.bf16.mxu0 0
      %2309 = vmatmul.mubr.bf16.gmra.mrb[0].mxu0 %v2169
      %v2310 = vpop.f32.mrb[0].mxu0
      %v2311 = vadd.f32 0.0, %v2310
      %v2312 = vpop.f32.mrb[0].mxu0
      %v2313 = vpop.f32.mrb[0].mxu0
      %v2314 = vadd.f32 0.0, %v2313
      %v2315 = vpop.f32.mrb[0].mxu0
      %2316 = vmatprep.mubr.bf16.mxu0 0
      %2317 = vmatmul.mubr.bf16.gmra.mrb[0].mxu0 %v2172
      %v2318 = vpop.f32.mrb[0].mxu0
      %v2319 = vadd.f32 0.0, %v2318
      %v2320 = vpop.f32.mrb[0].mxu0
      %v2321 = vpop.f32.mrb[0].mxu0
      %v2322 = vadd.f32 0.0, %v2321
      %v2323 = vpop.f32.mrb[0].mxu0
      %2324 = vmatprep.mubr.bf16.mxu0 0
      %2325 = vmatmul.mubr.bf16.gmra.mrb[0].mxu0 %v2175
      %v2326 = vpop.f32.mrb[0].mxu0
      %v2327 = vadd.f32 0.0, %v2326
      %v2328 = vpop.f32.mrb[0].mxu0
      %v2329 = vpop.f32.mrb[0].mxu0
      %v2330 = vadd.f32 0.0, %v2329
      %v2331 = vpop.f32.mrb[0].mxu0
      %2332 = vmatprep.mubr.bf16.mxu0 0
      %2333 = vmatmul.mubr.bf16.gmra.mrb[0].mxu0 %v2178
      %v2334 = vpop.f32.mrb[0].mxu0
      %v2335 = vadd.f32 0.0, %v2334
      %v2336 = vpop.f32.mrb[0].mxu0
      %v2337 = vpop.f32.mrb[0].mxu0
      %v2338 = vadd.f32 0.0, %v2337
      %v2339 = vpop.f32.mrb[0].mxu0
      %2340 = vdwg.mxu0
      %v2341 = vadd.f32 %v1941, %v2215
      %v2342 = vadd.f32 %v1944, %v2218
      %v2343 = vadd.f32 %v1949, %v2223
      %v2344 = vadd.f32 %v1952, %v2226
      %v2345 = vadd.f32 %v1957, %v2231
      %v2346 = vadd.f32 %v1960, %v2234
      %v2347 = vadd.f32 %v1965, %v2239
      %v2348 = vadd.f32 %v1968, %v2242
      %v2349 = vadd.f32 %v1973, %v2247
      %v2350 = vadd.f32 %v1976, %v2250
      %v2351 = vadd.f32 %v1981, %v2255
      %v2352 = vadd.f32 %v1984, %v2258
      %v2353 = vadd.f32 %v1989, %v2263
      %v2354 = vadd.f32 %v1992, %v2266
      %v2355 = vadd.f32 %v1997, %v2271
      %v2356 = vadd.f32 %v2000, %v2274
      %v2357 = vadd.f32 %v2005, %v2279
      %v2358 = vadd.f32 %v2008, %v2282
      %v2359 = vadd.f32 %v2013, %v2287
      %v2360 = vadd.f32 %v2016, %v2290
      %v2361 = vadd.f32 %v2021, %v2295
      %v2362 = vadd.f32 %v2024, %v2298
      %v2363 = vadd.f32 %v2029, %v2303
      %v2364 = vadd.f32 %v2032, %v2306
      %v2365 = vadd.f32 %v2037, %v2311
      %v2366 = vadd.f32 %v2040, %v2314
      %v2367 = vadd.f32 %v2045, %v2319
      %v2368 = vadd.f32 %v2048, %v2322
      %v2369 = vadd.f32 %v2053, %v2327
      %v2370 = vadd.f32 %v2056, %v2330
      %v2371 = vadd.f32 %v2061, %v2335
      %v2372 = vadd.f32 %v2064, %v2338
      %v2373 = vld [vmem:[%s1446] sm:$0xff]
      %v2374 = vld [vmem:[%s1446 + $0x8] sm:$0xff]
      %v2375 = vld [vmem:[%s1446 + $0x18] sm:$0xff]
      %v2376 = vld [vmem:[%s1446 + $0x20] sm:$0xff]
      %v2377 = vld [vmem:[%s1446 + $0x30] sm:$0xff]
      %v2378 = vld [vmem:[%s1446 + $0x38] sm:$0xff]
      %v2379 = vld [vmem:[%s1446 + $0x48] sm:$0xff]
      %v2380 = vld [vmem:[%s1446 + $0x50] sm:$0xff]
      %v2381 = vld [vmem:[%s1446 + $0x60] sm:$0xff]
      %v2382 = vld [vmem:[%s1446 + $0x68] sm:$0xff]
      %v2383 = vld [vmem:[%s1446 + $0x78] sm:$0xff]
      %v2384 = vld [vmem:[%s1446 + $0x80] sm:$0xff]
      %v2385 = vld [vmem:[%s1446 + $0x90] sm:$0xff]
      %v2386 = vld [vmem:[%s1446 + $0x98] sm:$0xff]
      %v2387 = vld [vmem:[%s1446 + $0xa8] sm:$0xff]
      %v2388 = vld [vmem:[%s1446 + $0xb0] sm:$0xff]
      %v2389 = vld [vmem:[%s1446 + $0xc0] sm:$0xff]
      %v2390 = vld [vmem:[%s1446 + $0xc8] sm:$0xff]
      %v2391 = vld [vmem:[%s1446 + $0xd8] sm:$0xff]
      %v2392 = vld [vmem:[%s1446 + $0xe0] sm:$0xff]
      %v2393 = vld [vmem:[%s1446 + $0xf0] sm:$0xff]
      %v2394 = vld [vmem:[%s1446 + $0xf8] sm:$0xff]
      %v2395 = vld [vmem:[%s1446 + $0x108] sm:$0xff]
      %v2396 = vld [vmem:[%s1446 + $0x110] sm:$0xff]
      %v2397 = vld [vmem:[%s1446 + $0x120] sm:$0xff]
      %v2398 = vld [vmem:[%s1446 + $0x128] sm:$0xff]
      %v2399 = vld [vmem:[%s1446 + $0x138] sm:$0xff]
      %v2400 = vld [vmem:[%s1446 + $0x140] sm:$0xff]
      %v2401 = vld [vmem:[%s1446 + $0x150] sm:$0xff]
      %v2402 = vld [vmem:[%s1446 + $0x158] sm:$0xff]
      %v2403 = vld [vmem:[%s1446 + $0x168] sm:$0xff]
      %v2404 = vld [vmem:[%s1446 + $0x170] sm:$0xff]
      %v2405 = vpack.c.bf16 %v2374, %v2373
      %v2406 = vpack.c.bf16 %v2376, %v2375
      %v2407 = vpack.c.bf16 %v2378, %v2377
      %v2408 = vpack.c.bf16 %v2380, %v2379
      %v2409 = vpack.c.bf16 %v2382, %v2381
      %v2410 = vpack.c.bf16 %v2384, %v2383
      %v2411 = vpack.c.bf16 %v2386, %v2385
      %v2412 = vpack.c.bf16 %v2388, %v2387
      %v2413 = vpack.c.bf16 %v2390, %v2389
      %v2414 = vpack.c.bf16 %v2392, %v2391
      %v2415 = vpack.c.bf16 %v2394, %v2393
      %v2416 = vpack.c.bf16 %v2396, %v2395
      %v2417 = vpack.c.bf16 %v2398, %v2397
      %v2418 = vpack.c.bf16 %v2400, %v2399
      %v2419 = vpack.c.bf16 %v2402, %v2401
      %v2420 = vpack.c.bf16 %v2404, %v2403
      %s2421 = scalar_lea.vmem %s2, 48
      %v2422 = vld [vmem:[%s2421] sm:$0xf]
      %v2423 = vld [vmem:[%s2421 + $0x4] sm:$0xf]
      %v2424 = vld [vmem:[%s2421 + $0x8] sm:$0xf]
      %v2425 = vld [vmem:[%s2421 + $0xc] sm:$0xf]
      %v2430 = vunpack.c.l.b16 %v2422
      %v2431 = vunpack.c.l.b16 %v2423
      %v2432 = vunpack.c.l.b16 %v2424
      %v2433 = vunpack.c.l.b16 %v2425
      %v2434 = vpack.c.b16 %v2431, %v2430
      %v2435 = vpack.c.b16 %v2433, %v2432
      %v2439 = vsel %vm614, %v2405, 0
      %v2442 = vsel %vm614, %v2406, 0
      %v2445 = vsel %vm614, %v2407, 0
      %v2448 = vsel %vm614, %v2408, 0
      %v2451 = vsel %vm614, %v2409, 0
      %v2454 = vsel %vm614, %v2410, 0
      %v2457 = vsel %vm614, %v2411, 0
      %v2460 = vsel %vm614, %v2412, 0
      %v2463 = vsel %vm614, %v2413, 0
      %v2466 = vsel %vm614, %v2414, 0
      %v2469 = vsel %vm614, %v2415, 0
      %v2472 = vsel %vm614, %v2416, 0
      %v2475 = vsel %vm614, %v2417, 0
      %v2478 = vsel %vm614, %v2418, 0
      %v2481 = vsel %vm614, %v2419, 0
      %v2484 = vsel %vm614, %v2420, 0
      %2486 = vmatprep.subr.bf16.mxu0 0
      %2487 = vmatpush1.bf16.msra.mxu0 %v2434
      %2488 = vmatprep.subr.bf16.mxu0 0
      %2489 = vmatpush1.bf16.msra.mxu0 %v2435
      %2490 = vmatprep.subr.bf16.mxu0 0
      %2491 = vmatpush1.bf16.msra.mxu0 0
      %2492 = vmatprep.subr.bf16.mxu0 0
      %2493 = vmatpush1.bf16.msra.mxu0 0
      %2494 = vmatprep.subr.bf16.mxu0 0
      %2495 = vmatpush1.bf16.msra.mxu0 0
      %2496 = vmatprep.subr.bf16.mxu0 0
      %2497 = vmatpush1.bf16.msra.mxu0 0
      %2498 = vmatprep.subr.bf16.mxu0 0
      %2499 = vmatpush1.bf16.msra.mxu0 0
      %2500 = vmatprep.subr.bf16.mxu0 0
      %2501 = vmatpush1.bf16.msra.mxu0 0
      %2502 = vmatprep.subr.bf16.mxu0 0
      %2503 = vmatpush1.bf16.msra.mxu0 0
      %2504 = vmatprep.subr.bf16.mxu0 0
      %2505 = vmatpush1.bf16.msra.mxu0 0
      %2506 = vmatprep.subr.bf16.mxu0 0
      %2507 = vmatpush1.bf16.msra.mxu0 0
      %2508 = vmatprep.subr.bf16.mxu0 0
      %2509 = vmatpush1.bf16.msra.mxu0 0
      %2510 = vmatprep.subr.bf16.mxu0 0
      %2511 = vmatpush1.bf16.msra.mxu0 0
      %2512 = vmatprep.subr.bf16.mxu0 0
      %2513 = vmatpush1.bf16.msra.mxu0 0
      %2514 = vmatprep.subr.bf16.mxu0 0
      %2515 = vmatpush1.bf16.msra.mxu0 0
      %2516 = vmatprep.subr.bf16.mxu0 0
      %2517 = vmatpush1.bf16.msra.mxu0 0
      %2518 = vmatprep.mubr.bf16.mxu0 0
      %2519 = vmatmul.mubr.bf16.gmra.mrb[0].mxu0 %v2439
      %v2520 = vpop.f32.mrb[0].mxu0
      %v2521 = vadd.f32 0.0, %v2520
      %v2522 = vpop.f32.mrb[0].mxu0
      %v2523 = vpop.f32.mrb[0].mxu0
      %v2524 = vadd.f32 0.0, %v2523
      %v2525 = vpop.f32.mrb[0].mxu0
      %2526 = vmatprep.mubr.bf16.mxu0 0
      %2527 = vmatmul.mubr.bf16.gmra.mrb[0].mxu0 %v2442
      %v2528 = vpop.f32.mrb[0].mxu0
      %v2529 = vadd.f32 0.0, %v2528
      %v2530 = vpop.f32.mrb[0].mxu0
      %v2531 = vpop.f32.mrb[0].mxu0
      %v2532 = vadd.f32 0.0, %v2531
      %v2533 = vpop.f32.mrb[0].mxu0
      %2534 = vmatprep.mubr.bf16.mxu0 0
      %2535 = vmatmul.mubr.bf16.gmra.mrb[0].mxu0 %v2445
      %v2536 = vpop.f32.mrb[0].mxu0
      %v2537 = vadd.f32 0.0, %v2536
      %v2538 = vpop.f32.mrb[0].mxu0
      %v2539 = vpop.f32.mrb[0].mxu0
      %v2540 = vadd.f32 0.0, %v2539
      %v2541 = vpop.f32.mrb[0].mxu0
      %2542 = vmatprep.mubr.bf16.mxu0 0
      %2543 = vmatmul.mubr.bf16.gmra.mrb[0].mxu0 %v2448
      %v2544 = vpop.f32.mrb[0].mxu0
      %v2545 = vadd.f32 0.0, %v2544
      %v2546 = vpop.f32.mrb[0].mxu0
      %v2547 = vpop.f32.mrb[0].mxu0
      %v2548 = vadd.f32 0.0, %v2547
      %v2549 = vpop.f32.mrb[0].mxu0
      %2550 = vmatprep.mubr.bf16.mxu0 0
      %2551 = vmatmul.mubr.bf16.gmra.mrb[0].mxu0 %v2451
      %v2552 = vpop.f32.mrb[0].mxu0
      %v2553 = vadd.f32 0.0, %v2552
      %v2554 = vpop.f32.mrb[0].mxu0
      %v2555 = vpop.f32.mrb[0].mxu0
      %v2556 = vadd.f32 0.0, %v2555
      %v2557 = vpop.f32.mrb[0].mxu0
      %2558 = vmatprep.mubr.bf16.mxu0 0
      %2559 = vmatmul.mubr.bf16.gmra.mrb[0].mxu0 %v2454
      %v2560 = vpop.f32.mrb[0].mxu0
      %v2561 = vadd.f32 0.0, %v2560
      %v2562 = vpop.f32.mrb[0].mxu0
      %v2563 = vpop.f32.mrb[0].mxu0
      %v2564 = vadd.f32 0.0, %v2563
      %v2565 = vpop.f32.mrb[0].mxu0
      %2566 = vmatprep.mubr.bf16.mxu0 0
      %2567 = vmatmul.mubr.bf16.gmra.mrb[0].mxu0 %v2457
      %v2568 = vpop.f32.mrb[0].mxu0
      %v2569 = vadd.f32 0.0, %v2568
      %v2570 = vpop.f32.mrb[0].mxu0
      %v2571 = vpop.f32.mrb[0].mxu0
      %v2572 = vadd.f32 0.0, %v2571
      %v2573 = vpop.f32.mrb[0].mxu0
      %2574 = vmatprep.mubr.bf16.mxu0 0
      %2575 = vmatmul.mubr.bf16.gmra.mrb[0].mxu0 %v2460
      %v2576 = vpop.f32.mrb[0].mxu0
      %v2577 = vadd.f32 0.0, %v2576
      %v2578 = vpop.f32.mrb[0].mxu0
      %v2579 = vpop.f32.mrb[0].mxu0
      %v2580 = vadd.f32 0.0, %v2579
      %v2581 = vpop.f32.mrb[0].mxu0
      %2582 = vmatprep.mubr.bf16.mxu0 0
      %2583 = vmatmul.mubr.bf16.gmra.mrb[0].mxu0 %v2463
      %v2584 = vpop.f32.mrb[0].mxu0
      %v2585 = vadd.f32 0.0, %v2584
      %v2586 = vpop.f32.mrb[0].mxu0
      %v2587 = vpop.f32.mrb[0].mxu0
      %v2588 = vadd.f32 0.0, %v2587
      %v2589 = vpop.f32.mrb[0].mxu0
      %2590 = vmatprep.mubr.bf16.mxu0 0
      %2591 = vmatmul.mubr.bf16.gmra.mrb[0].mxu0 %v2466
      %v2592 = vpop.f32.mrb[0].mxu0
      %v2593 = vadd.f32 0.0, %v2592
      %v2594 = vpop.f32.mrb[0].mxu0
      %v2595 = vpop.f32.mrb[0].mxu0
      %v2596 = vadd.f32 0.0, %v2595
      %v2597 = vpop.f32.mrb[0].mxu0
      %2598 = vmatprep.mubr.bf16.mxu0 0
      %2599 = vmatmul.mubr.bf16.gmra.mrb[0].mxu0 %v2469
      %v2600 = vpop.f32.mrb[0].mxu0
      %v2601 = vadd.f32 0.0, %v2600
      %v2602 = vpop.f32.mrb[0].mxu0
      %v2603 = vpop.f32.mrb[0].mxu0
      %v2604 = vadd.f32 0.0, %v2603
      %v2605 = vpop.f32.mrb[0].mxu0
      %2606 = vmatprep.mubr.bf16.mxu0 0
      %2607 = vmatmul.mubr.bf16.gmra.mrb[0].mxu0 %v2472
      %v2608 = vpop.f32.mrb[0].mxu0
      %v2609 = vadd.f32 0.0, %v2608
      %v2610 = vpop.f32.mrb[0].mxu0
      %v2611 = vpop.f32.mrb[0].mxu0
      %v2612 = vadd.f32 0.0, %v2611
      %v2613 = vpop.f32.mrb[0].mxu0
      %2614 = vmatprep.mubr.bf16.mxu0 0
      %2615 = vmatmul.mubr.bf16.gmra.mrb[0].mxu0 %v2475
      %v2616 = vpop.f32.mrb[0].mxu0
      %v2617 = vadd.f32 0.0, %v2616
      %v2618 = vpop.f32.mrb[0].mxu0
      %v2619 = vpop.f32.mrb[0].mxu0
      %v2620 = vadd.f32 0.0, %v2619
      %v2621 = vpop.f32.mrb[0].mxu0
      %2622 = vmatprep.mubr.bf16.mxu0 0
      %2623 = vmatmul.mubr.bf16.gmra.mrb[0].mxu0 %v2478
      %v2624 = vpop.f32.mrb[0].mxu0
      %v2625 = vadd.f32 0.0, %v2624
      %v2626 = vpop.f32.mrb[0].mxu0
      %v2627 = vpop.f32.mrb[0].mxu0
      %v2628 = vadd.f32 0.0, %v2627
      %v2629 = vpop.f32.mrb[0].mxu0
      %2630 = vmatprep.mubr.bf16.mxu0 0
      %2631 = vmatmul.mubr.bf16.gmra.mrb[0].mxu0 %v2481
      %v2632 = vpop.f32.mrb[0].mxu0
      %v2633 = vadd.f32 0.0, %v2632
      %v2634 = vpop.f32.mrb[0].mxu0
      %v2635 = vpop.f32.mrb[0].mxu0
      %v2636 = vadd.f32 0.0, %v2635
      %v2637 = vpop.f32.mrb[0].mxu0
      %2638 = vmatprep.mubr.bf16.mxu0 0
      %2639 = vmatmul.mubr.bf16.gmra.mrb[0].mxu0 %v2484
      %v2640 = vpop.f32.mrb[0].mxu0
      %v2641 = vadd.f32 0.0, %v2640
      %v2642 = vpop.f32.mrb[0].mxu0
      %v2643 = vpop.f32.mrb[0].mxu0
      %v2644 = vadd.f32 0.0, %v2643
      %v2645 = vpop.f32.mrb[0].mxu0
      %2646 = vdwg.mxu0
      %v2647 = vadd.f32 %v2341, %v2521
      %v2648 = vadd.f32 %v2342, %v2524
      %v2649 = vadd.f32 %v2343, %v2529
      %v2650 = vadd.f32 %v2344, %v2532
      %v2651 = vadd.f32 %v2345, %v2537
      %v2652 = vadd.f32 %v2346, %v2540
      %v2653 = vadd.f32 %v2347, %v2545
      %v2654 = vadd.f32 %v2348, %v2548
      %v2655 = vadd.f32 %v2349, %v2553
      %v2656 = vadd.f32 %v2350, %v2556
      %v2657 = vadd.f32 %v2351, %v2561
      %v2658 = vadd.f32 %v2352, %v2564
      %v2659 = vadd.f32 %v2353, %v2569
      %v2660 = vadd.f32 %v2354, %v2572
      %v2661 = vadd.f32 %v2355, %v2577
      %v2662 = vadd.f32 %v2356, %v2580
      %v2663 = vadd.f32 %v2357, %v2585
      %v2664 = vadd.f32 %v2358, %v2588
      %v2665 = vadd.f32 %v2359, %v2593
      %v2666 = vadd.f32 %v2360, %v2596
      %v2667 = vadd.f32 %v2361, %v2601
      %v2668 = vadd.f32 %v2362, %v2604
      %v2669 = vadd.f32 %v2363, %v2609
      %v2670 = vadd.f32 %v2364, %v2612
      %v2671 = vadd.f32 %v2365, %v2617
      %v2672 = vadd.f32 %v2366, %v2620
      %v2673 = vadd.f32 %v2367, %v2625
      %v2674 = vadd.f32 %v2368, %v2628
      %v2675 = vadd.f32 %v2369, %v2633
      %v2676 = vadd.f32 %v2370, %v2636
      %v2677 = vadd.f32 %v2371, %v2641
      %v2678 = vadd.f32 %v2372, %v2644
      %v2679 = vld [vmem:[%s1446 + $0x1] sm:$0xff]
      %v2680 = vld [vmem:[%s1446 + $0x9] sm:$0xff]
      %v2681 = vld [vmem:[%s1446 + $0x19] sm:$0xff]
      %v2682 = vld [vmem:[%s1446 + $0x21] sm:$0xff]
      %v2683 = vld [vmem:[%s1446 + $0x31] sm:$0xff]
      %v2684 = vld [vmem:[%s1446 + $0x39] sm:$0xff]
      %v2685 = vld [vmem:[%s1446 + $0x49] sm:$0xff]
      %v2686 = vld [vmem:[%s1446 + $0x51] sm:$0xff]
      %v2687 = vld [vmem:[%s1446 + $0x61] sm:$0xff]
      %v2688 = vld [vmem:[%s1446 + $0x69] sm:$0xff]
      %v2689 = vld [vmem:[%s1446 + $0x79] sm:$0xff]
      %v2690 = vld [vmem:[%s1446 + $0x81] sm:$0xff]
      %v2691 = vld [vmem:[%s1446 + $0x91] sm:$0xff]
      %v2692 = vld [vmem:[%s1446 + $0x99] sm:$0xff]
      %v2693 = vld [vmem:[%s1446 + $0xa9] sm:$0xff]
      %v2694 = vld [vmem:[%s1446 + $0xb1] sm:$0xff]
      %v2695 = vld [vmem:[%s1446 + $0xc1] sm:$0xff]
      %v2696 = vld [vmem:[%s1446 + $0xc9] sm:$0xff]
      %v2697 = vld [vmem:[%s1446 + $0xd9] sm:$0xff]
      %v2698 = vld [vmem:[%s1446 + $0xe1] sm:$0xff]
      %v2699 = vld [vmem:[%s1446 + $0xf1] sm:$0xff]
      %v2700 = vld [vmem:[%s1446 + $0xf9] sm:$0xff]
      %v2701 = vld [vmem:[%s1446 + $0x109] sm:$0xff]
      %v2702 = vld [vmem:[%s1446 + $0x111] sm:$0xff]
      %v2703 = vld [vmem:[%s1446 + $0x121] sm:$0xff]
      %v2704 = vld [vmem:[%s1446 + $0x129] sm:$0xff]
      %v2705 = vld [vmem:[%s1446 + $0x139] sm:$0xff]
      %v2706 = vld [vmem:[%s1446 + $0x141] sm:$0xff]
      %v2707 = vld [vmem:[%s1446 + $0x151] sm:$0xff]
      %v2708 = vld [vmem:[%s1446 + $0x159] sm:$0xff]
      %v2709 = vld [vmem:[%s1446 + $0x169] sm:$0xff]
      %v2710 = vld [vmem:[%s1446 + $0x171] sm:$0xff]
      %v2711 = vpack.c.bf16 %v2680, %v2679
      %v2712 = vpack.c.bf16 %v2682, %v2681
      %v2713 = vpack.c.bf16 %v2684, %v2683
      %v2714 = vpack.c.bf16 %v2686, %v2685
      %v2715 = vpack.c.bf16 %v2688, %v2687
      %v2716 = vpack.c.bf16 %v2690, %v2689
      %v2717 = vpack.c.bf16 %v2692, %v2691
      %v2718 = vpack.c.bf16 %v2694, %v2693
      %v2719 = vpack.c.bf16 %v2696, %v2695
      %v2720 = vpack.c.bf16 %v2698, %v2697
      %v2721 = vpack.c.bf16 %v2700, %v2699
      %v2722 = vpack.c.bf16 %v2702, %v2701
      %v2723 = vpack.c.bf16 %v2704, %v2703
      %v2724 = vpack.c.bf16 %v2706, %v2705
      %v2725 = vpack.c.bf16 %v2708, %v2707
      %v2726 = vpack.c.bf16 %v2710, %v2709
      %s2727 = scalar_lea.vmem %s2, 64
      %v2728 = vld [vmem:[%s2727] sm:$0xf]
      %v2729 = vld [vmem:[%s2727 + $0x4] sm:$0xf]
      %v2730 = vld [vmem:[%s2727 + $0x8] sm:$0xf]
      %v2731 = vld [vmem:[%s2727 + $0xc] sm:$0xf]
      %v2736 = vunpack.c.l.b16 %v2728
      %v2737 = vunpack.c.l.b16 %v2729
      %v2738 = vunpack.c.l.b16 %v2730
      %v2739 = vunpack.c.l.b16 %v2731
      %v2740 = vpack.c.b16 %v2737, %v2736
      %v2741 = vpack.c.b16 %v2739, %v2738
      %v2745 = vsel %vm614, %v2711, 0
      %v2748 = vsel %vm614, %v2712, 0
      %v2751 = vsel %vm614, %v2713, 0
      %v2754 = vsel %vm614, %v2714, 0
      %v2757 = vsel %vm614, %v2715, 0
      %v2760 = vsel %vm614, %v2716, 0
      %v2763 = vsel %vm614, %v2717, 0
      %v2766 = vsel %vm614, %v2718, 0
      %v2769 = vsel %vm614, %v2719, 0
      %v2772 = vsel %vm614, %v2720, 0
      %v2775 = vsel %vm614, %v2721, 0
      %v2778 = vsel %vm614, %v2722, 0
      %v2781 = vsel %vm614, %v2723, 0
      %v2784 = vsel %vm614, %v2724, 0
      %v2787 = vsel %vm614, %v2725, 0
      %v2790 = vsel %vm614, %v2726, 0
      %2792 = vmatprep.subr.bf16.mxu0 0
      %2793 = vmatpush1.bf16.msra.mxu0 %v2740
      %2794 = vmatprep.subr.bf16.mxu0 0
      %2795 = vmatpush1.bf16.msra.mxu0 %v2741
      %2796 = vmatprep.subr.bf16.mxu0 0
      %2797 = vmatpush1.bf16.msra.mxu0 0
      %2798 = vmatprep.subr.bf16.mxu0 0
      %2799 = vmatpush1.bf16.msra.mxu0 0
      %2800 = vmatprep.subr.bf16.mxu0 0
      %2801 = vmatpush1.bf16.msra.mxu0 0
      %2802 = vmatprep.subr.bf16.mxu0 0
      %2803 = vmatpush1.bf16.msra.mxu0 0
      %2804 = vmatprep.subr.bf16.mxu0 0
      %2805 = vmatpush1.bf16.msra.mxu0 0
      %2806 = vmatprep.subr.bf16.mxu0 0
      %2807 = vmatpush1.bf16.msra.mxu0 0
      %2808 = vmatprep.subr.bf16.mxu0 0
      %2809 = vmatpush1.bf16.msra.mxu0 0
      %2810 = vmatprep.subr.bf16.mxu0 0
      %2811 = vmatpush1.bf16.msra.mxu0 0
      %2812 = vmatprep.subr.bf16.mxu0 0
      %2813 = vmatpush1.bf16.msra.mxu0 0
      %2814 = vmatprep.subr.bf16.mxu0 0
      %2815 = vmatpush1.bf16.msra.mxu0 0
      %2816 = vmatprep.subr.bf16.mxu0 0
      %2817 = vmatpush1.bf16.msra.mxu0 0
      %2818 = vmatprep.subr.bf16.mxu0 0
      %2819 = vmatpush1.bf16.msra.mxu0 0
      %2820 = vmatprep.subr.bf16.mxu0 0
      %2821 = vmatpush1.bf16.msra.mxu0 0
      %2822 = vmatprep.subr.bf16.mxu0 0
      %2823 = vmatpush1.bf16.msra.mxu0 0
      %2824 = vmatprep.mubr.bf16.mxu0 0
      %2825 = vmatmul.mubr.bf16.gmra.mrb[0].mxu0 %v2745
      %v2826 = vpop.f32.mrb[0].mxu0
      %v2827 = vadd.f32 0.0, %v2826
      %v2828 = vpop.f32.mrb[0].mxu0
      %v2829 = vpop.f32.mrb[0].mxu0
      %v2830 = vadd.f32 0.0, %v2829
      %v2831 = vpop.f32.mrb[0].mxu0
      %2832 = vmatprep.mubr.bf16.mxu0 0
      %2833 = vmatmul.mubr.bf16.gmra.mrb[0].mxu0 %v2748
      %v2834 = vpop.f32.mrb[0].mxu0
      %v2835 = vadd.f32 0.0, %v2834
      %v2836 = vpop.f32.mrb[0].mxu0
      %v2837 = vpop.f32.mrb[0].mxu0
      %v2838 = vadd.f32 0.0, %v2837
      %v2839 = vpop.f32.mrb[0].mxu0
      %2840 = vmatprep.mubr.bf16.mxu0 0
      %2841 = vmatmul.mubr.bf16.gmra.mrb[0].mxu0 %v2751
      %v2842 = vpop.f32.mrb[0].mxu0
      %v2843 = vadd.f32 0.0, %v2842
      %v2844 = vpop.f32.mrb[0].mxu0
      %v2845 = vpop.f32.mrb[0].mxu0
      %v2846 = vadd.f32 0.0, %v2845
      %v2847 = vpop.f32.mrb[0].mxu0
      %2848 = vmatprep.mubr.bf16.mxu0 0
      %2849 = vmatmul.mubr.bf16.gmra.mrb[0].mxu0 %v2754
      %v2850 = vpop.f32.mrb[0].mxu0
      %v2851 = vadd.f32 0.0, %v2850
      %v2852 = vpop.f32.mrb[0].mxu0
      %v2853 = vpop.f32.mrb[0].mxu0
      %v2854 = vadd.f32 0.0, %v2853
      %v2855 = vpop.f32.mrb[0].mxu0
      %2856 = vmatprep.mubr.bf16.mxu0 0
      %2857 = vmatmul.mubr.bf16.gmra.mrb[0].mxu0 %v2757
      %v2858 = vpop.f32.mrb[0].mxu0
      %v2859 = vadd.f32 0.0, %v2858
      %v2860 = vpop.f32.mrb[0].mxu0
      %v2861 = vpop.f32.mrb[0].mxu0
      %v2862 = vadd.f32 0.0, %v2861
      %v2863 = vpop.f32.mrb[0].mxu0
      %2864 = vmatprep.mubr.bf16.mxu0 0
      %2865 = vmatmul.mubr.bf16.gmra.mrb[0].mxu0 %v2760
      %v2866 = vpop.f32.mrb[0].mxu0
      %v2867 = vadd.f32 0.0, %v2866
      %v2868 = vpop.f32.mrb[0].mxu0
      %v2869 = vpop.f32.mrb[0].mxu0
      %v2870 = vadd.f32 0.0, %v2869
      %v2871 = vpop.f32.mrb[0].mxu0
      %2872 = vmatprep.mubr.bf16.mxu0 0
      %2873 = vmatmul.mubr.bf16.gmra.mrb[0].mxu0 %v2763
      %v2874 = vpop.f32.mrb[0].mxu0
      %v2875 = vadd.f32 0.0, %v2874
      %v2876 = vpop.f32.mrb[0].mxu0
      %v2877 = vpop.f32.mrb[0].mxu0
      %v2878 = vadd.f32 0.0, %v2877
      %v2879 = vpop.f32.mrb[0].mxu0
      %2880 = vmatprep.mubr.bf16.mxu0 0
      %2881 = vmatmul.mubr.bf16.gmra.mrb[0].mxu0 %v2766
      %v2882 = vpop.f32.mrb[0].mxu0
      %v2883 = vadd.f32 0.0, %v2882
      %v2884 = vpop.f32.mrb[0].mxu0
      %v2885 = vpop.f32.mrb[0].mxu0
      %v2886 = vadd.f32 0.0, %v2885
      %v2887 = vpop.f32.mrb[0].mxu0
      %2888 = vmatprep.mubr.bf16.mxu0 0
      %2889 = vmatmul.mubr.bf16.gmra.mrb[0].mxu0 %v2769
      %v2890 = vpop.f32.mrb[0].mxu0
      %v2891 = vadd.f32 0.0, %v2890
      %v2892 = vpop.f32.mrb[0].mxu0
      %v2893 = vpop.f32.mrb[0].mxu0
      %v2894 = vadd.f32 0.0, %v2893
      %v2895 = vpop.f32.mrb[0].mxu0
      %2896 = vmatprep.mubr.bf16.mxu0 0
      %2897 = vmatmul.mubr.bf16.gmra.mrb[0].mxu0 %v2772
      %v2898 = vpop.f32.mrb[0].mxu0
      %v2899 = vadd.f32 0.0, %v2898
      %v2900 = vpop.f32.mrb[0].mxu0
      %v2901 = vpop.f32.mrb[0].mxu0
      %v2902 = vadd.f32 0.0, %v2901
      %v2903 = vpop.f32.mrb[0].mxu0
      %2904 = vmatprep.mubr.bf16.mxu0 0
      %2905 = vmatmul.mubr.bf16.gmra.mrb[0].mxu0 %v2775
      %v2906 = vpop.f32.mrb[0].mxu0
      %v2907 = vadd.f32 0.0, %v2906
      %v2908 = vpop.f32.mrb[0].mxu0
      %v2909 = vpop.f32.mrb[0].mxu0
      %v2910 = vadd.f32 0.0, %v2909
      %v2911 = vpop.f32.mrb[0].mxu0
      %2912 = vmatprep.mubr.bf16.mxu0 0
      %2913 = vmatmul.mubr.bf16.gmra.mrb[0].mxu0 %v2778
      %v2914 = vpop.f32.mrb[0].mxu0
      %v2915 = vadd.f32 0.0, %v2914
      %v2916 = vpop.f32.mrb[0].mxu0
      %v2917 = vpop.f32.mrb[0].mxu0
      %v2918 = vadd.f32 0.0, %v2917
      %v2919 = vpop.f32.mrb[0].mxu0
      %2920 = vmatprep.mubr.bf16.mxu0 0
      %2921 = vmatmul.mubr.bf16.gmra.mrb[0].mxu0 %v2781
      %v2922 = vpop.f32.mrb[0].mxu0
      %v2923 = vadd.f32 0.0, %v2922
      %v2924 = vpop.f32.mrb[0].mxu0
      %v2925 = vpop.f32.mrb[0].mxu0
      %v2926 = vadd.f32 0.0, %v2925
      %v2927 = vpop.f32.mrb[0].mxu0
      %2928 = vmatprep.mubr.bf16.mxu0 0
      %2929 = vmatmul.mubr.bf16.gmra.mrb[0].mxu0 %v2784
      %v2930 = vpop.f32.mrb[0].mxu0
      %v2931 = vadd.f32 0.0, %v2930
      %v2932 = vpop.f32.mrb[0].mxu0
      %v2933 = vpop.f32.mrb[0].mxu0
      %v2934 = vadd.f32 0.0, %v2933
      %v2935 = vpop.f32.mrb[0].mxu0
      %2936 = vmatprep.mubr.bf16.mxu0 0
      %2937 = vmatmul.mubr.bf16.gmra.mrb[0].mxu0 %v2787
      %v2938 = vpop.f32.mrb[0].mxu0
      %v2939 = vadd.f32 0.0, %v2938
      %v2940 = vpop.f32.mrb[0].mxu0
      %v2941 = vpop.f32.mrb[0].mxu0
      %v2942 = vadd.f32 0.0, %v2941
      %v2943 = vpop.f32.mrb[0].mxu0
      %2944 = vmatprep.mubr.bf16.mxu0 0
      %2945 = vmatmul.mubr.bf16.gmra.mrb[0].mxu0 %v2790
      %v2946 = vpop.f32.mrb[0].mxu0
      %v2947 = vadd.f32 0.0, %v2946
      %v2948 = vpop.f32.mrb[0].mxu0
      %v2949 = vpop.f32.mrb[0].mxu0
      %v2950 = vadd.f32 0.0, %v2949
      %v2951 = vpop.f32.mrb[0].mxu0
      %2952 = vdwg.mxu0
      %v2953 = vadd.f32 %v2647, %v2827
      %v2954 = vadd.f32 %v2648, %v2830
      %v2955 = vadd.f32 %v2649, %v2835
      %v2956 = vadd.f32 %v2650, %v2838
      %v2957 = vadd.f32 %v2651, %v2843
      %v2958 = vadd.f32 %v2652, %v2846
      %v2959 = vadd.f32 %v2653, %v2851
      %v2960 = vadd.f32 %v2654, %v2854
      %v2961 = vadd.f32 %v2655, %v2859
      %v2962 = vadd.f32 %v2656, %v2862
      %v2963 = vadd.f32 %v2657, %v2867
      %v2964 = vadd.f32 %v2658, %v2870
      %v2965 = vadd.f32 %v2659, %v2875
      %v2966 = vadd.f32 %v2660, %v2878
      %v2967 = vadd.f32 %v2661, %v2883
      %v2968 = vadd.f32 %v2662, %v2886
      %v2969 = vadd.f32 %v2663, %v2891
      %v2970 = vadd.f32 %v2664, %v2894
      %v2971 = vadd.f32 %v2665, %v2899
      %v2972 = vadd.f32 %v2666, %v2902
      %v2973 = vadd.f32 %v2667, %v2907
      %v2974 = vadd.f32 %v2668, %v2910
      %v2975 = vadd.f32 %v2669, %v2915
      %v2976 = vadd.f32 %v2670, %v2918
      %v2977 = vadd.f32 %v2671, %v2923
      %v2978 = vadd.f32 %v2672, %v2926
      %v2979 = vadd.f32 %v2673, %v2931
      %v2980 = vadd.f32 %v2674, %v2934
      %v2981 = vadd.f32 %v2675, %v2939
      %v2982 = vadd.f32 %v2676, %v2942
      %v2983 = vadd.f32 %v2677, %v2947
      %v2984 = vadd.f32 %v2678, %v2950
      %v2985 = vld [vmem:[%s1446 + $0x2] sm:$0xff]
      %v2986 = vld [vmem:[%s1446 + $0xa] sm:$0xff]
      %v2987 = vld [vmem:[%s1446 + $0x1a] sm:$0xff]
      %v2988 = vld [vmem:[%s1446 + $0x22] sm:$0xff]
      %v2989 = vld [vmem:[%s1446 + $0x32] sm:$0xff]
      %v2990 = vld [vmem:[%s1446 + $0x3a] sm:$0xff]
      %v2991 = vld [vmem:[%s1446 + $0x4a] sm:$0xff]
      %v2992 = vld [vmem:[%s1446 + $0x52] sm:$0xff]
      %v2993 = vld [vmem:[%s1446 + $0x62] sm:$0xff]
      %v2994 = vld [vmem:[%s1446 + $0x6a] sm:$0xff]
      %v2995 = vld [vmem:[%s1446 + $0x7a] sm:$0xff]
      %v2996 = vld [vmem:[%s1446 + $0x82] sm:$0xff]
      %v2997 = vld [vmem:[%s1446 + $0x92] sm:$0xff]
      %v2998 = vld [vmem:[%s1446 + $0x9a] sm:$0xff]
      %v2999 = vld [vmem:[%s1446 + $0xaa] sm:$0xff]
      %v3000 = vld [vmem:[%s1446 + $0xb2] sm:$0xff]
      %v3001 = vld [vmem:[%s1446 + $0xc2] sm:$0xff]
      %v3002 = vld [vmem:[%s1446 + $0xca] sm:$0xff]
      %v3003 = vld [vmem:[%s1446 + $0xda] sm:$0xff]
      %v3004 = vld [vmem:[%s1446 + $0xe2] sm:$0xff]
      %v3005 = vld [vmem:[%s1446 + $0xf2] sm:$0xff]
      %v3006 = vld [vmem:[%s1446 + $0xfa] sm:$0xff]
      %v3007 = vld [vmem:[%s1446 + $0x10a] sm:$0xff]
      %v3008 = vld [vmem:[%s1446 + $0x112] sm:$0xff]
      %v3009 = vld [vmem:[%s1446 + $0x122] sm:$0xff]
      %v3010 = vld [vmem:[%s1446 + $0x12a] sm:$0xff]
      %v3011 = vld [vmem:[%s1446 + $0x13a] sm:$0xff]
      %v3012 = vld [vmem:[%s1446 + $0x142] sm:$0xff]
      %v3013 = vld [vmem:[%s1446 + $0x152] sm:$0xff]
      %v3014 = vld [vmem:[%s1446 + $0x15a] sm:$0xff]
      %v3015 = vld [vmem:[%s1446 + $0x16a] sm:$0xff]
      %v3016 = vld [vmem:[%s1446 + $0x172] sm:$0xff]
      %v3017 = vpack.c.bf16 %v2986, %v2985
      %v3018 = vpack.c.bf16 %v2988, %v2987
      %v3019 = vpack.c.bf16 %v2990, %v2989
      %v3020 = vpack.c.bf16 %v2992, %v2991
      %v3021 = vpack.c.bf16 %v2994, %v2993
      %v3022 = vpack.c.bf16 %v2996, %v2995
      %v3023 = vpack.c.bf16 %v2998, %v2997
      %v3024 = vpack.c.bf16 %v3000, %v2999
      %v3025 = vpack.c.bf16 %v3002, %v3001
      %v3026 = vpack.c.bf16 %v3004, %v3003
      %v3027 = vpack.c.bf16 %v3006, %v3005
      %v3028 = vpack.c.bf16 %v3008, %v3007
      %v3029 = vpack.c.bf16 %v3010, %v3009
      %v3030 = vpack.c.bf16 %v3012, %v3011
      %v3031 = vpack.c.bf16 %v3014, %v3013
      %v3032 = vpack.c.bf16 %v3016, %v3015
      %s3033 = scalar_lea.vmem %s2, 80
      %v3034 = vld [vmem:[%s3033] sm:$0xf]
      %v3035 = vld [vmem:[%s3033 + $0x4] sm:$0xf]
      %v3036 = vld [vmem:[%s3033 + $0x8] sm:$0xf]
      %v3037 = vld [vmem:[%s3033 + $0xc] sm:$0xf]
      %v3042 = vunpack.c.l.b16 %v3034
      %v3043 = vunpack.c.l.b16 %v3035
      %v3044 = vunpack.c.l.b16 %v3036
      %v3045 = vunpack.c.l.b16 %v3037
      %v3046 = vpack.c.b16 %v3043, %v3042
      %v3047 = vpack.c.b16 %v3045, %v3044
      %v3051 = vsel %vm614, %v3017, 0
      %v3054 = vsel %vm614, %v3018, 0
      %v3057 = vsel %vm614, %v3019, 0
      %v3060 = vsel %vm614, %v3020, 0
      %v3063 = vsel %vm614, %v3021, 0
      %v3066 = vsel %vm614, %v3022, 0
      %v3069 = vsel %vm614, %v3023, 0
      %v3072 = vsel %vm614, %v3024, 0
      %v3075 = vsel %vm614, %v3025, 0
      %v3078 = vsel %vm614, %v3026, 0
      %v3081 = vsel %vm614, %v3027, 0
      %v3084 = vsel %vm614, %v3028, 0
      %v3087 = vsel %vm614, %v3029, 0
      %v3090 = vsel %vm614, %v3030, 0
      %v3093 = vsel %vm614, %v3031, 0
      %v3096 = vsel %vm614, %v3032, 0
      %3098 = vmatprep.subr.bf16.mxu0 0
      %3099 = vmatpush1.bf16.msra.mxu0 %v3046
      %3100 = vmatprep.subr.bf16.mxu0 0
      %3101 = vmatpush1.bf16.msra.mxu0 %v3047
      %3102 = vmatprep.subr.bf16.mxu0 0
      %3103 = vmatpush1.bf16.msra.mxu0 0
      %3104 = vmatprep.subr.bf16.mxu0 0
      %3105 = vmatpush1.bf16.msra.mxu0 0
      %3106 = vmatprep.subr.bf16.mxu0 0
      %3107 = vmatpush1.bf16.msra.mxu0 0
      %3108 = vmatprep.subr.bf16.mxu0 0
      %3109 = vmatpush1.bf16.msra.mxu0 0
      %3110 = vmatprep.subr.bf16.mxu0 0
      %3111 = vmatpush1.bf16.msra.mxu0 0
      %3112 = vmatprep.subr.bf16.mxu0 0
      %3113 = vmatpush1.bf16.msra.mxu0 0
      %3114 = vmatprep.subr.bf16.mxu0 0
      %3115 = vmatpush1.bf16.msra.mxu0 0
      %3116 = vmatprep.subr.bf16.mxu0 0
      %3117 = vmatpush1.bf16.msra.mxu0 0
      %3118 = vmatprep.subr.bf16.mxu0 0
      %3119 = vmatpush1.bf16.msra.mxu0 0
      %3120 = vmatprep.subr.bf16.mxu0 0
      %3121 = vmatpush1.bf16.msra.mxu0 0
      %3122 = vmatprep.subr.bf16.mxu0 0
      %3123 = vmatpush1.bf16.msra.mxu0 0
      %3124 = vmatprep.subr.bf16.mxu0 0
      %3125 = vmatpush1.bf16.msra.mxu0 0
      %3126 = vmatprep.subr.bf16.mxu0 0
      %3127 = vmatpush1.bf16.msra.mxu0 0
      %3128 = vmatprep.subr.bf16.mxu0 0
      %3129 = vmatpush1.bf16.msra.mxu0 0
      %3130 = vmatprep.mubr.bf16.mxu0 0
      %3131 = vmatmul.mubr.bf16.gmra.mrb[0].mxu0 %v3051
      %v3132 = vpop.f32.mrb[0].mxu0
      %v3133 = vadd.f32 0.0, %v3132
      %v3134 = vpop.f32.mrb[0].mxu0
      %v3135 = vpop.f32.mrb[0].mxu0
      %v3136 = vadd.f32 0.0, %v3135
      %v3137 = vpop.f32.mrb[0].mxu0
      %3138 = vmatprep.mubr.bf16.mxu0 0
      %3139 = vmatmul.mubr.bf16.gmra.mrb[0].mxu0 %v3054
      %v3140 = vpop.f32.mrb[0].mxu0
      %v3141 = vadd.f32 0.0, %v3140
      %v3142 = vpop.f32.mrb[0].mxu0
      %v3143 = vpop.f32.mrb[0].mxu0
      %v3144 = vadd.f32 0.0, %v3143
      %v3145 = vpop.f32.mrb[0].mxu0
      %3146 = vmatprep.mubr.bf16.mxu0 0
      %3147 = vmatmul.mubr.bf16.gmra.mrb[0].mxu0 %v3057
      %v3148 = vpop.f32.mrb[0].mxu0
      %v3149 = vadd.f32 0.0, %v3148
      %v3150 = vpop.f32.mrb[0].mxu0
      %v3151 = vpop.f32.mrb[0].mxu0
      %v3152 = vadd.f32 0.0, %v3151
      %v3153 = vpop.f32.mrb[0].mxu0
      %3154 = vmatprep.mubr.bf16.mxu0 0
      %3155 = vmatmul.mubr.bf16.gmra.mrb[0].mxu0 %v3060
      %v3156 = vpop.f32.mrb[0].mxu0
      %v3157 = vadd.f32 0.0, %v3156
      %v3158 = vpop.f32.mrb[0].mxu0
      %v3159 = vpop.f32.mrb[0].mxu0
      %v3160 = vadd.f32 0.0, %v3159
      %v3161 = vpop.f32.mrb[0].mxu0
      %3162 = vmatprep.mubr.bf16.mxu0 0
      %3163 = vmatmul.mubr.bf16.gmra.mrb[0].mxu0 %v3063
      %v3164 = vpop.f32.mrb[0].mxu0
      %v3165 = vadd.f32 0.0, %v3164
      %v3166 = vpop.f32.mrb[0].mxu0
      %v3167 = vpop.f32.mrb[0].mxu0
      %v3168 = vadd.f32 0.0, %v3167
      %v3169 = vpop.f32.mrb[0].mxu0
      %3170 = vmatprep.mubr.bf16.mxu0 0
      %3171 = vmatmul.mubr.bf16.gmra.mrb[0].mxu0 %v3066
      %v3172 = vpop.f32.mrb[0].mxu0
      %v3173 = vadd.f32 0.0, %v3172
      %v3174 = vpop.f32.mrb[0].mxu0
      %v3175 = vpop.f32.mrb[0].mxu0
      %v3176 = vadd.f32 0.0, %v3175
      %v3177 = vpop.f32.mrb[0].mxu0
      %3178 = vmatprep.mubr.bf16.mxu0 0
      %3179 = vmatmul.mubr.bf16.gmra.mrb[0].mxu0 %v3069
      %v3180 = vpop.f32.mrb[0].mxu0
      %v3181 = vadd.f32 0.0, %v3180
      %v3182 = vpop.f32.mrb[0].mxu0
      %v3183 = vpop.f32.mrb[0].mxu0
      %v3184 = vadd.f32 0.0, %v3183
      %v3185 = vpop.f32.mrb[0].mxu0
      %3186 = vmatprep.mubr.bf16.mxu0 0
      %3187 = vmatmul.mubr.bf16.gmra.mrb[0].mxu0 %v3072
      %v3188 = vpop.f32.mrb[0].mxu0
      %v3189 = vadd.f32 0.0, %v3188
      %v3190 = vpop.f32.mrb[0].mxu0
      %v3191 = vpop.f32.mrb[0].mxu0
      %v3192 = vadd.f32 0.0, %v3191
      %v3193 = vpop.f32.mrb[0].mxu0
      %3194 = vmatprep.mubr.bf16.mxu0 0
      %3195 = vmatmul.mubr.bf16.gmra.mrb[0].mxu0 %v3075
      %v3196 = vpop.f32.mrb[0].mxu0
      %v3197 = vadd.f32 0.0, %v3196
      %v3198 = vpop.f32.mrb[0].mxu0
      %v3199 = vpop.f32.mrb[0].mxu0
      %v3200 = vadd.f32 0.0, %v3199
      %v3201 = vpop.f32.mrb[0].mxu0
      %3202 = vmatprep.mubr.bf16.mxu0 0
      %3203 = vmatmul.mubr.bf16.gmra.mrb[0].mxu0 %v3078
      %v3204 = vpop.f32.mrb[0].mxu0
      %v3205 = vadd.f32 0.0, %v3204
      %v3206 = vpop.f32.mrb[0].mxu0
      %v3207 = vpop.f32.mrb[0].mxu0
      %v3208 = vadd.f32 0.0, %v3207
      %v3209 = vpop.f32.mrb[0].mxu0
      %3210 = vmatprep.mubr.bf16.mxu0 0
      %3211 = vmatmul.mubr.bf16.gmra.mrb[0].mxu0 %v3081
      %v3212 = vpop.f32.mrb[0].mxu0
      %v3213 = vadd.f32 0.0, %v3212
      %v3214 = vpop.f32.mrb[0].mxu0
      %v3215 = vpop.f32.mrb[0].mxu0
      %v3216 = vadd.f32 0.0, %v3215
      %v3217 = vpop.f32.mrb[0].mxu0
      %3218 = vmatprep.mubr.bf16.mxu0 0
      %3219 = vmatmul.mubr.bf16.gmra.mrb[0].mxu0 %v3084
      %v3220 = vpop.f32.mrb[0].mxu0
      %v3221 = vadd.f32 0.0, %v3220
      %v3222 = vpop.f32.mrb[0].mxu0
      %v3223 = vpop.f32.mrb[0].mxu0
      %v3224 = vadd.f32 0.0, %v3223
      %v3225 = vpop.f32.mrb[0].mxu0
      %3226 = vmatprep.mubr.bf16.mxu0 0
      %3227 = vmatmul.mubr.bf16.gmra.mrb[0].mxu0 %v3087
      %v3228 = vpop.f32.mrb[0].mxu0
      %v3229 = vadd.f32 0.0, %v3228
      %v3230 = vpop.f32.mrb[0].mxu0
      %v3231 = vpop.f32.mrb[0].mxu0
      %v3232 = vadd.f32 0.0, %v3231
      %v3233 = vpop.f32.mrb[0].mxu0
      %3234 = vmatprep.mubr.bf16.mxu0 0
      %3235 = vmatmul.mubr.bf16.gmra.mrb[0].mxu0 %v3090
      %v3236 = vpop.f32.mrb[0].mxu0
      %v3237 = vadd.f32 0.0, %v3236
      %v3238 = vpop.f32.mrb[0].mxu0
      %v3239 = vpop.f32.mrb[0].mxu0
      %v3240 = vadd.f32 0.0, %v3239
      %v3241 = vpop.f32.mrb[0].mxu0
      %3242 = vmatprep.mubr.bf16.mxu0 0
      %3243 = vmatmul.mubr.bf16.gmra.mrb[0].mxu0 %v3093
      %v3244 = vpop.f32.mrb[0].mxu0
      %v3245 = vadd.f32 0.0, %v3244
      %v3246 = vpop.f32.mrb[0].mxu0
      %v3247 = vpop.f32.mrb[0].mxu0
      %v3248 = vadd.f32 0.0, %v3247
      %v3249 = vpop.f32.mrb[0].mxu0
      %3250 = vmatprep.mubr.bf16.mxu0 0
      %3251 = vmatmul.mubr.bf16.gmra.mrb[0].mxu0 %v3096
      %v3252 = vpop.f32.mrb[0].mxu0
      %v3253 = vadd.f32 0.0, %v3252
      %v3254 = vpop.f32.mrb[0].mxu0
      %v3255 = vpop.f32.mrb[0].mxu0
      %v3256 = vadd.f32 0.0, %v3255
      %v3257 = vpop.f32.mrb[0].mxu0
      %3258 = vdwg.mxu0
      %v3259 = vadd.f32 %v2953, %v3133
      %v3260 = vadd.f32 %v2954, %v3136
      %v3261 = vadd.f32 %v2955, %v3141
      %v3262 = vadd.f32 %v2956, %v3144
      %v3263 = vadd.f32 %v2957, %v3149
      %v3264 = vadd.f32 %v2958, %v3152
      %v3265 = vadd.f32 %v2959, %v3157
      %v3266 = vadd.f32 %v2960, %v3160
      %v3267 = vadd.f32 %v2961, %v3165
      %v3268 = vadd.f32 %v2962, %v3168
      %v3269 = vadd.f32 %v2963, %v3173
      %v3270 = vadd.f32 %v2964, %v3176
      %v3271 = vadd.f32 %v2965, %v3181
      %v3272 = vadd.f32 %v2966, %v3184
      %v3273 = vadd.f32 %v2967, %v3189
      %v3274 = vadd.f32 %v2968, %v3192
      %v3275 = vadd.f32 %v2969, %v3197
      %v3276 = vadd.f32 %v2970, %v3200
      %v3277 = vadd.f32 %v2971, %v3205
      %v3278 = vadd.f32 %v2972, %v3208
      %v3279 = vadd.f32 %v2973, %v3213
      %v3280 = vadd.f32 %v2974, %v3216
      %v3281 = vadd.f32 %v2975, %v3221
      %v3282 = vadd.f32 %v2976, %v3224
      %v3283 = vadd.f32 %v2977, %v3229
      %v3284 = vadd.f32 %v2978, %v3232
      %v3285 = vadd.f32 %v2979, %v3237
      %v3286 = vadd.f32 %v2980, %v3240
      %v3287 = vadd.f32 %v2981, %v3245
      %v3288 = vadd.f32 %v2982, %v3248
      %v3289 = vadd.f32 %v2983, %v3253
      %v3290 = vadd.f32 %v2984, %v3256
      %s3291 = scalar_lea.vmem [#allocation2], 48
      %v3292 = vld [vmem:[%s3291] sm:$0xff]
      %v3293 = vld [vmem:[%s3291 + $0x8] sm:$0xff]
      %v3294 = vld [vmem:[%s3291 + $0x18] sm:$0xff]
      %v3295 = vld [vmem:[%s3291 + $0x20] sm:$0xff]
      %v3296 = vld [vmem:[%s3291 + $0x30] sm:$0xff]
      %v3297 = vld [vmem:[%s3291 + $0x38] sm:$0xff]
      %v3298 = vld [vmem:[%s3291 + $0x48] sm:$0xff]
      %v3299 = vld [vmem:[%s3291 + $0x50] sm:$0xff]
      %v3300 = vld [vmem:[%s3291 + $0x60] sm:$0xff]
      %v3301 = vld [vmem:[%s3291 + $0x68] sm:$0xff]
      %v3302 = vld [vmem:[%s3291 + $0x78] sm:$0xff]
      %v3303 = vld [vmem:[%s3291 + $0x80] sm:$0xff]
      %v3304 = vld [vmem:[%s3291 + $0x90] sm:$0xff]
      %v3305 = vld [vmem:[%s3291 + $0x98] sm:$0xff]
      %v3306 = vld [vmem:[%s3291 + $0xa8] sm:$0xff]
      %v3307 = vld [vmem:[%s3291 + $0xb0] sm:$0xff]
      %v3308 = vld [vmem:[%s3291 + $0xc0] sm:$0xff]
      %v3309 = vld [vmem:[%s3291 + $0xc8] sm:$0xff]
      %v3310 = vld [vmem:[%s3291 + $0xd8] sm:$0xff]
      %v3311 = vld [vmem:[%s3291 + $0xe0] sm:$0xff]
      %v3312 = vld [vmem:[%s3291 + $0xf0] sm:$0xff]
      %v3313 = vld [vmem:[%s3291 + $0xf8] sm:$0xff]
      %v3314 = vld [vmem:[%s3291 + $0x108] sm:$0xff]
      %v3315 = vld [vmem:[%s3291 + $0x110] sm:$0xff]
      %v3316 = vld [vmem:[%s3291 + $0x120] sm:$0xff]
      %v3317 = vld [vmem:[%s3291 + $0x128] sm:$0xff]
      %v3318 = vld [vmem:[%s3291 + $0x138] sm:$0xff]
      %v3319 = vld [vmem:[%s3291 + $0x140] sm:$0xff]
      %v3320 = vld [vmem:[%s3291 + $0x150] sm:$0xff]
      %v3321 = vld [vmem:[%s3291 + $0x158] sm:$0xff]
      %v3322 = vld [vmem:[%s3291 + $0x168] sm:$0xff]
      %v3323 = vld [vmem:[%s3291 + $0x170] sm:$0xff]
      %v3324 = vpack.c.bf16 %v3293, %v3292
      %v3325 = vpack.c.bf16 %v3295, %v3294
      %v3326 = vpack.c.bf16 %v3297, %v3296
      %v3327 = vpack.c.bf16 %v3299, %v3298
      %v3328 = vpack.c.bf16 %v3301, %v3300
      %v3329 = vpack.c.bf16 %v3303, %v3302
      %v3330 = vpack.c.bf16 %v3305, %v3304
      %v3331 = vpack.c.bf16 %v3307, %v3306
      %v3332 = vpack.c.bf16 %v3309, %v3308
      %v3333 = vpack.c.bf16 %v3311, %v3310
      %v3334 = vpack.c.bf16 %v3313, %v3312
      %v3335 = vpack.c.bf16 %v3315, %v3314
      %v3336 = vpack.c.bf16 %v3317, %v3316
      %v3337 = vpack.c.bf16 %v3319, %v3318
      %v3338 = vpack.c.bf16 %v3321, %v3320
      %v3339 = vpack.c.bf16 %v3323, %v3322
      %s3340 = scalar_lea.vmem %s2, 96
      %v3341 = vld [vmem:[%s3340] sm:$0xf]
      %v3342 = vld [vmem:[%s3340 + $0x4] sm:$0xf]
      %v3343 = vld [vmem:[%s3340 + $0x8] sm:$0xf]
      %v3344 = vld [vmem:[%s3340 + $0xc] sm:$0xf]
      %v3349 = vunpack.c.l.b16 %v3341
      %v3350 = vunpack.c.l.b16 %v3342
      %v3351 = vunpack.c.l.b16 %v3343
      %v3352 = vunpack.c.l.b16 %v3344
      %v3353 = vpack.c.b16 %v3350, %v3349
      %v3354 = vpack.c.b16 %v3352, %v3351
      %v3358 = vsel %vm614, %v3324, 0
      %v3361 = vsel %vm614, %v3325, 0
      %v3364 = vsel %vm614, %v3326, 0
      %v3367 = vsel %vm614, %v3327, 0
      %v3370 = vsel %vm614, %v3328, 0
      %v3373 = vsel %vm614, %v3329, 0
      %v3376 = vsel %vm614, %v3330, 0
      %v3379 = vsel %vm614, %v3331, 0
      %v3382 = vsel %vm614, %v3332, 0
      %v3385 = vsel %vm614, %v3333, 0
      %v3388 = vsel %vm614, %v3334, 0
      %v3391 = vsel %vm614, %v3335, 0
      %v3394 = vsel %vm614, %v3336, 0
      %v3397 = vsel %vm614, %v3337, 0
      %v3400 = vsel %vm614, %v3338, 0
      %v3403 = vsel %vm614, %v3339, 0
      %3405 = vmatprep.subr.bf16.mxu0 0
      %3406 = vmatpush1.bf16.msra.mxu0 %v3353
      %3407 = vmatprep.subr.bf16.mxu0 0
      %3408 = vmatpush1.bf16.msra.mxu0 %v3354
      %3409 = vmatprep.subr.bf16.mxu0 0
      %3410 = vmatpush1.bf16.msra.mxu0 0
      %3411 = vmatprep.subr.bf16.mxu0 0
      %3412 = vmatpush1.bf16.msra.mxu0 0
      %3413 = vmatprep.subr.bf16.mxu0 0
      %3414 = vmatpush1.bf16.msra.mxu0 0
      %3415 = vmatprep.subr.bf16.mxu0 0
      %3416 = vmatpush1.bf16.msra.mxu0 0
      %3417 = vmatprep.subr.bf16.mxu0 0
      %3418 = vmatpush1.bf16.msra.mxu0 0
      %3419 = vmatprep.subr.bf16.mxu0 0
      %3420 = vmatpush1.bf16.msra.mxu0 0
      %3421 = vmatprep.subr.bf16.mxu0 0
      %3422 = vmatpush1.bf16.msra.mxu0 0
      %3423 = vmatprep.subr.bf16.mxu0 0
      %3424 = vmatpush1.bf16.msra.mxu0 0
      %3425 = vmatprep.subr.bf16.mxu0 0
      %3426 = vmatpush1.bf16.msra.mxu0 0
      %3427 = vmatprep.subr.bf16.mxu0 0
      %3428 = vmatpush1.bf16.msra.mxu0 0
      %3429 = vmatprep.subr.bf16.mxu0 0
      %3430 = vmatpush1.bf16.msra.mxu0 0
      %3431 = vmatprep.subr.bf16.mxu0 0
      %3432 = vmatpush1.bf16.msra.mxu0 0
      %3433 = vmatprep.subr.bf16.mxu0 0
      %3434 = vmatpush1.bf16.msra.mxu0 0
      %3435 = vmatprep.subr.bf16.mxu0 0
      %3436 = vmatpush1.bf16.msra.mxu0 0
      %3437 = vmatprep.mubr.bf16.mxu0 0
      %3438 = vmatmul.mubr.bf16.gmra.mrb[0].mxu0 %v3358
      %v3439 = vpop.f32.mrb[0].mxu0
      %v3440 = vadd.f32 0.0, %v3439
      %v3441 = vpop.f32.mrb[0].mxu0
      %v3442 = vpop.f32.mrb[0].mxu0
      %v3443 = vadd.f32 0.0, %v3442
      %v3444 = vpop.f32.mrb[0].mxu0
      %3445 = vmatprep.mubr.bf16.mxu0 0
      %3446 = vmatmul.mubr.bf16.gmra.mrb[0].mxu0 %v3361
      %v3447 = vpop.f32.mrb[0].mxu0
      %v3448 = vadd.f32 0.0, %v3447
      %v3449 = vpop.f32.mrb[0].mxu0
      %v3450 = vpop.f32.mrb[0].mxu0
      %v3451 = vadd.f32 0.0, %v3450
      %v3452 = vpop.f32.mrb[0].mxu0
      %3453 = vmatprep.mubr.bf16.mxu0 0
      %3454 = vmatmul.mubr.bf16.gmra.mrb[0].mxu0 %v3364
      %v3455 = vpop.f32.mrb[0].mxu0
      %v3456 = vadd.f32 0.0, %v3455
      %v3457 = vpop.f32.mrb[0].mxu0
      %v3458 = vpop.f32.mrb[0].mxu0
      %v3459 = vadd.f32 0.0, %v3458
      %v3460 = vpop.f32.mrb[0].mxu0
      %3461 = vmatprep.mubr.bf16.mxu0 0
      %3462 = vmatmul.mubr.bf16.gmra.mrb[0].mxu0 %v3367
      %v3463 = vpop.f32.mrb[0].mxu0
      %v3464 = vadd.f32 0.0, %v3463
      %v3465 = vpop.f32.mrb[0].mxu0
      %v3466 = vpop.f32.mrb[0].mxu0
      %v3467 = vadd.f32 0.0, %v3466
      %v3468 = vpop.f32.mrb[0].mxu0
      %3469 = vmatprep.mubr.bf16.mxu0 0
      %3470 = vmatmul.mubr.bf16.gmra.mrb[0].mxu0 %v3370
      %v3471 = vpop.f32.mrb[0].mxu0
      %v3472 = vadd.f32 0.0, %v3471
      %v3473 = vpop.f32.mrb[0].mxu0
      %v3474 = vpop.f32.mrb[0].mxu0
      %v3475 = vadd.f32 0.0, %v3474
      %v3476 = vpop.f32.mrb[0].mxu0
      %3477 = vmatprep.mubr.bf16.mxu0 0
      %3478 = vmatmul.mubr.bf16.gmra.mrb[0].mxu0 %v3373
      %v3479 = vpop.f32.mrb[0].mxu0
      %v3480 = vadd.f32 0.0, %v3479
      %v3481 = vpop.f32.mrb[0].mxu0
      %v3482 = vpop.f32.mrb[0].mxu0
      %v3483 = vadd.f32 0.0, %v3482
      %v3484 = vpop.f32.mrb[0].mxu0
      %3485 = vmatprep.mubr.bf16.mxu0 0
      %3486 = vmatmul.mubr.bf16.gmra.mrb[0].mxu0 %v3376
      %v3487 = vpop.f32.mrb[0].mxu0
      %v3488 = vadd.f32 0.0, %v3487
      %v3489 = vpop.f32.mrb[0].mxu0
      %v3490 = vpop.f32.mrb[0].mxu0
      %v3491 = vadd.f32 0.0, %v3490
      %v3492 = vpop.f32.mrb[0].mxu0
      %3493 = vmatprep.mubr.bf16.mxu0 0
      %3494 = vmatmul.mubr.bf16.gmra.mrb[0].mxu0 %v3379
      %v3495 = vpop.f32.mrb[0].mxu0
      %v3496 = vadd.f32 0.0, %v3495
      %v3497 = vpop.f32.mrb[0].mxu0
      %v3498 = vpop.f32.mrb[0].mxu0
      %v3499 = vadd.f32 0.0, %v3498
      %v3500 = vpop.f32.mrb[0].mxu0
      %3501 = vmatprep.mubr.bf16.mxu0 0
      %3502 = vmatmul.mubr.bf16.gmra.mrb[0].mxu0 %v3382
      %v3503 = vpop.f32.mrb[0].mxu0
      %v3504 = vadd.f32 0.0, %v3503
      %v3505 = vpop.f32.mrb[0].mxu0
      %v3506 = vpop.f32.mrb[0].mxu0
      %v3507 = vadd.f32 0.0, %v3506
      %v3508 = vpop.f32.mrb[0].mxu0
      %3509 = vmatprep.mubr.bf16.mxu0 0
      %3510 = vmatmul.mubr.bf16.gmra.mrb[0].mxu0 %v3385
      %v3511 = vpop.f32.mrb[0].mxu0
      %v3512 = vadd.f32 0.0, %v3511
      %v3513 = vpop.f32.mrb[0].mxu0
      %v3514 = vpop.f32.mrb[0].mxu0
      %v3515 = vadd.f32 0.0, %v3514
      %v3516 = vpop.f32.mrb[0].mxu0
      %3517 = vmatprep.mubr.bf16.mxu0 0
      %3518 = vmatmul.mubr.bf16.gmra.mrb[0].mxu0 %v3388
      %v3519 = vpop.f32.mrb[0].mxu0
      %v3520 = vadd.f32 0.0, %v3519
      %v3521 = vpop.f32.mrb[0].mxu0
      %v3522 = vpop.f32.mrb[0].mxu0
      %v3523 = vadd.f32 0.0, %v3522
      %v3524 = vpop.f32.mrb[0].mxu0
      %3525 = vmatprep.mubr.bf16.mxu0 0
      %3526 = vmatmul.mubr.bf16.gmra.mrb[0].mxu0 %v3391
      %v3527 = vpop.f32.mrb[0].mxu0
      %v3528 = vadd.f32 0.0, %v3527
      %v3529 = vpop.f32.mrb[0].mxu0
      %v3530 = vpop.f32.mrb[0].mxu0
      %v3531 = vadd.f32 0.0, %v3530
      %v3532 = vpop.f32.mrb[0].mxu0
      %3533 = vmatprep.mubr.bf16.mxu0 0
      %3534 = vmatmul.mubr.bf16.gmra.mrb[0].mxu0 %v3394
      %v3535 = vpop.f32.mrb[0].mxu0
      %v3536 = vadd.f32 0.0, %v3535
      %v3537 = vpop.f32.mrb[0].mxu0
      %v3538 = vpop.f32.mrb[0].mxu0
      %v3539 = vadd.f32 0.0, %v3538
      %v3540 = vpop.f32.mrb[0].mxu0
      %3541 = vmatprep.mubr.bf16.mxu0 0
      %3542 = vmatmul.mubr.bf16.gmra.mrb[0].mxu0 %v3397
      %v3543 = vpop.f32.mrb[0].mxu0
      %v3544 = vadd.f32 0.0, %v3543
      %v3545 = vpop.f32.mrb[0].mxu0
      %v3546 = vpop.f32.mrb[0].mxu0
      %v3547 = vadd.f32 0.0, %v3546
      %v3548 = vpop.f32.mrb[0].mxu0
      %3549 = vmatprep.mubr.bf16.mxu0 0
      %3550 = vmatmul.mubr.bf16.gmra.mrb[0].mxu0 %v3400
      %v3551 = vpop.f32.mrb[0].mxu0
      %v3552 = vadd.f32 0.0, %v3551
      %v3553 = vpop.f32.mrb[0].mxu0
      %v3554 = vpop.f32.mrb[0].mxu0
      %v3555 = vadd.f32 0.0, %v3554
      %v3556 = vpop.f32.mrb[0].mxu0
      %3557 = vmatprep.mubr.bf16.mxu0 0
      %3558 = vmatmul.mubr.bf16.gmra.mrb[0].mxu0 %v3403
      %v3559 = vpop.f32.mrb[0].mxu0
      %v3560 = vadd.f32 0.0, %v3559
      %v3561 = vpop.f32.mrb[0].mxu0
      %v3562 = vpop.f32.mrb[0].mxu0
      %v3563 = vadd.f32 0.0, %v3562
      %v3564 = vpop.f32.mrb[0].mxu0
      %3565 = vdwg.mxu0
      %v3566 = vadd.f32 %v3259, %v3440
      %v3567 = vadd.f32 %v3260, %v3443
      %v3568 = vadd.f32 %v3261, %v3448
      %v3569 = vadd.f32 %v3262, %v3451
      %v3570 = vadd.f32 %v3263, %v3456
      %v3571 = vadd.f32 %v3264, %v3459
      %v3572 = vadd.f32 %v3265, %v3464
      %v3573 = vadd.f32 %v3266, %v3467
      %v3574 = vadd.f32 %v3267, %v3472
      %v3575 = vadd.f32 %v3268, %v3475
      %v3576 = vadd.f32 %v3269, %v3480
      %v3577 = vadd.f32 %v3270, %v3483
      %v3578 = vadd.f32 %v3271, %v3488
      %v3579 = vadd.f32 %v3272, %v3491
      %v3580 = vadd.f32 %v3273, %v3496
      %v3581 = vadd.f32 %v3274, %v3499
      %v3582 = vadd.f32 %v3275, %v3504
      %v3583 = vadd.f32 %v3276, %v3507
      %v3584 = vadd.f32 %v3277, %v3512
      %v3585 = vadd.f32 %v3278, %v3515
      %v3586 = vadd.f32 %v3279, %v3520
      %v3587 = vadd.f32 %v3280, %v3523
      %v3588 = vadd.f32 %v3281, %v3528
      %v3589 = vadd.f32 %v3282, %v3531
      %v3590 = vadd.f32 %v3283, %v3536
      %v3591 = vadd.f32 %v3284, %v3539
      %v3592 = vadd.f32 %v3285, %v3544
      %v3593 = vadd.f32 %v3286, %v3547
      %v3594 = vadd.f32 %v3287, %v3552
      %v3595 = vadd.f32 %v3288, %v3555
      %v3596 = vadd.f32 %v3289, %v3560
      %v3597 = vadd.f32 %v3290, %v3563
      %v3598 = vld [vmem:[%s3291 + $0x1] sm:$0xff]
      %v3599 = vld [vmem:[%s3291 + $0x9] sm:$0xff]
      %v3600 = vld [vmem:[%s3291 + $0x19] sm:$0xff]
      %v3601 = vld [vmem:[%s3291 + $0x21] sm:$0xff]
      %v3602 = vld [vmem:[%s3291 + $0x31] sm:$0xff]
      %v3603 = vld [vmem:[%s3291 + $0x39] sm:$0xff]
      %v3604 = vld [vmem:[%s3291 + $0x49] sm:$0xff]
      %v3605 = vld [vmem:[%s3291 + $0x51] sm:$0xff]
      %v3606 = vld [vmem:[%s3291 + $0x61] sm:$0xff]
      %v3607 = vld [vmem:[%s3291 + $0x69] sm:$0xff]
      %v3608 = vld [vmem:[%s3291 + $0x79] sm:$0xff]
      %v3609 = vld [vmem:[%s3291 + $0x81] sm:$0xff]
      %v3610 = vld [vmem:[%s3291 + $0x91] sm:$0xff]
      %v3611 = vld [vmem:[%s3291 + $0x99] sm:$0xff]
      %v3612 = vld [vmem:[%s3291 + $0xa9] sm:$0xff]
      %v3613 = vld [vmem:[%s3291 + $0xb1] sm:$0xff]
      %v3614 = vld [vmem:[%s3291 + $0xc1] sm:$0xff]
      %v3615 = vld [vmem:[%s3291 + $0xc9] sm:$0xff]
      %v3616 = vld [vmem:[%s3291 + $0xd9] sm:$0xff]
      %v3617 = vld [vmem:[%s3291 + $0xe1] sm:$0xff]
      %v3618 = vld [vmem:[%s3291 + $0xf1] sm:$0xff]
      %v3619 = vld [vmem:[%s3291 + $0xf9] sm:$0xff]
      %v3620 = vld [vmem:[%s3291 + $0x109] sm:$0xff]
      %v3621 = vld [vmem:[%s3291 + $0x111] sm:$0xff]
      %v3622 = vld [vmem:[%s3291 + $0x121] sm:$0xff]
      %v3623 = vld [vmem:[%s3291 + $0x129] sm:$0xff]
      %v3624 = vld [vmem:[%s3291 + $0x139] sm:$0xff]
      %v3625 = vld [vmem:[%s3291 + $0x141] sm:$0xff]
      %v3626 = vld [vmem:[%s3291 + $0x151] sm:$0xff]
      %v3627 = vld [vmem:[%s3291 + $0x159] sm:$0xff]
      %v3628 = vld [vmem:[%s3291 + $0x169] sm:$0xff]
      %v3629 = vld [vmem:[%s3291 + $0x171] sm:$0xff]
      %v3630 = vpack.c.bf16 %v3599, %v3598
      %v3631 = vpack.c.bf16 %v3601, %v3600
      %v3632 = vpack.c.bf16 %v3603, %v3602
      %v3633 = vpack.c.bf16 %v3605, %v3604
      %v3634 = vpack.c.bf16 %v3607, %v3606
      %v3635 = vpack.c.bf16 %v3609, %v3608
      %v3636 = vpack.c.bf16 %v3611, %v3610
      %v3637 = vpack.c.bf16 %v3613, %v3612
      %v3638 = vpack.c.bf16 %v3615, %v3614
      %v3639 = vpack.c.bf16 %v3617, %v3616
      %v3640 = vpack.c.bf16 %v3619, %v3618
      %v3641 = vpack.c.bf16 %v3621, %v3620
      %v3642 = vpack.c.bf16 %v3623, %v3622
      %v3643 = vpack.c.bf16 %v3625, %v3624
      %v3644 = vpack.c.bf16 %v3627, %v3626
      %v3645 = vpack.c.bf16 %v3629, %v3628
      %s3646 = scalar_lea.vmem %s2, 112
      %v3647 = vld [vmem:[%s3646] sm:$0xf]
      %v3648 = vld [vmem:[%s3646 + $0x4] sm:$0xf]
      %v3649 = vld [vmem:[%s3646 + $0x8] sm:$0xf]
      %v3650 = vld [vmem:[%s3646 + $0xc] sm:$0xf]
      %v3655 = vunpack.c.l.b16 %v3647
      %v3656 = vunpack.c.l.b16 %v3648
      %v3657 = vunpack.c.l.b16 %v3649
      %v3658 = vunpack.c.l.b16 %v3650
      %v3659 = vpack.c.b16 %v3656, %v3655
      %v3660 = vpack.c.b16 %v3658, %v3657
      %v3664 = vsel %vm614, %v3630, 0
      %v3667 = vsel %vm614, %v3631, 0
      %v3670 = vsel %vm614, %v3632, 0
      %v3673 = vsel %vm614, %v3633, 0
      %v3676 = vsel %vm614, %v3634, 0
      %v3679 = vsel %vm614, %v3635, 0
      %v3682 = vsel %vm614, %v3636, 0
      %v3685 = vsel %vm614, %v3637, 0
      %v3688 = vsel %vm614, %v3638, 0
      %v3691 = vsel %vm614, %v3639, 0
      %v3694 = vsel %vm614, %v3640, 0
      %v3697 = vsel %vm614, %v3641, 0
      %v3700 = vsel %vm614, %v3642, 0
      %v3703 = vsel %vm614, %v3643, 0
      %v3706 = vsel %vm614, %v3644, 0
      %v3709 = vsel %vm614, %v3645, 0
      %3711 = vmatprep.subr.bf16.mxu0 0
      %3712 = vmatpush1.bf16.msra.mxu0 %v3659
      %3713 = vmatprep.subr.bf16.mxu0 0
      %3714 = vmatpush1.bf16.msra.mxu0 %v3660
      %3715 = vmatprep.subr.bf16.mxu0 0
      %3716 = vmatpush1.bf16.msra.mxu0 0
      %3717 = vmatprep.subr.bf16.mxu0 0
      %3718 = vmatpush1.bf16.msra.mxu0 0
      %3719 = vmatprep.subr.bf16.mxu0 0
      %3720 = vmatpush1.bf16.msra.mxu0 0
      %3721 = vmatprep.subr.bf16.mxu0 0
      %3722 = vmatpush1.bf16.msra.mxu0 0
      %3723 = vmatprep.subr.bf16.mxu0 0
      %3724 = vmatpush1.bf16.msra.mxu0 0
      %3725 = vmatprep.subr.bf16.mxu0 0
      %3726 = vmatpush1.bf16.msra.mxu0 0
      %3727 = vmatprep.subr.bf16.mxu0 0
      %3728 = vmatpush1.bf16.msra.mxu0 0
      %3729 = vmatprep.subr.bf16.mxu0 0
      %3730 = vmatpush1.bf16.msra.mxu0 0
      %3731 = vmatprep.subr.bf16.mxu0 0
      %3732 = vmatpush1.bf16.msra.mxu0 0
      %3733 = vmatprep.subr.bf16.mxu0 0
      %3734 = vmatpush1.bf16.msra.mxu0 0
      %3735 = vmatprep.subr.bf16.mxu0 0
      %3736 = vmatpush1.bf16.msra.mxu0 0
      %3737 = vmatprep.subr.bf16.mxu0 0
      %3738 = vmatpush1.bf16.msra.mxu0 0
      %3739 = vmatprep.subr.bf16.mxu0 0
      %3740 = vmatpush1.bf16.msra.mxu0 0
      %3741 = vmatprep.subr.bf16.mxu0 0
      %3742 = vmatpush1.bf16.msra.mxu0 0
      %3743 = vmatprep.mubr.bf16.mxu0 0
      %3744 = vmatmul.mubr.bf16.gmra.mrb[0].mxu0 %v3664
      %v3745 = vpop.f32.mrb[0].mxu0
      %v3746 = vadd.f32 0.0, %v3745
      %v3747 = vpop.f32.mrb[0].mxu0
      %v3748 = vpop.f32.mrb[0].mxu0
      %v3749 = vadd.f32 0.0, %v3748
      %v3750 = vpop.f32.mrb[0].mxu0
      %3751 = vmatprep.mubr.bf16.mxu0 0
      %3752 = vmatmul.mubr.bf16.gmra.mrb[0].mxu0 %v3667
      %v3753 = vpop.f32.mrb[0].mxu0
      %v3754 = vadd.f32 0.0, %v3753
      %v3755 = vpop.f32.mrb[0].mxu0
      %v3756 = vpop.f32.mrb[0].mxu0
      %v3757 = vadd.f32 0.0, %v3756
      %v3758 = vpop.f32.mrb[0].mxu0
      %3759 = vmatprep.mubr.bf16.mxu0 0
      %3760 = vmatmul.mubr.bf16.gmra.mrb[0].mxu0 %v3670
      %v3761 = vpop.f32.mrb[0].mxu0
      %v3762 = vadd.f32 0.0, %v3761
      %v3763 = vpop.f32.mrb[0].mxu0
      %v3764 = vpop.f32.mrb[0].mxu0
      %v3765 = vadd.f32 0.0, %v3764
      %v3766 = vpop.f32.mrb[0].mxu0
      %3767 = vmatprep.mubr.bf16.mxu0 0
      %3768 = vmatmul.mubr.bf16.gmra.mrb[0].mxu0 %v3673
      %v3769 = vpop.f32.mrb[0].mxu0
      %v3770 = vadd.f32 0.0, %v3769
      %v3771 = vpop.f32.mrb[0].mxu0
      %v3772 = vpop.f32.mrb[0].mxu0
      %v3773 = vadd.f32 0.0, %v3772
      %v3774 = vpop.f32.mrb[0].mxu0
      %3775 = vmatprep.mubr.bf16.mxu0 0
      %3776 = vmatmul.mubr.bf16.gmra.mrb[0].mxu0 %v3676
      %v3777 = vpop.f32.mrb[0].mxu0
      %v3778 = vadd.f32 0.0, %v3777
      %v3779 = vpop.f32.mrb[0].mxu0
      %v3780 = vpop.f32.mrb[0].mxu0
      %v3781 = vadd.f32 0.0, %v3780
      %v3782 = vpop.f32.mrb[0].mxu0
      %3783 = vmatprep.mubr.bf16.mxu0 0
      %3784 = vmatmul.mubr.bf16.gmra.mrb[0].mxu0 %v3679
      %v3785 = vpop.f32.mrb[0].mxu0
      %v3786 = vadd.f32 0.0, %v3785
      %v3787 = vpop.f32.mrb[0].mxu0
      %v3788 = vpop.f32.mrb[0].mxu0
      %v3789 = vadd.f32 0.0, %v3788
      %v3790 = vpop.f32.mrb[0].mxu0
      %3791 = vmatprep.mubr.bf16.mxu0 0
      %3792 = vmatmul.mubr.bf16.gmra.mrb[0].mxu0 %v3682
      %v3793 = vpop.f32.mrb[0].mxu0
      %v3794 = vadd.f32 0.0, %v3793
      %v3795 = vpop.f32.mrb[0].mxu0
      %v3796 = vpop.f32.mrb[0].mxu0
      %v3797 = vadd.f32 0.0, %v3796
      %v3798 = vpop.f32.mrb[0].mxu0
      %3799 = vmatprep.mubr.bf16.mxu0 0
      %3800 = vmatmul.mubr.bf16.gmra.mrb[0].mxu0 %v3685
      %v3801 = vpop.f32.mrb[0].mxu0
      %v3802 = vadd.f32 0.0, %v3801
      %v3803 = vpop.f32.mrb[0].mxu0
      %v3804 = vpop.f32.mrb[0].mxu0
      %v3805 = vadd.f32 0.0, %v3804
      %v3806 = vpop.f32.mrb[0].mxu0
      %3807 = vmatprep.mubr.bf16.mxu0 0
      %3808 = vmatmul.mubr.bf16.gmra.mrb[0].mxu0 %v3688
      %v3809 = vpop.f32.mrb[0].mxu0
      %v3810 = vadd.f32 0.0, %v3809
      %v3811 = vpop.f32.mrb[0].mxu0
      %v3812 = vpop.f32.mrb[0].mxu0
      %v3813 = vadd.f32 0.0, %v3812
      %v3814 = vpop.f32.mrb[0].mxu0
      %3815 = vmatprep.mubr.bf16.mxu0 0
      %3816 = vmatmul.mubr.bf16.gmra.mrb[0].mxu0 %v3691
      %v3817 = vpop.f32.mrb[0].mxu0
      %v3818 = vadd.f32 0.0, %v3817
      %v3819 = vpop.f32.mrb[0].mxu0
      %v3820 = vpop.f32.mrb[0].mxu0
      %v3821 = vadd.f32 0.0, %v3820
      %v3822 = vpop.f32.mrb[0].mxu0
      %3823 = vmatprep.mubr.bf16.mxu0 0
      %3824 = vmatmul.mubr.bf16.gmra.mrb[0].mxu0 %v3694
      %v3825 = vpop.f32.mrb[0].mxu0
      %v3826 = vadd.f32 0.0, %v3825
      %v3827 = vpop.f32.mrb[0].mxu0
      %v3828 = vpop.f32.mrb[0].mxu0
      %v3829 = vadd.f32 0.0, %v3828
      %v3830 = vpop.f32.mrb[0].mxu0
      %3831 = vmatprep.mubr.bf16.mxu0 0
      %3832 = vmatmul.mubr.bf16.gmra.mrb[0].mxu0 %v3697
      %v3833 = vpop.f32.mrb[0].mxu0
      %v3834 = vadd.f32 0.0, %v3833
      %v3835 = vpop.f32.mrb[0].mxu0
      %v3836 = vpop.f32.mrb[0].mxu0
      %v3837 = vadd.f32 0.0, %v3836
      %v3838 = vpop.f32.mrb[0].mxu0
      %3839 = vmatprep.mubr.bf16.mxu0 0
      %3840 = vmatmul.mubr.bf16.gmra.mrb[0].mxu0 %v3700
      %v3841 = vpop.f32.mrb[0].mxu0
      %v3842 = vadd.f32 0.0, %v3841
      %v3843 = vpop.f32.mrb[0].mxu0
      %v3844 = vpop.f32.mrb[0].mxu0
      %v3845 = vadd.f32 0.0, %v3844
      %v3846 = vpop.f32.mrb[0].mxu0
      %3847 = vmatprep.mubr.bf16.mxu0 0
      %3848 = vmatmul.mubr.bf16.gmra.mrb[0].mxu0 %v3703
      %v3849 = vpop.f32.mrb[0].mxu0
      %v3850 = vadd.f32 0.0, %v3849
      %v3851 = vpop.f32.mrb[0].mxu0
      %v3852 = vpop.f32.mrb[0].mxu0
      %v3853 = vadd.f32 0.0, %v3852
      %v3854 = vpop.f32.mrb[0].mxu0
      %3855 = vmatprep.mubr.bf16.mxu0 0
      %3856 = vmatmul.mubr.bf16.gmra.mrb[0].mxu0 %v3706
      %v3857 = vpop.f32.mrb[0].mxu0
      %v3858 = vadd.f32 0.0, %v3857
      %v3859 = vpop.f32.mrb[0].mxu0
      %v3860 = vpop.f32.mrb[0].mxu0
      %v3861 = vadd.f32 0.0, %v3860
      %v3862 = vpop.f32.mrb[0].mxu0
      %3863 = vmatprep.mubr.bf16.mxu0 0
      %3864 = vmatmul.mubr.bf16.gmra.mrb[0].mxu0 %v3709
      %v3865 = vpop.f32.mrb[0].mxu0
      %v3866 = vadd.f32 0.0, %v3865
      %v3867 = vpop.f32.mrb[0].mxu0
      %v3868 = vpop.f32.mrb[0].mxu0
      %v3869 = vadd.f32 0.0, %v3868
      %v3870 = vpop.f32.mrb[0].mxu0
      %3871 = vdwg.mxu0
      %v3872 = vadd.f32 %v3566, %v3746
      %v3873 = vadd.f32 %v3567, %v3749
      %v3874 = vadd.f32 %v3568, %v3754
      %v3875 = vadd.f32 %v3569, %v3757
      %v3876 = vadd.f32 %v3570, %v3762
      %v3877 = vadd.f32 %v3571, %v3765
      %v3878 = vadd.f32 %v3572, %v3770
      %v3879 = vadd.f32 %v3573, %v3773
      %v3880 = vadd.f32 %v3574, %v3778
      %v3881 = vadd.f32 %v3575, %v3781
      %v3882 = vadd.f32 %v3576, %v3786
      %v3883 = vadd.f32 %v3577, %v3789
      %v3884 = vadd.f32 %v3578, %v3794
      %v3885 = vadd.f32 %v3579, %v3797
      %v3886 = vadd.f32 %v3580, %v3802
      %v3887 = vadd.f32 %v3581, %v3805
      %v3888 = vadd.f32 %v3582, %v3810
      %v3889 = vadd.f32 %v3583, %v3813
      %v3890 = vadd.f32 %v3584, %v3818
      %v3891 = vadd.f32 %v3585, %v3821
      %v3892 = vadd.f32 %v3586, %v3826
      %v3893 = vadd.f32 %v3587, %v3829
      %v3894 = vadd.f32 %v3588, %v3834
      %v3895 = vadd.f32 %v3589, %v3837
      %v3896 = vadd.f32 %v3590, %v3842
      %v3897 = vadd.f32 %v3591, %v3845
      %v3898 = vadd.f32 %v3592, %v3850
      %v3899 = vadd.f32 %v3593, %v3853
      %v3900 = vadd.f32 %v3594, %v3858
      %v3901 = vadd.f32 %v3595, %v3861
      %v3902 = vadd.f32 %v3596, %v3866
      %v3903 = vadd.f32 %v3597, %v3869
      %v3904 = vld [vmem:[%s3291 + $0x2] sm:$0xff]
      %v3905 = vld [vmem:[%s3291 + $0xa] sm:$0xff]
      %v3906 = vld [vmem:[%s3291 + $0x1a] sm:$0xff]
      %v3907 = vld [vmem:[%s3291 + $0x22] sm:$0xff]
      %v3908 = vld [vmem:[%s3291 + $0x32] sm:$0xff]
      %v3909 = vld [vmem:[%s3291 + $0x3a] sm:$0xff]
      %v3910 = vld [vmem:[%s3291 + $0x4a] sm:$0xff]
      %v3911 = vld [vmem:[%s3291 + $0x52] sm:$0xff]
      %v3912 = vld [vmem:[%s3291 + $0x62] sm:$0xff]
      %v3913 = vld [vmem:[%s3291 + $0x6a] sm:$0xff]
      %v3914 = vld [vmem:[%s3291 + $0x7a] sm:$0xff]
      %v3915 = vld [vmem:[%s3291 + $0x82] sm:$0xff]
      %v3916 = vld [vmem:[%s3291 + $0x92] sm:$0xff]
      %v3917 = vld [vmem:[%s3291 + $0x9a] sm:$0xff]
      %v3918 = vld [vmem:[%s3291 + $0xaa] sm:$0xff]
      %v3919 = vld [vmem:[%s3291 + $0xb2] sm:$0xff]
      %v3920 = vld [vmem:[%s3291 + $0xc2] sm:$0xff]
      %v3921 = vld [vmem:[%s3291 + $0xca] sm:$0xff]
      %v3922 = vld [vmem:[%s3291 + $0xda] sm:$0xff]
      %v3923 = vld [vmem:[%s3291 + $0xe2] sm:$0xff]
      %v3924 = vld [vmem:[%s3291 + $0xf2] sm:$0xff]
      %v3925 = vld [vmem:[%s3291 + $0xfa] sm:$0xff]
      %v3926 = vld [vmem:[%s3291 + $0x10a] sm:$0xff]
      %v3927 = vld [vmem:[%s3291 + $0x112] sm:$0xff]
      %v3928 = vld [vmem:[%s3291 + $0x122] sm:$0xff]
      %v3929 = vld [vmem:[%s3291 + $0x12a] sm:$0xff]
      %v3930 = vld [vmem:[%s3291 + $0x13a] sm:$0xff]
      %v3931 = vld [vmem:[%s3291 + $0x142] sm:$0xff]
      %v3932 = vld [vmem:[%s3291 + $0x152] sm:$0xff]
      %v3933 = vld [vmem:[%s3291 + $0x15a] sm:$0xff]
      %v3934 = vld [vmem:[%s3291 + $0x16a] sm:$0xff]
      %v3935 = vld [vmem:[%s3291 + $0x172] sm:$0xff]
      %v3936 = vpack.c.bf16 %v3905, %v3904
      %v3937 = vpack.c.bf16 %v3907, %v3906
      %v3938 = vpack.c.bf16 %v3909, %v3908
      %v3939 = vpack.c.bf16 %v3911, %v3910
      %v3940 = vpack.c.bf16 %v3913, %v3912
      %v3941 = vpack.c.bf16 %v3915, %v3914
      %v3942 = vpack.c.bf16 %v3917, %v3916
      %v3943 = vpack.c.bf16 %v3919, %v3918
      %v3944 = vpack.c.bf16 %v3921, %v3920
      %v3945 = vpack.c.bf16 %v3923, %v3922
      %v3946 = vpack.c.bf16 %v3925, %v3924
      %v3947 = vpack.c.bf16 %v3927, %v3926
      %v3948 = vpack.c.bf16 %v3929, %v3928
      %v3949 = vpack.c.bf16 %v3931, %v3930
      %v3950 = vpack.c.bf16 %v3933, %v3932
      %v3951 = vpack.c.bf16 %v3935, %v3934
      %s3952 = scalar_lea.vmem %s2, 128
      %v3953 = vld [vmem:[%s3952] sm:$0xf]
      %v3954 = vld [vmem:[%s3952 + $0x4] sm:$0xf]
      %v3955 = vld [vmem:[%s3952 + $0x8] sm:$0xf]
      %v3956 = vld [vmem:[%s3952 + $0xc] sm:$0xf]
      %v3961 = vunpack.c.l.b16 %v3953
      %v3962 = vunpack.c.l.b16 %v3954
      %v3963 = vunpack.c.l.b16 %v3955
      %v3964 = vunpack.c.l.b16 %v3956
      %v3965 = vpack.c.b16 %v3962, %v3961
      %v3966 = vpack.c.b16 %v3964, %v3963
      %v3970 = vsel %vm614, %v3936, 0
      %v3973 = vsel %vm614, %v3937, 0
      %v3976 = vsel %vm614, %v3938, 0
      %v3979 = vsel %vm614, %v3939, 0
      %v3982 = vsel %vm614, %v3940, 0
      %v3985 = vsel %vm614, %v3941, 0
      %v3988 = vsel %vm614, %v3942, 0
      %v3991 = vsel %vm614, %v3943, 0
      %v3994 = vsel %vm614, %v3944, 0
      %v3997 = vsel %vm614, %v3945, 0
      %v4000 = vsel %vm614, %v3946, 0
      %v4003 = vsel %vm614, %v3947, 0
      %v4006 = vsel %vm614, %v3948, 0
      %v4009 = vsel %vm614, %v3949, 0
      %v4012 = vsel %vm614, %v3950, 0
      %v4015 = vsel %vm614, %v3951, 0
      %4017 = vmatprep.subr.bf16.mxu0 0
      %4018 = vmatpush1.bf16.msra.mxu0 %v3965
      %4019 = vmatprep.subr.bf16.mxu0 0
      %4020 = vmatpush1.bf16.msra.mxu0 %v3966
      %4021 = vmatprep.subr.bf16.mxu0 0
      %4022 = vmatpush1.bf16.msra.mxu0 0
      %4023 = vmatprep.subr.bf16.mxu0 0
      %4024 = vmatpush1.bf16.msra.mxu0 0
      %4025 = vmatprep.subr.bf16.mxu0 0
      %4026 = vmatpush1.bf16.msra.mxu0 0
      %4027 = vmatprep.subr.bf16.mxu0 0
      %4028 = vmatpush1.bf16.msra.mxu0 0
      %4029 = vmatprep.subr.bf16.mxu0 0
      %4030 = vmatpush1.bf16.msra.mxu0 0
      %4031 = vmatprep.subr.bf16.mxu0 0
      %4032 = vmatpush1.bf16.msra.mxu0 0
      %4033 = vmatprep.subr.bf16.mxu0 0
      %4034 = vmatpush1.bf16.msra.mxu0 0
      %4035 = vmatprep.subr.bf16.mxu0 0
      %4036 = vmatpush1.bf16.msra.mxu0 0
      %4037 = vmatprep.subr.bf16.mxu0 0
      %4038 = vmatpush1.bf16.msra.mxu0 0
      %4039 = vmatprep.subr.bf16.mxu0 0
      %4040 = vmatpush1.bf16.msra.mxu0 0
      %4041 = vmatprep.subr.bf16.mxu0 0
      %4042 = vmatpush1.bf16.msra.mxu0 0
      %4043 = vmatprep.subr.bf16.mxu0 0
      %4044 = vmatpush1.bf16.msra.mxu0 0
      %4045 = vmatprep.subr.bf16.mxu0 0
      %4046 = vmatpush1.bf16.msra.mxu0 0
      %4047 = vmatprep.subr.bf16.mxu0 0
      %4048 = vmatpush1.bf16.msra.mxu0 0
      %4049 = vmatprep.mubr.bf16.mxu0 0
      %4050 = vmatmul.mubr.bf16.gmra.mrb[0].mxu0 %v3970
      %v4051 = vpop.f32.mrb[0].mxu0
      %v4052 = vadd.f32 0.0, %v4051
      %v4053 = vpop.f32.mrb[0].mxu0
      %v4054 = vpop.f32.mrb[0].mxu0
      %v4055 = vadd.f32 0.0, %v4054
      %v4056 = vpop.f32.mrb[0].mxu0
      %4057 = vmatprep.mubr.bf16.mxu0 0
      %4058 = vmatmul.mubr.bf16.gmra.mrb[0].mxu0 %v3973
      %v4059 = vpop.f32.mrb[0].mxu0
      %v4060 = vadd.f32 0.0, %v4059
      %v4061 = vpop.f32.mrb[0].mxu0
      %v4062 = vpop.f32.mrb[0].mxu0
      %v4063 = vadd.f32 0.0, %v4062
      %v4064 = vpop.f32.mrb[0].mxu0
      %4065 = vmatprep.mubr.bf16.mxu0 0
      %4066 = vmatmul.mubr.bf16.gmra.mrb[0].mxu0 %v3976
      %v4067 = vpop.f32.mrb[0].mxu0
      %v4068 = vadd.f32 0.0, %v4067
      %v4069 = vpop.f32.mrb[0].mxu0
      %v4070 = vpop.f32.mrb[0].mxu0
      %v4071 = vadd.f32 0.0, %v4070
      %v4072 = vpop.f32.mrb[0].mxu0
      %4073 = vmatprep.mubr.bf16.mxu0 0
      %4074 = vmatmul.mubr.bf16.gmra.mrb[0].mxu0 %v3979
      %v4075 = vpop.f32.mrb[0].mxu0
      %v4076 = vadd.f32 0.0, %v4075
      %v4077 = vpop.f32.mrb[0].mxu0
      %v4078 = vpop.f32.mrb[0].mxu0
      %v4079 = vadd.f32 0.0, %v4078
      %v4080 = vpop.f32.mrb[0].mxu0
      %4081 = vmatprep.mubr.bf16.mxu0 0
      %4082 = vmatmul.mubr.bf16.gmra.mrb[0].mxu0 %v3982
      %v4083 = vpop.f32.mrb[0].mxu0
      %v4084 = vadd.f32 0.0, %v4083
      %v4085 = vpop.f32.mrb[0].mxu0
      %v4086 = vpop.f32.mrb[0].mxu0
      %v4087 = vadd.f32 0.0, %v4086
      %v4088 = vpop.f32.mrb[0].mxu0
      %4089 = vmatprep.mubr.bf16.mxu0 0
      %4090 = vmatmul.mubr.bf16.gmra.mrb[0].mxu0 %v3985
      %v4091 = vpop.f32.mrb[0].mxu0
      %v4092 = vadd.f32 0.0, %v4091
      %v4093 = vpop.f32.mrb[0].mxu0
      %v4094 = vpop.f32.mrb[0].mxu0
      %v4095 = vadd.f32 0.0, %v4094
      %v4096 = vpop.f32.mrb[0].mxu0
      %4097 = vmatprep.mubr.bf16.mxu0 0
      %4098 = vmatmul.mubr.bf16.gmra.mrb[0].mxu0 %v3988
      %v4099 = vpop.f32.mrb[0].mxu0
      %v4100 = vadd.f32 0.0, %v4099
      %v4101 = vpop.f32.mrb[0].mxu0
      %v4102 = vpop.f32.mrb[0].mxu0
      %v4103 = vadd.f32 0.0, %v4102
      %v4104 = vpop.f32.mrb[0].mxu0
      %4105 = vmatprep.mubr.bf16.mxu0 0
      %4106 = vmatmul.mubr.bf16.gmra.mrb[0].mxu0 %v3991
      %v4107 = vpop.f32.mrb[0].mxu0
      %v4108 = vadd.f32 0.0, %v4107
      %v4109 = vpop.f32.mrb[0].mxu0
      %v4110 = vpop.f32.mrb[0].mxu0
      %v4111 = vadd.f32 0.0, %v4110
      %v4112 = vpop.f32.mrb[0].mxu0
      %4113 = vmatprep.mubr.bf16.mxu0 0
      %4114 = vmatmul.mubr.bf16.gmra.mrb[0].mxu0 %v3994
      %v4115 = vpop.f32.mrb[0].mxu0
      %v4116 = vadd.f32 0.0, %v4115
      %v4117 = vpop.f32.mrb[0].mxu0
      %v4118 = vpop.f32.mrb[0].mxu0
      %v4119 = vadd.f32 0.0, %v4118
      %v4120 = vpop.f32.mrb[0].mxu0
      %4121 = vmatprep.mubr.bf16.mxu0 0
      %4122 = vmatmul.mubr.bf16.gmra.mrb[0].mxu0 %v3997
      %v4123 = vpop.f32.mrb[0].mxu0
      %v4124 = vadd.f32 0.0, %v4123
      %v4125 = vpop.f32.mrb[0].mxu0
      %v4126 = vpop.f32.mrb[0].mxu0
      %v4127 = vadd.f32 0.0, %v4126
      %v4128 = vpop.f32.mrb[0].mxu0
      %4129 = vmatprep.mubr.bf16.mxu0 0
      %4130 = vmatmul.mubr.bf16.gmra.mrb[0].mxu0 %v4000
      %v4131 = vpop.f32.mrb[0].mxu0
      %v4132 = vadd.f32 0.0, %v4131
      %v4133 = vpop.f32.mrb[0].mxu0
      %v4134 = vpop.f32.mrb[0].mxu0
      %v4135 = vadd.f32 0.0, %v4134
      %v4136 = vpop.f32.mrb[0].mxu0
      %4137 = vmatprep.mubr.bf16.mxu0 0
      %4138 = vmatmul.mubr.bf16.gmra.mrb[0].mxu0 %v4003
      %v4139 = vpop.f32.mrb[0].mxu0
      %v4140 = vadd.f32 0.0, %v4139
      %v4141 = vpop.f32.mrb[0].mxu0
      %v4142 = vpop.f32.mrb[0].mxu0
      %v4143 = vadd.f32 0.0, %v4142
      %v4144 = vpop.f32.mrb[0].mxu0
      %4145 = vmatprep.mubr.bf16.mxu0 0
      %4146 = vmatmul.mubr.bf16.gmra.mrb[0].mxu0 %v4006
      %v4147 = vpop.f32.mrb[0].mxu0
      %v4148 = vadd.f32 0.0, %v4147
      %v4149 = vpop.f32.mrb[0].mxu0
      %v4150 = vpop.f32.mrb[0].mxu0
      %v4151 = vadd.f32 0.0, %v4150
      %v4152 = vpop.f32.mrb[0].mxu0
      %4153 = vmatprep.mubr.bf16.mxu0 0
      %4154 = vmatmul.mubr.bf16.gmra.mrb[0].mxu0 %v4009
      %v4155 = vpop.f32.mrb[0].mxu0
      %v4156 = vadd.f32 0.0, %v4155
      %v4157 = vpop.f32.mrb[0].mxu0
      %v4158 = vpop.f32.mrb[0].mxu0
      %v4159 = vadd.f32 0.0, %v4158
      %v4160 = vpop.f32.mrb[0].mxu0
      %4161 = vmatprep.mubr.bf16.mxu0 0
      %4162 = vmatmul.mubr.bf16.gmra.mrb[0].mxu0 %v4012
      %v4163 = vpop.f32.mrb[0].mxu0
      %v4164 = vadd.f32 0.0, %v4163
      %v4165 = vpop.f32.mrb[0].mxu0
      %v4166 = vpop.f32.mrb[0].mxu0
      %v4167 = vadd.f32 0.0, %v4166
      %v4168 = vpop.f32.mrb[0].mxu0
      %4169 = vmatprep.mubr.bf16.mxu0 0
      %4170 = vmatmul.mubr.bf16.gmra.mrb[0].mxu0 %v4015
      %v4171 = vpop.f32.mrb[0].mxu0
      %v4172 = vadd.f32 0.0, %v4171
      %v4173 = vpop.f32.mrb[0].mxu0
      %v4174 = vpop.f32.mrb[0].mxu0
      %v4175 = vadd.f32 0.0, %v4174
      %v4176 = vpop.f32.mrb[0].mxu0
      %4177 = vdwg.mxu0
      %v4178 = vadd.f32 %v3872, %v4052
      %v4179 = vadd.f32 %v3873, %v4055
      %v4180 = vadd.f32 %v3874, %v4060
      %v4181 = vadd.f32 %v3875, %v4063
      %v4182 = vadd.f32 %v3876, %v4068
      %v4183 = vadd.f32 %v3877, %v4071
      %v4184 = vadd.f32 %v3878, %v4076
      %v4185 = vadd.f32 %v3879, %v4079
      %v4186 = vadd.f32 %v3880, %v4084
      %v4187 = vadd.f32 %v3881, %v4087
      %v4188 = vadd.f32 %v3882, %v4092
      %v4189 = vadd.f32 %v3883, %v4095
      %v4190 = vadd.f32 %v3884, %v4100
      %v4191 = vadd.f32 %v3885, %v4103
      %v4192 = vadd.f32 %v3886, %v4108
      %v4193 = vadd.f32 %v3887, %v4111
      %v4194 = vadd.f32 %v3888, %v4116
      %v4195 = vadd.f32 %v3889, %v4119
      %v4196 = vadd.f32 %v3890, %v4124
      %v4197 = vadd.f32 %v3891, %v4127
      %v4198 = vadd.f32 %v3892, %v4132
      %v4199 = vadd.f32 %v3893, %v4135
      %v4200 = vadd.f32 %v3894, %v4140
      %v4201 = vadd.f32 %v3895, %v4143
      %v4202 = vadd.f32 %v3896, %v4148
      %v4203 = vadd.f32 %v3897, %v4151
      %v4204 = vadd.f32 %v3898, %v4156
      %v4205 = vadd.f32 %v3899, %v4159
      %v4206 = vadd.f32 %v3900, %v4164
      %v4207 = vadd.f32 %v3901, %v4167
      %v4208 = vadd.f32 %v3902, %v4172
      %v4209 = vadd.f32 %v3903, %v4175
      %v4210 = vld [vmem:[%s13] sm:$0xff]
      %v4211 = vld [vmem:[%s13 + $0x8] sm:$0xff]
      %v4212 = vld [vmem:[%s13 + $0x10] sm:$0xff]
      %v4213 = vld [vmem:[%s13 + $0x18] sm:$0xff]
      %v4214 = vld [vmem:[%s14] sm:$0xff]
      %v4215 = vld [vmem:[%s14 + $0x8] sm:$0xff]
      %v4216 = vld [vmem:[%s14 + $0x10] sm:$0xff]
      %v4217 = vld [vmem:[%s14 + $0x18] sm:$0xff]
      %v4218 = vld [vmem:[%s7] sm:$0x1]
      %v4219 = vld [vmem:[%s8] sm:$0x1]
      %v4220 = vsel %vm614, %v4178, 0.0
      %v4221 = vsel %vm614, %v4179, 0.0
      %v4222 = vadd.f32 %v4220, %v4221
      %v4223 = vsel %vm614, %v4180, 0.0
      %v4224 = vadd.f32 %v4222, %v4223
      %v4225 = vsel %vm614, %v4181, 0.0
      %v4226 = vadd.f32 %v4224, %v4225
      %v4227 = vsel %vm614, %v4182, 0.0
      %v4228 = vadd.f32 %v4226, %v4227
      %v4229 = vsel %vm614, %v4183, 0.0
      %v4230 = vadd.f32 %v4228, %v4229
      %v4231 = vsel %vm614, %v4184, 0.0
      %v4232 = vadd.f32 %v4230, %v4231
      %v4233 = vsel %vm614, %v4185, 0.0
      %v4234 = vadd.f32 %v4232, %v4233
      %v4235 = vsel %vm614, %v4186, 0.0
      %v4236 = vadd.f32 %v4234, %v4235
      %v4237 = vsel %vm614, %v4187, 0.0
      %v4238 = vadd.f32 %v4236, %v4237
      %v4239 = vsel %vm614, %v4188, 0.0
      %v4240 = vadd.f32 %v4238, %v4239
      %v4241 = vsel %vm614, %v4189, 0.0
      %v4242 = vadd.f32 %v4240, %v4241
      %v4243 = vsel %vm614, %v4190, 0.0
      %v4244 = vadd.f32 %v4242, %v4243
      %v4245 = vsel %vm614, %v4191, 0.0
      %v4246 = vadd.f32 %v4244, %v4245
      %v4247 = vsel %vm614, %v4192, 0.0
      %v4248 = vadd.f32 %v4246, %v4247
      %v4249 = vsel %vm614, %v4193, 0.0
      %v4250 = vadd.f32 %v4248, %v4249
      %v4251 = vsel %vm614, %v4194, 0.0
      %v4252 = vadd.f32 %v4250, %v4251
      %v4253 = vsel %vm614, %v4195, 0.0
      %v4254 = vadd.f32 %v4252, %v4253
      %v4255 = vsel %vm614, %v4196, 0.0
      %v4256 = vadd.f32 %v4254, %v4255
      %v4257 = vsel %vm614, %v4197, 0.0
      %v4258 = vadd.f32 %v4256, %v4257
      %v4259 = vsel %vm614, %v4198, 0.0
      %v4260 = vadd.f32 %v4258, %v4259
      %v4261 = vsel %vm614, %v4199, 0.0
      %v4262 = vadd.f32 %v4260, %v4261
      %v4263 = vsel %vm614, %v4200, 0.0
      %v4264 = vadd.f32 %v4262, %v4263
      %v4265 = vsel %vm614, %v4201, 0.0
      %v4266 = vadd.f32 %v4264, %v4265
      %v4267 = vsel %vm614, %v4202, 0.0
      %v4268 = vadd.f32 %v4266, %v4267
      %v4269 = vsel %vm614, %v4203, 0.0
      %v4270 = vadd.f32 %v4268, %v4269
      %v4271 = vsel %vm614, %v4204, 0.0
      %v4272 = vadd.f32 %v4270, %v4271
      %v4273 = vsel %vm614, %v4205, 0.0
      %v4274 = vadd.f32 %v4272, %v4273
      %v4275 = vsel %vm614, %v4206, 0.0
      %v4276 = vadd.f32 %v4274, %v4275
      %v4277 = vsel %vm614, %v4207, 0.0
      %v4278 = vadd.f32 %v4276, %v4277
      %v4279 = vsel %vm614, %v4208, 0.0
      %v4280 = vadd.f32 %v4278, %v4279
      %v4281 = vsel %vm614, %v4209, 0.0
      %v4282 = vadd.f32 %v4280, %v4281
      %v4283 = vrot.slane %v4282, 4
      %v4284 = vadd.f32 %v4282, %v4283
      %v4285 = vrot.slane %v4284, 2
      %v4286 = vadd.f32 %v4284, %v4285
      %v4287 = vrot.slane %v4286, 1
      %v4288 = vadd.f32 %v4286, %v4287
      %v4289 = vmul.f32 %v4178, %v4178
      %v4290 = vmul.f32 %v4179, %v4179
      %v4291 = vmul.f32 %v4180, %v4180
      %v4292 = vmul.f32 %v4181, %v4181
      %v4293 = vmul.f32 %v4182, %v4182
      %v4294 = vmul.f32 %v4183, %v4183
      %v4295 = vmul.f32 %v4184, %v4184
      %v4296 = vmul.f32 %v4185, %v4185
      %v4297 = vmul.f32 %v4186, %v4186
      %v4298 = vmul.f32 %v4187, %v4187
      %v4299 = vmul.f32 %v4188, %v4188
      %v4300 = vmul.f32 %v4189, %v4189
      %v4301 = vmul.f32 %v4190, %v4190
      %v4302 = vmul.f32 %v4191, %v4191
      %v4303 = vmul.f32 %v4192, %v4192
      %v4304 = vmul.f32 %v4193, %v4193
      %v4305 = vmul.f32 %v4194, %v4194
      %v4306 = vmul.f32 %v4195, %v4195
      %v4307 = vmul.f32 %v4196, %v4196
      %v4308 = vmul.f32 %v4197, %v4197
      %v4309 = vmul.f32 %v4198, %v4198
      %v4310 = vmul.f32 %v4199, %v4199
      %v4311 = vmul.f32 %v4200, %v4200
      %v4312 = vmul.f32 %v4201, %v4201
      %v4313 = vmul.f32 %v4202, %v4202
      %v4314 = vmul.f32 %v4203, %v4203
      %v4315 = vmul.f32 %v4204, %v4204
      %v4316 = vmul.f32 %v4205, %v4205
      %v4317 = vmul.f32 %v4206, %v4206
      %v4318 = vmul.f32 %v4207, %v4207
      %v4319 = vmul.f32 %v4208, %v4208
      %v4320 = vmul.f32 %v4209, %v4209
      %v4321 = vsel %vm614, %v4289, 0.0
      %v4322 = vsel %vm614, %v4290, 0.0
      %v4323 = vadd.f32 %v4321, %v4322
      %v4324 = vsel %vm614, %v4291, 0.0
      %v4325 = vadd.f32 %v4323, %v4324
      %v4326 = vsel %vm614, %v4292, 0.0
      %v4327 = vadd.f32 %v4325, %v4326
      %v4328 = vsel %vm614, %v4293, 0.0
      %v4329 = vadd.f32 %v4327, %v4328
      %v4330 = vsel %vm614, %v4294, 0.0
      %v4331 = vadd.f32 %v4329, %v4330
      %v4332 = vsel %vm614, %v4295, 0.0
      %v4333 = vadd.f32 %v4331, %v4332
      %v4334 = vsel %vm614, %v4296, 0.0
      %v4335 = vadd.f32 %v4333, %v4334
      %v4336 = vsel %vm614, %v4297, 0.0
      %v4337 = vadd.f32 %v4335, %v4336
      %v4338 = vsel %vm614, %v4298, 0.0
      %v4339 = vadd.f32 %v4337, %v4338
      %v4340 = vsel %vm614, %v4299, 0.0
      %v4341 = vadd.f32 %v4339, %v4340
      %v4342 = vsel %vm614, %v4300, 0.0
      %v4343 = vadd.f32 %v4341, %v4342
      %v4344 = vsel %vm614, %v4301, 0.0
      %v4345 = vadd.f32 %v4343, %v4344
      %v4346 = vsel %vm614, %v4302, 0.0
      %v4347 = vadd.f32 %v4345, %v4346
      %v4348 = vsel %vm614, %v4303, 0.0
      %v4349 = vadd.f32 %v4347, %v4348
      %v4350 = vsel %vm614, %v4304, 0.0
      %v4351 = vadd.f32 %v4349, %v4350
      %v4352 = vsel %vm614, %v4305, 0.0
      %v4353 = vadd.f32 %v4351, %v4352
      %v4354 = vsel %vm614, %v4306, 0.0
      %v4355 = vadd.f32 %v4353, %v4354
      %v4356 = vsel %vm614, %v4307, 0.0
      %v4357 = vadd.f32 %v4355, %v4356
      %v4358 = vsel %vm614, %v4308, 0.0
      %v4359 = vadd.f32 %v4357, %v4358
      %v4360 = vsel %vm614, %v4309, 0.0
      %v4361 = vadd.f32 %v4359, %v4360
      %v4362 = vsel %vm614, %v4310, 0.0
      %v4363 = vadd.f32 %v4361, %v4362
      %v4364 = vsel %vm614, %v4311, 0.0
      %v4365 = vadd.f32 %v4363, %v4364
      %v4366 = vsel %vm614, %v4312, 0.0
      %v4367 = vadd.f32 %v4365, %v4366
      %v4368 = vsel %vm614, %v4313, 0.0
      %v4369 = vadd.f32 %v4367, %v4368
      %v4370 = vsel %vm614, %v4314, 0.0
      %v4371 = vadd.f32 %v4369, %v4370
      %v4372 = vsel %vm614, %v4315, 0.0
      %v4373 = vadd.f32 %v4371, %v4372
      %v4374 = vsel %vm614, %v4316, 0.0
      %v4375 = vadd.f32 %v4373, %v4374
      %v4376 = vsel %vm614, %v4317, 0.0
      %v4377 = vadd.f32 %v4375, %v4376
      %v4378 = vsel %vm614, %v4318, 0.0
      %v4379 = vadd.f32 %v4377, %v4378
      %v4380 = vsel %vm614, %v4319, 0.0
      %v4381 = vadd.f32 %v4379, %v4380
      %v4382 = vsel %vm614, %v4320, 0.0
      %v4383 = vadd.f32 %v4381, %v4382
      %v4384 = vrot.slane %v4383, 4
      %v4385 = vadd.f32 %v4383, %v4384
      %v4386 = vrot.slane %v4385, 2
      %v4387 = vadd.f32 %v4385, %v4386
      %v4388 = vrot.slane %v4387, 1
      %v4389 = vadd.f32 %v4387, %v4388
      %v4391 = vsel %vm614, %v4288, 0
      %4393 = vmatprep.subr.mxu0 0.0
      %4394 = vmatpush1.msra.mxu0 %v4210
      %4395 = vmatprep.subr.mxu0 0.0
      %4396 = vmatpush1.msra.mxu0 %v4211
      %4397 = vmatprep.subr.mxu0 0.0
      %4398 = vmatpush1.msra.mxu0 %v4212
      %4399 = vmatprep.subr.mxu0 0.0
      %4400 = vmatpush1.msra.mxu0 %v4213
      %4401 = vmatprep.subr.mxu0 0.0
      %4402 = vmatpush1.msra.mxu0 0.0
      %4403 = vmatprep.subr.mxu0 0.0
      %4404 = vmatpush1.msra.mxu0 0.0
      %4405 = vmatprep.subr.mxu0 0.0
      %4406 = vmatpush1.msra.mxu0 0.0
      %4407 = vmatprep.subr.mxu0 0.0
      %4408 = vmatpush1.msra.mxu0 0.0
      %4409 = vmatprep.subr.mxu0 0.0
      %4410 = vmatpush1.msra.mxu0 0.0
      %4411 = vmatprep.subr.mxu0 0.0
      %4412 = vmatpush1.msra.mxu0 0.0
      %4413 = vmatprep.subr.mxu0 0.0
      %4414 = vmatpush1.msra.mxu0 0.0
      %4415 = vmatprep.subr.mxu0 0.0
      %4416 = vmatpush1.msra.mxu0 0.0
      %4417 = vmatprep.subr.mxu0 0.0
      %4418 = vmatpush1.msra.mxu0 0.0
      %4419 = vmatprep.subr.mxu0 0.0
      %4420 = vmatpush1.msra.mxu0 0.0
      %4421 = vmatprep.subr.mxu0 0.0
      %4422 = vmatpush1.msra.mxu0 0.0
      %4423 = vmatprep.subr.mxu0 0.0
      %4424 = vmatpush1.msra.mxu0 0.0
      %4425 = vmatprep.subr.mxu0 0.0
      %4426 = vmatpush1.msra.mxu0 0.0
      %4427 = vmatprep.subr.mxu0 0.0
      %4428 = vmatpush1.msra.mxu0 0.0
      %4429 = vmatprep.subr.mxu0 0.0
      %4430 = vmatpush1.msra.mxu0 0.0
      %4431 = vmatprep.subr.mxu0 0.0
      %4432 = vmatpush1.msra.mxu0 0.0
      %4433 = vmatprep.subr.mxu0 0.0
      %4434 = vmatpush1.msra.mxu0 0.0
      %4435 = vmatprep.subr.mxu0 0.0
      %4436 = vmatpush1.msra.mxu0 0.0
      %4437 = vmatprep.subr.mxu0 0.0
      %4438 = vmatpush1.msra.mxu0 0.0
      %4439 = vmatprep.subr.mxu0 0.0
      %4440 = vmatpush1.msra.mxu0 0.0
      %4441 = vmatprep.subr.mxu0 0.0
      %4442 = vmatpush1.msra.mxu0 0.0
      %4443 = vmatprep.subr.mxu0 0.0
      %4444 = vmatpush1.msra.mxu0 0.0
      %4445 = vmatprep.subr.mxu0 0.0
      %4446 = vmatpush1.msra.mxu0 0.0
      %4447 = vmatprep.subr.mxu0 0.0
      %4448 = vmatpush1.msra.mxu0 0.0
      %4449 = vmatprep.subr.mxu0 0.0
      %4450 = vmatpush1.msra.mxu0 0.0
      %4451 = vmatprep.subr.mxu0 0.0
      %4452 = vmatpush1.msra.mxu0 0.0
      %4453 = vmatprep.subr.mxu0 0.0
      %4454 = vmatpush1.msra.mxu0 0.0
      %4455 = vmatprep.subr.mxu0 0.0
      %4456 = vmatpush1.msra.mxu0 0.0
      %4457 = vmatprep.mubr.f32.mxu0 0.0
      %4458 = vmatmul.mubr.f32.gmra.mrb[0].mxu0 %v4391
      %v4459 = vpop.f32.mrb[0].mxu0
      %v4460 = vadd.f32 0.0, %v4459
      %v4461 = vpop.f32.mrb[0].mxu0
      %4462 = vdwg.mxu0
      %v4464 = vsel %vm614, %v4460, 0
      %4466 = vmatprep.subr.mxu0 0.0
      %4467 = vmatpush1.msra.mxu0 %v4214
      %4468 = vmatprep.subr.mxu0 0.0
      %4469 = vmatpush1.msra.mxu0 %v4215
      %4470 = vmatprep.subr.mxu0 0.0
      %4471 = vmatpush1.msra.mxu0 %v4216
      %4472 = vmatprep.subr.mxu0 0.0
      %4473 = vmatpush1.msra.mxu0 %v4217
      %4474 = vmatprep.subr.mxu0 0.0
      %4475 = vmatpush1.msra.mxu0 0.0
      %4476 = vmatprep.subr.mxu0 0.0
      %4477 = vmatpush1.msra.mxu0 0.0
      %4478 = vmatprep.subr.mxu0 0.0
      %4479 = vmatpush1.msra.mxu0 0.0
      %4480 = vmatprep.subr.mxu0 0.0
      %4481 = vmatpush1.msra.mxu0 0.0
      %4482 = vmatprep.subr.mxu0 0.0
      %4483 = vmatpush1.msra.mxu0 0.0
      %4484 = vmatprep.subr.mxu0 0.0
      %4485 = vmatpush1.msra.mxu0 0.0
      %4486 = vmatprep.subr.mxu0 0.0
      %4487 = vmatpush1.msra.mxu0 0.0
      %4488 = vmatprep.subr.mxu0 0.0
      %4489 = vmatpush1.msra.mxu0 0.0
      %4490 = vmatprep.subr.mxu0 0.0
      %4491 = vmatpush1.msra.mxu0 0.0
      %4492 = vmatprep.subr.mxu0 0.0
      %4493 = vmatpush1.msra.mxu0 0.0
      %4494 = vmatprep.subr.mxu0 0.0
      %4495 = vmatpush1.msra.mxu0 0.0
      %4496 = vmatprep.subr.mxu0 0.0
      %4497 = vmatpush1.msra.mxu0 0.0
      %4498 = vmatprep.subr.mxu0 0.0
      %4499 = vmatpush1.msra.mxu0 0.0
      %4500 = vmatprep.subr.mxu0 0.0
      %4501 = vmatpush1.msra.mxu0 0.0
      %4502 = vmatprep.subr.mxu0 0.0
      %4503 = vmatpush1.msra.mxu0 0.0
      %4504 = vmatprep.subr.mxu0 0.0
      %4505 = vmatpush1.msra.mxu0 0.0
      %4506 = vmatprep.subr.mxu0 0.0
      %4507 = vmatpush1.msra.mxu0 0.0
      %4508 = vmatprep.subr.mxu0 0.0
      %4509 = vmatpush1.msra.mxu0 0.0
      %4510 = vmatprep.subr.mxu0 0.0
      %4511 = vmatpush1.msra.mxu0 0.0
      %4512 = vmatprep.subr.mxu0 0.0
      %4513 = vmatpush1.msra.mxu0 0.0
      %4514 = vmatprep.subr.mxu0 0.0
      %4515 = vmatpush1.msra.mxu0 0.0
      %4516 = vmatprep.subr.mxu0 0.0
      %4517 = vmatpush1.msra.mxu0 0.0
      %4518 = vmatprep.subr.mxu0 0.0
      %4519 = vmatpush1.msra.mxu0 0.0
      %4520 = vmatprep.subr.mxu0 0.0
      %4521 = vmatpush1.msra.mxu0 0.0
      %4522 = vmatprep.subr.mxu0 0.0
      %4523 = vmatpush1.msra.mxu0 0.0
      %4524 = vmatprep.subr.mxu0 0.0
      %4525 = vmatpush1.msra.mxu0 0.0
      %4526 = vmatprep.subr.mxu0 0.0
      %4527 = vmatpush1.msra.mxu0 0.0
      %4528 = vmatprep.subr.mxu0 0.0
      %4529 = vmatpush1.msra.mxu0 0.0
      %4530 = vmatprep.mubr.f32.mxu0 0.0
      %4531 = vmatmul.mubr.f32.gmra.mrb[0].mxu0 %v4464
      %v4532 = vpop.f32.mrb[0].mxu0
      %v4533 = vadd.f32 0.0, %v4532
      %v4534 = vpop.f32.mrb[0].mxu0
      %4535 = vdwg.mxu0
      %v4537 = vsel %vm614, %v4389, 0
      %4539 = vmatprep.subr.mxu0 0.0
      %4540 = vmatpush1.msra.mxu0 %v4210
      %4541 = vmatprep.subr.mxu0 0.0
      %4542 = vmatpush1.msra.mxu0 %v4211
      %4543 = vmatprep.subr.mxu0 0.0
      %4544 = vmatpush1.msra.mxu0 %v4212
      %4545 = vmatprep.subr.mxu0 0.0
      %4546 = vmatpush1.msra.mxu0 %v4213
      %4547 = vmatprep.subr.mxu0 0.0
      %4548 = vmatpush1.msra.mxu0 0.0
      %4549 = vmatprep.subr.mxu0 0.0
      %4550 = vmatpush1.msra.mxu0 0.0
      %4551 = vmatprep.subr.mxu0 0.0
      %4552 = vmatpush1.msra.mxu0 0.0
      %4553 = vmatprep.subr.mxu0 0.0
      %4554 = vmatpush1.msra.mxu0 0.0
      %4555 = vmatprep.subr.mxu0 0.0
      %4556 = vmatpush1.msra.mxu0 0.0
      %4557 = vmatprep.subr.mxu0 0.0
      %4558 = vmatpush1.msra.mxu0 0.0
      %4559 = vmatprep.subr.mxu0 0.0
      %4560 = vmatpush1.msra.mxu0 0.0
      %4561 = vmatprep.subr.mxu0 0.0
      %4562 = vmatpush1.msra.mxu0 0.0
      %4563 = vmatprep.subr.mxu0 0.0
      %4564 = vmatpush1.msra.mxu0 0.0
      %4565 = vmatprep.subr.mxu0 0.0
      %4566 = vmatpush1.msra.mxu0 0.0
      %4567 = vmatprep.subr.mxu0 0.0
      %4568 = vmatpush1.msra.mxu0 0.0
      %4569 = vmatprep.subr.mxu0 0.0
      %4570 = vmatpush1.msra.mxu0 0.0
      %4571 = vmatprep.subr.mxu0 0.0
      %4572 = vmatpush1.msra.mxu0 0.0
      %4573 = vmatprep.subr.mxu0 0.0
      %4574 = vmatpush1.msra.mxu0 0.0
      %4575 = vmatprep.subr.mxu0 0.0
      %4576 = vmatpush1.msra.mxu0 0.0
      %4577 = vmatprep.subr.mxu0 0.0
      %4578 = vmatpush1.msra.mxu0 0.0
      %4579 = vmatprep.subr.mxu0 0.0
      %4580 = vmatpush1.msra.mxu0 0.0
      %4581 = vmatprep.subr.mxu0 0.0
      %4582 = vmatpush1.msra.mxu0 0.0
      %4583 = vmatprep.subr.mxu0 0.0
      %4584 = vmatpush1.msra.mxu0 0.0
      %4585 = vmatprep.subr.mxu0 0.0
      %4586 = vmatpush1.msra.mxu0 0.0
      %4587 = vmatprep.subr.mxu0 0.0
      %4588 = vmatpush1.msra.mxu0 0.0
      %4589 = vmatprep.subr.mxu0 0.0
      %4590 = vmatpush1.msra.mxu0 0.0
      %4591 = vmatprep.subr.mxu0 0.0
      %4592 = vmatpush1.msra.mxu0 0.0
      %4593 = vmatprep.subr.mxu0 0.0
      %4594 = vmatpush1.msra.mxu0 0.0
      %4595 = vmatprep.subr.mxu0 0.0
      %4596 = vmatpush1.msra.mxu0 0.0
      %4597 = vmatprep.subr.mxu0 0.0
      %4598 = vmatpush1.msra.mxu0 0.0
      %4599 = vmatprep.subr.mxu0 0.0
      %4600 = vmatpush1.msra.mxu0 0.0
      %4601 = vmatprep.subr.mxu0 0.0
      %4602 = vmatpush1.msra.mxu0 0.0
      %4603 = vmatprep.mubr.f32.mxu0 0.0
      %4604 = vmatmul.mubr.f32.gmra.mrb[0].mxu0 %v4537
      %v4605 = vpop.f32.mrb[0].mxu0
      %v4606 = vadd.f32 0.0, %v4605
      %v4607 = vpop.f32.mrb[0].mxu0
      %4608 = vdwg.mxu0
      %v4610 = vsel %vm614, %v4606, 0
      %4612 = vmatprep.subr.mxu0 0.0
      %4613 = vmatpush1.msra.mxu0 %v4214
      %4614 = vmatprep.subr.mxu0 0.0
      %4615 = vmatpush1.msra.mxu0 %v4215
      %4616 = vmatprep.subr.mxu0 0.0
      %4617 = vmatpush1.msra.mxu0 %v4216
      %4618 = vmatprep.subr.mxu0 0.0
      %4619 = vmatpush1.msra.mxu0 %v4217
      %4620 = vmatprep.subr.mxu0 0.0
      %4621 = vmatpush1.msra.mxu0 0.0
      %4622 = vmatprep.subr.mxu0 0.0
      %4623 = vmatpush1.msra.mxu0 0.0
      %4624 = vmatprep.subr.mxu0 0.0
      %4625 = vmatpush1.msra.mxu0 0.0
      %4626 = vmatprep.subr.mxu0 0.0
      %4627 = vmatpush1.msra.mxu0 0.0
      %4628 = vmatprep.subr.mxu0 0.0
      %4629 = vmatpush1.msra.mxu0 0.0
      %4630 = vmatprep.subr.mxu0 0.0
      %4631 = vmatpush1.msra.mxu0 0.0
      %4632 = vmatprep.subr.mxu0 0.0
      %4633 = vmatpush1.msra.mxu0 0.0
      %4634 = vmatprep.subr.mxu0 0.0
      %4635 = vmatpush1.msra.mxu0 0.0
      %4636 = vmatprep.subr.mxu0 0.0
      %4637 = vmatpush1.msra.mxu0 0.0
      %4638 = vmatprep.subr.mxu0 0.0
      %4639 = vmatpush1.msra.mxu0 0.0
      %4640 = vmatprep.subr.mxu0 0.0
      %4641 = vmatpush1.msra.mxu0 0.0
      %4642 = vmatprep.subr.mxu0 0.0
      %4643 = vmatpush1.msra.mxu0 0.0
      %4644 = vmatprep.subr.mxu0 0.0
      %4645 = vmatpush1.msra.mxu0 0.0
      %4646 = vmatprep.subr.mxu0 0.0
      %4647 = vmatpush1.msra.mxu0 0.0
      %4648 = vmatprep.subr.mxu0 0.0
      %4649 = vmatpush1.msra.mxu0 0.0
      %4650 = vmatprep.subr.mxu0 0.0
      %4651 = vmatpush1.msra.mxu0 0.0
      %4652 = vmatprep.subr.mxu0 0.0
      %4653 = vmatpush1.msra.mxu0 0.0
      %4654 = vmatprep.subr.mxu0 0.0
      %4655 = vmatpush1.msra.mxu0 0.0
      %4656 = vmatprep.subr.mxu0 0.0
      %4657 = vmatpush1.msra.mxu0 0.0
      %4658 = vmatprep.subr.mxu0 0.0
      %4659 = vmatpush1.msra.mxu0 0.0
      %4660 = vmatprep.subr.mxu0 0.0
      %4661 = vmatpush1.msra.mxu0 0.0
      %4662 = vmatprep.subr.mxu0 0.0
      %4663 = vmatpush1.msra.mxu0 0.0
      %4664 = vmatprep.subr.mxu0 0.0
      %4665 = vmatpush1.msra.mxu0 0.0
      %4666 = vmatprep.subr.mxu0 0.0
      %4667 = vmatpush1.msra.mxu0 0.0
      %4668 = vmatprep.subr.mxu0 0.0
      %4669 = vmatpush1.msra.mxu0 0.0
      %4670 = vmatprep.subr.mxu0 0.0
      %4671 = vmatpush1.msra.mxu0 0.0
      %4672 = vmatprep.subr.mxu0 0.0
      %4673 = vmatpush1.msra.mxu0 0.0
      %4674 = vmatprep.subr.mxu0 0.0
      %4675 = vmatpush1.msra.mxu0 0.0
      %4676 = vmatprep.mubr.f32.mxu0 0.0
      %4677 = vmatmul.mubr.f32.gmra.mrb[0].mxu0 %v4610
      %v4678 = vpop.f32.mrb[0].mxu0
      %v4679 = vadd.f32 0.0, %v4678
      %v4680 = vpop.f32.mrb[0].mxu0
      %4681 = vdwg.mxu0
      %v4682 = vmul.f32 %v4533, %v1296
      %v4683 = vmul.f32 %v4679, %v1296
      %v4684 = vmul.f32 %v4682, %v4682
      %v4685 = vsub.f32 %v4683, %v4684
      %v4686 = vadd.f32 %v4685, 1e-06
      %v4687 = vrsqrt.pop %v4686
      %v4688 = vlaneseq
      %v4689 = vshrl.u32 %v4688, 7
      %v4690 = vsub.s32 0, %v4689
      %v4691 = vrot.slane %v4682, %v4690
      %v4692 = vsub.f32 %v4178, %v4691
      %v4693 = vsub.f32 %v4179, %v4691
      %v4694 = vsub.f32 %v4180, %v4691
      %v4695 = vsub.f32 %v4181, %v4691
      %v4696 = vsub.f32 %v4182, %v4691
      %v4697 = vsub.f32 %v4183, %v4691
      %v4698 = vsub.f32 %v4184, %v4691
      %v4699 = vsub.f32 %v4185, %v4691
      %v4700 = vsub.f32 %v4186, %v4691
      %v4701 = vsub.f32 %v4187, %v4691
      %v4702 = vsub.f32 %v4188, %v4691
      %v4703 = vsub.f32 %v4189, %v4691
      %v4704 = vsub.f32 %v4190, %v4691
      %v4705 = vsub.f32 %v4191, %v4691
      %v4706 = vsub.f32 %v4192, %v4691
      %v4707 = vsub.f32 %v4193, %v4691
      %v4708 = vsub.f32 %v4194, %v4691
      %v4709 = vsub.f32 %v4195, %v4691
      %v4710 = vsub.f32 %v4196, %v4691
      %v4711 = vsub.f32 %v4197, %v4691
      %v4712 = vsub.f32 %v4198, %v4691
      %v4713 = vsub.f32 %v4199, %v4691
      %v4714 = vsub.f32 %v4200, %v4691
      %v4715 = vsub.f32 %v4201, %v4691
      %v4716 = vsub.f32 %v4202, %v4691
      %v4717 = vsub.f32 %v4203, %v4691
      %v4718 = vsub.f32 %v4204, %v4691
      %v4719 = vsub.f32 %v4205, %v4691
      %v4720 = vsub.f32 %v4206, %v4691
      %v4721 = vsub.f32 %v4207, %v4691
      %v4722 = vsub.f32 %v4208, %v4691
      %v4723 = vsub.f32 %v4209, %v4691
      %v4724 = vmul.f32 %v4687, %v4218
      %v4725 = vlaneseq
      %v4726 = vshrl.u32 %v4725, 7
      %v4727 = vsub.s32 0, %v4726
      %v4728 = vrot.slane %v4724, %v4727
      %v4729 = vmul.f32 %v4692, %v4728
      %v4730 = vmul.f32 %v4693, %v4728
      %v4731 = vmul.f32 %v4694, %v4728
      %v4732 = vmul.f32 %v4695, %v4728
      %v4733 = vmul.f32 %v4696, %v4728
      %v4734 = vmul.f32 %v4697, %v4728
      %v4735 = vmul.f32 %v4698, %v4728
      %v4736 = vmul.f32 %v4699, %v4728
      %v4737 = vmul.f32 %v4700, %v4728
      %v4738 = vmul.f32 %v4701, %v4728
      %v4739 = vmul.f32 %v4702, %v4728
      %v4740 = vmul.f32 %v4703, %v4728
      %v4741 = vmul.f32 %v4704, %v4728
      %v4742 = vmul.f32 %v4705, %v4728
      %v4743 = vmul.f32 %v4706, %v4728
      %v4744 = vmul.f32 %v4707, %v4728
      %v4745 = vmul.f32 %v4708, %v4728
      %v4746 = vmul.f32 %v4709, %v4728
      %v4747 = vmul.f32 %v4710, %v4728
      %v4748 = vmul.f32 %v4711, %v4728
      %v4749 = vmul.f32 %v4712, %v4728
      %v4750 = vmul.f32 %v4713, %v4728
      %v4751 = vmul.f32 %v4714, %v4728
      %v4752 = vmul.f32 %v4715, %v4728
      %v4753 = vmul.f32 %v4716, %v4728
      %v4754 = vmul.f32 %v4717, %v4728
      %v4755 = vmul.f32 %v4718, %v4728
      %v4756 = vmul.f32 %v4719, %v4728
      %v4757 = vmul.f32 %v4720, %v4728
      %v4758 = vmul.f32 %v4721, %v4728
      %v4759 = vmul.f32 %v4722, %v4728
      %v4760 = vmul.f32 %v4723, %v4728
      %v4762 = vlaneseq
      %v4763 = vshrl.u32 %v4762, 7
      %v4764 = vsub.s32 0, %v4763
      %v4765 = vrot.slane %v4219, %v4764
      %v4767 = vadd.f32 %v4729, %v4765
      %v4768 = vadd.f32 %v4730, %v4765
      %v4769 = vadd.f32 %v4731, %v4765
      %v4770 = vadd.f32 %v4732, %v4765
      %v4771 = vadd.f32 %v4733, %v4765
      %v4772 = vadd.f32 %v4734, %v4765
      %v4773 = vadd.f32 %v4735, %v4765
      %v4774 = vadd.f32 %v4736, %v4765
      %v4775 = vadd.f32 %v4737, %v4765
      %v4776 = vadd.f32 %v4738, %v4765
      %v4777 = vadd.f32 %v4739, %v4765
      %v4778 = vadd.f32 %v4740, %v4765
      %v4779 = vadd.f32 %v4741, %v4765
      %v4780 = vadd.f32 %v4742, %v4765
      %v4781 = vadd.f32 %v4743, %v4765
      %v4782 = vadd.f32 %v4744, %v4765
      %v4783 = vadd.f32 %v4745, %v4765
      %v4784 = vadd.f32 %v4746, %v4765
      %v4785 = vadd.f32 %v4747, %v4765
      %v4786 = vadd.f32 %v4748, %v4765
      %v4787 = vadd.f32 %v4749, %v4765
      %v4788 = vadd.f32 %v4750, %v4765
      %v4789 = vadd.f32 %v4751, %v4765
      %v4790 = vadd.f32 %v4752, %v4765
      %v4791 = vadd.f32 %v4753, %v4765
      %v4792 = vadd.f32 %v4754, %v4765
      %v4793 = vadd.f32 %v4755, %v4765
      %v4794 = vadd.f32 %v4756, %v4765
      %v4795 = vadd.f32 %v4757, %v4765
      %v4796 = vadd.f32 %v4758, %v4765
      %v4797 = vadd.f32 %v4759, %v4765
      %v4798 = vadd.f32 %v4760, %v4765
      %v4799 = vmax.f32 %v4767, 0.0
      %v4800 = vmax.f32 %v4768, 0.0
      %v4801 = vmax.f32 %v4769, 0.0
      %v4802 = vmax.f32 %v4770, 0.0
      %v4803 = vmax.f32 %v4771, 0.0
      %v4804 = vmax.f32 %v4772, 0.0
      %v4805 = vmax.f32 %v4773, 0.0
      %v4806 = vmax.f32 %v4774, 0.0
      %v4807 = vmax.f32 %v4775, 0.0
      %v4808 = vmax.f32 %v4776, 0.0
      %v4809 = vmax.f32 %v4777, 0.0
      %v4810 = vmax.f32 %v4778, 0.0
      %v4811 = vmax.f32 %v4779, 0.0
      %v4812 = vmax.f32 %v4780, 0.0
      %v4813 = vmax.f32 %v4781, 0.0
      %v4814 = vmax.f32 %v4782, 0.0
      %v4815 = vmax.f32 %v4783, 0.0
      %v4816 = vmax.f32 %v4784, 0.0
      %v4817 = vmax.f32 %v4785, 0.0
      %v4818 = vmax.f32 %v4786, 0.0
      %v4819 = vmax.f32 %v4787, 0.0
      %v4820 = vmax.f32 %v4788, 0.0
      %v4821 = vmax.f32 %v4789, 0.0
      %v4822 = vmax.f32 %v4790, 0.0
      %v4823 = vmax.f32 %v4791, 0.0
      %v4824 = vmax.f32 %v4792, 0.0
      %v4825 = vmax.f32 %v4793, 0.0
      %v4826 = vmax.f32 %v4794, 0.0
      %v4827 = vmax.f32 %v4795, 0.0
      %v4828 = vmax.f32 %v4796, 0.0
      %v4829 = vmax.f32 %v4797, 0.0
      %v4830 = vmax.f32 %v4798, 0.0
      %v4831 = vpack.c.bf16 %v4800, %v4799
      %v4832 = vpack.c.bf16 %v4802, %v4801
      %v4833 = vpack.c.bf16 %v4804, %v4803
      %v4834 = vpack.c.bf16 %v4806, %v4805
      %v4835 = vpack.c.bf16 %v4808, %v4807
      %v4836 = vpack.c.bf16 %v4810, %v4809
      %v4837 = vpack.c.bf16 %v4812, %v4811
      %v4838 = vpack.c.bf16 %v4814, %v4813
      %v4839 = vpack.c.bf16 %v4816, %v4815
      %v4840 = vpack.c.bf16 %v4818, %v4817
      %v4841 = vpack.c.bf16 %v4820, %v4819
      %v4842 = vpack.c.bf16 %v4822, %v4821
      %v4843 = vpack.c.bf16 %v4824, %v4823
      %v4844 = vpack.c.bf16 %v4826, %v4825
      %v4845 = vpack.c.bf16 %v4828, %v4827
      %v4846 = vpack.c.bf16 %v4830, %v4829
      %v4847 = vld [vmem:[%s3] sm:$0xf]
      %v4848 = vld [vmem:[%s3 + $0x4] sm:$0xf]
      %v4849 = vld [vmem:[%s3 + $0x8] sm:$0xf]
      %v4850 = vld [vmem:[%s3 + $0xc] sm:$0xf]
      %v4855 = vunpack.c.l.b16 %v4847
      %v4856 = vunpack.c.l.b16 %v4848
      %v4857 = vunpack.c.l.b16 %v4849
      %v4858 = vunpack.c.l.b16 %v4850
      %v4859 = vpack.c.b16 %v4856, %v4855
      %v4860 = vpack.c.b16 %v4858, %v4857
      %v4864 = vsel %vm614, %v4831, 0
      %v4867 = vsel %vm614, %v4832, 0
      %v4870 = vsel %vm614, %v4833, 0
      %v4873 = vsel %vm614, %v4834, 0
      %v4876 = vsel %vm614, %v4835, 0
      %v4879 = vsel %vm614, %v4836, 0
      %v4882 = vsel %vm614, %v4837, 0
      %v4885 = vsel %vm614, %v4838, 0
      %v4888 = vsel %vm614, %v4839, 0
      %v4891 = vsel %vm614, %v4840, 0
      %v4894 = vsel %vm614, %v4841, 0
      %v4897 = vsel %vm614, %v4842, 0
      %v4900 = vsel %vm614, %v4843, 0
      %v4903 = vsel %vm614, %v4844, 0
      %v4906 = vsel %vm614, %v4845, 0
      %v4909 = vsel %vm614, %v4846, 0
      %4911 = vmatprep.subr.bf16.mxu0 0
      %4912 = vmatpush1.bf16.msra.mxu0 %v4859
      %4913 = vmatprep.subr.bf16.mxu0 0
      %4914 = vmatpush1.bf16.msra.mxu0 %v4860
      %4915 = vmatprep.subr.bf16.mxu0 0
      %4916 = vmatpush1.bf16.msra.mxu0 0
      %4917 = vmatprep.subr.bf16.mxu0 0
      %4918 = vmatpush1.bf16.msra.mxu0 0
      %4919 = vmatprep.subr.bf16.mxu0 0
      %4920 = vmatpush1.bf16.msra.mxu0 0
      %4921 = vmatprep.subr.bf16.mxu0 0
      %4922 = vmatpush1.bf16.msra.mxu0 0
      %4923 = vmatprep.subr.bf16.mxu0 0
      %4924 = vmatpush1.bf16.msra.mxu0 0
      %4925 = vmatprep.subr.bf16.mxu0 0
      %4926 = vmatpush1.bf16.msra.mxu0 0
      %4927 = vmatprep.subr.bf16.mxu0 0
      %4928 = vmatpush1.bf16.msra.mxu0 0
      %4929 = vmatprep.subr.bf16.mxu0 0
      %4930 = vmatpush1.bf16.msra.mxu0 0
      %4931 = vmatprep.subr.bf16.mxu0 0
      %4932 = vmatpush1.bf16.msra.mxu0 0
      %4933 = vmatprep.subr.bf16.mxu0 0
      %4934 = vmatpush1.bf16.msra.mxu0 0
      %4935 = vmatprep.subr.bf16.mxu0 0
      %4936 = vmatpush1.bf16.msra.mxu0 0
      %4937 = vmatprep.subr.bf16.mxu0 0
      %4938 = vmatpush1.bf16.msra.mxu0 0
      %4939 = vmatprep.subr.bf16.mxu0 0
      %4940 = vmatpush1.bf16.msra.mxu0 0
      %4941 = vmatprep.subr.bf16.mxu0 0
      %4942 = vmatpush1.bf16.msra.mxu0 0
      %4943 = vmatprep.mubr.bf16.mxu0 0
      %4944 = vmatmul.mubr.bf16.gmra.mrb[0].mxu0 %v4864
      %v4945 = vpop.f32.mrb[0].mxu0
      %v4946 = vadd.f32 0.0, %v4945
      %v4947 = vpop.f32.mrb[0].mxu0
      %v4948 = vpop.f32.mrb[0].mxu0
      %v4949 = vadd.f32 0.0, %v4948
      %v4950 = vpop.f32.mrb[0].mxu0
      %4951 = vmatprep.mubr.bf16.mxu0 0
      %4952 = vmatmul.mubr.bf16.gmra.mrb[0].mxu0 %v4867
      %v4953 = vpop.f32.mrb[0].mxu0
      %v4954 = vadd.f32 0.0, %v4953
      %v4955 = vpop.f32.mrb[0].mxu0
      %v4956 = vpop.f32.mrb[0].mxu0
      %v4957 = vadd.f32 0.0, %v4956
      %v4958 = vpop.f32.mrb[0].mxu0
      %4959 = vmatprep.mubr.bf16.mxu0 0
      %4960 = vmatmul.mubr.bf16.gmra.mrb[0].mxu0 %v4870
      %v4961 = vpop.f32.mrb[0].mxu0
      %v4962 = vadd.f32 0.0, %v4961
      %v4963 = vpop.f32.mrb[0].mxu0
      %v4964 = vpop.f32.mrb[0].mxu0
      %v4965 = vadd.f32 0.0, %v4964
      %v4966 = vpop.f32.mrb[0].mxu0
      %4967 = vmatprep.mubr.bf16.mxu0 0
      %4968 = vmatmul.mubr.bf16.gmra.mrb[0].mxu0 %v4873
      %v4969 = vpop.f32.mrb[0].mxu0
      %v4970 = vadd.f32 0.0, %v4969
      %v4971 = vpop.f32.mrb[0].mxu0
      %v4972 = vpop.f32.mrb[0].mxu0
      %v4973 = vadd.f32 0.0, %v4972
      %v4974 = vpop.f32.mrb[0].mxu0
      %4975 = vmatprep.mubr.bf16.mxu0 0
      %4976 = vmatmul.mubr.bf16.gmra.mrb[0].mxu0 %v4876
      %v4977 = vpop.f32.mrb[0].mxu0
      %v4978 = vadd.f32 0.0, %v4977
      %v4979 = vpop.f32.mrb[0].mxu0
      %v4980 = vpop.f32.mrb[0].mxu0
      %v4981 = vadd.f32 0.0, %v4980
      %v4982 = vpop.f32.mrb[0].mxu0
      %4983 = vmatprep.mubr.bf16.mxu0 0
      %4984 = vmatmul.mubr.bf16.gmra.mrb[0].mxu0 %v4879
      %v4985 = vpop.f32.mrb[0].mxu0
      %v4986 = vadd.f32 0.0, %v4985
      %v4987 = vpop.f32.mrb[0].mxu0
      %v4988 = vpop.f32.mrb[0].mxu0
      %v4989 = vadd.f32 0.0, %v4988
      %v4990 = vpop.f32.mrb[0].mxu0
      %4991 = vmatprep.mubr.bf16.mxu0 0
      %4992 = vmatmul.mubr.bf16.gmra.mrb[0].mxu0 %v4882
      %v4993 = vpop.f32.mrb[0].mxu0
      %v4994 = vadd.f32 0.0, %v4993
      %v4995 = vpop.f32.mrb[0].mxu0
      %v4996 = vpop.f32.mrb[0].mxu0
      %v4997 = vadd.f32 0.0, %v4996
      %v4998 = vpop.f32.mrb[0].mxu0
      %4999 = vmatprep.mubr.bf16.mxu0 0
      %5000 = vmatmul.mubr.bf16.gmra.mrb[0].mxu0 %v4885
      %v5001 = vpop.f32.mrb[0].mxu0
      %v5002 = vadd.f32 0.0, %v5001
      %v5003 = vpop.f32.mrb[0].mxu0
      %v5004 = vpop.f32.mrb[0].mxu0
      %v5005 = vadd.f32 0.0, %v5004
      %v5006 = vpop.f32.mrb[0].mxu0
      %5007 = vmatprep.mubr.bf16.mxu0 0
      %5008 = vmatmul.mubr.bf16.gmra.mrb[0].mxu0 %v4888
      %v5009 = vpop.f32.mrb[0].mxu0
      %v5010 = vadd.f32 0.0, %v5009
      %v5011 = vpop.f32.mrb[0].mxu0
      %v5012 = vpop.f32.mrb[0].mxu0
      %v5013 = vadd.f32 0.0, %v5012
      %v5014 = vpop.f32.mrb[0].mxu0
      %5015 = vmatprep.mubr.bf16.mxu0 0
      %5016 = vmatmul.mubr.bf16.gmra.mrb[0].mxu0 %v4891
      %v5017 = vpop.f32.mrb[0].mxu0
      %v5018 = vadd.f32 0.0, %v5017
      %v5019 = vpop.f32.mrb[0].mxu0
      %v5020 = vpop.f32.mrb[0].mxu0
      %v5021 = vadd.f32 0.0, %v5020
      %v5022 = vpop.f32.mrb[0].mxu0
      %5023 = vmatprep.mubr.bf16.mxu0 0
      %5024 = vmatmul.mubr.bf16.gmra.mrb[0].mxu0 %v4894
      %v5025 = vpop.f32.mrb[0].mxu0
      %v5026 = vadd.f32 0.0, %v5025
      %v5027 = vpop.f32.mrb[0].mxu0
      %v5028 = vpop.f32.mrb[0].mxu0
      %v5029 = vadd.f32 0.0, %v5028
      %v5030 = vpop.f32.mrb[0].mxu0
      %5031 = vmatprep.mubr.bf16.mxu0 0
      %5032 = vmatmul.mubr.bf16.gmra.mrb[0].mxu0 %v4897
      %v5033 = vpop.f32.mrb[0].mxu0
      %v5034 = vadd.f32 0.0, %v5033
      %v5035 = vpop.f32.mrb[0].mxu0
      %v5036 = vpop.f32.mrb[0].mxu0
      %v5037 = vadd.f32 0.0, %v5036
      %v5038 = vpop.f32.mrb[0].mxu0
      %5039 = vmatprep.mubr.bf16.mxu0 0
      %5040 = vmatmul.mubr.bf16.gmra.mrb[0].mxu0 %v4900
      %v5041 = vpop.f32.mrb[0].mxu0
      %v5042 = vadd.f32 0.0, %v5041
      %v5043 = vpop.f32.mrb[0].mxu0
      %v5044 = vpop.f32.mrb[0].mxu0
      %v5045 = vadd.f32 0.0, %v5044
      %v5046 = vpop.f32.mrb[0].mxu0
      %5047 = vmatprep.mubr.bf16.mxu0 0
      %5048 = vmatmul.mubr.bf16.gmra.mrb[0].mxu0 %v4903
      %v5049 = vpop.f32.mrb[0].mxu0
      %v5050 = vadd.f32 0.0, %v5049
      %v5051 = vpop.f32.mrb[0].mxu0
      %v5052 = vpop.f32.mrb[0].mxu0
      %v5053 = vadd.f32 0.0, %v5052
      %v5054 = vpop.f32.mrb[0].mxu0
      %5055 = vmatprep.mubr.bf16.mxu0 0
      %5056 = vmatmul.mubr.bf16.gmra.mrb[0].mxu0 %v4906
      %v5057 = vpop.f32.mrb[0].mxu0
      %v5058 = vadd.f32 0.0, %v5057
      %v5059 = vpop.f32.mrb[0].mxu0
      %v5060 = vpop.f32.mrb[0].mxu0
      %v5061 = vadd.f32 0.0, %v5060
      %v5062 = vpop.f32.mrb[0].mxu0
      %5063 = vmatprep.mubr.bf16.mxu0 0
      %5064 = vmatmul.mubr.bf16.gmra.mrb[0].mxu0 %v4909
      %v5065 = vpop.f32.mrb[0].mxu0
      %v5066 = vadd.f32 0.0, %v5065
      %v5067 = vpop.f32.mrb[0].mxu0
      %v5068 = vpop.f32.mrb[0].mxu0
      %v5069 = vadd.f32 0.0, %v5068
      %v5070 = vpop.f32.mrb[0].mxu0
      %5071 = vdwg.mxu0
      %v5072 = vld [vmem:[%s15] sm:$0xff]
      %v5073 = vld [vmem:[%s15 + $0x8] sm:$0xff]
      %v5074 = vld [vmem:[%s15 + $0x10] sm:$0xff]
      %v5075 = vld [vmem:[%s15 + $0x18] sm:$0xff]
      %v5076 = vld [vmem:[%s15 + $0x20] sm:$0xff]
      %v5077 = vld [vmem:[%s15 + $0x28] sm:$0xff]
      %v5078 = vld [vmem:[%s15 + $0x30] sm:$0xff]
      %v5079 = vld [vmem:[%s15 + $0x38] sm:$0xff]
      %v5080 = vld [vmem:[%s16] sm:$0xff]
      %v5081 = vld [vmem:[%s16 + $0x8] sm:$0xff]
      %v5082 = vld [vmem:[%s16 + $0x10] sm:$0xff]
      %v5083 = vld [vmem:[%s16 + $0x18] sm:$0xff]
      %v5084 = vld [vmem:[%s9] sm:$0x1]
      %v5085 = vld [vmem:[%s10] sm:$0x1]
      %vm5086 = vcmask 523264
      %v5087 = vsel %vm5086, %v4946, 0.0
      %v5088 = vsel %vm5086, %v4949, 0.0
      %v5089 = vadd.f32 %v5087, %v5088
      %v5090 = vsel %vm5086, %v4954, 0.0
      %v5091 = vadd.f32 %v5089, %v5090
      %v5092 = vsel %vm5086, %v4957, 0.0
      %v5093 = vadd.f32 %v5091, %v5092
      %v5094 = vsel %vm5086, %v4962, 0.0
      %v5095 = vadd.f32 %v5093, %v5094
      %v5096 = vsel %vm5086, %v4965, 0.0
      %v5097 = vadd.f32 %v5095, %v5096
      %v5098 = vsel %vm5086, %v4970, 0.0
      %v5099 = vadd.f32 %v5097, %v5098
      %v5100 = vsel %vm5086, %v4973, 0.0
      %v5101 = vadd.f32 %v5099, %v5100
      %v5102 = vsel %vm5086, %v4978, 0.0
      %v5103 = vadd.f32 %v5101, %v5102
      %v5104 = vsel %vm5086, %v4981, 0.0
      %v5105 = vadd.f32 %v5103, %v5104
      %v5106 = vsel %vm5086, %v4986, 0.0
      %v5107 = vadd.f32 %v5105, %v5106
      %v5108 = vsel %vm5086, %v4989, 0.0
      %v5109 = vadd.f32 %v5107, %v5108
      %v5110 = vsel %vm5086, %v4994, 0.0
      %v5111 = vadd.f32 %v5109, %v5110
      %v5112 = vsel %vm5086, %v4997, 0.0
      %v5113 = vadd.f32 %v5111, %v5112
      %v5114 = vsel %vm5086, %v5002, 0.0
      %v5115 = vadd.f32 %v5113, %v5114
      %v5116 = vsel %vm5086, %v5005, 0.0
      %v5117 = vadd.f32 %v5115, %v5116
      %v5118 = vsel %vm5086, %v5010, 0.0
      %v5119 = vadd.f32 %v5117, %v5118
      %v5120 = vsel %vm5086, %v5013, 0.0
      %v5121 = vadd.f32 %v5119, %v5120
      %v5122 = vsel %vm5086, %v5018, 0.0
      %v5123 = vadd.f32 %v5121, %v5122
      %v5124 = vsel %vm5086, %v5021, 0.0
      %v5125 = vadd.f32 %v5123, %v5124
      %v5126 = vsel %vm5086, %v5026, 0.0
      %v5127 = vadd.f32 %v5125, %v5126
      %v5128 = vsel %vm5086, %v5029, 0.0
      %v5129 = vadd.f32 %v5127, %v5128
      %v5130 = vsel %vm5086, %v5034, 0.0
      %v5131 = vadd.f32 %v5129, %v5130
      %v5132 = vsel %vm5086, %v5037, 0.0
      %v5133 = vadd.f32 %v5131, %v5132
      %v5134 = vsel %vm5086, %v5042, 0.0
      %v5135 = vadd.f32 %v5133, %v5134
      %v5136 = vsel %vm5086, %v5045, 0.0
      %v5137 = vadd.f32 %v5135, %v5136
      %v5138 = vsel %vm5086, %v5050, 0.0
      %v5139 = vadd.f32 %v5137, %v5138
      %v5140 = vsel %vm5086, %v5053, 0.0
      %v5141 = vadd.f32 %v5139, %v5140
      %v5142 = vsel %vm5086, %v5058, 0.0
      %v5143 = vadd.f32 %v5141, %v5142
      %v5144 = vsel %vm5086, %v5061, 0.0
      %v5145 = vadd.f32 %v5143, %v5144
      %v5146 = vsel %vm5086, %v5066, 0.0
      %v5147 = vadd.f32 %v5145, %v5146
      %v5148 = vsel %vm5086, %v5069, 0.0
      %v5149 = vadd.f32 %v5147, %v5148
      %v5150 = vrot.slane %v5149, 4
      %v5151 = vadd.f32 %v5149, %v5150
      %v5152 = vrot.slane %v5151, 2
      %v5153 = vadd.f32 %v5151, %v5152
      %v5154 = vrot.slane %v5153, 1
      %v5155 = vadd.f32 %v5153, %v5154
      %v5156 = vmul.f32 %v4946, %v4946
      %v5157 = vmul.f32 %v4949, %v4949
      %v5158 = vmul.f32 %v4954, %v4954
      %v5159 = vmul.f32 %v4957, %v4957
      %v5160 = vmul.f32 %v4962, %v4962
      %v5161 = vmul.f32 %v4965, %v4965
      %v5162 = vmul.f32 %v4970, %v4970
      %v5163 = vmul.f32 %v4973, %v4973
      %v5164 = vmul.f32 %v4978, %v4978
      %v5165 = vmul.f32 %v4981, %v4981
      %v5166 = vmul.f32 %v4986, %v4986
      %v5167 = vmul.f32 %v4989, %v4989
      %v5168 = vmul.f32 %v4994, %v4994
      %v5169 = vmul.f32 %v4997, %v4997
      %v5170 = vmul.f32 %v5002, %v5002
      %v5171 = vmul.f32 %v5005, %v5005
      %v5172 = vmul.f32 %v5010, %v5010
      %v5173 = vmul.f32 %v5013, %v5013
      %v5174 = vmul.f32 %v5018, %v5018
      %v5175 = vmul.f32 %v5021, %v5021
      %v5176 = vmul.f32 %v5026, %v5026
      %v5177 = vmul.f32 %v5029, %v5029
      %v5178 = vmul.f32 %v5034, %v5034
      %v5179 = vmul.f32 %v5037, %v5037
      %v5180 = vmul.f32 %v5042, %v5042
      %v5181 = vmul.f32 %v5045, %v5045
      %v5182 = vmul.f32 %v5050, %v5050
      %v5183 = vmul.f32 %v5053, %v5053
      %v5184 = vmul.f32 %v5058, %v5058
      %v5185 = vmul.f32 %v5061, %v5061
      %v5186 = vmul.f32 %v5066, %v5066
      %v5187 = vmul.f32 %v5069, %v5069
      %v5188 = vsel %vm5086, %v5156, 0.0
      %v5189 = vsel %vm5086, %v5157, 0.0
      %v5190 = vadd.f32 %v5188, %v5189
      %v5191 = vsel %vm5086, %v5158, 0.0
      %v5192 = vadd.f32 %v5190, %v5191
      %v5193 = vsel %vm5086, %v5159, 0.0
      %v5194 = vadd.f32 %v5192, %v5193
      %v5195 = vsel %vm5086, %v5160, 0.0
      %v5196 = vadd.f32 %v5194, %v5195
      %v5197 = vsel %vm5086, %v5161, 0.0
      %v5198 = vadd.f32 %v5196, %v5197
      %v5199 = vsel %vm5086, %v5162, 0.0
      %v5200 = vadd.f32 %v5198, %v5199
      %v5201 = vsel %vm5086, %v5163, 0.0
      %v5202 = vadd.f32 %v5200, %v5201
      %v5203 = vsel %vm5086, %v5164, 0.0
      %v5204 = vadd.f32 %v5202, %v5203
      %v5205 = vsel %vm5086, %v5165, 0.0
      %v5206 = vadd.f32 %v5204, %v5205
      %v5207 = vsel %vm5086, %v5166, 0.0
      %v5208 = vadd.f32 %v5206, %v5207
      %v5209 = vsel %vm5086, %v5167, 0.0
      %v5210 = vadd.f32 %v5208, %v5209
      %v5211 = vsel %vm5086, %v5168, 0.0
      %v5212 = vadd.f32 %v5210, %v5211
      %v5213 = vsel %vm5086, %v5169, 0.0
      %v5214 = vadd.f32 %v5212, %v5213
      %v5215 = vsel %vm5086, %v5170, 0.0
      %v5216 = vadd.f32 %v5214, %v5215
      %v5217 = vsel %vm5086, %v5171, 0.0
      %v5218 = vadd.f32 %v5216, %v5217
      %v5219 = vsel %vm5086, %v5172, 0.0
      %v5220 = vadd.f32 %v5218, %v5219
      %v5221 = vsel %vm5086, %v5173, 0.0
      %v5222 = vadd.f32 %v5220, %v5221
      %v5223 = vsel %vm5086, %v5174, 0.0
      %v5224 = vadd.f32 %v5222, %v5223
      %v5225 = vsel %vm5086, %v5175, 0.0
      %v5226 = vadd.f32 %v5224, %v5225
      %v5227 = vsel %vm5086, %v5176, 0.0
      %v5228 = vadd.f32 %v5226, %v5227
      %v5229 = vsel %vm5086, %v5177, 0.0
      %v5230 = vadd.f32 %v5228, %v5229
      %v5231 = vsel %vm5086, %v5178, 0.0
      %v5232 = vadd.f32 %v5230, %v5231
      %v5233 = vsel %vm5086, %v5179, 0.0
      %v5234 = vadd.f32 %v5232, %v5233
      %v5235 = vsel %vm5086, %v5180, 0.0
      %v5236 = vadd.f32 %v5234, %v5235
      %v5237 = vsel %vm5086, %v5181, 0.0
      %v5238 = vadd.f32 %v5236, %v5237
      %v5239 = vsel %vm5086, %v5182, 0.0
      %v5240 = vadd.f32 %v5238, %v5239
      %v5241 = vsel %vm5086, %v5183, 0.0
      %v5242 = vadd.f32 %v5240, %v5241
      %v5243 = vsel %vm5086, %v5184, 0.0
      %v5244 = vadd.f32 %v5242, %v5243
      %v5245 = vsel %vm5086, %v5185, 0.0
      %v5246 = vadd.f32 %v5244, %v5245
      %v5247 = vsel %vm5086, %v5186, 0.0
      %v5248 = vadd.f32 %v5246, %v5247
      %v5249 = vsel %vm5086, %v5187, 0.0
      %v5250 = vadd.f32 %v5248, %v5249
      %v5251 = vrot.slane %v5250, 4
      %v5252 = vadd.f32 %v5250, %v5251
      %v5253 = vrot.slane %v5252, 2
      %v5254 = vadd.f32 %v5252, %v5253
      %v5255 = vrot.slane %v5254, 1
      %v5256 = vadd.f32 %v5254, %v5255
      %v5258 = vsel %vm5086, %v5155, 0
      %5260 = vmatprep.subr.mxu0 0.0
      %5261 = vmatpush1.msra.mxu0 %v5072
      %5262 = vmatprep.subr.mxu0 0.0
      %5263 = vmatpush1.msra.mxu0 %v5073
      %5264 = vmatprep.subr.mxu0 0.0
      %5265 = vmatpush1.msra.mxu0 %v5074
      %5266 = vmatprep.subr.mxu0 0.0
      %5267 = vmatpush1.msra.mxu0 %v5075
      %5268 = vmatprep.subr.mxu0 0.0
      %5269 = vmatpush1.msra.mxu0 %v5076
      %5270 = vmatprep.subr.mxu0 0.0
      %5271 = vmatpush1.msra.mxu0 %v5077
      %5272 = vmatprep.subr.mxu0 0.0
      %5273 = vmatpush1.msra.mxu0 %v5078
      %5274 = vmatprep.subr.mxu0 0.0
      %5275 = vmatpush1.msra.mxu0 %v5079
      %5276 = vmatprep.subr.mxu0 0.0
      %5277 = vmatpush1.msra.mxu0 0.0
      %5278 = vmatprep.subr.mxu0 0.0
      %5279 = vmatpush1.msra.mxu0 0.0
      %5280 = vmatprep.subr.mxu0 0.0
      %5281 = vmatpush1.msra.mxu0 0.0
      %5282 = vmatprep.subr.mxu0 0.0
      %5283 = vmatpush1.msra.mxu0 0.0
      %5284 = vmatprep.subr.mxu0 0.0
      %5285 = vmatpush1.msra.mxu0 0.0
      %5286 = vmatprep.subr.mxu0 0.0
      %5287 = vmatpush1.msra.mxu0 0.0
      %5288 = vmatprep.subr.mxu0 0.0
      %5289 = vmatpush1.msra.mxu0 0.0
      %5290 = vmatprep.subr.mxu0 0.0
      %5291 = vmatpush1.msra.mxu0 0.0
      %5292 = vmatprep.subr.mxu0 0.0
      %5293 = vmatpush1.msra.mxu0 0.0
      %5294 = vmatprep.subr.mxu0 0.0
      %5295 = vmatpush1.msra.mxu0 0.0
      %5296 = vmatprep.subr.mxu0 0.0
      %5297 = vmatpush1.msra.mxu0 0.0
      %5298 = vmatprep.subr.mxu0 0.0
      %5299 = vmatpush1.msra.mxu0 0.0
      %5300 = vmatprep.subr.mxu0 0.0
      %5301 = vmatpush1.msra.mxu0 0.0
      %5302 = vmatprep.subr.mxu0 0.0
      %5303 = vmatpush1.msra.mxu0 0.0
      %5304 = vmatprep.subr.mxu0 0.0
      %5305 = vmatpush1.msra.mxu0 0.0
      %5306 = vmatprep.subr.mxu0 0.0
      %5307 = vmatpush1.msra.mxu0 0.0
      %5308 = vmatprep.subr.mxu0 0.0
      %5309 = vmatpush1.msra.mxu0 0.0
      %5310 = vmatprep.subr.mxu0 0.0
      %5311 = vmatpush1.msra.mxu0 0.0
      %5312 = vmatprep.subr.mxu0 0.0
      %5313 = vmatpush1.msra.mxu0 0.0
      %5314 = vmatprep.subr.mxu0 0.0
      %5315 = vmatpush1.msra.mxu0 0.0
      %5316 = vmatprep.subr.mxu0 0.0
      %5317 = vmatpush1.msra.mxu0 0.0
      %5318 = vmatprep.subr.mxu0 0.0
      %5319 = vmatpush1.msra.mxu0 0.0
      %5320 = vmatprep.subr.mxu0 0.0
      %5321 = vmatpush1.msra.mxu0 0.0
      %5322 = vmatprep.subr.mxu0 0.0
      %5323 = vmatpush1.msra.mxu0 0.0
      %5324 = vmatprep.mubr.f32.mxu0 0.0
      %5325 = vmatmul.mubr.f32.gmra.mrb[0].mxu0 %v5258
      %v5326 = vpop.f32.mrb[0].mxu0
      %v5327 = vadd.f32 0.0, %v5326
      %v5328 = vpop.f32.mrb[0].mxu0
      %5329 = vdwg.mxu0
      %v5331 = vsel %vm614, %v5327, 0
      %5333 = vmatprep.subr.mxu0 0.0
      %5334 = vmatpush1.msra.mxu0 %v5080
      %5335 = vmatprep.subr.mxu0 0.0
      %5336 = vmatpush1.msra.mxu0 %v5081
      %5337 = vmatprep.subr.mxu0 0.0
      %5338 = vmatpush1.msra.mxu0 %v5082
      %5339 = vmatprep.subr.mxu0 0.0
      %5340 = vmatpush1.msra.mxu0 %v5083
      %5341 = vmatprep.subr.mxu0 0.0
      %5342 = vmatpush1.msra.mxu0 0.0
      %5343 = vmatprep.subr.mxu0 0.0
      %5344 = vmatpush1.msra.mxu0 0.0
      %5345 = vmatprep.subr.mxu0 0.0
      %5346 = vmatpush1.msra.mxu0 0.0
      %5347 = vmatprep.subr.mxu0 0.0
      %5348 = vmatpush1.msra.mxu0 0.0
      %5349 = vmatprep.subr.mxu0 0.0
      %5350 = vmatpush1.msra.mxu0 0.0
      %5351 = vmatprep.subr.mxu0 0.0
      %5352 = vmatpush1.msra.mxu0 0.0
      %5353 = vmatprep.subr.mxu0 0.0
      %5354 = vmatpush1.msra.mxu0 0.0
      %5355 = vmatprep.subr.mxu0 0.0
      %5356 = vmatpush1.msra.mxu0 0.0
      %5357 = vmatprep.subr.mxu0 0.0
      %5358 = vmatpush1.msra.mxu0 0.0
      %5359 = vmatprep.subr.mxu0 0.0
      %5360 = vmatpush1.msra.mxu0 0.0
      %5361 = vmatprep.subr.mxu0 0.0
      %5362 = vmatpush1.msra.mxu0 0.0
      %5363 = vmatprep.subr.mxu0 0.0
      %5364 = vmatpush1.msra.mxu0 0.0
      %5365 = vmatprep.subr.mxu0 0.0
      %5366 = vmatpush1.msra.mxu0 0.0
      %5367 = vmatprep.subr.mxu0 0.0
      %5368 = vmatpush1.msra.mxu0 0.0
      %5369 = vmatprep.subr.mxu0 0.0
      %5370 = vmatpush1.msra.mxu0 0.0
      %5371 = vmatprep.subr.mxu0 0.0
      %5372 = vmatpush1.msra.mxu0 0.0
      %5373 = vmatprep.subr.mxu0 0.0
      %5374 = vmatpush1.msra.mxu0 0.0
      %5375 = vmatprep.subr.mxu0 0.0
      %5376 = vmatpush1.msra.mxu0 0.0
      %5377 = vmatprep.subr.mxu0 0.0
      %5378 = vmatpush1.msra.mxu0 0.0
      %5379 = vmatprep.subr.mxu0 0.0
      %5380 = vmatpush1.msra.mxu0 0.0
      %5381 = vmatprep.subr.mxu0 0.0
      %5382 = vmatpush1.msra.mxu0 0.0
      %5383 = vmatprep.subr.mxu0 0.0
      %5384 = vmatpush1.msra.mxu0 0.0
      %5385 = vmatprep.subr.mxu0 0.0
      %5386 = vmatpush1.msra.mxu0 0.0
      %5387 = vmatprep.subr.mxu0 0.0
      %5388 = vmatpush1.msra.mxu0 0.0
      %5389 = vmatprep.subr.mxu0 0.0
      %5390 = vmatpush1.msra.mxu0 0.0
      %5391 = vmatprep.subr.mxu0 0.0
      %5392 = vmatpush1.msra.mxu0 0.0
      %5393 = vmatprep.subr.mxu0 0.0
      %5394 = vmatpush1.msra.mxu0 0.0
      %5395 = vmatprep.subr.mxu0 0.0
      %5396 = vmatpush1.msra.mxu0 0.0
      %5397 = vmatprep.mubr.f32.mxu0 0.0
      %5398 = vmatmul.mubr.f32.gmra.mrb[0].mxu0 %v5331
      %v5399 = vpop.f32.mrb[0].mxu0
      %v5400 = vadd.f32 0.0, %v5399
      %v5401 = vpop.f32.mrb[0].mxu0
      %5402 = vdwg.mxu0
      %v5404 = vsel %vm5086, %v5256, 0
      %5406 = vmatprep.subr.mxu0 0.0
      %5407 = vmatpush1.msra.mxu0 %v5072
      %5408 = vmatprep.subr.mxu0 0.0
      %5409 = vmatpush1.msra.mxu0 %v5073
      %5410 = vmatprep.subr.mxu0 0.0
      %5411 = vmatpush1.msra.mxu0 %v5074
      %5412 = vmatprep.subr.mxu0 0.0
      %5413 = vmatpush1.msra.mxu0 %v5075
      %5414 = vmatprep.subr.mxu0 0.0
      %5415 = vmatpush1.msra.mxu0 %v5076
      %5416 = vmatprep.subr.mxu0 0.0
      %5417 = vmatpush1.msra.mxu0 %v5077
      %5418 = vmatprep.subr.mxu0 0.0
      %5419 = vmatpush1.msra.mxu0 %v5078
      %5420 = vmatprep.subr.mxu0 0.0
      %5421 = vmatpush1.msra.mxu0 %v5079
      %5422 = vmatprep.subr.mxu0 0.0
      %5423 = vmatpush1.msra.mxu0 0.0
      %5424 = vmatprep.subr.mxu0 0.0
      %5425 = vmatpush1.msra.mxu0 0.0
      %5426 = vmatprep.subr.mxu0 0.0
      %5427 = vmatpush1.msra.mxu0 0.0
      %5428 = vmatprep.subr.mxu0 0.0
      %5429 = vmatpush1.msra.mxu0 0.0
      %5430 = vmatprep.subr.mxu0 0.0
      %5431 = vmatpush1.msra.mxu0 0.0
      %5432 = vmatprep.subr.mxu0 0.0
      %5433 = vmatpush1.msra.mxu0 0.0
      %5434 = vmatprep.subr.mxu0 0.0
      %5435 = vmatpush1.msra.mxu0 0.0
      %5436 = vmatprep.subr.mxu0 0.0
      %5437 = vmatpush1.msra.mxu0 0.0
      %5438 = vmatprep.subr.mxu0 0.0
      %5439 = vmatpush1.msra.mxu0 0.0
      %5440 = vmatprep.subr.mxu0 0.0
      %5441 = vmatpush1.msra.mxu0 0.0
      %5442 = vmatprep.subr.mxu0 0.0
      %5443 = vmatpush1.msra.mxu0 0.0
      %5444 = vmatprep.subr.mxu0 0.0
      %5445 = vmatpush1.msra.mxu0 0.0
      %5446 = vmatprep.subr.mxu0 0.0
      %5447 = vmatpush1.msra.mxu0 0.0
      %5448 = vmatprep.subr.mxu0 0.0
      %5449 = vmatpush1.msra.mxu0 0.0
      %5450 = vmatprep.subr.mxu0 0.0
      %5451 = vmatpush1.msra.mxu0 0.0
      %5452 = vmatprep.subr.mxu0 0.0
      %5453 = vmatpush1.msra.mxu0 0.0
      %5454 = vmatprep.subr.mxu0 0.0
      %5455 = vmatpush1.msra.mxu0 0.0
      %5456 = vmatprep.subr.mxu0 0.0
      %5457 = vmatpush1.msra.mxu0 0.0
      %5458 = vmatprep.subr.mxu0 0.0
      %5459 = vmatpush1.msra.mxu0 0.0
      %5460 = vmatprep.subr.mxu0 0.0
      %5461 = vmatpush1.msra.mxu0 0.0
      %5462 = vmatprep.subr.mxu0 0.0
      %5463 = vmatpush1.msra.mxu0 0.0
      %5464 = vmatprep.subr.mxu0 0.0
      %5465 = vmatpush1.msra.mxu0 0.0
      %5466 = vmatprep.subr.mxu0 0.0
      %5467 = vmatpush1.msra.mxu0 0.0
      %5468 = vmatprep.subr.mxu0 0.0
      %5469 = vmatpush1.msra.mxu0 0.0
      %5470 = vmatprep.mubr.f32.mxu0 0.0
      %5471 = vmatmul.mubr.f32.gmra.mrb[0].mxu0 %v5404
      %v5472 = vpop.f32.mrb[0].mxu0
      %v5473 = vadd.f32 0.0, %v5472
      %v5474 = vpop.f32.mrb[0].mxu0
      %5475 = vdwg.mxu0
      %v5477 = vsel %vm614, %v5473, 0
      %5479 = vmatprep.subr.mxu0 0.0
      %5480 = vmatpush1.msra.mxu0 %v5080
      %5481 = vmatprep.subr.mxu0 0.0
      %5482 = vmatpush1.msra.mxu0 %v5081
      %5483 = vmatprep.subr.mxu0 0.0
      %5484 = vmatpush1.msra.mxu0 %v5082
      %5485 = vmatprep.subr.mxu0 0.0
      %5486 = vmatpush1.msra.mxu0 %v5083
      %5487 = vmatprep.subr.mxu0 0.0
      %5488 = vmatpush1.msra.mxu0 0.0
      %5489 = vmatprep.subr.mxu0 0.0
      %5490 = vmatpush1.msra.mxu0 0.0
      %5491 = vmatprep.subr.mxu0 0.0
      %5492 = vmatpush1.msra.mxu0 0.0
      %5493 = vmatprep.subr.mxu0 0.0
      %5494 = vmatpush1.msra.mxu0 0.0
      %5495 = vmatprep.subr.mxu0 0.0
      %5496 = vmatpush1.msra.mxu0 0.0
      %5497 = vmatprep.subr.mxu0 0.0
      %5498 = vmatpush1.msra.mxu0 0.0
      %5499 = vmatprep.subr.mxu0 0.0
      %5500 = vmatpush1.msra.mxu0 0.0
      %5501 = vmatprep.subr.mxu0 0.0
      %5502 = vmatpush1.msra.mxu0 0.0
      %5503 = vmatprep.subr.mxu0 0.0
      %5504 = vmatpush1.msra.mxu0 0.0
      %5505 = vmatprep.subr.mxu0 0.0
      %5506 = vmatpush1.msra.mxu0 0.0
      %5507 = vmatprep.subr.mxu0 0.0
      %5508 = vmatpush1.msra.mxu0 0.0
      %5509 = vmatprep.subr.mxu0 0.0
      %5510 = vmatpush1.msra.mxu0 0.0
      %5511 = vmatprep.subr.mxu0 0.0
      %5512 = vmatpush1.msra.mxu0 0.0
      %5513 = vmatprep.subr.mxu0 0.0
      %5514 = vmatpush1.msra.mxu0 0.0
      %5515 = vmatprep.subr.mxu0 0.0
      %5516 = vmatpush1.msra.mxu0 0.0
      %5517 = vmatprep.subr.mxu0 0.0
      %5518 = vmatpush1.msra.mxu0 0.0
      %5519 = vmatprep.subr.mxu0 0.0
      %5520 = vmatpush1.msra.mxu0 0.0
      %5521 = vmatprep.subr.mxu0 0.0
      %5522 = vmatpush1.msra.mxu0 0.0
      %5523 = vmatprep.subr.mxu0 0.0
      %5524 = vmatpush1.msra.mxu0 0.0
      %5525 = vmatprep.subr.mxu0 0.0
      %5526 = vmatpush1.msra.mxu0 0.0
      %5527 = vmatprep.subr.mxu0 0.0
      %5528 = vmatpush1.msra.mxu0 0.0
      %5529 = vmatprep.subr.mxu0 0.0
      %5530 = vmatpush1.msra.mxu0 0.0
      %5531 = vmatprep.subr.mxu0 0.0
      %5532 = vmatpush1.msra.mxu0 0.0
      %5533 = vmatprep.subr.mxu0 0.0
      %5534 = vmatpush1.msra.mxu0 0.0
      %5535 = vmatprep.subr.mxu0 0.0
      %5536 = vmatpush1.msra.mxu0 0.0
      %5537 = vmatprep.subr.mxu0 0.0
      %5538 = vmatpush1.msra.mxu0 0.0
      %5539 = vmatprep.subr.mxu0 0.0
      %5540 = vmatpush1.msra.mxu0 0.0
      %5541 = vmatprep.subr.mxu0 0.0
      %5542 = vmatpush1.msra.mxu0 0.0
      %5543 = vmatprep.mubr.f32.mxu0 0.0
      %5544 = vmatmul.mubr.f32.gmra.mrb[0].mxu0 %v5477
      %v5545 = vpop.f32.mrb[0].mxu0
      %v5546 = vadd.f32 0.0, %v5545
      %v5547 = vpop.f32.mrb[0].mxu0
      %5548 = vdwg.mxu0
      %v5549 = vrcp.pop 512.0
      %v5550 = vmul.f32 %v5400, %v5549
      %v5551 = vmul.f32 %v5546, %v5549
      %v5552 = vmul.f32 %v5550, %v5550
      %v5553 = vsub.f32 %v5551, %v5552
      %v5554 = vadd.f32 %v5553, 1e-06
      %v5555 = vrsqrt.pop %v5554
      %v5556 = vlaneseq
      %v5557 = vshrl.u32 %v5556, 7
      %v5558 = vsub.s32 0, %v5557
      %v5559 = vrot.slane %v5550, %v5558
      %v5560 = vsub.f32 %v4946, %v5559
      %v5561 = vsub.f32 %v4949, %v5559
      %v5562 = vsub.f32 %v4954, %v5559
      %v5563 = vsub.f32 %v4957, %v5559
      %v5564 = vsub.f32 %v4962, %v5559
      %v5565 = vsub.f32 %v4965, %v5559
      %v5566 = vsub.f32 %v4970, %v5559
      %v5567 = vsub.f32 %v4973, %v5559
      %v5568 = vsub.f32 %v4978, %v5559
      %v5569 = vsub.f32 %v4981, %v5559
      %v5570 = vsub.f32 %v4986, %v5559
      %v5571 = vsub.f32 %v4989, %v5559
      %v5572 = vsub.f32 %v4994, %v5559
      %v5573 = vsub.f32 %v4997, %v5559
      %v5574 = vsub.f32 %v5002, %v5559
      %v5575 = vsub.f32 %v5005, %v5559
      %v5576 = vsub.f32 %v5010, %v5559
      %v5577 = vsub.f32 %v5013, %v5559
      %v5578 = vsub.f32 %v5018, %v5559
      %v5579 = vsub.f32 %v5021, %v5559
      %v5580 = vsub.f32 %v5026, %v5559
      %v5581 = vsub.f32 %v5029, %v5559
      %v5582 = vsub.f32 %v5034, %v5559
      %v5583 = vsub.f32 %v5037, %v5559
      %v5584 = vsub.f32 %v5042, %v5559
      %v5585 = vsub.f32 %v5045, %v5559
      %v5586 = vsub.f32 %v5050, %v5559
      %v5587 = vsub.f32 %v5053, %v5559
      %v5588 = vsub.f32 %v5058, %v5559
      %v5589 = vsub.f32 %v5061, %v5559
      %v5590 = vsub.f32 %v5066, %v5559
      %v5591 = vsub.f32 %v5069, %v5559
      %v5592 = vmul.f32 %v5555, %v5084
      %v5593 = vlaneseq
      %v5594 = vshrl.u32 %v5593, 7
      %v5595 = vsub.s32 0, %v5594
      %v5596 = vrot.slane %v5592, %v5595
      %v5597 = vmul.f32 %v5560, %v5596
      %v5598 = vmul.f32 %v5561, %v5596
      %v5599 = vmul.f32 %v5562, %v5596
      %v5600 = vmul.f32 %v5563, %v5596
      %v5601 = vmul.f32 %v5564, %v5596
      %v5602 = vmul.f32 %v5565, %v5596
      %v5603 = vmul.f32 %v5566, %v5596
      %v5604 = vmul.f32 %v5567, %v5596
      %v5605 = vmul.f32 %v5568, %v5596
      %v5606 = vmul.f32 %v5569, %v5596
      %v5607 = vmul.f32 %v5570, %v5596
      %v5608 = vmul.f32 %v5571, %v5596
      %v5609 = vmul.f32 %v5572, %v5596
      %v5610 = vmul.f32 %v5573, %v5596
      %v5611 = vmul.f32 %v5574, %v5596
      %v5612 = vmul.f32 %v5575, %v5596
      %v5613 = vmul.f32 %v5576, %v5596
      %v5614 = vmul.f32 %v5577, %v5596
      %v5615 = vmul.f32 %v5578, %v5596
      %v5616 = vmul.f32 %v5579, %v5596
      %v5617 = vmul.f32 %v5580, %v5596
      %v5618 = vmul.f32 %v5581, %v5596
      %v5619 = vmul.f32 %v5582, %v5596
      %v5620 = vmul.f32 %v5583, %v5596
      %v5621 = vmul.f32 %v5584, %v5596
      %v5622 = vmul.f32 %v5585, %v5596
      %v5623 = vmul.f32 %v5586, %v5596
      %v5624 = vmul.f32 %v5587, %v5596
      %v5625 = vmul.f32 %v5588, %v5596
      %v5626 = vmul.f32 %v5589, %v5596
      %v5627 = vmul.f32 %v5590, %v5596
      %v5628 = vmul.f32 %v5591, %v5596
      %v5630 = vlaneseq
      %v5631 = vshrl.u32 %v5630, 7
      %v5632 = vsub.s32 0, %v5631
      %v5633 = vrot.slane %v5085, %v5632
      %v5635 = vadd.f32 %v5597, %v5633
      %v5636 = vadd.f32 %v5598, %v5633
      %v5637 = vadd.f32 %v5599, %v5633
      %v5638 = vadd.f32 %v5600, %v5633
      %v5639 = vadd.f32 %v5601, %v5633
      %v5640 = vadd.f32 %v5602, %v5633
      %v5641 = vadd.f32 %v5603, %v5633
      %v5642 = vadd.f32 %v5604, %v5633
      %v5643 = vadd.f32 %v5605, %v5633
      %v5644 = vadd.f32 %v5606, %v5633
      %v5645 = vadd.f32 %v5607, %v5633
      %v5646 = vadd.f32 %v5608, %v5633
      %v5647 = vadd.f32 %v5609, %v5633
      %v5648 = vadd.f32 %v5610, %v5633
      %v5649 = vadd.f32 %v5611, %v5633
      %v5650 = vadd.f32 %v5612, %v5633
      %v5651 = vadd.f32 %v5613, %v5633
      %v5652 = vadd.f32 %v5614, %v5633
      %v5653 = vadd.f32 %v5615, %v5633
      %v5654 = vadd.f32 %v5616, %v5633
      %v5655 = vadd.f32 %v5617, %v5633
      %v5656 = vadd.f32 %v5618, %v5633
      %v5657 = vadd.f32 %v5619, %v5633
      %v5658 = vadd.f32 %v5620, %v5633
      %v5659 = vadd.f32 %v5621, %v5633
      %v5660 = vadd.f32 %v5622, %v5633
      %v5661 = vadd.f32 %v5623, %v5633
      %v5662 = vadd.f32 %v5624, %v5633
      %v5663 = vadd.f32 %v5625, %v5633
      %v5664 = vadd.f32 %v5626, %v5633
      %v5665 = vadd.f32 %v5627, %v5633
      %v5666 = vadd.f32 %v5628, %v5633
      %v5667 = vld [vmem:[%s4] sm:$0xf]
      %v5668 = vld [vmem:[%s4 + $0x4] sm:$0xf]
      %v5669 = vld [vmem:[%s4 + $0x8] sm:$0xf]
      %v5670 = vld [vmem:[%s4 + $0xc] sm:$0xf]
      %v5675 = vunpack.c.l.b16 %v5667
      %v5676 = vunpack.c.l.b16 %v5668
      %v5677 = vunpack.c.l.b16 %v5669
      %v5678 = vunpack.c.l.b16 %v5670
      %v5679 = vpack.c.b16 %v5676, %v5675
      %v5680 = vpack.c.b16 %v5678, %v5677
      %5683 = vmatprep.subr.bf16.mxu0 0
      %5684 = vmatpush1.bf16.msra.mxu0 %v5679
      %5685 = vmatprep.subr.bf16.mxu0 0
      %5686 = vmatpush1.bf16.msra.mxu0 %v5680
      %5687 = vmatprep.subr.bf16.mxu0 0
      %5688 = vmatpush1.bf16.msra.mxu0 0
      %5689 = vmatprep.subr.bf16.mxu0 0
      %5690 = vmatpush1.bf16.msra.mxu0 0
      %5691 = vmatprep.subr.bf16.mxu0 0
      %5692 = vmatpush1.bf16.msra.mxu0 0
      %5693 = vmatprep.subr.bf16.mxu0 0
      %5694 = vmatpush1.bf16.msra.mxu0 0
      %5695 = vmatprep.subr.bf16.mxu0 0
      %5696 = vmatpush1.bf16.msra.mxu0 0
      %5697 = vmatprep.subr.bf16.mxu0 0
      %5698 = vmatpush1.bf16.msra.mxu0 0
      %5699 = vmatprep.subr.bf16.mxu0 0
      %5700 = vmatpush1.bf16.msra.mxu0 0
      %5701 = vmatprep.subr.bf16.mxu0 0
      %5702 = vmatpush1.bf16.msra.mxu0 0
      %5703 = vmatprep.subr.bf16.mxu0 0
      %5704 = vmatpush1.bf16.msra.mxu0 0
      %5705 = vmatprep.subr.bf16.mxu0 0
      %5706 = vmatpush1.bf16.msra.mxu0 0
      %5707 = vmatprep.subr.bf16.mxu0 0
      %5708 = vmatpush1.bf16.msra.mxu0 0
      %5709 = vmatprep.subr.bf16.mxu0 0
      %5710 = vmatpush1.bf16.msra.mxu0 0
      %5711 = vmatprep.subr.bf16.mxu0 0
      %5712 = vmatpush1.bf16.msra.mxu0 0
      %5713 = vmatprep.subr.bf16.mxu0 0
      %5714 = vmatpush1.bf16.msra.mxu0 0
      %5715 = vmatprep.mubr.bf16.mxu0 0
      %5716 = vmatmul.mubr.bf16.gmra.mrb[0].mxu0 %v616
      %v5717 = vpop.f32.mrb[0].mxu0
      %v5718 = vadd.f32 0.0, %v5717
      %v5719 = vpop.f32.mrb[0].mxu0
      %v5720 = vpop.f32.mrb[0].mxu0
      %v5721 = vadd.f32 0.0, %v5720
      %v5722 = vpop.f32.mrb[0].mxu0
      %5723 = vmatprep.mubr.bf16.mxu0 0
      %5724 = vmatmul.mubr.bf16.gmra.mrb[0].mxu0 %v619
      %v5725 = vpop.f32.mrb[0].mxu0
      %v5726 = vadd.f32 0.0, %v5725
      %v5727 = vpop.f32.mrb[0].mxu0
      %v5728 = vpop.f32.mrb[0].mxu0
      %v5729 = vadd.f32 0.0, %v5728
      %v5730 = vpop.f32.mrb[0].mxu0
      %5731 = vmatprep.mubr.bf16.mxu0 0
      %5732 = vmatmul.mubr.bf16.gmra.mrb[0].mxu0 %v622
      %v5733 = vpop.f32.mrb[0].mxu0
      %v5734 = vadd.f32 0.0, %v5733
      %v5735 = vpop.f32.mrb[0].mxu0
      %v5736 = vpop.f32.mrb[0].mxu0
      %v5737 = vadd.f32 0.0, %v5736
      %v5738 = vpop.f32.mrb[0].mxu0
      %5739 = vmatprep.mubr.bf16.mxu0 0
      %5740 = vmatmul.mubr.bf16.gmra.mrb[0].mxu0 %v625
      %v5741 = vpop.f32.mrb[0].mxu0
      %v5742 = vadd.f32 0.0, %v5741
      %v5743 = vpop.f32.mrb[0].mxu0
      %v5744 = vpop.f32.mrb[0].mxu0
      %v5745 = vadd.f32 0.0, %v5744
      %v5746 = vpop.f32.mrb[0].mxu0
      %5747 = vmatprep.mubr.bf16.mxu0 0
      %5748 = vmatmul.mubr.bf16.gmra.mrb[0].mxu0 %v628
      %v5749 = vpop.f32.mrb[0].mxu0
      %v5750 = vadd.f32 0.0, %v5749
      %v5751 = vpop.f32.mrb[0].mxu0
      %v5752 = vpop.f32.mrb[0].mxu0
      %v5753 = vadd.f32 0.0, %v5752
      %v5754 = vpop.f32.mrb[0].mxu0
      %5755 = vmatprep.mubr.bf16.mxu0 0
      %5756 = vmatmul.mubr.bf16.gmra.mrb[0].mxu0 %v631
      %v5757 = vpop.f32.mrb[0].mxu0
      %v5758 = vadd.f32 0.0, %v5757
      %v5759 = vpop.f32.mrb[0].mxu0
      %v5760 = vpop.f32.mrb[0].mxu0
      %v5761 = vadd.f32 0.0, %v5760
      %v5762 = vpop.f32.mrb[0].mxu0
      %5763 = vmatprep.mubr.bf16.mxu0 0
      %5764 = vmatmul.mubr.bf16.gmra.mrb[0].mxu0 %v634
      %v5765 = vpop.f32.mrb[0].mxu0
      %v5766 = vadd.f32 0.0, %v5765
      %v5767 = vpop.f32.mrb[0].mxu0
      %v5768 = vpop.f32.mrb[0].mxu0
      %v5769 = vadd.f32 0.0, %v5768
      %v5770 = vpop.f32.mrb[0].mxu0
      %5771 = vmatprep.mubr.bf16.mxu0 0
      %5772 = vmatmul.mubr.bf16.gmra.mrb[0].mxu0 %v637
      %v5773 = vpop.f32.mrb[0].mxu0
      %v5774 = vadd.f32 0.0, %v5773
      %v5775 = vpop.f32.mrb[0].mxu0
      %v5776 = vpop.f32.mrb[0].mxu0
      %v5777 = vadd.f32 0.0, %v5776
      %v5778 = vpop.f32.mrb[0].mxu0
      %5779 = vmatprep.mubr.bf16.mxu0 0
      %5780 = vmatmul.mubr.bf16.gmra.mrb[0].mxu0 %v640
      %v5781 = vpop.f32.mrb[0].mxu0
      %v5782 = vadd.f32 0.0, %v5781
      %v5783 = vpop.f32.mrb[0].mxu0
      %v5784 = vpop.f32.mrb[0].mxu0
      %v5785 = vadd.f32 0.0, %v5784
      %v5786 = vpop.f32.mrb[0].mxu0
      %5787 = vmatprep.mubr.bf16.mxu0 0
      %5788 = vmatmul.mubr.bf16.gmra.mrb[0].mxu0 %v643
      %v5789 = vpop.f32.mrb[0].mxu0
      %v5790 = vadd.f32 0.0, %v5789
      %v5791 = vpop.f32.mrb[0].mxu0
      %v5792 = vpop.f32.mrb[0].mxu0
      %v5793 = vadd.f32 0.0, %v5792
      %v5794 = vpop.f32.mrb[0].mxu0
      %5795 = vmatprep.mubr.bf16.mxu0 0
      %5796 = vmatmul.mubr.bf16.gmra.mrb[0].mxu0 %v646
      %v5797 = vpop.f32.mrb[0].mxu0
      %v5798 = vadd.f32 0.0, %v5797
      %v5799 = vpop.f32.mrb[0].mxu0
      %v5800 = vpop.f32.mrb[0].mxu0
      %v5801 = vadd.f32 0.0, %v5800
      %v5802 = vpop.f32.mrb[0].mxu0
      %5803 = vmatprep.mubr.bf16.mxu0 0
      %5804 = vmatmul.mubr.bf16.gmra.mrb[0].mxu0 %v649
      %v5805 = vpop.f32.mrb[0].mxu0
      %v5806 = vadd.f32 0.0, %v5805
      %v5807 = vpop.f32.mrb[0].mxu0
      %v5808 = vpop.f32.mrb[0].mxu0
      %v5809 = vadd.f32 0.0, %v5808
      %v5810 = vpop.f32.mrb[0].mxu0
      %5811 = vmatprep.mubr.bf16.mxu0 0
      %5812 = vmatmul.mubr.bf16.gmra.mrb[0].mxu0 %v652
      %v5813 = vpop.f32.mrb[0].mxu0
      %v5814 = vadd.f32 0.0, %v5813
      %v5815 = vpop.f32.mrb[0].mxu0
      %v5816 = vpop.f32.mrb[0].mxu0
      %v5817 = vadd.f32 0.0, %v5816
      %v5818 = vpop.f32.mrb[0].mxu0
      %5819 = vmatprep.mubr.bf16.mxu0 0
      %5820 = vmatmul.mubr.bf16.gmra.mrb[0].mxu0 %v655
      %v5821 = vpop.f32.mrb[0].mxu0
      %v5822 = vadd.f32 0.0, %v5821
      %v5823 = vpop.f32.mrb[0].mxu0
      %v5824 = vpop.f32.mrb[0].mxu0
      %v5825 = vadd.f32 0.0, %v5824
      %v5826 = vpop.f32.mrb[0].mxu0
      %5827 = vmatprep.mubr.bf16.mxu0 0
      %5828 = vmatmul.mubr.bf16.gmra.mrb[0].mxu0 %v658
      %v5829 = vpop.f32.mrb[0].mxu0
      %v5830 = vadd.f32 0.0, %v5829
      %v5831 = vpop.f32.mrb[0].mxu0
      %v5832 = vpop.f32.mrb[0].mxu0
      %v5833 = vadd.f32 0.0, %v5832
      %v5834 = vpop.f32.mrb[0].mxu0
      %5835 = vmatprep.mubr.bf16.mxu0 0
      %5836 = vmatmul.mubr.bf16.gmra.mrb[0].mxu0 %v661
      %v5837 = vpop.f32.mrb[0].mxu0
      %v5838 = vadd.f32 0.0, %v5837
      %v5839 = vpop.f32.mrb[0].mxu0
      %v5840 = vpop.f32.mrb[0].mxu0
      %v5841 = vadd.f32 0.0, %v5840
      %v5842 = vpop.f32.mrb[0].mxu0
      %5843 = vdwg.mxu0
      %v5844 = vld [vmem:[%s11] sm:$0x1]
      %v5845 = vld [vmem:[%s12] sm:$0x1]
      %v5846 = vsel %vm5086, %v5718, 0.0
      %v5847 = vsel %vm5086, %v5721, 0.0
      %v5848 = vadd.f32 %v5846, %v5847
      %v5849 = vsel %vm5086, %v5726, 0.0
      %v5850 = vadd.f32 %v5848, %v5849
      %v5851 = vsel %vm5086, %v5729, 0.0
      %v5852 = vadd.f32 %v5850, %v5851
      %v5853 = vsel %vm5086, %v5734, 0.0
      %v5854 = vadd.f32 %v5852, %v5853
      %v5855 = vsel %vm5086, %v5737, 0.0
      %v5856 = vadd.f32 %v5854, %v5855
      %v5857 = vsel %vm5086, %v5742, 0.0
      %v5858 = vadd.f32 %v5856, %v5857
      %v5859 = vsel %vm5086, %v5745, 0.0
      %v5860 = vadd.f32 %v5858, %v5859
      %v5861 = vsel %vm5086, %v5750, 0.0
      %v5862 = vadd.f32 %v5860, %v5861
      %v5863 = vsel %vm5086, %v5753, 0.0
      %v5864 = vadd.f32 %v5862, %v5863
      %v5865 = vsel %vm5086, %v5758, 0.0
      %v5866 = vadd.f32 %v5864, %v5865
      %v5867 = vsel %vm5086, %v5761, 0.0
      %v5868 = vadd.f32 %v5866, %v5867
      %v5869 = vsel %vm5086, %v5766, 0.0
      %v5870 = vadd.f32 %v5868, %v5869
      %v5871 = vsel %vm5086, %v5769, 0.0
      %v5872 = vadd.f32 %v5870, %v5871
      %v5873 = vsel %vm5086, %v5774, 0.0
      %v5874 = vadd.f32 %v5872, %v5873
      %v5875 = vsel %vm5086, %v5777, 0.0
      %v5876 = vadd.f32 %v5874, %v5875
      %v5877 = vsel %vm5086, %v5782, 0.0
      %v5878 = vadd.f32 %v5876, %v5877
      %v5879 = vsel %vm5086, %v5785, 0.0
      %v5880 = vadd.f32 %v5878, %v5879
      %v5881 = vsel %vm5086, %v5790, 0.0
      %v5882 = vadd.f32 %v5880, %v5881
      %v5883 = vsel %vm5086, %v5793, 0.0
      %v5884 = vadd.f32 %v5882, %v5883
      %v5885 = vsel %vm5086, %v5798, 0.0
      %v5886 = vadd.f32 %v5884, %v5885
      %v5887 = vsel %vm5086, %v5801, 0.0
      %v5888 = vadd.f32 %v5886, %v5887
      %v5889 = vsel %vm5086, %v5806, 0.0
      %v5890 = vadd.f32 %v5888, %v5889
      %v5891 = vsel %vm5086, %v5809, 0.0
      %v5892 = vadd.f32 %v5890, %v5891
      %v5893 = vsel %vm5086, %v5814, 0.0
      %v5894 = vadd.f32 %v5892, %v5893
      %v5895 = vsel %vm5086, %v5817, 0.0
      %v5896 = vadd.f32 %v5894, %v5895
      %v5897 = vsel %vm5086, %v5822, 0.0
      %v5898 = vadd.f32 %v5896, %v5897
      %v5899 = vsel %vm5086, %v5825, 0.0
      %v5900 = vadd.f32 %v5898, %v5899
      %v5901 = vsel %vm5086, %v5830, 0.0
      %v5902 = vadd.f32 %v5900, %v5901
      %v5903 = vsel %vm5086, %v5833, 0.0
      %v5904 = vadd.f32 %v5902, %v5903
      %v5905 = vsel %vm5086, %v5838, 0.0
      %v5906 = vadd.f32 %v5904, %v5905
      %v5907 = vsel %vm5086, %v5841, 0.0
      %v5908 = vadd.f32 %v5906, %v5907
      %v5909 = vrot.slane %v5908, 4
      %v5910 = vadd.f32 %v5908, %v5909
      %v5911 = vrot.slane %v5910, 2
      %v5912 = vadd.f32 %v5910, %v5911
      %v5913 = vrot.slane %v5912, 1
      %v5914 = vadd.f32 %v5912, %v5913
      %v5915 = vmul.f32 %v5718, %v5718
      %v5916 = vmul.f32 %v5721, %v5721
      %v5917 = vmul.f32 %v5726, %v5726
      %v5918 = vmul.f32 %v5729, %v5729
      %v5919 = vmul.f32 %v5734, %v5734
      %v5920 = vmul.f32 %v5737, %v5737
      %v5921 = vmul.f32 %v5742, %v5742
      %v5922 = vmul.f32 %v5745, %v5745
      %v5923 = vmul.f32 %v5750, %v5750
      %v5924 = vmul.f32 %v5753, %v5753
      %v5925 = vmul.f32 %v5758, %v5758
      %v5926 = vmul.f32 %v5761, %v5761
      %v5927 = vmul.f32 %v5766, %v5766
      %v5928 = vmul.f32 %v5769, %v5769
      %v5929 = vmul.f32 %v5774, %v5774
      %v5930 = vmul.f32 %v5777, %v5777
      %v5931 = vmul.f32 %v5782, %v5782
      %v5932 = vmul.f32 %v5785, %v5785
      %v5933 = vmul.f32 %v5790, %v5790
      %v5934 = vmul.f32 %v5793, %v5793
      %v5935 = vmul.f32 %v5798, %v5798
      %v5936 = vmul.f32 %v5801, %v5801
      %v5937 = vmul.f32 %v5806, %v5806
      %v5938 = vmul.f32 %v5809, %v5809
      %v5939 = vmul.f32 %v5814, %v5814
      %v5940 = vmul.f32 %v5817, %v5817
      %v5941 = vmul.f32 %v5822, %v5822
      %v5942 = vmul.f32 %v5825, %v5825
      %v5943 = vmul.f32 %v5830, %v5830
      %v5944 = vmul.f32 %v5833, %v5833
      %v5945 = vmul.f32 %v5838, %v5838
      %v5946 = vmul.f32 %v5841, %v5841
      %v5947 = vsel %vm5086, %v5915, 0.0
      %v5948 = vsel %vm5086, %v5916, 0.0
      %v5949 = vadd.f32 %v5947, %v5948
      %v5950 = vsel %vm5086, %v5917, 0.0
      %v5951 = vadd.f32 %v5949, %v5950
      %v5952 = vsel %vm5086, %v5918, 0.0
      %v5953 = vadd.f32 %v5951, %v5952
      %v5954 = vsel %vm5086, %v5919, 0.0
      %v5955 = vadd.f32 %v5953, %v5954
      %v5956 = vsel %vm5086, %v5920, 0.0
      %v5957 = vadd.f32 %v5955, %v5956
      %v5958 = vsel %vm5086, %v5921, 0.0
      %v5959 = vadd.f32 %v5957, %v5958
      %v5960 = vsel %vm5086, %v5922, 0.0
      %v5961 = vadd.f32 %v5959, %v5960
      %v5962 = vsel %vm5086, %v5923, 0.0
      %v5963 = vadd.f32 %v5961, %v5962
      %v5964 = vsel %vm5086, %v5924, 0.0
      %v5965 = vadd.f32 %v5963, %v5964
      %v5966 = vsel %vm5086, %v5925, 0.0
      %v5967 = vadd.f32 %v5965, %v5966
      %v5968 = vsel %vm5086, %v5926, 0.0
      %v5969 = vadd.f32 %v5967, %v5968
      %v5970 = vsel %vm5086, %v5927, 0.0
      %v5971 = vadd.f32 %v5969, %v5970
      %v5972 = vsel %vm5086, %v5928, 0.0
      %v5973 = vadd.f32 %v5971, %v5972
      %v5974 = vsel %vm5086, %v5929, 0.0
      %v5975 = vadd.f32 %v5973, %v5974
      %v5976 = vsel %vm5086, %v5930, 0.0
      %v5977 = vadd.f32 %v5975, %v5976
      %v5978 = vsel %vm5086, %v5931, 0.0
      %v5979 = vadd.f32 %v5977, %v5978
      %v5980 = vsel %vm5086, %v5932, 0.0
      %v5981 = vadd.f32 %v5979, %v5980
      %v5982 = vsel %vm5086, %v5933, 0.0
      %v5983 = vadd.f32 %v5981, %v5982
      %v5984 = vsel %vm5086, %v5934, 0.0
      %v5985 = vadd.f32 %v5983, %v5984
      %v5986 = vsel %vm5086, %v5935, 0.0
      %v5987 = vadd.f32 %v5985, %v5986
      %v5988 = vsel %vm5086, %v5936, 0.0
      %v5989 = vadd.f32 %v5987, %v5988
      %v5990 = vsel %vm5086, %v5937, 0.0
      %v5991 = vadd.f32 %v5989, %v5990
      %v5992 = vsel %vm5086, %v5938, 0.0
      %v5993 = vadd.f32 %v5991, %v5992
      %v5994 = vsel %vm5086, %v5939, 0.0
      %v5995 = vadd.f32 %v5993, %v5994
      %v5996 = vsel %vm5086, %v5940, 0.0
      %v5997 = vadd.f32 %v5995, %v5996
      %v5998 = vsel %vm5086, %v5941, 0.0
      %v5999 = vadd.f32 %v5997, %v5998
      %v6000 = vsel %vm5086, %v5942, 0.0
      %v6001 = vadd.f32 %v5999, %v6000
      %v6002 = vsel %vm5086, %v5943, 0.0
      %v6003 = vadd.f32 %v6001, %v6002
      %v6004 = vsel %vm5086, %v5944, 0.0
      %v6005 = vadd.f32 %v6003, %v6004
      %v6006 = vsel %vm5086, %v5945, 0.0
      %v6007 = vadd.f32 %v6005, %v6006
      %v6008 = vsel %vm5086, %v5946, 0.0
      %v6009 = vadd.f32 %v6007, %v6008
      %v6010 = vrot.slane %v6009, 4
      %v6011 = vadd.f32 %v6009, %v6010
      %v6012 = vrot.slane %v6011, 2
      %v6013 = vadd.f32 %v6011, %v6012
      %v6014 = vrot.slane %v6013, 1
      %v6015 = vadd.f32 %v6013, %v6014
      %v6016 = vmul.f32 %v5914, %v1296
      %v6017 = vmul.f32 %v6015, %v1296
      %v6018 = vmul.f32 %v6016, %v6016
      %v6019 = vsub.f32 %v6017, %v6018
      %v6020 = vadd.f32 %v6019, 1e-05
      %v6021 = vrsqrt.pop %v6020
      %v6022 = vsub.f32 %v5718, %v6016
      %v6023 = vsub.f32 %v5721, %v6016
      %v6024 = vsub.f32 %v5726, %v6016
      %v6025 = vsub.f32 %v5729, %v6016
      %v6026 = vsub.f32 %v5734, %v6016
      %v6027 = vsub.f32 %v5737, %v6016
      %v6028 = vsub.f32 %v5742, %v6016
      %v6029 = vsub.f32 %v5745, %v6016
      %v6030 = vsub.f32 %v5750, %v6016
      %v6031 = vsub.f32 %v5753, %v6016
      %v6032 = vsub.f32 %v5758, %v6016
      %v6033 = vsub.f32 %v5761, %v6016
      %v6034 = vsub.f32 %v5766, %v6016
      %v6035 = vsub.f32 %v5769, %v6016
      %v6036 = vsub.f32 %v5774, %v6016
      %v6037 = vsub.f32 %v5777, %v6016
      %v6038 = vsub.f32 %v5782, %v6016
      %v6039 = vsub.f32 %v5785, %v6016
      %v6040 = vsub.f32 %v5790, %v6016
      %v6041 = vsub.f32 %v5793, %v6016
      %v6042 = vsub.f32 %v5798, %v6016
      %v6043 = vsub.f32 %v5801, %v6016
      %v6044 = vsub.f32 %v5806, %v6016
      %v6045 = vsub.f32 %v5809, %v6016
      %v6046 = vsub.f32 %v5814, %v6016
      %v6047 = vsub.f32 %v5817, %v6016
      %v6048 = vsub.f32 %v5822, %v6016
      %v6049 = vsub.f32 %v5825, %v6016
      %v6050 = vsub.f32 %v5830, %v6016
      %v6051 = vsub.f32 %v5833, %v6016
      %v6052 = vsub.f32 %v5838, %v6016
      %v6053 = vsub.f32 %v5841, %v6016
      %v6054 = vmul.f32 %v6021, %v5844
      %v6055 = vlaneseq
      %v6056 = vshrl.u32 %v6055, 7
      %v6057 = vsub.s32 0, %v6056
      %v6058 = vrot.slane %v6054, %v6057
      %v6059 = vmul.f32 %v6022, %v6058
      %v6060 = vmul.f32 %v6023, %v6058
      %v6061 = vmul.f32 %v6024, %v6058
      %v6062 = vmul.f32 %v6025, %v6058
      %v6063 = vmul.f32 %v6026, %v6058
      %v6064 = vmul.f32 %v6027, %v6058
      %v6065 = vmul.f32 %v6028, %v6058
      %v6066 = vmul.f32 %v6029, %v6058
      %v6067 = vmul.f32 %v6030, %v6058
      %v6068 = vmul.f32 %v6031, %v6058
      %v6069 = vmul.f32 %v6032, %v6058
      %v6070 = vmul.f32 %v6033, %v6058
      %v6071 = vmul.f32 %v6034, %v6058
      %v6072 = vmul.f32 %v6035, %v6058
      %v6073 = vmul.f32 %v6036, %v6058
      %v6074 = vmul.f32 %v6037, %v6058
      %v6075 = vmul.f32 %v6038, %v6058
      %v6076 = vmul.f32 %v6039, %v6058
      %v6077 = vmul.f32 %v6040, %v6058
      %v6078 = vmul.f32 %v6041, %v6058
      %v6079 = vmul.f32 %v6042, %v6058
      %v6080 = vmul.f32 %v6043, %v6058
      %v6081 = vmul.f32 %v6044, %v6058
      %v6082 = vmul.f32 %v6045, %v6058
      %v6083 = vmul.f32 %v6046, %v6058
      %v6084 = vmul.f32 %v6047, %v6058
      %v6085 = vmul.f32 %v6048, %v6058
      %v6086 = vmul.f32 %v6049, %v6058
      %v6087 = vmul.f32 %v6050, %v6058
      %v6088 = vmul.f32 %v6051, %v6058
      %v6089 = vmul.f32 %v6052, %v6058
      %v6090 = vmul.f32 %v6053, %v6058
      %v6092 = vlaneseq
      %v6093 = vshrl.u32 %v6092, 7
      %v6094 = vsub.s32 0, %v6093
      %v6095 = vrot.slane %v5845, %v6094
      %v6097 = vadd.f32 %v6059, %v6095
      %v6098 = vadd.f32 %v6060, %v6095
      %v6099 = vadd.f32 %v6061, %v6095
      %v6100 = vadd.f32 %v6062, %v6095
      %v6101 = vadd.f32 %v6063, %v6095
      %v6102 = vadd.f32 %v6064, %v6095
      %v6103 = vadd.f32 %v6065, %v6095
      %v6104 = vadd.f32 %v6066, %v6095
      %v6105 = vadd.f32 %v6067, %v6095
      %v6106 = vadd.f32 %v6068, %v6095
      %v6107 = vadd.f32 %v6069, %v6095
      %v6108 = vadd.f32 %v6070, %v6095
      %v6109 = vadd.f32 %v6071, %v6095
      %v6110 = vadd.f32 %v6072, %v6095
      %v6111 = vadd.f32 %v6073, %v6095
      %v6112 = vadd.f32 %v6074, %v6095
      %v6113 = vadd.f32 %v6075, %v6095
      %v6114 = vadd.f32 %v6076, %v6095
      %v6115 = vadd.f32 %v6077, %v6095
      %v6116 = vadd.f32 %v6078, %v6095
      %v6117 = vadd.f32 %v6079, %v6095
      %v6118 = vadd.f32 %v6080, %v6095
      %v6119 = vadd.f32 %v6081, %v6095
      %v6120 = vadd.f32 %v6082, %v6095
      %v6121 = vadd.f32 %v6083, %v6095
      %v6122 = vadd.f32 %v6084, %v6095
      %v6123 = vadd.f32 %v6085, %v6095
      %v6124 = vadd.f32 %v6086, %v6095
      %v6125 = vadd.f32 %v6087, %v6095
      %v6126 = vadd.f32 %v6088, %v6095
      %v6127 = vadd.f32 %v6089, %v6095
      %v6128 = vadd.f32 %v6090, %v6095
      %v6129 = vadd.f32 %v6097, %v5635
      %v6130 = vadd.f32 %v6098, %v5636
      %v6131 = vadd.f32 %v6099, %v5637
      %v6132 = vadd.f32 %v6100, %v5638
      %v6133 = vadd.f32 %v6101, %v5639
      %v6134 = vadd.f32 %v6102, %v5640
      %v6135 = vadd.f32 %v6103, %v5641
      %v6136 = vadd.f32 %v6104, %v5642
      %v6137 = vadd.f32 %v6105, %v5643
      %v6138 = vadd.f32 %v6106, %v5644
      %v6139 = vadd.f32 %v6107, %v5645
      %v6140 = vadd.f32 %v6108, %v5646
      %v6141 = vadd.f32 %v6109, %v5647
      %v6142 = vadd.f32 %v6110, %v5648
      %v6143 = vadd.f32 %v6111, %v5649
      %v6144 = vadd.f32 %v6112, %v5650
      %v6145 = vadd.f32 %v6113, %v5651
      %v6146 = vadd.f32 %v6114, %v5652
      %v6147 = vadd.f32 %v6115, %v5653
      %v6148 = vadd.f32 %v6116, %v5654
      %v6149 = vadd.f32 %v6117, %v5655
      %v6150 = vadd.f32 %v6118, %v5656
      %v6151 = vadd.f32 %v6119, %v5657
      %v6152 = vadd.f32 %v6120, %v5658
      %v6153 = vadd.f32 %v6121, %v5659
      %v6154 = vadd.f32 %v6122, %v5660
      %v6155 = vadd.f32 %v6123, %v5661
      %v6156 = vadd.f32 %v6124, %v5662
      %v6157 = vadd.f32 %v6125, %v5663
      %v6158 = vadd.f32 %v6126, %v5664
      %v6159 = vadd.f32 %v6127, %v5665
      %v6160 = vadd.f32 %v6128, %v5666
      %v6161 = vmax.f32 %v6129, 0.0
      %v6162 = vmax.f32 %v6130, 0.0
      %v6163 = vmax.f32 %v6131, 0.0
      %v6164 = vmax.f32 %v6132, 0.0
      %v6165 = vmax.f32 %v6133, 0.0
      %v6166 = vmax.f32 %v6134, 0.0
      %v6167 = vmax.f32 %v6135, 0.0
      %v6168 = vmax.f32 %v6136, 0.0
      %v6169 = vmax.f32 %v6137, 0.0
      %v6170 = vmax.f32 %v6138, 0.0
      %v6171 = vmax.f32 %v6139, 0.0
      %v6172 = vmax.f32 %v6140, 0.0
      %v6173 = vmax.f32 %v6141, 0.0
      %v6174 = vmax.f32 %v6142, 0.0
      %v6175 = vmax.f32 %v6143, 0.0
      %v6176 = vmax.f32 %v6144, 0.0
      %v6177 = vmax.f32 %v6145, 0.0
      %v6178 = vmax.f32 %v6146, 0.0
      %v6179 = vmax.f32 %v6147, 0.0
      %v6180 = vmax.f32 %v6148, 0.0
      %v6181 = vmax.f32 %v6149, 0.0
      %v6182 = vmax.f32 %v6150, 0.0
      %v6183 = vmax.f32 %v6151, 0.0
      %v6184 = vmax.f32 %v6152, 0.0
      %v6185 = vmax.f32 %v6153, 0.0
      %v6186 = vmax.f32 %v6154, 0.0
      %v6187 = vmax.f32 %v6155, 0.0
      %v6188 = vmax.f32 %v6156, 0.0
      %v6189 = vmax.f32 %v6157, 0.0
      %v6190 = vmax.f32 %v6158, 0.0
      %v6191 = vmax.f32 %v6159, 0.0
      %v6192 = vmax.f32 %v6160, 0.0
      %6193 = vst.msk [vmem:[%s548] sm:$0xff] %vm5086, %v6161
      %6194 = vst.msk [vmem:[%s548 + $0x8] sm:$0xff] %vm5086, %v6162
      %6195 = vst.msk [vmem:[%s548 + $0x10] sm:$0xff] %vm5086, %v6163
      %6196 = vst.msk [vmem:[%s548 + $0x18] sm:$0xff] %vm5086, %v6164
      %6197 = vst.msk [vmem:[%s548 + $0x20] sm:$0xff] %vm5086, %v6165
      %6198 = vst.msk [vmem:[%s548 + $0x28] sm:$0xff] %vm5086, %v6166
      %6199 = vst.msk [vmem:[%s548 + $0x30] sm:$0xff] %vm5086, %v6167
      %6200 = vst.msk [vmem:[%s548 + $0x38] sm:$0xff] %vm5086, %v6168
      %6201 = vst.msk [vmem:[%s548 + $0x40] sm:$0xff] %vm5086, %v6169
      %6202 = vst.msk [vmem:[%s548 + $0x48] sm:$0xff] %vm5086, %v6170
      %6203 = vst.msk [vmem:[%s548 + $0x50] sm:$0xff] %vm5086, %v6171
      %6204 = vst.msk [vmem:[%s548 + $0x58] sm:$0xff] %vm5086, %v6172
      %6205 = vst.msk [vmem:[%s548 + $0x60] sm:$0xff] %vm5086, %v6173
      %6206 = vst.msk [vmem:[%s548 + $0x68] sm:$0xff] %vm5086, %v6174
      %6207 = vst.msk [vmem:[%s548 + $0x70] sm:$0xff] %vm5086, %v6175
      %6208 = vst.msk [vmem:[%s548 + $0x78] sm:$0xff] %vm5086, %v6176
      %6209 = vst.msk [vmem:[%s548 + $0x80] sm:$0xff] %vm5086, %v6177
      %6210 = vst.msk [vmem:[%s548 + $0x88] sm:$0xff] %vm5086, %v6178
      %6211 = vst.msk [vmem:[%s548 + $0x90] sm:$0xff] %vm5086, %v6179
      %6212 = vst.msk [vmem:[%s548 + $0x98] sm:$0xff] %vm5086, %v6180
      %6213 = vst.msk [vmem:[%s548 + $0xa0] sm:$0xff] %vm5086, %v6181
      %6214 = vst.msk [vmem:[%s548 + $0xa8] sm:$0xff] %vm5086, %v6182
      %6215 = vst.msk [vmem:[%s548 + $0xb0] sm:$0xff] %vm5086, %v6183
      %6216 = vst.msk [vmem:[%s548 + $0xb8] sm:$0xff] %vm5086, %v6184
      %6217 = vst.msk [vmem:[%s548 + $0xc0] sm:$0xff] %vm5086, %v6185
      %6218 = vst.msk [vmem:[%s548 + $0xc8] sm:$0xff] %vm5086, %v6186
      %6219 = vst.msk [vmem:[%s548 + $0xd0] sm:$0xff] %vm5086, %v6187
      %6220 = vst.msk [vmem:[%s548 + $0xd8] sm:$0xff] %vm5086, %v6188
      %6221 = vst.msk [vmem:[%s548 + $0xe0] sm:$0xff] %vm5086, %v6189
      %6222 = vst.msk [vmem:[%s548 + $0xe8] sm:$0xff] %vm5086, %v6190
      %6223 = vst.msk [vmem:[%s548 + $0xf0] sm:$0xff] %vm5086, %v6191
      %6224 = vst.msk [vmem:[%s548 + $0xf8] sm:$0xff] %vm5086, %v6192
      %p6225 = scmp.lt.s32.totalorder %s28, 1
      %s6226 = scalar_select %p6225, %s28, 1
      %s6227 = smul.addr %s6226, 32
      %s6228 = smul.addr %s6227, 8
      %s6229 = scalar_lea.vmem %s17, %s6228
      // Predicated region
      $region89: #{tpu_custom_call.1} parent=87 // pred_check
        %p6230 = pneg %p408
      $region90: #{tpu_custom_call.1} parent=87 // pred_check_branch
        %6232 = sbr.rel (%p6230) target = $region92
      $region91: #{tpu_custom_call.1} parent=87 // pred_region
        _
      $region92: #{tpu_custom_call.1} parent=87 // pred_fallthru
        _
    $region88: #{tpu_custom_call.1} parent=5 // pred_fallthru
      _
    %p6233 = scmp.le.s32.totalorder 2, %s23
    // Predicated region
    $region93: #{tpu_custom_call.1} parent=5 // pred_check
      %p6234 = pneg %p6233
    $region94: #{tpu_custom_call.1} parent=5 // pred_check_branch
      %6236 = sbr.rel (%p6234) target = $region96
    $region95: #{tpu_custom_call.1} parent=5 // pred_region
      %s6237 = ssub.s32 %s23, 2
      // Predicated region
      $region97: #{tpu_custom_call.1} parent=95 // pred_check
        %p6238 = pneg %p414
      $region98: #{tpu_custom_call.1} parent=95 // pred_check_branch
        %6240 = sbr.rel (%p6238) target = $region100
      $region99: #{tpu_custom_call.1} parent=95 // pred_region
        %p6241 = scmp.lt.s32.totalorder %s29, 1
        %s6242 = scalar_select %p6241, %s29, 1
        %s6243 = smul.addr %s6242, 32
        %s6244 = smul.addr %s6243, 8
        %s6245 = scalar_lea.vmem %s17, %s6244
      $region100: #{tpu_custom_call.1} parent=95 // pred_fallthru
        _
    $region96: #{tpu_custom_call.1} parent=5 // pred_fallthru
      _
  $region6: #{tpu_custom_call.1} parent=0 // loop_footer
    %s27 = sadd.s32 1, %s23
  $region7: #{tpu_custom_call.1} parent=0 // loop_footer_branch
    %22 = sbr.rel target = $region3
  $region8: #{tpu_custom_call.1} parent=0 // loop_exit
    _

</llo_original>
